<compile_context>
chip_gen: v6e
topology: v6e:2x2x1
jax: 0.10.0
libtpu: 0.0.40
codegen_flags: <defaults>
</compile_context>

<pallas_src>
import jax
import jax.numpy as jnp
from jax import lax
from jax.experimental import pallas as pl
from jax.experimental.pallas import tpu as pltpu

# ----------------------------------------------------------------------------
# Model hyper-parameters ("opt" values from the reference script).
# ----------------------------------------------------------------------------
LATENT_DIM = 32                       # opt.latent_dim
CHANNELS   = 1                        # opt.channels
IMG_SIZE   = 16                       # opt.img_size
IMG_SHAPE  = (CHANNELS, IMG_SIZE, IMG_SIZE)
OUT_DIM    = CHANNELS * IMG_SIZE * IMG_SIZE   # int(np.prod(img_shape)) = 256
HIDDEN     = (128, 256, 512, 1024)
DIMS       = (LATENT_DIM,) + HIDDEN + (OUT_DIM,)
BN_EPS     = 0.8                      # nn.BatchNorm1d(out_feat, 0.8) -> eps = 0.8

# Packed per-layer vector layout (all f32).  Every width is a multiple of 128,
# so every static slice below is lane-aligned (no masked loads).
# b2/b3/b4 are intentionally absent: training-mode BN cancels them exactly.
_VEC_LAYOUT = (
    ("s1", 128), ("b1", 128),
    ("s2", 256), ("g2", 256), ("be2", 256),
    ("s3", 512), ("g3", 512), ("be3", 512),
    ("s4", 1024), ("g4", 1024), ("be4", 1024),
    ("s5", OUT_DIM), ("b5", OUT_DIM),
)
_VEC_OFFSET = {}
_off = 0
for _name, _w in _VEC_LAYOUT:
    _VEC_OFFSET[_name] = (_off, _w)
    _off += _w
VEC_TOTAL = _off                       # 6144 = 48 * 128


# ----------------------------------------------------------------------------
# Math helpers.
# ----------------------------------------------------------------------------
def _leaky_relu(x, slope=0.2):
    return jnp.where(x > 0, x, slope * x)


# ----------------------------------------------------------------------------
# Fused kernel.
# ----------------------------------------------------------------------------
def generator_kernel(z_ref, w1_ref, w2_ref, w3_ref, w4_hbm, w5_hbm, vec_ref,
                     out_ref, w4_vmem, w5_vmem, dma_sems):
    # Kick off the two big late-layer weight DMAs immediately; they are not
    # needed until after three layers of matmul + BN + LeakyReLU compute, so
    # the HBM traffic overlaps that work instead of preceding it.
    w4_copy = pltpu.make_async_copy(w4_hbm, w4_vmem, dma_sems.at[0])
    w5_copy = pltpu.make_async_copy(w5_hbm, w5_vmem, dma_sems.at[1])
    w4_copy.start()
    w5_copy.start()

    def vec(name):
        off, width = _VEC_OFFSET[name]
        return vec_ref[:, off:off + width]

    def qdot(x, w_ref):
        # int8 weight codes (|code| <= 127) -> bf16 is exact; MXU matmul with
        # f32 accumulation.  The per-channel dequant scale is applied in the
        # epilogue (folded into BN for the normalized layers).
        w = w_ref[...].astype(jnp.bfloat16)
        return jnp.dot(x.astype(jnp.bfloat16), w,
                       preferred_element_type=jnp.float32)

    def bn_block(y, s, gamma, beta):
        # PyTorch BatchNorm1d (training mode, biased batch stats) applied to
        # a = y * s (+ const bias, which BN cancels exactly):
        #   BN(a) = gamma * (a - mean_a) * rsqrt(var_a + eps) + beta
        #         = (y - mean_y) * [gamma * s * rsqrt(var_y * s^2 + eps)] + beta
        # One-pass variance is fine here because eps = 0.8 dominates.
        mean = jnp.mean(y, axis=0, keepdims=True)
        mean_sq = jnp.mean(y * y, axis=0, keepdims=True)
        var = mean_sq - mean * mean
        scale = gamma * s * lax.rsqrt(var * (s * s) + BN_EPS)
        return (y - mean) * scale + beta

    # block(latent_dim, 128, normalize=False): Linear + LeakyReLU
    h = qdot(z_ref[...], w1_ref)
    h = _leaky_relu(h * vec("s1") + vec("b1"))

    # block(128, 256): Linear + BatchNorm1d(eps=0.8) + LeakyReLU (bias cancelled)
    h = _leaky_relu(bn_block(qdot(h, w2_ref), vec("s2"), vec("g2"), vec("be2")))

    # block(256, 512)
    h = _leaky_relu(bn_block(qdot(h, w3_ref), vec("s3"), vec("g3"), vec("be3")))

    # block(512, 1024): wait for W4 only now -- its DMA ran under layers 1-3.
    w4_copy.wait()
    h = _leaky_relu(bn_block(qdot(h, w4_vmem), vec("s4"), vec("g4"), vec("be4")))

    # Linear(1024, prod(img_shape)) + Tanh
    w5_copy.wait()
    h = qdot(h, w5_vmem)
    out_ref[...] = jnp.tanh(h * vec("s5") + vec("b5"))


# ----------------------------------------------------------------------------
# Wrapper.
# ----------------------------------------------------------------------------
@jax.jit
def generator_forward(z, weights_q, vecs):
    """z: (B, LATENT_DIM) f32, weights_q: 5 int8 (in,out) mats, vecs: (1, VEC_TOTAL) f32."""
    B = z.shape[0]
    w1, w2, w3, w4, w5 = weights_q

    def full(a):
        return pl.BlockSpec(a.shape, lambda: (0,) * a.ndim)

    weight_bytes = sum(int(w.size) for w in weights_q)            # int8 -> 1 B/elem
    flops = 2 * B * sum(a * b for a, b in zip(DIMS[:-1], DIMS[1:]))
    cost = pl.CostEstimate(
        flops=flops,
        transcendentals=B * OUT_DIM + sum(HIDDEN[1:]),            # tanh + rsqrt
        bytes_accessed=z.size * 4 + weight_bytes + vecs.size * 4 + B * OUT_DIM * 4,
    )

    # BatchNorm needs full-batch statistics, so the whole batch lives in one
    # grid point.  Small weights / z / vecs are auto-DMA'd before the body;
    # W4/W5 stay in HBM (pl.ANY) and are overlapped manually inside the kernel.
    flat = pl.pallas_call(
        generator_kernel,
        out_shape=jax.ShapeDtypeStruct((B, OUT_DIM), jnp.float32),
        grid=(),
        in_specs=[
            full(z), full(w1), full(w2), full(w3),
            pl.BlockSpec(memory_space=pl.ANY),     # W4 (raw HBM ref)
            pl.BlockSpec(memory_space=pl.ANY),     # W5 (raw HBM ref)
            full(vecs),
        ],
        out_specs=pl.BlockSpec((B, OUT_DIM), lambda: (0, 0)),
        scratch_shapes=[
            pltpu.VMEM((HIDDEN[2], HIDDEN[3]), jnp.int8),   # W4 landing buffer
            pltpu.VMEM((HIDDEN[3], OUT_DIM), jnp.int8),     # W5 landing buffer
            pltpu.SemaphoreType.DMA((2,)),
        ],
        cost_estimate=cost,
        compiler_params=pltpu.CompilerParams(vmem_limit_bytes=16 << 20),
    )(z, w1, w2, w3, w4, w5, vecs)

    # img = img.view(img.size(0), *img_shape)   (glue reshape, not the hot path)
    return flat.reshape(B, *IMG_SHAPE)


# ----------------------------------------------------------------------------
# Parameters (deterministic, PyTorch-default-like ranges), int8-quantized
# weights with per-output-channel scales.
# ----------------------------------------------------------------------------
def init_params(key):
    keys = jax.random.split(key, 2 * (len(DIMS) - 1))
    weights_q = []
    vec_parts = {}
    dropped_biases = {}    # b2/b3/b4: cancelled by training-mode BN; kept for the reference only
    ki = 0
    for li, (fan_in, fan_out) in enumerate(zip(DIMS[:-1], DIMS[1:])):
        bound = 1.0 / float(fan_in) ** 0.5
        w = jax.random.uniform(keys[ki], (fan_in, fan_out), jnp.float32, -bound, bound)
        b = jax.random.uniform(keys[ki + 1], (1, fan_out), jnp.float32, -bound, bound)
        ki += 2
        # Symmetric per-output-channel int8 quantization.
        scale = jnp.maximum(jnp.max(jnp.abs(w), axis=0, keepdims=True), 1e-12) / 127.0
        w_q = jnp.clip(jnp.round(w / scale), -127, 127).astype(jnp.int8)
        weights_q.append(w_q)
        vec_parts[f"s{li + 1}"] = scale
        if li in (0, 4):                 # layers not followed by BatchNorm keep their bias
            vec_parts[f"b{li + 1}"] = b
        else:                            # layers followed by BatchNorm1d: bias cancels
            dropped_biases[f"b{li + 1}"] = b
            vec_parts[f"g{li + 1}"] = jnp.ones((1, fan_out), jnp.float32)    # PyTorch BN defaults
            vec_parts[f"be{li + 1}"] = jnp.zeros((1, fan_out), jnp.float32)
    vecs = jnp.concatenate([vec_parts[name] for name, _ in _VEC_LAYOUT], axis=1)
    assert vecs.shape == (1, VEC_TOTAL)
    return tuple(weights_q), vecs, dropped_biases


# ----------------------------------------------------------------------------
# Pure-JAX reference: full PyTorch forward (including the b2/b3/b4 bias adds
# and the standard un-folded BatchNorm) on the same quantized weights.
# ----------------------------------------------------------------------------
def generator_reference(z, weights_q, vecs, dropped_biases):
    def vec(name):
        off, width = _VEC_OFFSET[name]
        return vecs[:, off:off + width]

    def linear(x, wq, s, b):
        # x @ (wq * s) + b, computed as (x @ wq) * s + b (identical in real arithmetic)
        y = jnp.dot(x.astype(jnp.bfloat16), wq.astype(jnp.bfloat16),
                    preferred_element_type=jnp.float32)
        return y * s + b

    def bn(a, gamma, beta):
        mean = jnp.mean(a, axis=0, keepdims=True)
        var = jnp.mean((a - mean) ** 2, axis=0, keepdims=True)   # biased, training-mode
        return gamma * (a - mean) * lax.rsqrt(var + BN_EPS) + beta

    h = _leaky_relu(linear(z, weights_q[0], vec("s1"), vec("b1")))
    h = _leaky_relu(bn(linear(h, weights_q[1], vec("s2"), dropped_biases["b2"]),
                       vec("g2"), vec("be2")))
    h = _leaky_relu(bn(linear(h, weights_q[2], vec("s3"), dropped_biases["b3"]),
                       vec("g3"), vec("be3")))
    h = _leaky_relu(bn(linear(h, weights_q[3], vec("s4"), dropped_biases["b4"]),
                       vec("g4"), vec("be4")))
    h = jnp.tanh(linear(h, weights_q[4], vec("s5"), vec("b5")))
    return h.reshape(z.shape[0], *IMG_SHAPE)


if __name__ == "__main__":
    key = jax.random.PRNGKey(0)
    pkey, zkey = jax.random.split(key)

    weights_q, vecs, dropped_biases = init_params(pkey)

    # Batch large enough to amortize the fixed weight-DMA cost (per perf review),
    # still tiny in absolute terms (z is 256x32 f32 = 32 KB).
    B = 256
    z = jax.random.normal(zkey, (B, LATENT_DIM), jnp.float32)

    img = generator_forward(z, weights_q, vecs)
    jax.block_until_ready(img)

    assert img.shape == (B, CHANNELS, IMG_SIZE, IMG_SIZE), img.shape
    assert img.dtype == jnp.float32
    assert bool(jnp.all(jnp.isfinite(img)))

    ref = generator_reference(z, weights_q, vecs, dropped_biases)
    assert bool(jnp.allclose(img, ref, rtol=2e-2, atol=2e-2)), (
        float(jnp.max(jnp.abs(img - ref))))

    print("KERNEL_OK")
</pallas_src>

<mosaic_0001>
module attributes {stable_mosaic.version = 11 : i64} {
  func.func @generator_kernel(%arg0: memref<256x32xf32, #tpu.memory_space<vmem>>, %arg1: memref<32x128xi8, #tpu.memory_space<vmem>>, %arg2: memref<128x256xi8, #tpu.memory_space<vmem>>, %arg3: memref<256x512xi8, #tpu.memory_space<vmem>>, %arg4: memref<512x1024xi8, #tpu.memory_space<any>>, %arg5: memref<1024x256xi8, #tpu.memory_space<any>>, %arg6: memref<1x6144xf32, #tpu.memory_space<vmem>>, %arg7: memref<256x256xf32, #tpu.memory_space<vmem>>, %arg8: memref<512x1024xi8, #tpu.memory_space<vmem>>, %arg9: memref<1024x256xi8, #tpu.memory_space<vmem>>, %arg10: memref<2x!tpu.dma_semaphore, #tpu.memory_space<semaphore_mem>>) attributes {dimension_semantics = [], scalar_prefetch = 0 : i64, scratch_operands = 3 : i64, tpu.core_type = #tpu.core_type<tc>} {
    %c0_i32 = arith.constant 0 : i32
    %0 = tpu.memref_slice %arg10[%c0_i32] : memref<2x!tpu.dma_semaphore, #tpu.memory_space<semaphore_mem>> -> memref<1x!tpu.dma_semaphore, #tpu.memory_space<semaphore_mem>>
    %1 = tpu.memref_squeeze %0 : memref<1x!tpu.dma_semaphore, #tpu.memory_space<semaphore_mem>> -> memref<!tpu.dma_semaphore, #tpu.memory_space<semaphore_mem>>
    tpu.enqueue_dma source(%arg4 : memref<512x1024xi8, #tpu.memory_space<any>>) target(%arg8 : memref<512x1024xi8, #tpu.memory_space<vmem>>) target_semaphore(%1 : memref<!tpu.dma_semaphore, #tpu.memory_space<semaphore_mem>>)
    %c1_i32 = arith.constant 1 : i32
    %2 = tpu.memref_slice %arg10[%c1_i32] : memref<2x!tpu.dma_semaphore, #tpu.memory_space<semaphore_mem>> -> memref<1x!tpu.dma_semaphore, #tpu.memory_space<semaphore_mem>>
    %3 = tpu.memref_squeeze %2 : memref<1x!tpu.dma_semaphore, #tpu.memory_space<semaphore_mem>> -> memref<!tpu.dma_semaphore, #tpu.memory_space<semaphore_mem>>
    tpu.enqueue_dma source(%arg5 : memref<1024x256xi8, #tpu.memory_space<any>>) target(%arg9 : memref<1024x256xi8, #tpu.memory_space<vmem>>) target_semaphore(%3 : memref<!tpu.dma_semaphore, #tpu.memory_space<semaphore_mem>>)
    %c0 = arith.constant 0 : index
    %c0_0 = arith.constant 0 : index
    %4 = vector.load %arg0[%c0, %c0_0] : memref<256x32xf32, #tpu.memory_space<vmem>>, vector<256x32xf32>
    %c0_1 = arith.constant 0 : index
    %c0_2 = arith.constant 0 : index
    %5 = vector.load %arg1[%c0_1, %c0_2] : memref<32x128xi8, #tpu.memory_space<vmem>>, vector<32x128xi8>
    %6 = arith.sitofp %5 : vector<32x128xi8> to vector<32x128xbf16>
    %7 = arith.truncf %4 : vector<256x32xf32> to vector<256x32xbf16>
    %cst = arith.constant dense<0.000000e+00> : vector<256x128xf32>
    %8 = tpu.matmul %7, %6, %cst {dimension_numbers = #tpu.dot_dimension_numbers<[1], [0], [0], [1], [0, 0, 1, 1], [], []>} : vector<256x32xbf16>, vector<32x128xbf16>, vector<256x128xf32> -> vector<256x128xf32>
    %c0_3 = arith.constant 0 : index
    %c0_4 = arith.constant 0 : index
    %9 = vector.load %arg6[%c0_3, %c0_4] : memref<1x6144xf32, #tpu.memory_space<vmem>>, vector<1x128xf32>
    %10 = vector.broadcast %9 : vector<1x128xf32> to vector<256x128xf32>
    %11 = arith.mulf %8, %10 : vector<256x128xf32>
    %c0_5 = arith.constant 0 : index
    %c128 = arith.constant 128 : index
    %12 = vector.load %arg6[%c0_5, %c128] : memref<1x6144xf32, #tpu.memory_space<vmem>>, vector<1x128xf32>
    %13 = vector.broadcast %12 : vector<1x128xf32> to vector<256x128xf32>
    %14 = arith.addf %11, %13 : vector<256x128xf32>
    %cst_6 = arith.constant 0.000000e+00 : f32
    %15 = vector.broadcast %cst_6 : f32 to vector<256x128xf32>
    %16 = arith.cmpf ogt, %14, %15 : vector<256x128xf32>
    %cst_7 = arith.constant 2.000000e-01 : f32
    %17 = vector.broadcast %cst_7 : f32 to vector<256x128xf32>
    %18 = arith.mulf %17, %14 : vector<256x128xf32>
    %19 = arith.select %16, %14, %18 : vector<256x128xi1>, vector<256x128xf32>
    %c0_8 = arith.constant 0 : index
    %c0_9 = arith.constant 0 : index
    %20 = vector.load %arg2[%c0_8, %c0_9] : memref<128x256xi8, #tpu.memory_space<vmem>>, vector<128x256xi8>
    %21 = arith.sitofp %20 : vector<128x256xi8> to vector<128x256xbf16>
    %22 = arith.truncf %19 : vector<256x128xf32> to vector<256x128xbf16>
    %cst_10 = arith.constant dense<0.000000e+00> : vector<256x256xf32>
    %23 = tpu.matmul %22, %21, %cst_10 {dimension_numbers = #tpu.dot_dimension_numbers<[1], [0], [0], [1], [0, 0, 1, 1], [], []>} : vector<256x128xbf16>, vector<128x256xbf16>, vector<256x256xf32> -> vector<256x256xf32>
    %c0_11 = arith.constant 0 : index
    %c256 = arith.constant 256 : index
    %24 = vector.load %arg6[%c0_11, %c256] : memref<1x6144xf32, #tpu.memory_space<vmem>>, vector<1x256xf32>
    %c0_12 = arith.constant 0 : index
    %c512 = arith.constant 512 : index
    %25 = vector.load %arg6[%c0_12, %c512] : memref<1x6144xf32, #tpu.memory_space<vmem>>, vector<1x256xf32>
    %c0_13 = arith.constant 0 : index
    %c768 = arith.constant 768 : index
    %26 = vector.load %arg6[%c0_13, %c768] : memref<1x6144xf32, #tpu.memory_space<vmem>>, vector<1x256xf32>
    %cst_14 = arith.constant dense<0.000000e+00> : vector<256xf32>
    %27 = vector.multi_reduction <add>, %23, %cst_14 [0] : vector<256x256xf32> to vector<256xf32>
    %28 = vector.shape_cast %27 : vector<256xf32> to vector<1x256xf32>
    %cst_15 = arith.constant 2.560000e+02 : f32
    %29 = vector.broadcast %cst_15 : f32 to vector<1x256xf32>
    %30 = arith.divf %28, %29 : vector<1x256xf32>
    %31 = arith.mulf %23, %23 : vector<256x256xf32>
    %cst_16 = arith.constant dense<0.000000e+00> : vector<256xf32>
    %32 = vector.multi_reduction <add>, %31, %cst_16 [0] : vector<256x256xf32> to vector<256xf32>
    %33 = vector.shape_cast %32 : vector<256xf32> to vector<1x256xf32>
    %cst_17 = arith.constant 2.560000e+02 : f32
    %34 = vector.broadcast %cst_17 : f32 to vector<1x256xf32>
    %35 = arith.divf %33, %34 : vector<1x256xf32>
    %36 = arith.mulf %30, %30 : vector<1x256xf32>
    %37 = arith.subf %35, %36 : vector<1x256xf32>
    %38 = arith.mulf %25, %24 : vector<1x256xf32>
    %39 = arith.mulf %24, %24 : vector<1x256xf32>
    %40 = arith.mulf %37, %39 : vector<1x256xf32>
    %cst_18 = arith.constant 8.000000e-01 : f32
    %41 = vector.broadcast %cst_18 : f32 to vector<1x256xf32>
    %42 = arith.addf %40, %41 : vector<1x256xf32>
    %43 = math.rsqrt %42 : vector<1x256xf32>
    %44 = arith.mulf %38, %43 : vector<1x256xf32>
    %45 = vector.broadcast %30 : vector<1x256xf32> to vector<256x256xf32>
    %46 = arith.subf %23, %45 : vector<256x256xf32>
    %47 = vector.broadcast %44 : vector<1x256xf32> to vector<256x256xf32>
    %48 = arith.mulf %46, %47 : vector<256x256xf32>
    %49 = vector.broadcast %26 : vector<1x256xf32> to vector<256x256xf32>
    %50 = arith.addf %48, %49 : vector<256x256xf32>
    %cst_19 = arith.constant 0.000000e+00 : f32
    %51 = vector.broadcast %cst_19 : f32 to vector<256x256xf32>
    %52 = arith.cmpf ogt, %50, %51 : vector<256x256xf32>
    %cst_20 = arith.constant 2.000000e-01 : f32
    %53 = vector.broadcast %cst_20 : f32 to vector<256x256xf32>
    %54 = arith.mulf %53, %50 : vector<256x256xf32>
    %55 = arith.select %52, %50, %54 : vector<256x256xi1>, vector<256x256xf32>
    %c0_21 = arith.constant 0 : index
    %c0_22 = arith.constant 0 : index
    %56 = vector.load %arg3[%c0_21, %c0_22] : memref<256x512xi8, #tpu.memory_space<vmem>>, vector<256x512xi8>
    %57 = arith.sitofp %56 : vector<256x512xi8> to vector<256x512xbf16>
    %58 = arith.truncf %55 : vector<256x256xf32> to vector<256x256xbf16>
    %cst_23 = arith.constant dense<0.000000e+00> : vector<256x512xf32>
    %59 = tpu.matmul %58, %57, %cst_23 {dimension_numbers = #tpu.dot_dimension_numbers<[1], [0], [0], [1], [0, 0, 1, 1], [], []>} : vector<256x256xbf16>, vector<256x512xbf16>, vector<256x512xf32> -> vector<256x512xf32>
    %c0_24 = arith.constant 0 : index
    %c1024 = arith.constant 1024 : index
    %60 = vector.load %arg6[%c0_24, %c1024] : memref<1x6144xf32, #tpu.memory_space<vmem>>, vector<1x512xf32>
    %c0_25 = arith.constant 0 : index
    %c1536 = arith.constant 1536 : index
    %61 = vector.load %arg6[%c0_25, %c1536] : memref<1x6144xf32, #tpu.memory_space<vmem>>, vector<1x512xf32>
    %c0_26 = arith.constant 0 : index
    %c2048 = arith.constant 2048 : index
    %62 = vector.load %arg6[%c0_26, %c2048] : memref<1x6144xf32, #tpu.memory_space<vmem>>, vector<1x512xf32>
    %cst_27 = arith.constant dense<0.000000e+00> : vector<512xf32>
    %63 = vector.multi_reduction <add>, %59, %cst_27 [0] : vector<256x512xf32> to vector<512xf32>
    %64 = vector.shape_cast %63 : vector<512xf32> to vector<1x512xf32>
    %cst_28 = arith.constant 2.560000e+02 : f32
    %65 = vector.broadcast %cst_28 : f32 to vector<1x512xf32>
    %66 = arith.divf %64, %65 : vector<1x512xf32>
    %67 = arith.mulf %59, %59 : vector<256x512xf32>
    %cst_29 = arith.constant dense<0.000000e+00> : vector<512xf32>
    %68 = vector.multi_reduction <add>, %67, %cst_29 [0] : vector<256x512xf32> to vector<512xf32>
    %69 = vector.shape_cast %68 : vector<512xf32> to vector<1x512xf32>
    %cst_30 = arith.constant 2.560000e+02 : f32
    %70 = vector.broadcast %cst_30 : f32 to vector<1x512xf32>
    %71 = arith.divf %69, %70 : vector<1x512xf32>
    %72 = arith.mulf %66, %66 : vector<1x512xf32>
    %73 = arith.subf %71, %72 : vector<1x512xf32>
    %74 = arith.mulf %61, %60 : vector<1x512xf32>
    %75 = arith.mulf %60, %60 : vector<1x512xf32>
    %76 = arith.mulf %73, %75 : vector<1x512xf32>
    %cst_31 = arith.constant 8.000000e-01 : f32
    %77 = vector.broadcast %cst_31 : f32 to vector<1x512xf32>
    %78 = arith.addf %76, %77 : vector<1x512xf32>
    %79 = math.rsqrt %78 : vector<1x512xf32>
    %80 = arith.mulf %74, %79 : vector<1x512xf32>
    %81 = vector.broadcast %66 : vector<1x512xf32> to vector<256x512xf32>
    %82 = arith.subf %59, %81 : vector<256x512xf32>
    %83 = vector.broadcast %80 : vector<1x512xf32> to vector<256x512xf32>
    %84 = arith.mulf %82, %83 : vector<256x512xf32>
    %85 = vector.broadcast %62 : vector<1x512xf32> to vector<256x512xf32>
    %86 = arith.addf %84, %85 : vector<256x512xf32>
    %cst_32 = arith.constant 0.000000e+00 : f32
    %87 = vector.broadcast %cst_32 : f32 to vector<256x512xf32>
    %88 = arith.cmpf ogt, %86, %87 : vector<256x512xf32>
    %cst_33 = arith.constant 2.000000e-01 : f32
    %89 = vector.broadcast %cst_33 : f32 to vector<256x512xf32>
    %90 = arith.mulf %89, %86 : vector<256x512xf32>
    %91 = arith.select %88, %86, %90 : vector<256x512xi1>, vector<256x512xf32>
    %c0_i32_34 = arith.constant 0 : i32
    %92 = tpu.memref_slice %arg10[%c0_i32_34] : memref<2x!tpu.dma_semaphore, #tpu.memory_space<semaphore_mem>> -> memref<1x!tpu.dma_semaphore, #tpu.memory_space<semaphore_mem>>
    %93 = tpu.memref_squeeze %92 : memref<1x!tpu.dma_semaphore, #tpu.memory_space<semaphore_mem>> -> memref<!tpu.dma_semaphore, #tpu.memory_space<semaphore_mem>>
    tpu.wait_dma2 semaphore(%93 : memref<!tpu.dma_semaphore, #tpu.memory_space<semaphore_mem>>) src(%arg4 : memref<512x1024xi8, #tpu.memory_space<any>>) dst(%arg8 : memref<512x1024xi8, #tpu.memory_space<vmem>>)
    %c0_35 = arith.constant 0 : index
    %c0_36 = arith.constant 0 : index
    %94 = vector.load %arg8[%c0_35, %c0_36] : memref<512x1024xi8, #tpu.memory_space<vmem>>, vector<512x1024xi8>
    %95 = arith.sitofp %94 : vector<512x1024xi8> to vector<512x1024xbf16>
    %96 = arith.truncf %91 : vector<256x512xf32> to vector<256x512xbf16>
    %cst_37 = arith.constant dense<0.000000e+00> : vector<256x1024xf32>
    %97 = tpu.matmul %96, %95, %cst_37 {dimension_numbers = #tpu.dot_dimension_numbers<[1], [0], [0], [1], [0, 0, 1, 1], [], []>} : vector<256x512xbf16>, vector<512x1024xbf16>, vector<256x1024xf32> -> vector<256x1024xf32>
    %c0_38 = arith.constant 0 : index
    %c2560 = arith.constant 2560 : index
    %98 = vector.load %arg6[%c0_38, %c2560] : memref<1x6144xf32, #tpu.memory_space<vmem>>, vector<1x1024xf32>
    %c0_39 = arith.constant 0 : index
    %c3584 = arith.constant 3584 : index
    %99 = vector.load %arg6[%c0_39, %c3584] : memref<1x6144xf32, #tpu.memory_space<vmem>>, vector<1x1024xf32>
    %c0_40 = arith.constant 0 : index
    %c4608 = arith.constant 4608 : index
    %100 = vector.load %arg6[%c0_40, %c4608] : memref<1x6144xf32, #tpu.memory_space<vmem>>, vector<1x1024xf32>
    %cst_41 = arith.constant dense<0.000000e+00> : vector<1024xf32>
    %101 = vector.multi_reduction <add>, %97, %cst_41 [0] : vector<256x1024xf32> to vector<1024xf32>
    %102 = vector.shape_cast %101 : vector<1024xf32> to vector<1x1024xf32>
    %cst_42 = arith.constant 2.560000e+02 : f32
    %103 = vector.broadcast %cst_42 : f32 to vector<1x1024xf32>
    %104 = arith.divf %102, %103 : vector<1x1024xf32>
    %105 = arith.mulf %97, %97 : vector<256x1024xf32>
    %cst_43 = arith.constant dense<0.000000e+00> : vector<1024xf32>
    %106 = vector.multi_reduction <add>, %105, %cst_43 [0] : vector<256x1024xf32> to vector<1024xf32>
    %107 = vector.shape_cast %106 : vector<1024xf32> to vector<1x1024xf32>
    %cst_44 = arith.constant 2.560000e+02 : f32
    %108 = vector.broadcast %cst_44 : f32 to vector<1x1024xf32>
    %109 = arith.divf %107, %108 : vector<1x1024xf32>
    %110 = arith.mulf %104, %104 : vector<1x1024xf32>
    %111 = arith.subf %109, %110 : vector<1x1024xf32>
    %112 = arith.mulf %99, %98 : vector<1x1024xf32>
    %113 = arith.mulf %98, %98 : vector<1x1024xf32>
    %114 = arith.mulf %111, %113 : vector<1x1024xf32>
    %cst_45 = arith.constant 8.000000e-01 : f32
    %115 = vector.broadcast %cst_45 : f32 to vector<1x1024xf32>
    %116 = arith.addf %114, %115 : vector<1x1024xf32>
    %117 = math.rsqrt %116 : vector<1x1024xf32>
    %118 = arith.mulf %112, %117 : vector<1x1024xf32>
    %119 = vector.broadcast %104 : vector<1x1024xf32> to vector<256x1024xf32>
    %120 = arith.subf %97, %119 : vector<256x1024xf32>
    %121 = vector.broadcast %118 : vector<1x1024xf32> to vector<256x1024xf32>
    %122 = arith.mulf %120, %121 : vector<256x1024xf32>
    %123 = vector.broadcast %100 : vector<1x1024xf32> to vector<256x1024xf32>
    %124 = arith.addf %122, %123 : vector<256x1024xf32>
    %cst_46 = arith.constant 0.000000e+00 : f32
    %125 = vector.broadcast %cst_46 : f32 to vector<256x1024xf32>
    %126 = arith.cmpf ogt, %124, %125 : vector<256x1024xf32>
    %cst_47 = arith.constant 2.000000e-01 : f32
    %127 = vector.broadcast %cst_47 : f32 to vector<256x1024xf32>
    %128 = arith.mulf %127, %124 : vector<256x1024xf32>
    %129 = arith.select %126, %124, %128 : vector<256x1024xi1>, vector<256x1024xf32>
    %c1_i32_48 = arith.constant 1 : i32
    %130 = tpu.memref_slice %arg10[%c1_i32_48] : memref<2x!tpu.dma_semaphore, #tpu.memory_space<semaphore_mem>> -> memref<1x!tpu.dma_semaphore, #tpu.memory_space<semaphore_mem>>
    %131 = tpu.memref_squeeze %130 : memref<1x!tpu.dma_semaphore, #tpu.memory_space<semaphore_mem>> -> memref<!tpu.dma_semaphore, #tpu.memory_space<semaphore_mem>>
    tpu.wait_dma2 semaphore(%131 : memref<!tpu.dma_semaphore, #tpu.memory_space<semaphore_mem>>) src(%arg5 : memref<1024x256xi8, #tpu.memory_space<any>>) dst(%arg9 : memref<1024x256xi8, #tpu.memory_space<vmem>>)
    %c0_49 = arith.constant 0 : index
    %c0_50 = arith.constant 0 : index
    %132 = vector.load %arg9[%c0_49, %c0_50] : memref<1024x256xi8, #tpu.memory_space<vmem>>, vector<1024x256xi8>
    %133 = arith.sitofp %132 : vector<1024x256xi8> to vector<1024x256xbf16>
    %134 = arith.truncf %129 : vector<256x1024xf32> to vector<256x1024xbf16>
    %cst_51 = arith.constant dense<0.000000e+00> : vector<256x256xf32>
    %135 = tpu.matmul %134, %133, %cst_51 {dimension_numbers = #tpu.dot_dimension_numbers<[1], [0], [0], [1], [0, 0, 1, 1], [], []>} : vector<256x1024xbf16>, vector<1024x256xbf16>, vector<256x256xf32> -> vector<256x256xf32>
    %c0_52 = arith.constant 0 : index
    %c5632 = arith.constant 5632 : index
    %136 = vector.load %arg6[%c0_52, %c5632] : memref<1x6144xf32, #tpu.memory_space<vmem>>, vector<1x256xf32>
    %137 = vector.broadcast %136 : vector<1x256xf32> to vector<256x256xf32>
    %138 = arith.mulf %135, %137 : vector<256x256xf32>
    %c0_53 = arith.constant 0 : index
    %c5888 = arith.constant 5888 : index
    %139 = vector.load %arg6[%c0_53, %c5888] : memref<1x6144xf32, #tpu.memory_space<vmem>>, vector<1x256xf32>
    %140 = vector.broadcast %139 : vector<1x256xf32> to vector<256x256xf32>
    %141 = arith.addf %138, %140 : vector<256x256xf32>
    %142 = math.tanh %141 : vector<256x256xf32>
    %c0_54 = arith.constant 0 : index
    %c0_55 = arith.constant 0 : index
    %143 = vector.load %arg7[%c0_54, %c0_55] : memref<256x256xf32, #tpu.memory_space<vmem>>, vector<256x256xf32>
    tpu.vector_store %arg7[%c0_54, %c0_55], %142 {strides = array<i32>} : memref<256x256xf32, #tpu.memory_space<vmem>>, vector<256x256xf32>,
    return
  }
}

</mosaic_0001>

<llo_original>
// kernel: generator_forward.1
$region0: #{generator_forward.1}
  #allocation0 [shape = 'u32[]', space=smem, size = 0x4, offset = 0x4, fixed_abs, tag = 'smem constant byte address 0x4 - core index']
  #allocation1 [shape = 'u32[144,128]{1,0:T(1,128)}', space=vmem, size = 0x12000, scoped, tag = 'internal scratch']
  #allocation2 [shape = 's8[512,1024]{1,0:T(32,128)(4,1)}', space=vmem, size = 0x80000, scoped, tag = 'scratch operand']
  #allocation3 [shape = 's8[1024,256]{1,0:T(32,128)(4,1)}', space=vmem, size = 0x40000, scoped, tag = 'scratch operand']
  #allocation4 [shape = 's32[2]{0}', space=sflag, size = 0x8, scoped, tag = 'scratch operand']
  #allocation9 [shape = 's32[]', space=sflag, size = 0x4, offset = 0, fixed_abs, tag = 'sflag constant byte address 0x0 - dummy sync flag']
  #allocation10 [shape = 's32[]', space=sflag, size = 0x4, offset = 0, fixed_abs, tag = 'sflag constant byte address 0x0 - dummy sync flag']
  #allocation11 [shape = 'u32[]', space=smem, size = 0x4, offset = 0x44, fixed_abs, tag = 'smem constant byte address 0x44 - assertion arg 0']
  #allocation12 [shape = 'u32[]', space=smem, size = 0x4, offset = 0x48, fixed_abs, tag = 'smem constant byte address 0x48 - assertion arg 1']
  #allocation13 [shape = 's32[]', space=sflag, size = 0x4, offset = 0, fixed_abs, tag = 'sflag constant byte address 0x0 - dummy sync flag']
  #allocation14 [shape = 's32[]', space=sflag, size = 0x4, offset = 0, fixed_abs, tag = 'sflag constant byte address 0x0 - dummy sync flag']
  %s0 = inlined_call_operand.vmem [shape: f32[256,32], index: 0, kind: input, shape index: {}]
  %s1 = inlined_call_operand.hbm [shape: s8[32,128], index: 1, kind: input, shape index: {}]
  %s2 = inlined_call_operand.vmem [shape: s8[128,256], index: 2, kind: input, shape index: {}]
  %s3 = inlined_call_operand.vmem [shape: s8[256,512], index: 3, kind: input, shape index: {}]
  %s4 = inlined_call_operand.hbm [shape: s8[512,1024], index: 4, kind: input, shape index: {}]
  %s5 = inlined_call_operand.hbm [shape: s8[1024,256], index: 5, kind: input, shape index: {}]
  %s6 = inlined_call_operand.hbm [shape: f32[1,6144], index: 6, kind: input, shape index: {}]
  %s7 = inlined_call_operand.vmem [shape: f32[256,256], index: 7, kind: output, shape index: {}]
  %s8 = sld [smem:[#allocation0]]
  $region46: #{generator_forward.1} parent=0
    _
  %s10 = ssub.s32 1, %s8
  %s11 = scalar_select 0, %s10, %s8
  $region1: #{generator_forward.1} parent=0
    #allocation5 [shape = 'u8[4096]{0}', space=vmem, size = 0x1000, scoped, tag = 'input window, operand 1, single buffered']
    #allocation6 [shape = 's32[1]{0}', space=sflag, size = 0x4, scoped, tag = 'scoped memory for generator_forward.1']
    #allocation7 [shape = 'u8[24576]{0}', space=vmem, size = 0x6000, scoped, tag = 'input window, operand 6, single buffered']
    #allocation8 [shape = 's32[1]{0}', space=sflag, size = 0x4, scoped, tag = 'scoped memory for generator_forward.1']
    %12 = vsyncpa [#allocation6], 0
    %13 = vsyncpa [#allocation8], 0
    // Predicated region
    $region2: #{generator_forward.1} parent=1 // pred_check
      _
    $region3: #{generator_forward.1} parent=1 // pred_check_branch
      %15 = sbr.rel (0) target = $region5
    $region4: #{generator_forward.1} parent=1 // pred_region
      _
    $region5: #{generator_forward.1} parent=1 // pred_fallthru
      _
    // Predicated region
    $region6: #{generator_forward.1} parent=1 // pred_check
      _
    $region7: #{generator_forward.1} parent=1 // pred_check_branch
      %17 = sbr.rel (0) target = $region9
    $region8: #{generator_forward.1} parent=1 // pred_region
      %s19 = ssub.s32 128, 128
      %20 = vsyncadd [#allocation6], %s19
      %s22 = sshll.u32 [#allocation5], 4
      %s23 = int_to_ptr.vmem [resolvable:$true] %s22
      %25 = dma.hbm_to_vmem [thread:$0]  %s1, 128, %s23, [#allocation6]
    $region9: #{generator_forward.1} parent=1 // pred_fallthru
      _
    // Predicated region
    $region10: #{generator_forward.1} parent=1 // pred_check
      _
    $region11: #{generator_forward.1} parent=1 // pred_check_branch
      %27 = sbr.rel (0) target = $region13
    $region12: #{generator_forward.1} parent=1 // pred_region
      _
    $region13: #{generator_forward.1} parent=1 // pred_fallthru
      _
    // Predicated region
    $region14: #{generator_forward.1} parent=1 // pred_check
      _
    $region15: #{generator_forward.1} parent=1 // pred_check_branch
      %29 = sbr.rel (0) target = $region17
    $region16: #{generator_forward.1} parent=1 // pred_region
      _
    $region17: #{generator_forward.1} parent=1 // pred_fallthru
      _
    // Predicated region
    $region18: #{generator_forward.1} parent=1 // pred_check
      _
    $region19: #{generator_forward.1} parent=1 // pred_check_branch
      %31 = sbr.rel (0) target = $region21
    $region20: #{generator_forward.1} parent=1 // pred_region
      %s33 = ssub.s32 768, 768
      %34 = vsyncadd [#allocation8], %s33
      %s36 = sshll.u32 [#allocation7], 4
      %s37 = int_to_ptr.vmem [resolvable:$true] %s36
      %39 = dma.hbm_to_vmem [thread:$0]  %s6, 768, %s37, [#allocation8]
    $region21: #{generator_forward.1} parent=1 // pred_fallthru
      _
    // Predicated region
    $region22: #{generator_forward.1} parent=1 // pred_check
      _
    $region23: #{generator_forward.1} parent=1 // pred_check_branch
      %41 = sbr.rel (0) target = $region25
    $region24: #{generator_forward.1} parent=1 // pred_region
      %42 = dma.done [#allocation6], 128
    $region25: #{generator_forward.1} parent=1 // pred_fallthru
      _
    // Predicated region
    $region26: #{generator_forward.1} parent=1 // pred_check
      _
    $region27: #{generator_forward.1} parent=1 // pred_check_branch
      %44 = sbr.rel (0) target = $region29
    $region28: #{generator_forward.1} parent=1 // pred_region
      %45 = dma.done [#allocation8], 768
    $region29: #{generator_forward.1} parent=1 // pred_fallthru
      _
    // Predicated region
    $region30: #{generator_forward.1} parent=1 // pred_check
      _
    $region31: #{generator_forward.1} parent=1 // pred_check_branch
      %48 = sbr.rel target = $region33
    $region32: #{generator_forward.1} parent=1 // pred_region
      %49 = sst [smem:[#allocation11]] [#allocation10]
      %50 = sst [smem:[#allocation12]] [#allocation9]
    $region33: #{generator_forward.1} parent=1 // pred_fallthru
      _
    %52 = shalt.err (0)
    %s54 = sshll.u32 [#allocation2], 4
    %s55 = int_to_ptr.vmem [resolvable:$true] %s54
    %57 = dma.hbm_to_vmem [thread:$0]  %s4, 16384, %s55, [#allocation4]
    %s58 = scalar_lea.sflag [#allocation4], 1
    // Predicated region
    $region34: #{generator_forward.1} parent=1 // pred_check
      _
    $region35: #{generator_forward.1} parent=1 // pred_check_branch
      %60 = sbr.rel target = $region37
    $region36: #{generator_forward.1} parent=1 // pred_region
      %61 = sst [smem:[#allocation11]] [#allocation14]
      %62 = sst [smem:[#allocation12]] [#allocation13]
    $region37: #{generator_forward.1} parent=1 // pred_fallthru
      _
    %64 = shalt.err (0)
    %s66 = sshll.u32 [#allocation3], 4
    %s67 = int_to_ptr.vmem [resolvable:$true] %s66
    %69 = dma.hbm_to_vmem [thread:$0]  %s5, 8192, %s67, %s58
    %v70 = vld [vmem:[%s0] sm:$0xff]
    %v71 = vld [vmem:[%s0 + $0x8] sm:$0xff]
    %v72 = vld [vmem:[%s0 + $0x10] sm:$0xff]
    %v73 = vld [vmem:[%s0 + $0x18] sm:$0xff]
    %v74 = vld [vmem:[%s0 + $0x20] sm:$0xff]
    %v75 = vld [vmem:[%s0 + $0x28] sm:$0xff]
    %v76 = vld [vmem:[%s0 + $0x30] sm:$0xff]
    %v77 = vld [vmem:[%s0 + $0x38] sm:$0xff]
    %v78 = vld [vmem:[%s0 + $0x40] sm:$0xff]
    %v79 = vld [vmem:[%s0 + $0x48] sm:$0xff]
    %v80 = vld [vmem:[%s0 + $0x50] sm:$0xff]
    %v81 = vld [vmem:[%s0 + $0x58] sm:$0xff]
    %v82 = vld [vmem:[%s0 + $0x60] sm:$0xff]
    %v83 = vld [vmem:[%s0 + $0x68] sm:$0xff]
    %v84 = vld [vmem:[%s0 + $0x70] sm:$0xff]
    %v85 = vld [vmem:[%s0 + $0x78] sm:$0xff]
    %v86 = vld [vmem:[%s0 + $0x80] sm:$0xff]
    %v87 = vld [vmem:[%s0 + $0x88] sm:$0xff]
    %v88 = vld [vmem:[%s0 + $0x90] sm:$0xff]
    %v89 = vld [vmem:[%s0 + $0x98] sm:$0xff]
    %v90 = vld [vmem:[%s0 + $0xa0] sm:$0xff]
    %v91 = vld [vmem:[%s0 + $0xa8] sm:$0xff]
    %v92 = vld [vmem:[%s0 + $0xb0] sm:$0xff]
    %v93 = vld [vmem:[%s0 + $0xb8] sm:$0xff]
    %v94 = vld [vmem:[%s0 + $0xc0] sm:$0xff]
    %v95 = vld [vmem:[%s0 + $0xc8] sm:$0xff]
    %v96 = vld [vmem:[%s0 + $0xd0] sm:$0xff]
    %v97 = vld [vmem:[%s0 + $0xd8] sm:$0xff]
    %v98 = vld [vmem:[%s0 + $0xe0] sm:$0xff]
    %v99 = vld [vmem:[%s0 + $0xe8] sm:$0xff]
    %v100 = vld [vmem:[%s0 + $0xf0] sm:$0xff]
    %v101 = vld [vmem:[%s0 + $0xf8] sm:$0xff]
    %v102 = vld [vmem:[#allocation5] sm:$0xff]
    %v103 = vunpack.c.l.s8.bf16 %v102
    %v104 = vunpack.c.h.s8.bf16 %v102
    %v105 = vpack.c.bf16 %v71, %v70
    %v106 = vpack.c.bf16 %v73, %v72
    %v107 = vpack.c.bf16 %v75, %v74
    %v108 = vpack.c.bf16 %v77, %v76
    %v109 = vpack.c.bf16 %v79, %v78
    %v110 = vpack.c.bf16 %v81, %v80
    %v111 = vpack.c.bf16 %v83, %v82
    %v112 = vpack.c.bf16 %v85, %v84
    %v113 = vpack.c.bf16 %v87, %v86
    %v114 = vpack.c.bf16 %v89, %v88
    %v115 = vpack.c.bf16 %v91, %v90
    %v116 = vpack.c.bf16 %v93, %v92
    %v117 = vpack.c.bf16 %v95, %v94
    %v118 = vpack.c.bf16 %v97, %v96
    %v119 = vpack.c.bf16 %v99, %v98
    %v120 = vpack.c.bf16 %v101, %v100
    %vm121 = vcmask 261120
    %v123 = vsel %vm121, %v105, 0
    %v126 = vsel %vm121, %v106, 0
    %v129 = vsel %vm121, %v107, 0
    %v132 = vsel %vm121, %v108, 0
    %v135 = vsel %vm121, %v109, 0
    %v138 = vsel %vm121, %v110, 0
    %v141 = vsel %vm121, %v111, 0
    %v144 = vsel %vm121, %v112, 0
    %v147 = vsel %vm121, %v113, 0
    %v150 = vsel %vm121, %v114, 0
    %v153 = vsel %vm121, %v115, 0
    %v156 = vsel %vm121, %v116, 0
    %v159 = vsel %vm121, %v117, 0
    %v162 = vsel %vm121, %v118, 0
    %v165 = vsel %vm121, %v119, 0
    %v168 = vsel %vm121, %v120, 0
    %170 = vmatprep.subr.bf16.mxu0 0
    %171 = vmatpush1.bf16.msra.mxu0 0
    %172 = vmatprep.subr.bf16.mxu0 0
    %173 = vmatpush1.bf16.msra.mxu0 0
    %174 = vmatprep.subr.bf16.mxu0 0
    %175 = vmatpush1.bf16.msra.mxu0 0
    %176 = vmatprep.subr.bf16.mxu0 0
    %177 = vmatpush1.bf16.msra.mxu0 0
    %178 = vmatprep.subr.bf16.mxu0 0
    %179 = vmatpush1.bf16.msra.mxu0 0
    %180 = vmatprep.subr.bf16.mxu0 0
    %181 = vmatpush1.bf16.msra.mxu0 0
    %182 = vmatprep.subr.bf16.mxu0 0
    %183 = vmatpush1.bf16.msra.mxu0 %v104
    %184 = vmatprep.subr.bf16.mxu0 0
    %185 = vmatpush1.bf16.msra.mxu0 %v103
    %186 = vmatprep.subr.bf16.mxu0 0
    %187 = vmatpush2.bf16.msra.mxu0 0
    %188 = vmatprep.subr.bf16.mxu0 0
    %189 = vmatpush2.bf16.msra.mxu0 0
    %190 = vmatprep.subr.bf16.mxu0 0
    %191 = vmatpush2.bf16.msra.mxu0 0
    %192 = vmatprep.subr.bf16.mxu0 0
    %193 = vmatpush2.bf16.msra.mxu0 0
    %194 = vmatprep.subr.bf16.mxu0 0
    %195 = vmatpush2.bf16.msra.mxu0 0
    %196 = vmatprep.subr.bf16.mxu0 0
    %197 = vmatpush2.bf16.msra.mxu0 0
    %198 = vmatprep.subr.bf16.mxu0 0
    %199 = vmatpush2.bf16.msra.mxu0 0
    %200 = vmatprep.subr.bf16.mxu0 0
    %201 = vmatpush2.bf16.msra.mxu0 0
    %202 = vmatprep.mubr.bf16.mxu0 0
    %203 = vmatmul.mubr.bf16.gmra.mxu0 %v123
    %v204 = vpop.f32.mrf.mxu0
    %v205 = vadd.f32 0.0, %v204
    %v206 = vpop.f32.mrf.mxu0
    %v207 = vpop.f32.mrf.mxu0
    %v208 = vadd.f32 0.0, %v207
    %v209 = vpop.f32.mrf.mxu0
    %210 = vmatprep.mubr.bf16.mxu0 0
    %211 = vmatmul.mubr.bf16.gmra.mxu0 %v126
    %v212 = vpop.f32.mrf.mxu0
    %v213 = vadd.f32 0.0, %v212
    %v214 = vpop.f32.mrf.mxu0
    %v215 = vpop.f32.mrf.mxu0
    %v216 = vadd.f32 0.0, %v215
    %v217 = vpop.f32.mrf.mxu0
    %218 = vmatprep.mubr.bf16.mxu0 0
    %219 = vmatmul.mubr.bf16.gmra.mxu0 %v129
    %v220 = vpop.f32.mrf.mxu0
    %v221 = vadd.f32 0.0, %v220
    %v222 = vpop.f32.mrf.mxu0
    %v223 = vpop.f32.mrf.mxu0
    %v224 = vadd.f32 0.0, %v223
    %v225 = vpop.f32.mrf.mxu0
    %226 = vmatprep.mubr.bf16.mxu0 0
    %227 = vmatmul.mubr.bf16.gmra.mxu0 %v132
    %v228 = vpop.f32.mrf.mxu0
    %v229 = vadd.f32 0.0, %v228
    %v230 = vpop.f32.mrf.mxu0
    %v231 = vpop.f32.mrf.mxu0
    %v232 = vadd.f32 0.0, %v231
    %v233 = vpop.f32.mrf.mxu0
    %234 = vmatprep.mubr.bf16.mxu0 0
    %235 = vmatmul.mubr.bf16.gmra.mxu0 %v135
    %v236 = vpop.f32.mrf.mxu0
    %v237 = vadd.f32 0.0, %v236
    %v238 = vpop.f32.mrf.mxu0
    %v239 = vpop.f32.mrf.mxu0
    %v240 = vadd.f32 0.0, %v239
    %v241 = vpop.f32.mrf.mxu0
    %242 = vmatprep.mubr.bf16.mxu0 0
    %243 = vmatmul.mubr.bf16.gmra.mxu0 %v138
    %v244 = vpop.f32.mrf.mxu0
    %v245 = vadd.f32 0.0, %v244
    %v246 = vpop.f32.mrf.mxu0
    %v247 = vpop.f32.mrf.mxu0
    %v248 = vadd.f32 0.0, %v247
    %v249 = vpop.f32.mrf.mxu0
    %250 = vmatprep.mubr.bf16.mxu0 0
    %251 = vmatmul.mubr.bf16.gmra.mxu0 %v141
    %v252 = vpop.f32.mrf.mxu0
    %v253 = vadd.f32 0.0, %v252
    %v254 = vpop.f32.mrf.mxu0
    %v255 = vpop.f32.mrf.mxu0
    %v256 = vadd.f32 0.0, %v255
    %v257 = vpop.f32.mrf.mxu0
    %258 = vmatprep.mubr.bf16.mxu0 0
    %259 = vmatmul.mubr.bf16.gmra.mxu0 %v144
    %v260 = vpop.f32.mrf.mxu0
    %v261 = vadd.f32 0.0, %v260
    %v262 = vpop.f32.mrf.mxu0
    %v263 = vpop.f32.mrf.mxu0
    %v264 = vadd.f32 0.0, %v263
    %v265 = vpop.f32.mrf.mxu0
    %266 = vmatprep.mubr.bf16.mxu0 0
    %267 = vmatmul.mubr.bf16.gmra.mxu0 %v147
    %v268 = vpop.f32.mrf.mxu0
    %v269 = vadd.f32 0.0, %v268
    %v270 = vpop.f32.mrf.mxu0
    %v271 = vpop.f32.mrf.mxu0
    %v272 = vadd.f32 0.0, %v271
    %v273 = vpop.f32.mrf.mxu0
    %274 = vmatprep.mubr.bf16.mxu0 0
    %275 = vmatmul.mubr.bf16.gmra.mxu0 %v150
    %v276 = vpop.f32.mrf.mxu0
    %v277 = vadd.f32 0.0, %v276
    %v278 = vpop.f32.mrf.mxu0
    %v279 = vpop.f32.mrf.mxu0
    %v280 = vadd.f32 0.0, %v279
    %v281 = vpop.f32.mrf.mxu0
    %282 = vmatprep.mubr.bf16.mxu0 0
    %283 = vmatmul.mubr.bf16.gmra.mxu0 %v153
    %v284 = vpop.f32.mrf.mxu0
    %v285 = vadd.f32 0.0, %v284
    %v286 = vpop.f32.mrf.mxu0
    %v287 = vpop.f32.mrf.mxu0
    %v288 = vadd.f32 0.0, %v287
    %v289 = vpop.f32.mrf.mxu0
    %290 = vmatprep.mubr.bf16.mxu0 0
    %291 = vmatmul.mubr.bf16.gmra.mxu0 %v156
    %v292 = vpop.f32.mrf.mxu0
    %v293 = vadd.f32 0.0, %v292
    %v294 = vpop.f32.mrf.mxu0
    %v295 = vpop.f32.mrf.mxu0
    %v296 = vadd.f32 0.0, %v295
    %v297 = vpop.f32.mrf.mxu0
    %298 = vmatprep.mubr.bf16.mxu0 0
    %299 = vmatmul.mubr.bf16.gmra.mxu0 %v159
    %v300 = vpop.f32.mrf.mxu0
    %v301 = vadd.f32 0.0, %v300
    %v302 = vpop.f32.mrf.mxu0
    %v303 = vpop.f32.mrf.mxu0
    %v304 = vadd.f32 0.0, %v303
    %v305 = vpop.f32.mrf.mxu0
    %306 = vmatprep.mubr.bf16.mxu0 0
    %307 = vmatmul.mubr.bf16.gmra.mxu0 %v162
    %v308 = vpop.f32.mrf.mxu0
    %v309 = vadd.f32 0.0, %v308
    %v310 = vpop.f32.mrf.mxu0
    %v311 = vpop.f32.mrf.mxu0
    %v312 = vadd.f32 0.0, %v311
    %v313 = vpop.f32.mrf.mxu0
    %314 = vmatprep.mubr.bf16.mxu0 0
    %315 = vmatmul.mubr.bf16.gmra.mxu0 %v165
    %v316 = vpop.f32.mrf.mxu0
    %v317 = vadd.f32 0.0, %v316
    %v318 = vpop.f32.mrf.mxu0
    %v319 = vpop.f32.mrf.mxu0
    %v320 = vadd.f32 0.0, %v319
    %v321 = vpop.f32.mrf.mxu0
    %322 = vmatprep.mubr.bf16.mxu0 0
    %323 = vmatmul.mubr.bf16.gmra.mxu0 %v168
    %v324 = vpop.f32.mrf.mxu0
    %v325 = vadd.f32 0.0, %v324
    %v326 = vpop.f32.mrf.mxu0
    %v327 = vpop.f32.mrf.mxu0
    %v328 = vadd.f32 0.0, %v327
    %v329 = vpop.f32.mrf.mxu0
    %330 = vdwg.mxu0
    %v331 = vld [vmem:[#allocation7] sm:$0x1]
    %v333 = vlaneseq
    %v334 = vshrl.u32 %v333, 7
    %v335 = vsub.s32 0, %v334
    %v336 = vrot.slane %v331, %v335
    %v338 = vmul.f32 %v205, %v336
    %v339 = vmul.f32 %v208, %v336
    %v340 = vmul.f32 %v213, %v336
    %v341 = vmul.f32 %v216, %v336
    %v342 = vmul.f32 %v221, %v336
    %v343 = vmul.f32 %v224, %v336
    %v344 = vmul.f32 %v229, %v336
    %v345 = vmul.f32 %v232, %v336
    %v346 = vmul.f32 %v237, %v336
    %v347 = vmul.f32 %v240, %v336
    %v348 = vmul.f32 %v245, %v336
    %v349 = vmul.f32 %v248, %v336
    %v350 = vmul.f32 %v253, %v336
    %v351 = vmul.f32 %v256, %v336
    %v352 = vmul.f32 %v261, %v336
    %v353 = vmul.f32 %v264, %v336
    %v354 = vmul.f32 %v269, %v336
    %v355 = vmul.f32 %v272, %v336
    %v356 = vmul.f32 %v277, %v336
    %v357 = vmul.f32 %v280, %v336
    %v358 = vmul.f32 %v285, %v336
    %v359 = vmul.f32 %v288, %v336
    %v360 = vmul.f32 %v293, %v336
    %v361 = vmul.f32 %v296, %v336
    %v362 = vmul.f32 %v301, %v336
    %v363 = vmul.f32 %v304, %v336
    %v364 = vmul.f32 %v309, %v336
    %v365 = vmul.f32 %v312, %v336
    %v366 = vmul.f32 %v317, %v336
    %v367 = vmul.f32 %v320, %v336
    %v368 = vmul.f32 %v325, %v336
    %v369 = vmul.f32 %v328, %v336
    %v370 = vld [vmem:[#allocation7 + $0x1] sm:$0x1]
    %v372 = vlaneseq
    %v373 = vshrl.u32 %v372, 7
    %v374 = vsub.s32 0, %v373
    %v375 = vrot.slane %v370, %v374
    %v377 = vadd.f32 %v338, %v375
    %v378 = vadd.f32 %v339, %v375
    %v379 = vadd.f32 %v340, %v375
    %v380 = vadd.f32 %v341, %v375
    %v381 = vadd.f32 %v342, %v375
    %v382 = vadd.f32 %v343, %v375
    %v383 = vadd.f32 %v344, %v375
    %v384 = vadd.f32 %v345, %v375
    %v385 = vadd.f32 %v346, %v375
    %v386 = vadd.f32 %v347, %v375
    %v387 = vadd.f32 %v348, %v375
    %v388 = vadd.f32 %v349, %v375
    %v389 = vadd.f32 %v350, %v375
    %v390 = vadd.f32 %v351, %v375
    %v391 = vadd.f32 %v352, %v375
    %v392 = vadd.f32 %v353, %v375
    %v393 = vadd.f32 %v354, %v375
    %v394 = vadd.f32 %v355, %v375
    %v395 = vadd.f32 %v356, %v375
    %v396 = vadd.f32 %v357, %v375
    %v397 = vadd.f32 %v358, %v375
    %v398 = vadd.f32 %v359, %v375
    %v399 = vadd.f32 %v360, %v375
    %v400 = vadd.f32 %v361, %v375
    %v401 = vadd.f32 %v362, %v375
    %v402 = vadd.f32 %v363, %v375
    %v403 = vadd.f32 %v364, %v375
    %v404 = vadd.f32 %v365, %v375
    %v405 = vadd.f32 %v366, %v375
    %v406 = vadd.f32 %v367, %v375
    %v407 = vadd.f32 %v368, %v375
    %v408 = vadd.f32 %v369, %v375
    %vm409 = vcmp.gt.f32.partialorder %v377, 0.0
    %vm410 = vcmp.gt.f32.partialorder %v378, 0.0
    %vm411 = vcmp.gt.f32.partialorder %v379, 0.0
    %vm412 = vcmp.gt.f32.partialorder %v380, 0.0
    %vm413 = vcmp.gt.f32.partialorder %v381, 0.0
    %vm414 = vcmp.gt.f32.partialorder %v382, 0.0
    %vm415 = vcmp.gt.f32.partialorder %v383, 0.0
    %vm416 = vcmp.gt.f32.partialorder %v384, 0.0
    %vm417 = vcmp.gt.f32.partialorder %v385, 0.0
    %vm418 = vcmp.gt.f32.partialorder %v386, 0.0
    %vm419 = vcmp.gt.f32.partialorder %v387, 0.0
    %vm420 = vcmp.gt.f32.partialorder %v388, 0.0
    %vm421 = vcmp.gt.f32.partialorder %v389, 0.0
    %vm422 = vcmp.gt.f32.partialorder %v390, 0.0
    %vm423 = vcmp.gt.f32.partialorder %v391, 0.0
    %vm424 = vcmp.gt.f32.partialorder %v392, 0.0
    %vm425 = vcmp.gt.f32.partialorder %v393, 0.0
    %vm426 = vcmp.gt.f32.partialorder %v394, 0.0
    %vm427 = vcmp.gt.f32.partialorder %v395, 0.0
    %vm428 = vcmp.gt.f32.partialorder %v396, 0.0
    %vm429 = vcmp.gt.f32.partialorder %v397, 0.0
    %vm430 = vcmp.gt.f32.partialorder %v398, 0.0
    %vm431 = vcmp.gt.f32.partialorder %v399, 0.0
    %vm432 = vcmp.gt.f32.partialorder %v400, 0.0
    %vm433 = vcmp.gt.f32.partialorder %v401, 0.0
    %vm434 = vcmp.gt.f32.partialorder %v402, 0.0
    %vm435 = vcmp.gt.f32.partialorder %v403, 0.0
    %vm436 = vcmp.gt.f32.partialorder %v404, 0.0
    %vm437 = vcmp.gt.f32.partialorder %v405, 0.0
    %vm438 = vcmp.gt.f32.partialorder %v406, 0.0
    %vm439 = vcmp.gt.f32.partialorder %v407, 0.0
    %vm440 = vcmp.gt.f32.partialorder %v408, 0.0
    %v441 = vmul.f32 %v377, 0.2
    %v442 = vmul.f32 %v378, 0.2
    %v443 = vmul.f32 %v379, 0.2
    %v444 = vmul.f32 %v380, 0.2
    %v445 = vmul.f32 %v381, 0.2
    %v446 = vmul.f32 %v382, 0.2
    %v447 = vmul.f32 %v383, 0.2
    %v448 = vmul.f32 %v384, 0.2
    %v449 = vmul.f32 %v385, 0.2
    %v450 = vmul.f32 %v386, 0.2
    %v451 = vmul.f32 %v387, 0.2
    %v452 = vmul.f32 %v388, 0.2
    %v453 = vmul.f32 %v389, 0.2
    %v454 = vmul.f32 %v390, 0.2
    %v455 = vmul.f32 %v391, 0.2
    %v456 = vmul.f32 %v392, 0.2
    %v457 = vmul.f32 %v393, 0.2
    %v458 = vmul.f32 %v394, 0.2
    %v459 = vmul.f32 %v395, 0.2
    %v460 = vmul.f32 %v396, 0.2
    %v461 = vmul.f32 %v397, 0.2
    %v462 = vmul.f32 %v398, 0.2
    %v463 = vmul.f32 %v399, 0.2
    %v464 = vmul.f32 %v400, 0.2
    %v465 = vmul.f32 %v401, 0.2
    %v466 = vmul.f32 %v402, 0.2
    %v467 = vmul.f32 %v403, 0.2
    %v468 = vmul.f32 %v404, 0.2
    %v469 = vmul.f32 %v405, 0.2
    %v470 = vmul.f32 %v406, 0.2
    %v471 = vmul.f32 %v407, 0.2
    %v472 = vmul.f32 %v408, 0.2
    %v473 = vsel %vm409, %v377, %v441
    %v474 = vsel %vm410, %v378, %v442
    %v475 = vsel %vm411, %v379, %v443
    %v476 = vsel %vm412, %v380, %v444
    %v477 = vsel %vm413, %v381, %v445
    %v478 = vsel %vm414, %v382, %v446
    %v479 = vsel %vm415, %v383, %v447
    %v480 = vsel %vm416, %v384, %v448
    %v481 = vsel %vm417, %v385, %v449
    %v482 = vsel %vm418, %v386, %v450
    %v483 = vsel %vm419, %v387, %v451
    %v484 = vsel %vm420, %v388, %v452
    %v485 = vsel %vm421, %v389, %v453
    %v486 = vsel %vm422, %v390, %v454
    %v487 = vsel %vm423, %v391, %v455
    %v488 = vsel %vm424, %v392, %v456
    %v489 = vsel %vm425, %v393, %v457
    %v490 = vsel %vm426, %v394, %v458
    %v491 = vsel %vm427, %v395, %v459
    %v492 = vsel %vm428, %v396, %v460
    %v493 = vsel %vm429, %v397, %v461
    %v494 = vsel %vm430, %v398, %v462
    %v495 = vsel %vm431, %v399, %v463
    %v496 = vsel %vm432, %v400, %v464
    %v497 = vsel %vm433, %v401, %v465
    %v498 = vsel %vm434, %v402, %v466
    %v499 = vsel %vm435, %v403, %v467
    %v500 = vsel %vm436, %v404, %v468
    %v501 = vsel %vm437, %v405, %v469
    %v502 = vsel %vm438, %v406, %v470
    %v503 = vsel %vm439, %v407, %v471
    %v504 = vsel %vm440, %v408, %v472
    %v505 = vld [vmem:[%s2] sm:$0xff]
    %v506 = vld [vmem:[%s2 + $0x8] sm:$0xff]
    %v507 = vld [vmem:[%s2 + $0x10] sm:$0xff]
    %v508 = vld [vmem:[%s2 + $0x18] sm:$0xff]
    %v509 = vld [vmem:[%s2 + $0x20] sm:$0xff]
    %v510 = vld [vmem:[%s2 + $0x28] sm:$0xff]
    %v511 = vld [vmem:[%s2 + $0x30] sm:$0xff]
    %v512 = vld [vmem:[%s2 + $0x38] sm:$0xff]
    %v513 = vunpack.c.l.s8.bf16 %v505
    %v514 = vunpack.c.l.s8.bf16 %v506
    %v515 = vunpack.c.h.s8.bf16 %v505
    %v516 = vunpack.c.h.s8.bf16 %v506
    %v517 = vunpack.c.l.s8.bf16 %v507
    %v518 = vunpack.c.l.s8.bf16 %v508
    %v519 = vunpack.c.h.s8.bf16 %v507
    %v520 = vunpack.c.h.s8.bf16 %v508
    %v521 = vunpack.c.l.s8.bf16 %v509
    %v522 = vunpack.c.l.s8.bf16 %v510
    %v523 = vunpack.c.h.s8.bf16 %v509
    %v524 = vunpack.c.h.s8.bf16 %v510
    %v525 = vunpack.c.l.s8.bf16 %v511
    %v526 = vunpack.c.l.s8.bf16 %v512
    %v527 = vunpack.c.h.s8.bf16 %v511
    %v528 = vunpack.c.h.s8.bf16 %v512
    %v529 = vpack.c.bf16 %v474, %v473
    %v530 = vpack.c.bf16 %v476, %v475
    %v531 = vpack.c.bf16 %v478, %v477
    %v532 = vpack.c.bf16 %v480, %v479
    %v533 = vpack.c.bf16 %v482, %v481
    %v534 = vpack.c.bf16 %v484, %v483
    %v535 = vpack.c.bf16 %v486, %v485
    %v536 = vpack.c.bf16 %v488, %v487
    %v537 = vpack.c.bf16 %v490, %v489
    %v538 = vpack.c.bf16 %v492, %v491
    %v539 = vpack.c.bf16 %v494, %v493
    %v540 = vpack.c.bf16 %v496, %v495
    %v541 = vpack.c.bf16 %v498, %v497
    %v542 = vpack.c.bf16 %v500, %v499
    %v543 = vpack.c.bf16 %v502, %v501
    %v544 = vpack.c.bf16 %v504, %v503
    %545 = vmatprep.subr.bf16.mxu0 %v528
    %546 = vmatpush1.bf16.msra.mxu0 %v527
    %547 = vmatprep.subr.bf16.mxu0 %v526
    %548 = vmatpush1.bf16.msra.mxu0 %v525
    %549 = vmatprep.subr.bf16.mxu0 %v524
    %550 = vmatpush1.bf16.msra.mxu0 %v523
    %551 = vmatprep.subr.bf16.mxu0 %v522
    %552 = vmatpush1.bf16.msra.mxu0 %v521
    %553 = vmatprep.subr.bf16.mxu0 %v520
    %554 = vmatpush1.bf16.msra.mxu0 %v519
    %555 = vmatprep.subr.bf16.mxu0 %v518
    %556 = vmatpush1.bf16.msra.mxu0 %v517
    %557 = vmatprep.subr.bf16.mxu0 %v516
    %558 = vmatpush1.bf16.msra.mxu0 %v515
    %559 = vmatprep.subr.bf16.mxu0 %v514
    %560 = vmatpush1.bf16.msra.mxu0 %v513
    %561 = vmatprep.subr.bf16.mxu0 0
    %562 = vmatpush2.bf16.msra.mxu0 0
    %563 = vmatprep.subr.bf16.mxu0 0
    %564 = vmatpush2.bf16.msra.mxu0 0
    %565 = vmatprep.subr.bf16.mxu0 0
    %566 = vmatpush2.bf16.msra.mxu0 0
    %567 = vmatprep.subr.bf16.mxu0 0
    %568 = vmatpush2.bf16.msra.mxu0 0
    %569 = vmatprep.subr.bf16.mxu0 0
    %570 = vmatpush2.bf16.msra.mxu0 0
    %571 = vmatprep.subr.bf16.mxu0 0
    %572 = vmatpush2.bf16.msra.mxu0 0
    %573 = vmatprep.subr.bf16.mxu0 0
    %574 = vmatpush2.bf16.msra.mxu0 0
    %575 = vmatprep.subr.bf16.mxu0 0
    %576 = vmatpush2.bf16.msra.mxu0 0
    %577 = vmatprep.mubr.bf16.mxu0 0
    %578 = vmatmul.mubr.bf16.gmra.mxu0 %v529
    %v579 = vpop.f32.mrf.mxu0
    %v580 = vadd.f32 0.0, %v579
    %v581 = vpop.f32.mrf.mxu0
    %v582 = vadd.f32 0.0, %v581
    %v583 = vpop.f32.mrf.mxu0
    %v584 = vadd.f32 0.0, %v583
    %v585 = vpop.f32.mrf.mxu0
    %v586 = vadd.f32 0.0, %v585
    %587 = vmatprep.mubr.bf16.mxu0 0
    %588 = vmatmul.mubr.bf16.gmra.mxu0 %v530
    %v589 = vpop.f32.mrf.mxu0
    %v590 = vadd.f32 0.0, %v589
    %v591 = vpop.f32.mrf.mxu0
    %v592 = vadd.f32 0.0, %v591
    %v593 = vpop.f32.mrf.mxu0
    %v594 = vadd.f32 0.0, %v593
    %v595 = vpop.f32.mrf.mxu0
    %v596 = vadd.f32 0.0, %v595
    %597 = vmatprep.mubr.bf16.mxu0 0
    %598 = vmatmul.mubr.bf16.gmra.mxu0 %v531
    %v599 = vpop.f32.mrf.mxu0
    %v600 = vadd.f32 0.0, %v599
    %v601 = vpop.f32.mrf.mxu0
    %v602 = vadd.f32 0.0, %v601
    %v603 = vpop.f32.mrf.mxu0
    %v604 = vadd.f32 0.0, %v603
    %v605 = vpop.f32.mrf.mxu0
    %v606 = vadd.f32 0.0, %v605
    %607 = vmatprep.mubr.bf16.mxu0 0
    %608 = vmatmul.mubr.bf16.gmra.mxu0 %v532
    %v609 = vpop.f32.mrf.mxu0
    %v610 = vadd.f32 0.0, %v609
    %v611 = vpop.f32.mrf.mxu0
    %v612 = vadd.f32 0.0, %v611
    %v613 = vpop.f32.mrf.mxu0
    %v614 = vadd.f32 0.0, %v613
    %v615 = vpop.f32.mrf.mxu0
    %v616 = vadd.f32 0.0, %v615
    %617 = vmatprep.mubr.bf16.mxu0 0
    %618 = vmatmul.mubr.bf16.gmra.mxu0 %v533
    %v619 = vpop.f32.mrf.mxu0
    %v620 = vadd.f32 0.0, %v619
    %v621 = vpop.f32.mrf.mxu0
    %v622 = vadd.f32 0.0, %v621
    %v623 = vpop.f32.mrf.mxu0
    %v624 = vadd.f32 0.0, %v623
    %v625 = vpop.f32.mrf.mxu0
    %v626 = vadd.f32 0.0, %v625
    %627 = vmatprep.mubr.bf16.mxu0 0
    %628 = vmatmul.mubr.bf16.gmra.mxu0 %v534
    %v629 = vpop.f32.mrf.mxu0
    %v630 = vadd.f32 0.0, %v629
    %v631 = vpop.f32.mrf.mxu0
    %v632 = vadd.f32 0.0, %v631
    %v633 = vpop.f32.mrf.mxu0
    %v634 = vadd.f32 0.0, %v633
    %v635 = vpop.f32.mrf.mxu0
    %v636 = vadd.f32 0.0, %v635
    %637 = vmatprep.mubr.bf16.mxu0 0
    %638 = vmatmul.mubr.bf16.gmra.mxu0 %v535
    %v639 = vpop.f32.mrf.mxu0
    %v640 = vadd.f32 0.0, %v639
    %v641 = vpop.f32.mrf.mxu0
    %v642 = vadd.f32 0.0, %v641
    %v643 = vpop.f32.mrf.mxu0
    %v644 = vadd.f32 0.0, %v643
    %v645 = vpop.f32.mrf.mxu0
    %v646 = vadd.f32 0.0, %v645
    %647 = vmatprep.mubr.bf16.mxu0 0
    %648 = vmatmul.mubr.bf16.gmra.mxu0 %v536
    %v649 = vpop.f32.mrf.mxu0
    %v650 = vadd.f32 0.0, %v649
    %v651 = vpop.f32.mrf.mxu0
    %v652 = vadd.f32 0.0, %v651
    %v653 = vpop.f32.mrf.mxu0
    %v654 = vadd.f32 0.0, %v653
    %v655 = vpop.f32.mrf.mxu0
    %v656 = vadd.f32 0.0, %v655
    %657 = vmatprep.mubr.bf16.mxu0 0
    %658 = vmatmul.mubr.bf16.gmra.mxu0 %v537
    %v659 = vpop.f32.mrf.mxu0
    %v660 = vadd.f32 0.0, %v659
    %v661 = vpop.f32.mrf.mxu0
    %v662 = vadd.f32 0.0, %v661
    %v663 = vpop.f32.mrf.mxu0
    %v664 = vadd.f32 0.0, %v663
    %v665 = vpop.f32.mrf.mxu0
    %v666 = vadd.f32 0.0, %v665
    %667 = vmatprep.mubr.bf16.mxu0 0
    %668 = vmatmul.mubr.bf16.gmra.mxu0 %v538
    %v669 = vpop.f32.mrf.mxu0
    %v670 = vadd.f32 0.0, %v669
    %v671 = vpop.f32.mrf.mxu0
    %v672 = vadd.f32 0.0, %v671
    %v673 = vpop.f32.mrf.mxu0
    %v674 = vadd.f32 0.0, %v673
    %v675 = vpop.f32.mrf.mxu0
    %v676 = vadd.f32 0.0, %v675
    %677 = vmatprep.mubr.bf16.mxu0 0
    %678 = vmatmul.mubr.bf16.gmra.mxu0 %v539
    %v679 = vpop.f32.mrf.mxu0
    %v680 = vadd.f32 0.0, %v679
    %v681 = vpop.f32.mrf.mxu0
    %v682 = vadd.f32 0.0, %v681
    %v683 = vpop.f32.mrf.mxu0
    %v684 = vadd.f32 0.0, %v683
    %v685 = vpop.f32.mrf.mxu0
    %v686 = vadd.f32 0.0, %v685
    %687 = vmatprep.mubr.bf16.mxu0 0
    %688 = vmatmul.mubr.bf16.gmra.mxu0 %v540
    %v689 = vpop.f32.mrf.mxu0
    %v690 = vadd.f32 0.0, %v689
    %v691 = vpop.f32.mrf.mxu0
    %v692 = vadd.f32 0.0, %v691
    %v693 = vpop.f32.mrf.mxu0
    %v694 = vadd.f32 0.0, %v693
    %v695 = vpop.f32.mrf.mxu0
    %v696 = vadd.f32 0.0, %v695
    %697 = vmatprep.mubr.bf16.mxu0 0
    %698 = vmatmul.mubr.bf16.gmra.mxu0 %v541
    %v699 = vpop.f32.mrf.mxu0
    %v700 = vadd.f32 0.0, %v699
    %v701 = vpop.f32.mrf.mxu0
    %v702 = vadd.f32 0.0, %v701
    %v703 = vpop.f32.mrf.mxu0
    %v704 = vadd.f32 0.0, %v703
    %v705 = vpop.f32.mrf.mxu0
    %v706 = vadd.f32 0.0, %v705
    %707 = vmatprep.mubr.bf16.mxu0 0
    %708 = vmatmul.mubr.bf16.gmra.mxu0 %v542
    %v709 = vpop.f32.mrf.mxu0
    %v710 = vadd.f32 0.0, %v709
    %v711 = vpop.f32.mrf.mxu0
    %v712 = vadd.f32 0.0, %v711
    %v713 = vpop.f32.mrf.mxu0
    %v714 = vadd.f32 0.0, %v713
    %v715 = vpop.f32.mrf.mxu0
    %v716 = vadd.f32 0.0, %v715
    %717 = vmatprep.mubr.bf16.mxu0 0
    %718 = vmatmul.mubr.bf16.gmra.mxu0 %v543
    %v719 = vpop.f32.mrf.mxu0
    %v720 = vadd.f32 0.0, %v719
    %v721 = vpop.f32.mrf.mxu0
    %v722 = vadd.f32 0.0, %v721
    %v723 = vpop.f32.mrf.mxu0
    %v724 = vadd.f32 0.0, %v723
    %v725 = vpop.f32.mrf.mxu0
    %v726 = vadd.f32 0.0, %v725
    %727 = vmatprep.mubr.bf16.mxu0 0
    %728 = vmatmul.mubr.bf16.gmra.mxu0 %v544
    %v729 = vpop.f32.mrf.mxu0
    %v730 = vadd.f32 0.0, %v729
    %v731 = vpop.f32.mrf.mxu0
    %v732 = vadd.f32 0.0, %v731
    %v733 = vpop.f32.mrf.mxu0
    %v734 = vadd.f32 0.0, %v733
    %v735 = vpop.f32.mrf.mxu0
    %v736 = vadd.f32 0.0, %v735
    %737 = vdwg.mxu0
    %v738 = vld [vmem:[#allocation7 + $0x2] sm:$0x3]
    %v739 = vld [vmem:[#allocation7 + $0x4] sm:$0x3]
    %v740 = vld [vmem:[#allocation7 + $0x6] sm:$0x3]
    %v741 = vadd.f32 %v580, %v584
    %v742 = vadd.f32 %v741, %v590
    %v743 = vadd.f32 %v742, %v594
    %v744 = vadd.f32 %v743, %v600
    %v745 = vadd.f32 %v744, %v604
    %v746 = vadd.f32 %v745, %v610
    %v747 = vadd.f32 %v746, %v614
    %v748 = vadd.f32 %v747, %v620
    %v749 = vadd.f32 %v748, %v624
    %v750 = vadd.f32 %v749, %v630
    %v751 = vadd.f32 %v750, %v634
    %v752 = vadd.f32 %v751, %v640
    %v753 = vadd.f32 %v752, %v644
    %v754 = vadd.f32 %v753, %v650
    %v755 = vadd.f32 %v754, %v654
    %v756 = vadd.f32 %v755, %v660
    %v757 = vadd.f32 %v756, %v664
    %v758 = vadd.f32 %v757, %v670
    %v759 = vadd.f32 %v758, %v674
    %v760 = vadd.f32 %v759, %v680
    %v761 = vadd.f32 %v760, %v684
    %v762 = vadd.f32 %v761, %v690
    %v763 = vadd.f32 %v762, %v694
    %v764 = vadd.f32 %v763, %v700
    %v765 = vadd.f32 %v764, %v704
    %v766 = vadd.f32 %v765, %v710
    %v767 = vadd.f32 %v766, %v714
    %v768 = vadd.f32 %v767, %v720
    %v769 = vadd.f32 %v768, %v724
    %v770 = vadd.f32 %v769, %v730
    %v771 = vadd.f32 %v770, %v734
    %v772 = vrot.slane %v771, 4
    %v773 = vadd.f32 %v771, %v772
    %v774 = vrot.slane %v773, 2
    %v775 = vadd.f32 %v773, %v774
    %v776 = vrot.slane %v775, 1
    %v777 = vadd.f32 %v775, %v776
    %v778 = vadd.f32 %v582, %v586
    %v779 = vadd.f32 %v778, %v592
    %v780 = vadd.f32 %v779, %v596
    %v781 = vadd.f32 %v780, %v602
    %v782 = vadd.f32 %v781, %v606
    %v783 = vadd.f32 %v782, %v612
    %v784 = vadd.f32 %v783, %v616
    %v785 = vadd.f32 %v784, %v622
    %v786 = vadd.f32 %v785, %v626
    %v787 = vadd.f32 %v786, %v632
    %v788 = vadd.f32 %v787, %v636
    %v789 = vadd.f32 %v788, %v642
    %v790 = vadd.f32 %v789, %v646
    %v791 = vadd.f32 %v790, %v652
    %v792 = vadd.f32 %v791, %v656
    %v793 = vadd.f32 %v792, %v662
    %v794 = vadd.f32 %v793, %v666
    %v795 = vadd.f32 %v794, %v672
    %v796 = vadd.f32 %v795, %v676
    %v797 = vadd.f32 %v796, %v682
    %v798 = vadd.f32 %v797, %v686
    %v799 = vadd.f32 %v798, %v692
    %v800 = vadd.f32 %v799, %v696
    %v801 = vadd.f32 %v800, %v702
    %v802 = vadd.f32 %v801, %v706
    %v803 = vadd.f32 %v802, %v712
    %v804 = vadd.f32 %v803, %v716
    %v805 = vadd.f32 %v804, %v722
    %v806 = vadd.f32 %v805, %v726
    %v807 = vadd.f32 %v806, %v732
    %v808 = vadd.f32 %v807, %v736
    %v809 = vrot.slane %v808, 4
    %v810 = vadd.f32 %v808, %v809
    %v811 = vrot.slane %v810, 2
    %v812 = vadd.f32 %v810, %v811
    %v813 = vrot.slane %v812, 1
    %v814 = vadd.f32 %v812, %v813
    %v815 = vrcp.pop 256.0
    %v816 = vmul.f32 %v777, %v815
    %v817 = vmul.f32 %v814, %v815
    %v818 = vmul.f32 %v580, %v580
    %v819 = vmul.f32 %v582, %v582
    %v820 = vmul.f32 %v584, %v584
    %v821 = vmul.f32 %v586, %v586
    %v822 = vmul.f32 %v590, %v590
    %v823 = vmul.f32 %v592, %v592
    %v824 = vmul.f32 %v594, %v594
    %v825 = vmul.f32 %v596, %v596
    %v826 = vmul.f32 %v600, %v600
    %v827 = vmul.f32 %v602, %v602
    %v828 = vmul.f32 %v604, %v604
    %v829 = vmul.f32 %v606, %v606
    %v830 = vmul.f32 %v610, %v610
    %v831 = vmul.f32 %v612, %v612
    %v832 = vmul.f32 %v614, %v614
    %v833 = vmul.f32 %v616, %v616
    %v834 = vmul.f32 %v620, %v620
    %v835 = vmul.f32 %v622, %v622
    %v836 = vmul.f32 %v624, %v624
    %v837 = vmul.f32 %v626, %v626
    %v838 = vmul.f32 %v630, %v630
    %v839 = vmul.f32 %v632, %v632
    %v840 = vmul.f32 %v634, %v634
    %v841 = vmul.f32 %v636, %v636
    %v842 = vmul.f32 %v640, %v640
    %v843 = vmul.f32 %v642, %v642
    %v844 = vmul.f32 %v644, %v644
    %v845 = vmul.f32 %v646, %v646
    %v846 = vmul.f32 %v650, %v650
    %v847 = vmul.f32 %v652, %v652
    %v848 = vmul.f32 %v654, %v654
    %v849 = vmul.f32 %v656, %v656
    %v850 = vmul.f32 %v660, %v660
    %v851 = vmul.f32 %v662, %v662
    %v852 = vmul.f32 %v664, %v664
    %v853 = vmul.f32 %v666, %v666
    %v854 = vmul.f32 %v670, %v670
    %v855 = vmul.f32 %v672, %v672
    %v856 = vmul.f32 %v674, %v674
    %v857 = vmul.f32 %v676, %v676
    %v858 = vmul.f32 %v680, %v680
    %v859 = vmul.f32 %v682, %v682
    %v860 = vmul.f32 %v684, %v684
    %v861 = vmul.f32 %v686, %v686
    %v862 = vmul.f32 %v690, %v690
    %v863 = vmul.f32 %v692, %v692
    %v864 = vmul.f32 %v694, %v694
    %v865 = vmul.f32 %v696, %v696
    %v866 = vmul.f32 %v700, %v700
    %v867 = vmul.f32 %v702, %v702
    %v868 = vmul.f32 %v704, %v704
    %v869 = vmul.f32 %v706, %v706
    %v870 = vmul.f32 %v710, %v710
    %v871 = vmul.f32 %v712, %v712
    %v872 = vmul.f32 %v714, %v714
    %v873 = vmul.f32 %v716, %v716
    %v874 = vmul.f32 %v720, %v720
    %v875 = vmul.f32 %v722, %v722
    %v876 = vmul.f32 %v724, %v724
    %v877 = vmul.f32 %v726, %v726
    %v878 = vmul.f32 %v730, %v730
    %v879 = vmul.f32 %v732, %v732
    %v880 = vmul.f32 %v734, %v734
    %v881 = vmul.f32 %v736, %v736
    %v882 = vadd.f32 %v818, %v820
    %v883 = vadd.f32 %v882, %v822
    %v884 = vadd.f32 %v883, %v824
    %v885 = vadd.f32 %v884, %v826
    %v886 = vadd.f32 %v885, %v828
    %v887 = vadd.f32 %v886, %v830
    %v888 = vadd.f32 %v887, %v832
    %v889 = vadd.f32 %v888, %v834
    %v890 = vadd.f32 %v889, %v836
    %v891 = vadd.f32 %v890, %v838
    %v892 = vadd.f32 %v891, %v840
    %v893 = vadd.f32 %v892, %v842
    %v894 = vadd.f32 %v893, %v844
    %v895 = vadd.f32 %v894, %v846
    %v896 = vadd.f32 %v895, %v848
    %v897 = vadd.f32 %v896, %v850
    %v898 = vadd.f32 %v897, %v852
    %v899 = vadd.f32 %v898, %v854
    %v900 = vadd.f32 %v899, %v856
    %v901 = vadd.f32 %v900, %v858
    %v902 = vadd.f32 %v901, %v860
    %v903 = vadd.f32 %v902, %v862
    %v904 = vadd.f32 %v903, %v864
    %v905 = vadd.f32 %v904, %v866
    %v906 = vadd.f32 %v905, %v868
    %v907 = vadd.f32 %v906, %v870
    %v908 = vadd.f32 %v907, %v872
    %v909 = vadd.f32 %v908, %v874
    %v910 = vadd.f32 %v909, %v876
    %v911 = vadd.f32 %v910, %v878
    %v912 = vadd.f32 %v911, %v880
    %v913 = vrot.slane %v912, 4
    %v914 = vadd.f32 %v912, %v913
    %v915 = vrot.slane %v914, 2
    %v916 = vadd.f32 %v914, %v915
    %v917 = vrot.slane %v916, 1
    %v918 = vadd.f32 %v916, %v917
    %v919 = vadd.f32 %v819, %v821
    %v920 = vadd.f32 %v919, %v823
    %v921 = vadd.f32 %v920, %v825
    %v922 = vadd.f32 %v921, %v827
    %v923 = vadd.f32 %v922, %v829
    %v924 = vadd.f32 %v923, %v831
    %v925 = vadd.f32 %v924, %v833
    %v926 = vadd.f32 %v925, %v835
    %v927 = vadd.f32 %v926, %v837
    %v928 = vadd.f32 %v927, %v839
    %v929 = vadd.f32 %v928, %v841
    %v930 = vadd.f32 %v929, %v843
    %v931 = vadd.f32 %v930, %v845
    %v932 = vadd.f32 %v931, %v847
    %v933 = vadd.f32 %v932, %v849
    %v934 = vadd.f32 %v933, %v851
    %v935 = vadd.f32 %v934, %v853
    %v936 = vadd.f32 %v935, %v855
    %v937 = vadd.f32 %v936, %v857
    %v938 = vadd.f32 %v937, %v859
    %v939 = vadd.f32 %v938, %v861
    %v940 = vadd.f32 %v939, %v863
    %v941 = vadd.f32 %v940, %v865
    %v942 = vadd.f32 %v941, %v867
    %v943 = vadd.f32 %v942, %v869
    %v944 = vadd.f32 %v943, %v871
    %v945 = vadd.f32 %v944, %v873
    %v946 = vadd.f32 %v945, %v875
    %v947 = vadd.f32 %v946, %v877
    %v948 = vadd.f32 %v947, %v879
    %v949 = vadd.f32 %v948, %v881
    %v950 = vrot.slane %v949, 4
    %v951 = vadd.f32 %v949, %v950
    %v952 = vrot.slane %v951, 2
    %v953 = vadd.f32 %v951, %v952
    %v954 = vrot.slane %v953, 1
    %v955 = vadd.f32 %v953, %v954
    %v956 = vmul.f32 %v918, %v815
    %v957 = vmul.f32 %v955, %v815
    %v958 = vmul.f32 %v816, %v816
    %v959 = vmul.f32 %v817, %v817
    %v960 = vsub.f32 %v956, %v958
    %v961 = vsub.f32 %v957, %v959
    %v962 = vmul.f32 %v739, %v738
    %v963 = vmul.f32 %v738, %v738
    %v965 = vlaneseq
    %v966 = vshrl.u32 %v965, 7
    %v967 = vsub.s32 0, %v966
    %v968 = vrot.slane %v963, %v967
    %v969 = vlaneseq
    %v970 = vshrl.u32 %v969, 7
    %v971 = vsub.s32 1, %v970
    %v972 = vrot.slane %v963, %v971
    %v975 = vmul.f32 %v960, %v968
    %v976 = vmul.f32 %v961, %v972
    %v977 = vadd.f32 %v975, 0.8
    %v978 = vadd.f32 %v976, 0.8
    %v979 = vrsqrt.pop %v977
    %v980 = vrsqrt.pop %v978
    %v983 = vcombine.low %v979, %v980
    %v985 = vunpack.c.l.s4 1966171168
    %v986 = vunpack.c.0.s8 %v985
    %v987 = vlaneseq
    %v988 = vshrl.u32 %v987, 7
    %v989 = vsub.s32 %v986, %v988
    %v990 = vrot.slane %v983, %v989
    %v992 = vunpack.c.l.s4 1966171168
    %v993 = vunpack.c.0.s8 %v992
    %v994 = vlaneseq
    %v995 = vshrl.u32 %v994, 7
    %v996 = vsub.s32 %v993, %v995
    %v997 = vrot.slane %v990, %v996
    %v999 = vmul.f32 %v962, %v997
    %v1000 = vsub.f32 %v580, %v816
    %v1001 = vsub.f32 %v582, %v817
    %v1002 = vsub.f32 %v584, %v816
    %v1003 = vsub.f32 %v586, %v817
    %v1004 = vsub.f32 %v590, %v816
    %v1005 = vsub.f32 %v592, %v817
    %v1006 = vsub.f32 %v594, %v816
    %v1007 = vsub.f32 %v596, %v817
    %v1008 = vsub.f32 %v600, %v816
    %v1009 = vsub.f32 %v602, %v817
    %v1010 = vsub.f32 %v604, %v816
    %v1011 = vsub.f32 %v606, %v817
    %v1012 = vsub.f32 %v610, %v816
    %v1013 = vsub.f32 %v612, %v817
    %v1014 = vsub.f32 %v614, %v816
    %v1015 = vsub.f32 %v616, %v817
    %v1016 = vsub.f32 %v620, %v816
    %v1017 = vsub.f32 %v622, %v817
    %v1018 = vsub.f32 %v624, %v816
    %v1019 = vsub.f32 %v626, %v817
    %v1020 = vsub.f32 %v630, %v816
    %v1021 = vsub.f32 %v632, %v817
    %v1022 = vsub.f32 %v634, %v816
    %v1023 = vsub.f32 %v636, %v817
    %v1024 = vsub.f32 %v640, %v816
    %v1025 = vsub.f32 %v642, %v817
    %v1026 = vsub.f32 %v644, %v816
    %v1027 = vsub.f32 %v646, %v817
    %v1028 = vsub.f32 %v650, %v816
    %v1029 = vsub.f32 %v652, %v817
    %v1030 = vsub.f32 %v654, %v816
    %v1031 = vsub.f32 %v656, %v817
    %v1032 = vsub.f32 %v660, %v816
    %v1033 = vsub.f32 %v662, %v817
    %v1034 = vsub.f32 %v664, %v816
    %v1035 = vsub.f32 %v666, %v817
    %v1036 = vsub.f32 %v670, %v816
    %v1037 = vsub.f32 %v672, %v817
    %v1038 = vsub.f32 %v674, %v816
    %v1039 = vsub.f32 %v676, %v817
    %v1040 = vsub.f32 %v680, %v816
    %v1041 = vsub.f32 %v682, %v817
    %v1042 = vsub.f32 %v684, %v816
    %v1043 = vsub.f32 %v686, %v817
    %v1044 = vsub.f32 %v690, %v816
    %v1045 = vsub.f32 %v692, %v817
    %v1046 = vsub.f32 %v694, %v816
    %v1047 = vsub.f32 %v696, %v817
    %v1048 = vsub.f32 %v700, %v816
    %v1049 = vsub.f32 %v702, %v817
    %v1050 = vsub.f32 %v704, %v816
    %v1051 = vsub.f32 %v706, %v817
    %v1052 = vsub.f32 %v710, %v816
    %v1053 = vsub.f32 %v712, %v817
    %v1054 = vsub.f32 %v714, %v816
    %v1055 = vsub.f32 %v716, %v817
    %v1056 = vsub.f32 %v720, %v816
    %v1057 = vsub.f32 %v722, %v817
    %v1058 = vsub.f32 %v724, %v816
    %v1059 = vsub.f32 %v726, %v817
    %v1060 = vsub.f32 %v730, %v816
    %v1061 = vsub.f32 %v732, %v817
    %v1062 = vsub.f32 %v734, %v816
    %v1063 = vsub.f32 %v736, %v817
    %v1065 = vlaneseq
    %v1066 = vshrl.u32 %v1065, 7
    %v1067 = vsub.s32 0, %v1066
    %v1068 = vrot.slane %v999, %v1067
    %v1069 = vlaneseq
    %v1070 = vshrl.u32 %v1069, 7
    %v1071 = vsub.s32 1, %v1070
    %v1072 = vrot.slane %v999, %v1071
    %v1075 = vmul.f32 %v1000, %v1068
    %v1076 = vmul.f32 %v1001, %v1072
    %v1077 = vmul.f32 %v1002, %v1068
    %v1078 = vmul.f32 %v1003, %v1072
    %v1079 = vmul.f32 %v1004, %v1068
    %v1080 = vmul.f32 %v1005, %v1072
    %v1081 = vmul.f32 %v1006, %v1068
    %v1082 = vmul.f32 %v1007, %v1072
    %v1083 = vmul.f32 %v1008, %v1068
    %v1084 = vmul.f32 %v1009, %v1072
    %v1085 = vmul.f32 %v1010, %v1068
    %v1086 = vmul.f32 %v1011, %v1072
    %v1087 = vmul.f32 %v1012, %v1068
    %v1088 = vmul.f32 %v1013, %v1072
    %v1089 = vmul.f32 %v1014, %v1068
    %v1090 = vmul.f32 %v1015, %v1072
    %v1091 = vmul.f32 %v1016, %v1068
    %v1092 = vmul.f32 %v1017, %v1072
    %v1093 = vmul.f32 %v1018, %v1068
    %v1094 = vmul.f32 %v1019, %v1072
    %v1095 = vmul.f32 %v1020, %v1068
    %v1096 = vmul.f32 %v1021, %v1072
    %v1097 = vmul.f32 %v1022, %v1068
    %v1098 = vmul.f32 %v1023, %v1072
    %v1099 = vmul.f32 %v1024, %v1068
    %v1100 = vmul.f32 %v1025, %v1072
    %v1101 = vmul.f32 %v1026, %v1068
    %v1102 = vmul.f32 %v1027, %v1072
    %v1103 = vmul.f32 %v1028, %v1068
    %v1104 = vmul.f32 %v1029, %v1072
    %v1105 = vmul.f32 %v1030, %v1068
    %v1106 = vmul.f32 %v1031, %v1072
    %v1107 = vmul.f32 %v1032, %v1068
    %v1108 = vmul.f32 %v1033, %v1072
    %v1109 = vmul.f32 %v1034, %v1068
    %v1110 = vmul.f32 %v1035, %v1072
    %v1111 = vmul.f32 %v1036, %v1068
    %v1112 = vmul.f32 %v1037, %v1072
    %v1113 = vmul.f32 %v1038, %v1068
    %v1114 = vmul.f32 %v1039, %v1072
    %v1115 = vmul.f32 %v1040, %v1068
    %v1116 = vmul.f32 %v1041, %v1072
    %v1117 = vmul.f32 %v1042, %v1068
    %v1118 = vmul.f32 %v1043, %v1072
    %v1119 = vmul.f32 %v1044, %v1068
    %v1120 = vmul.f32 %v1045, %v1072
    %v1121 = vmul.f32 %v1046, %v1068
    %v1122 = vmul.f32 %v1047, %v1072
    %v1123 = vmul.f32 %v1048, %v1068
    %v1124 = vmul.f32 %v1049, %v1072
    %v1125 = vmul.f32 %v1050, %v1068
    %v1126 = vmul.f32 %v1051, %v1072
    %v1127 = vmul.f32 %v1052, %v1068
    %v1128 = vmul.f32 %v1053, %v1072
    %v1129 = vmul.f32 %v1054, %v1068
    %v1130 = vmul.f32 %v1055, %v1072
    %v1131 = vmul.f32 %v1056, %v1068
    %v1132 = vmul.f32 %v1057, %v1072
    %v1133 = vmul.f32 %v1058, %v1068
    %v1134 = vmul.f32 %v1059, %v1072
    %v1135 = vmul.f32 %v1060, %v1068
    %v1136 = vmul.f32 %v1061, %v1072
    %v1137 = vmul.f32 %v1062, %v1068
    %v1138 = vmul.f32 %v1063, %v1072
    %v1140 = vlaneseq
    %v1141 = vshrl.u32 %v1140, 7
    %v1142 = vsub.s32 0, %v1141
    %v1143 = vrot.slane %v740, %v1142
    %v1144 = vlaneseq
    %v1145 = vshrl.u32 %v1144, 7
    %v1146 = vsub.s32 1, %v1145
    %v1147 = vrot.slane %v740, %v1146
    %v1150 = vadd.f32 %v1075, %v1143
    %v1151 = vadd.f32 %v1076, %v1147
    %v1152 = vadd.f32 %v1077, %v1143
    %v1153 = vadd.f32 %v1078, %v1147
    %v1154 = vadd.f32 %v1079, %v1143
    %v1155 = vadd.f32 %v1080, %v1147
    %v1156 = vadd.f32 %v1081, %v1143
    %v1157 = vadd.f32 %v1082, %v1147
    %v1158 = vadd.f32 %v1083, %v1143
    %v1159 = vadd.f32 %v1084, %v1147
    %v1160 = vadd.f32 %v1085, %v1143
    %v1161 = vadd.f32 %v1086, %v1147
    %v1162 = vadd.f32 %v1087, %v1143
    %v1163 = vadd.f32 %v1088, %v1147
    %v1164 = vadd.f32 %v1089, %v1143
    %v1165 = vadd.f32 %v1090, %v1147
    %v1166 = vadd.f32 %v1091, %v1143
    %v1167 = vadd.f32 %v1092, %v1147
    %v1168 = vadd.f32 %v1093, %v1143
    %v1169 = vadd.f32 %v1094, %v1147
    %v1170 = vadd.f32 %v1095, %v1143
    %v1171 = vadd.f32 %v1096, %v1147
    %v1172 = vadd.f32 %v1097, %v1143
    %v1173 = vadd.f32 %v1098, %v1147
    %v1174 = vadd.f32 %v1099, %v1143
    %v1175 = vadd.f32 %v1100, %v1147
    %v1176 = vadd.f32 %v1101, %v1143
    %v1177 = vadd.f32 %v1102, %v1147
    %v1178 = vadd.f32 %v1103, %v1143
    %v1179 = vadd.f32 %v1104, %v1147
    %v1180 = vadd.f32 %v1105, %v1143
    %v1181 = vadd.f32 %v1106, %v1147
    %v1182 = vadd.f32 %v1107, %v1143
    %v1183 = vadd.f32 %v1108, %v1147
    %v1184 = vadd.f32 %v1109, %v1143
    %v1185 = vadd.f32 %v1110, %v1147
    %v1186 = vadd.f32 %v1111, %v1143
    %v1187 = vadd.f32 %v1112, %v1147
    %v1188 = vadd.f32 %v1113, %v1143
    %v1189 = vadd.f32 %v1114, %v1147
    %v1190 = vadd.f32 %v1115, %v1143
    %v1191 = vadd.f32 %v1116, %v1147
    %v1192 = vadd.f32 %v1117, %v1143
    %v1193 = vadd.f32 %v1118, %v1147
    %v1194 = vadd.f32 %v1119, %v1143
    %v1195 = vadd.f32 %v1120, %v1147
    %v1196 = vadd.f32 %v1121, %v1143
    %v1197 = vadd.f32 %v1122, %v1147
    %v1198 = vadd.f32 %v1123, %v1143
    %v1199 = vadd.f32 %v1124, %v1147
    %v1200 = vadd.f32 %v1125, %v1143
    %v1201 = vadd.f32 %v1126, %v1147
    %v1202 = vadd.f32 %v1127, %v1143
    %v1203 = vadd.f32 %v1128, %v1147
    %v1204 = vadd.f32 %v1129, %v1143
    %v1205 = vadd.f32 %v1130, %v1147
    %v1206 = vadd.f32 %v1131, %v1143
    %v1207 = vadd.f32 %v1132, %v1147
    %v1208 = vadd.f32 %v1133, %v1143
    %v1209 = vadd.f32 %v1134, %v1147
    %v1210 = vadd.f32 %v1135, %v1143
    %v1211 = vadd.f32 %v1136, %v1147
    %v1212 = vadd.f32 %v1137, %v1143
    %v1213 = vadd.f32 %v1138, %v1147
    %vm1214 = vcmp.gt.f32.partialorder %v1150, 0.0
    %vm1215 = vcmp.gt.f32.partialorder %v1151, 0.0
    %vm1216 = vcmp.gt.f32.partialorder %v1152, 0.0
    %vm1217 = vcmp.gt.f32.partialorder %v1153, 0.0
    %vm1218 = vcmp.gt.f32.partialorder %v1154, 0.0
    %vm1219 = vcmp.gt.f32.partialorder %v1155, 0.0
    %vm1220 = vcmp.gt.f32.partialorder %v1156, 0.0
    %vm1221 = vcmp.gt.f32.partialorder %v1157, 0.0
    %vm1222 = vcmp.gt.f32.partialorder %v1158, 0.0
    %vm1223 = vcmp.gt.f32.partialorder %v1159, 0.0
    %vm1224 = vcmp.gt.f32.partialorder %v1160, 0.0
    %vm1225 = vcmp.gt.f32.partialorder %v1161, 0.0
    %vm1226 = vcmp.gt.f32.partialorder %v1162, 0.0
    %vm1227 = vcmp.gt.f32.partialorder %v1163, 0.0
    %vm1228 = vcmp.gt.f32.partialorder %v1164, 0.0
    %vm1229 = vcmp.gt.f32.partialorder %v1165, 0.0
    %vm1230 = vcmp.gt.f32.partialorder %v1166, 0.0
    %vm1231 = vcmp.gt.f32.partialorder %v1167, 0.0
    %vm1232 = vcmp.gt.f32.partialorder %v1168, 0.0
    %vm1233 = vcmp.gt.f32.partialorder %v1169, 0.0
    %vm1234 = vcmp.gt.f32.partialorder %v1170, 0.0
    %vm1235 = vcmp.gt.f32.partialorder %v1171, 0.0
    %vm1236 = vcmp.gt.f32.partialorder %v1172, 0.0
    %vm1237 = vcmp.gt.f32.partialorder %v1173, 0.0
    %vm1238 = vcmp.gt.f32.partialorder %v1174, 0.0
    %vm1239 = vcmp.gt.f32.partialorder %v1175, 0.0
    %vm1240 = vcmp.gt.f32.partialorder %v1176, 0.0
    %vm1241 = vcmp.gt.f32.partialorder %v1177, 0.0
    %vm1242 = vcmp.gt.f32.partialorder %v1178, 0.0
    %vm1243 = vcmp.gt.f32.partialorder %v1179, 0.0
    %vm1244 = vcmp.gt.f32.partialorder %v1180, 0.0
    %vm1245 = vcmp.gt.f32.partialorder %v1181, 0.0
    %vm1246 = vcmp.gt.f32.partialorder %v1182, 0.0
    %vm1247 = vcmp.gt.f32.partialorder %v1183, 0.0
    %vm1248 = vcmp.gt.f32.partialorder %v1184, 0.0
    %vm1249 = vcmp.gt.f32.partialorder %v1185, 0.0
    %vm1250 = vcmp.gt.f32.partialorder %v1186, 0.0
    %vm1251 = vcmp.gt.f32.partialorder %v1187, 0.0
    %vm1252 = vcmp.gt.f32.partialorder %v1188, 0.0
    %vm1253 = vcmp.gt.f32.partialorder %v1189, 0.0
    %vm1254 = vcmp.gt.f32.partialorder %v1190, 0.0
    %vm1255 = vcmp.gt.f32.partialorder %v1191, 0.0
    %vm1256 = vcmp.gt.f32.partialorder %v1192, 0.0
    %vm1257 = vcmp.gt.f32.partialorder %v1193, 0.0
    %vm1258 = vcmp.gt.f32.partialorder %v1194, 0.0
    %vm1259 = vcmp.gt.f32.partialorder %v1195, 0.0
    %vm1260 = vcmp.gt.f32.partialorder %v1196, 0.0
    %vm1261 = vcmp.gt.f32.partialorder %v1197, 0.0
    %vm1262 = vcmp.gt.f32.partialorder %v1198, 0.0
    %vm1263 = vcmp.gt.f32.partialorder %v1199, 0.0
    %vm1264 = vcmp.gt.f32.partialorder %v1200, 0.0
    %vm1265 = vcmp.gt.f32.partialorder %v1201, 0.0
    %vm1266 = vcmp.gt.f32.partialorder %v1202, 0.0
    %vm1267 = vcmp.gt.f32.partialorder %v1203, 0.0
    %vm1268 = vcmp.gt.f32.partialorder %v1204, 0.0
    %vm1269 = vcmp.gt.f32.partialorder %v1205, 0.0
    %vm1270 = vcmp.gt.f32.partialorder %v1206, 0.0
    %vm1271 = vcmp.gt.f32.partialorder %v1207, 0.0
    %vm1272 = vcmp.gt.f32.partialorder %v1208, 0.0
    %vm1273 = vcmp.gt.f32.partialorder %v1209, 0.0
    %vm1274 = vcmp.gt.f32.partialorder %v1210, 0.0
    %vm1275 = vcmp.gt.f32.partialorder %v1211, 0.0
    %vm1276 = vcmp.gt.f32.partialorder %v1212, 0.0
    %vm1277 = vcmp.gt.f32.partialorder %v1213, 0.0
    %v1278 = vmul.f32 %v1150, 0.2
    %v1279 = vmul.f32 %v1151, 0.2
    %v1280 = vmul.f32 %v1152, 0.2
    %v1281 = vmul.f32 %v1153, 0.2
    %v1282 = vmul.f32 %v1154, 0.2
    %v1283 = vmul.f32 %v1155, 0.2
    %v1284 = vmul.f32 %v1156, 0.2
    %v1285 = vmul.f32 %v1157, 0.2
    %v1286 = vmul.f32 %v1158, 0.2
    %v1287 = vmul.f32 %v1159, 0.2
    %v1288 = vmul.f32 %v1160, 0.2
    %v1289 = vmul.f32 %v1161, 0.2
    %v1290 = vmul.f32 %v1162, 0.2
    %v1291 = vmul.f32 %v1163, 0.2
    %v1292 = vmul.f32 %v1164, 0.2
    %v1293 = vmul.f32 %v1165, 0.2
    %v1294 = vmul.f32 %v1166, 0.2
    %v1295 = vmul.f32 %v1167, 0.2
    %v1296 = vmul.f32 %v1168, 0.2
    %v1297 = vmul.f32 %v1169, 0.2
    %v1298 = vmul.f32 %v1170, 0.2
    %v1299 = vmul.f32 %v1171, 0.2
    %v1300 = vmul.f32 %v1172, 0.2
    %v1301 = vmul.f32 %v1173, 0.2
    %v1302 = vmul.f32 %v1174, 0.2
    %v1303 = vmul.f32 %v1175, 0.2
    %v1304 = vmul.f32 %v1176, 0.2
    %v1305 = vmul.f32 %v1177, 0.2
    %v1306 = vmul.f32 %v1178, 0.2
    %v1307 = vmul.f32 %v1179, 0.2
    %v1308 = vmul.f32 %v1180, 0.2
    %v1309 = vmul.f32 %v1181, 0.2
    %v1310 = vmul.f32 %v1182, 0.2
    %v1311 = vmul.f32 %v1183, 0.2
    %v1312 = vmul.f32 %v1184, 0.2
    %v1313 = vmul.f32 %v1185, 0.2
    %v1314 = vmul.f32 %v1186, 0.2
    %v1315 = vmul.f32 %v1187, 0.2
    %v1316 = vmul.f32 %v1188, 0.2
    %v1317 = vmul.f32 %v1189, 0.2
    %v1318 = vmul.f32 %v1190, 0.2
    %v1319 = vmul.f32 %v1191, 0.2
    %v1320 = vmul.f32 %v1192, 0.2
    %v1321 = vmul.f32 %v1193, 0.2
    %v1322 = vmul.f32 %v1194, 0.2
    %v1323 = vmul.f32 %v1195, 0.2
    %v1324 = vmul.f32 %v1196, 0.2
    %v1325 = vmul.f32 %v1197, 0.2
    %v1326 = vmul.f32 %v1198, 0.2
    %v1327 = vmul.f32 %v1199, 0.2
    %v1328 = vmul.f32 %v1200, 0.2
    %v1329 = vmul.f32 %v1201, 0.2
    %v1330 = vmul.f32 %v1202, 0.2
    %v1331 = vmul.f32 %v1203, 0.2
    %v1332 = vmul.f32 %v1204, 0.2
    %v1333 = vmul.f32 %v1205, 0.2
    %v1334 = vmul.f32 %v1206, 0.2
    %v1335 = vmul.f32 %v1207, 0.2
    %v1336 = vmul.f32 %v1208, 0.2
    %v1337 = vmul.f32 %v1209, 0.2
    %v1338 = vmul.f32 %v1210, 0.2
    %v1339 = vmul.f32 %v1211, 0.2
    %v1340 = vmul.f32 %v1212, 0.2
    %v1341 = vmul.f32 %v1213, 0.2
    %v1342 = vsel %vm1214, %v1150, %v1278
    %v1343 = vsel %vm1215, %v1151, %v1279
    %v1344 = vsel %vm1216, %v1152, %v1280
    %v1345 = vsel %vm1217, %v1153, %v1281
    %v1346 = vsel %vm1218, %v1154, %v1282
    %v1347 = vsel %vm1219, %v1155, %v1283
    %v1348 = vsel %vm1220, %v1156, %v1284
    %v1349 = vsel %vm1221, %v1157, %v1285
    %v1350 = vsel %vm1222, %v1158, %v1286
    %v1351 = vsel %vm1223, %v1159, %v1287
    %v1352 = vsel %vm1224, %v1160, %v1288
    %v1353 = vsel %vm1225, %v1161, %v1289
    %v1354 = vsel %vm1226, %v1162, %v1290
    %v1355 = vsel %vm1227, %v1163, %v1291
    %v1356 = vsel %vm1228, %v1164, %v1292
    %v1357 = vsel %vm1229, %v1165, %v1293
    %v1358 = vsel %vm1230, %v1166, %v1294
    %v1359 = vsel %vm1231, %v1167, %v1295
    %v1360 = vsel %vm1232, %v1168, %v1296
    %v1361 = vsel %vm1233, %v1169, %v1297
    %v1362 = vsel %vm1234, %v1170, %v1298
    %v1363 = vsel %vm1235, %v1171, %v1299
    %v1364 = vsel %vm1236, %v1172, %v1300
    %v1365 = vsel %vm1237, %v1173, %v1301
    %v1366 = vsel %vm1238, %v1174, %v1302
    %v1367 = vsel %vm1239, %v1175, %v1303
    %v1368 = vsel %vm1240, %v1176, %v1304
    %v1369 = vsel %vm1241, %v1177, %v1305
    %v1370 = vsel %vm1242, %v1178, %v1306
    %v1371 = vsel %vm1243, %v1179, %v1307
    %v1372 = vsel %vm1244, %v1180, %v1308
    %v1373 = vsel %vm1245, %v1181, %v1309
    %v1374 = vsel %vm1246, %v1182, %v1310
    %v1375 = vsel %vm1247, %v1183, %v1311
    %v1376 = vsel %vm1248, %v1184, %v1312
    %v1377 = vsel %vm1249, %v1185, %v1313
    %v1378 = vsel %vm1250, %v1186, %v1314
    %v1379 = vsel %vm1251, %v1187, %v1315
    %v1380 = vsel %vm1252, %v1188, %v1316
    %v1381 = vsel %vm1253, %v1189, %v1317
    %v1382 = vsel %vm1254, %v1190, %v1318
    %v1383 = vsel %vm1255, %v1191, %v1319
    %v1384 = vsel %vm1256, %v1192, %v1320
    %v1385 = vsel %vm1257, %v1193, %v1321
    %v1386 = vsel %vm1258, %v1194, %v1322
    %v1387 = vsel %vm1259, %v1195, %v1323
    %v1388 = vsel %vm1260, %v1196, %v1324
    %v1389 = vsel %vm1261, %v1197, %v1325
    %v1390 = vsel %vm1262, %v1198, %v1326
    %v1391 = vsel %vm1263, %v1199, %v1327
    %v1392 = vsel %vm1264, %v1200, %v1328
    %v1393 = vsel %vm1265, %v1201, %v1329
    %v1394 = vsel %vm1266, %v1202, %v1330
    %v1395 = vsel %vm1267, %v1203, %v1331
    %v1396 = vsel %vm1268, %v1204, %v1332
    %v1397 = vsel %vm1269, %v1205, %v1333
    %v1398 = vsel %vm1270, %v1206, %v1334
    %v1399 = vsel %vm1271, %v1207, %v1335
    %v1400 = vsel %vm1272, %v1208, %v1336
    %v1401 = vsel %vm1273, %v1209, %v1337
    %v1402 = vsel %vm1274, %v1210, %v1338
    %v1403 = vsel %vm1275, %v1211, %v1339
    %v1404 = vsel %vm1276, %v1212, %v1340
    %v1405 = vsel %vm1277, %v1213, %v1341
    %v1406 = vld [vmem:[%s3] sm:$0xff]
    %v1407 = vld [vmem:[%s3 + $0x8] sm:$0xff]
    %v1408 = vld [vmem:[%s3 + $0x10] sm:$0xff]
    %v1409 = vld [vmem:[%s3 + $0x18] sm:$0xff]
    %v1410 = vld [vmem:[%s3 + $0x20] sm:$0xff]
    %v1411 = vld [vmem:[%s3 + $0x28] sm:$0xff]
    %v1412 = vld [vmem:[%s3 + $0x30] sm:$0xff]
    %v1413 = vld [vmem:[%s3 + $0x38] sm:$0xff]
    %v1414 = vld [vmem:[%s3 + $0x40] sm:$0xff]
    %v1415 = vld [vmem:[%s3 + $0x48] sm:$0xff]
    %v1416 = vld [vmem:[%s3 + $0x50] sm:$0xff]
    %v1417 = vld [vmem:[%s3 + $0x58] sm:$0xff]
    %v1418 = vld [vmem:[%s3 + $0x60] sm:$0xff]
    %v1419 = vld [vmem:[%s3 + $0x68] sm:$0xff]
    %v1420 = vld [vmem:[%s3 + $0x70] sm:$0xff]
    %v1421 = vld [vmem:[%s3 + $0x78] sm:$0xff]
    %v1422 = vld [vmem:[%s3 + $0x80] sm:$0xff]
    %v1423 = vld [vmem:[%s3 + $0x88] sm:$0xff]
    %v1424 = vld [vmem:[%s3 + $0x90] sm:$0xff]
    %v1425 = vld [vmem:[%s3 + $0x98] sm:$0xff]
    %v1426 = vld [vmem:[%s3 + $0xa0] sm:$0xff]
    %v1427 = vld [vmem:[%s3 + $0xa8] sm:$0xff]
    %v1428 = vld [vmem:[%s3 + $0xb0] sm:$0xff]
    %v1429 = vld [vmem:[%s3 + $0xb8] sm:$0xff]
    %v1430 = vld [vmem:[%s3 + $0xc0] sm:$0xff]
    %v1431 = vld [vmem:[%s3 + $0xc8] sm:$0xff]
    %v1432 = vld [vmem:[%s3 + $0xd0] sm:$0xff]
    %v1433 = vld [vmem:[%s3 + $0xd8] sm:$0xff]
    %v1434 = vld [vmem:[%s3 + $0xe0] sm:$0xff]
    %v1435 = vld [vmem:[%s3 + $0xe8] sm:$0xff]
    %v1436 = vld [vmem:[%s3 + $0xf0] sm:$0xff]
    %v1437 = vld [vmem:[%s3 + $0xf8] sm:$0xff]
    %v1438 = vunpack.c.l.s8.bf16 %v1406
    %v1439 = vunpack.c.l.s8.bf16 %v1407
    %v1440 = vunpack.c.l.s8.bf16 %v1408
    %v1441 = vunpack.c.l.s8.bf16 %v1409
    %v1442 = vunpack.c.h.s8.bf16 %v1406
    %v1443 = vunpack.c.h.s8.bf16 %v1407
    %v1444 = vunpack.c.h.s8.bf16 %v1408
    %v1445 = vunpack.c.h.s8.bf16 %v1409
    %v1446 = vunpack.c.l.s8.bf16 %v1410
    %v1447 = vunpack.c.l.s8.bf16 %v1411
    %v1448 = vunpack.c.l.s8.bf16 %v1412
    %v1449 = vunpack.c.l.s8.bf16 %v1413
    %v1450 = vunpack.c.h.s8.bf16 %v1410
    %v1451 = vunpack.c.h.s8.bf16 %v1411
    %v1452 = vunpack.c.h.s8.bf16 %v1412
    %v1453 = vunpack.c.h.s8.bf16 %v1413
    %v1454 = vunpack.c.l.s8.bf16 %v1414
    %v1455 = vunpack.c.l.s8.bf16 %v1415
    %v1456 = vunpack.c.l.s8.bf16 %v1416
    %v1457 = vunpack.c.l.s8.bf16 %v1417
    %v1458 = vunpack.c.h.s8.bf16 %v1414
    %v1459 = vunpack.c.h.s8.bf16 %v1415
    %v1460 = vunpack.c.h.s8.bf16 %v1416
    %v1461 = vunpack.c.h.s8.bf16 %v1417
    %v1462 = vunpack.c.l.s8.bf16 %v1418
    %v1463 = vunpack.c.l.s8.bf16 %v1419
    %v1464 = vunpack.c.l.s8.bf16 %v1420
    %v1465 = vunpack.c.l.s8.bf16 %v1421
    %v1466 = vunpack.c.h.s8.bf16 %v1418
    %v1467 = vunpack.c.h.s8.bf16 %v1419
    %v1468 = vunpack.c.h.s8.bf16 %v1420
    %v1469 = vunpack.c.h.s8.bf16 %v1421
    %v1470 = vunpack.c.l.s8.bf16 %v1422
    %v1471 = vunpack.c.l.s8.bf16 %v1423
    %v1472 = vunpack.c.l.s8.bf16 %v1424
    %v1473 = vunpack.c.l.s8.bf16 %v1425
    %v1474 = vunpack.c.h.s8.bf16 %v1422
    %v1475 = vunpack.c.h.s8.bf16 %v1423
    %v1476 = vunpack.c.h.s8.bf16 %v1424
    %v1477 = vunpack.c.h.s8.bf16 %v1425
    %v1478 = vunpack.c.l.s8.bf16 %v1426
    %v1479 = vunpack.c.l.s8.bf16 %v1427
    %v1480 = vunpack.c.l.s8.bf16 %v1428
    %v1481 = vunpack.c.l.s8.bf16 %v1429
    %v1482 = vunpack.c.h.s8.bf16 %v1426
    %v1483 = vunpack.c.h.s8.bf16 %v1427
    %v1484 = vunpack.c.h.s8.bf16 %v1428
    %v1485 = vunpack.c.h.s8.bf16 %v1429
    %v1486 = vunpack.c.l.s8.bf16 %v1430
    %v1487 = vunpack.c.l.s8.bf16 %v1431
    %v1488 = vunpack.c.l.s8.bf16 %v1432
    %v1489 = vunpack.c.l.s8.bf16 %v1433
    %v1490 = vunpack.c.h.s8.bf16 %v1430
    %v1491 = vunpack.c.h.s8.bf16 %v1431
    %v1492 = vunpack.c.h.s8.bf16 %v1432
    %v1493 = vunpack.c.h.s8.bf16 %v1433
    %v1494 = vunpack.c.l.s8.bf16 %v1434
    %v1495 = vunpack.c.l.s8.bf16 %v1435
    %v1496 = vunpack.c.l.s8.bf16 %v1436
    %v1497 = vunpack.c.l.s8.bf16 %v1437
    %v1498 = vunpack.c.h.s8.bf16 %v1434
    %v1499 = vunpack.c.h.s8.bf16 %v1435
    %v1500 = vunpack.c.h.s8.bf16 %v1436
    %v1501 = vunpack.c.h.s8.bf16 %v1437
    %v1502 = vpack.c.bf16 %v1344, %v1342
    %v1503 = vpack.c.bf16 %v1345, %v1343
    %v1504 = vpack.c.bf16 %v1348, %v1346
    %v1505 = vpack.c.bf16 %v1349, %v1347
    %v1506 = vpack.c.bf16 %v1352, %v1350
    %v1507 = vpack.c.bf16 %v1353, %v1351
    %v1508 = vpack.c.bf16 %v1356, %v1354
    %v1509 = vpack.c.bf16 %v1357, %v1355
    %v1510 = vpack.c.bf16 %v1360, %v1358
    %v1511 = vpack.c.bf16 %v1361, %v1359
    %v1512 = vpack.c.bf16 %v1364, %v1362
    %v1513 = vpack.c.bf16 %v1365, %v1363
    %v1514 = vpack.c.bf16 %v1368, %v1366
    %v1515 = vpack.c.bf16 %v1369, %v1367
    %v1516 = vpack.c.bf16 %v1372, %v1370
    %v1517 = vpack.c.bf16 %v1373, %v1371
    %v1518 = vpack.c.bf16 %v1376, %v1374
    %v1519 = vpack.c.bf16 %v1377, %v1375
    %v1520 = vpack.c.bf16 %v1380, %v1378
    %v1521 = vpack.c.bf16 %v1381, %v1379
    %v1522 = vpack.c.bf16 %v1384, %v1382
    %v1523 = vpack.c.bf16 %v1385, %v1383
    %v1524 = vpack.c.bf16 %v1388, %v1386
    %v1525 = vpack.c.bf16 %v1389, %v1387
    %v1526 = vpack.c.bf16 %v1392, %v1390
    %v1527 = vpack.c.bf16 %v1393, %v1391
    %v1528 = vpack.c.bf16 %v1396, %v1394
    %v1529 = vpack.c.bf16 %v1397, %v1395
    %v1530 = vpack.c.bf16 %v1400, %v1398
    %v1531 = vpack.c.bf16 %v1401, %v1399
    %v1532 = vpack.c.bf16 %v1404, %v1402
    %v1533 = vpack.c.bf16 %v1405, %v1403
    %1534 = vmatprep.subr.bf16.mxu0 %v1467
    %1535 = vmatpush1.bf16.msra.mxu0 %v1466
    %1536 = vmatprep.subr.bf16.mxu0 %v1463
    %1537 = vmatpush1.bf16.msra.mxu0 %v1462
    %1538 = vmatprep.subr.bf16.mxu0 %v1459
    %1539 = vmatpush1.bf16.msra.mxu0 %v1458
    %1540 = vmatprep.subr.bf16.mxu0 %v1455
    %1541 = vmatpush1.bf16.msra.mxu0 %v1454
    %1542 = vmatprep.subr.bf16.mxu0 %v1451
    %1543 = vmatpush1.bf16.msra.mxu0 %v1450
    %1544 = vmatprep.subr.bf16.mxu0 %v1447
    %1545 = vmatpush1.bf16.msra.mxu0 %v1446
    %1546 = vmatprep.subr.bf16.mxu0 %v1443
    %1547 = vmatpush1.bf16.msra.mxu0 %v1442
    %1548 = vmatprep.subr.bf16.mxu0 %v1439
    %1549 = vmatpush1.bf16.msra.mxu0 %v1438
    %1550 = vmatprep.subr.bf16.mxu0 %v1499
    %1551 = vmatpush2.bf16.msra.mxu0 %v1498
    %1552 = vmatprep.subr.bf16.mxu0 %v1495
    %1553 = vmatpush2.bf16.msra.mxu0 %v1494
    %1554 = vmatprep.subr.bf16.mxu0 %v1491
    %1555 = vmatpush2.bf16.msra.mxu0 %v1490
    %1556 = vmatprep.subr.bf16.mxu0 %v1487
    %1557 = vmatpush2.bf16.msra.mxu0 %v1486
    %1558 = vmatprep.subr.bf16.mxu0 %v1483
    %1559 = vmatpush2.bf16.msra.mxu0 %v1482
    %1560 = vmatprep.subr.bf16.mxu0 %v1479
    %1561 = vmatpush2.bf16.msra.mxu0 %v1478
    %1562 = vmatprep.subr.bf16.mxu0 %v1475
    %1563 = vmatpush2.bf16.msra.mxu0 %v1474
    %1564 = vmatprep.subr.bf16.mxu0 %v1471
    %1565 = vmatpush2.bf16.msra.mxu0 %v1470
    %1566 = vmatprep.mubr.bf16.mxu0 %v1503
    %1567 = vmatmul.mubr.bf16.gmra.mxu0 %v1502
    %v1568 = vpop.f32.mrf.mxu0
    %v1569 = vadd.f32 0.0, %v1568
    %v1570 = vpop.f32.mrf.mxu0
    %v1571 = vadd.f32 0.0, %v1570
    %v1572 = vpop.f32.mrf.mxu0
    %v1573 = vadd.f32 0.0, %v1572
    %v1574 = vpop.f32.mrf.mxu0
    %v1575 = vadd.f32 0.0, %v1574
    %1576 = vmatprep.mubr.bf16.mxu0 %v1505
    %1577 = vmatmul.mubr.bf16.gmra.mxu0 %v1504
    %v1578 = vpop.f32.mrf.mxu0
    %v1579 = vadd.f32 0.0, %v1578
    %v1580 = vpop.f32.mrf.mxu0
    %v1581 = vadd.f32 0.0, %v1580
    %v1582 = vpop.f32.mrf.mxu0
    %v1583 = vadd.f32 0.0, %v1582
    %v1584 = vpop.f32.mrf.mxu0
    %v1585 = vadd.f32 0.0, %v1584
    %1586 = vmatprep.mubr.bf16.mxu0 %v1507
    %1587 = vmatmul.mubr.bf16.gmra.mxu0 %v1506
    %v1588 = vpop.f32.mrf.mxu0
    %v1589 = vadd.f32 0.0, %v1588
    %v1590 = vpop.f32.mrf.mxu0
    %v1591 = vadd.f32 0.0, %v1590
    %v1592 = vpop.f32.mrf.mxu0
    %v1593 = vadd.f32 0.0, %v1592
    %v1594 = vpop.f32.mrf.mxu0
    %v1595 = vadd.f32 0.0, %v1594
    %1596 = vmatprep.mubr.bf16.mxu0 %v1509
    %1597 = vmatmul.mubr.bf16.gmra.mxu0 %v1508
    %v1598 = vpop.f32.mrf.mxu0
    %v1599 = vadd.f32 0.0, %v1598
    %v1600 = vpop.f32.mrf.mxu0
    %v1601 = vadd.f32 0.0, %v1600
    %v1602 = vpop.f32.mrf.mxu0
    %v1603 = vadd.f32 0.0, %v1602
    %v1604 = vpop.f32.mrf.mxu0
    %v1605 = vadd.f32 0.0, %v1604
    %1606 = vmatprep.mubr.bf16.mxu0 %v1511
    %1607 = vmatmul.mubr.bf16.gmra.mxu0 %v1510
    %v1608 = vpop.f32.mrf.mxu0
    %v1609 = vadd.f32 0.0, %v1608
    %v1610 = vpop.f32.mrf.mxu0
    %v1611 = vadd.f32 0.0, %v1610
    %v1612 = vpop.f32.mrf.mxu0
    %v1613 = vadd.f32 0.0, %v1612
    %v1614 = vpop.f32.mrf.mxu0
    %v1615 = vadd.f32 0.0, %v1614
    %1616 = vmatprep.mubr.bf16.mxu0 %v1513
    %1617 = vmatmul.mubr.bf16.gmra.mxu0 %v1512
    %v1618 = vpop.f32.mrf.mxu0
    %v1619 = vadd.f32 0.0, %v1618
    %v1620 = vpop.f32.mrf.mxu0
    %v1621 = vadd.f32 0.0, %v1620
    %v1622 = vpop.f32.mrf.mxu0
    %v1623 = vadd.f32 0.0, %v1622
    %v1624 = vpop.f32.mrf.mxu0
    %v1625 = vadd.f32 0.0, %v1624
    %1626 = vmatprep.mubr.bf16.mxu0 %v1515
    %1627 = vmatmul.mubr.bf16.gmra.mxu0 %v1514
    %v1628 = vpop.f32.mrf.mxu0
    %v1629 = vadd.f32 0.0, %v1628
    %v1630 = vpop.f32.mrf.mxu0
    %v1631 = vadd.f32 0.0, %v1630
    %v1632 = vpop.f32.mrf.mxu0
    %v1633 = vadd.f32 0.0, %v1632
    %v1634 = vpop.f32.mrf.mxu0
    %v1635 = vadd.f32 0.0, %v1634
    %1636 = vmatprep.mubr.bf16.mxu0 %v1517
    %1637 = vmatmul.mubr.bf16.gmra.mxu0 %v1516
    %v1638 = vpop.f32.mrf.mxu0
    %v1639 = vadd.f32 0.0, %v1638
    %v1640 = vpop.f32.mrf.mxu0
    %v1641 = vadd.f32 0.0, %v1640
    %v1642 = vpop.f32.mrf.mxu0
    %v1643 = vadd.f32 0.0, %v1642
    %v1644 = vpop.f32.mrf.mxu0
    %v1645 = vadd.f32 0.0, %v1644
    %1646 = vmatprep.mubr.bf16.mxu0 %v1519
    %1647 = vmatmul.mubr.bf16.gmra.mxu0 %v1518
    %v1648 = vpop.f32.mrf.mxu0
    %v1649 = vadd.f32 0.0, %v1648
    %v1650 = vpop.f32.mrf.mxu0
    %v1651 = vadd.f32 0.0, %v1650
    %v1652 = vpop.f32.mrf.mxu0
    %v1653 = vadd.f32 0.0, %v1652
    %v1654 = vpop.f32.mrf.mxu0
    %v1655 = vadd.f32 0.0, %v1654
    %1656 = vmatprep.mubr.bf16.mxu0 %v1521
    %1657 = vmatmul.mubr.bf16.gmra.mxu0 %v1520
    %v1658 = vpop.f32.mrf.mxu0
    %v1659 = vadd.f32 0.0, %v1658
    %v1660 = vpop.f32.mrf.mxu0
    %v1661 = vadd.f32 0.0, %v1660
    %v1662 = vpop.f32.mrf.mxu0
    %v1663 = vadd.f32 0.0, %v1662
    %v1664 = vpop.f32.mrf.mxu0
    %v1665 = vadd.f32 0.0, %v1664
    %1666 = vmatprep.mubr.bf16.mxu0 %v1523
    %1667 = vmatmul.mubr.bf16.gmra.mxu0 %v1522
    %v1668 = vpop.f32.mrf.mxu0
    %v1669 = vadd.f32 0.0, %v1668
    %v1670 = vpop.f32.mrf.mxu0
    %v1671 = vadd.f32 0.0, %v1670
    %v1672 = vpop.f32.mrf.mxu0
    %v1673 = vadd.f32 0.0, %v1672
    %v1674 = vpop.f32.mrf.mxu0
    %v1675 = vadd.f32 0.0, %v1674
    %1676 = vmatprep.mubr.bf16.mxu0 %v1525
    %1677 = vmatmul.mubr.bf16.gmra.mxu0 %v1524
    %v1678 = vpop.f32.mrf.mxu0
    %v1679 = vadd.f32 0.0, %v1678
    %v1680 = vpop.f32.mrf.mxu0
    %v1681 = vadd.f32 0.0, %v1680
    %v1682 = vpop.f32.mrf.mxu0
    %v1683 = vadd.f32 0.0, %v1682
    %v1684 = vpop.f32.mrf.mxu0
    %v1685 = vadd.f32 0.0, %v1684
    %1686 = vmatprep.mubr.bf16.mxu0 %v1527
    %1687 = vmatmul.mubr.bf16.gmra.mxu0 %v1526
    %v1688 = vpop.f32.mrf.mxu0
    %v1689 = vadd.f32 0.0, %v1688
    %v1690 = vpop.f32.mrf.mxu0
    %v1691 = vadd.f32 0.0, %v1690
    %v1692 = vpop.f32.mrf.mxu0
    %v1693 = vadd.f32 0.0, %v1692
    %v1694 = vpop.f32.mrf.mxu0
    %v1695 = vadd.f32 0.0, %v1694
    %1696 = vmatprep.mubr.bf16.mxu0 %v1529
    %1697 = vmatmul.mubr.bf16.gmra.mxu0 %v1528
    %v1698 = vpop.f32.mrf.mxu0
    %v1699 = vadd.f32 0.0, %v1698
    %v1700 = vpop.f32.mrf.mxu0
    %v1701 = vadd.f32 0.0, %v1700
    %v1702 = vpop.f32.mrf.mxu0
    %v1703 = vadd.f32 0.0, %v1702
    %v1704 = vpop.f32.mrf.mxu0
    %v1705 = vadd.f32 0.0, %v1704
    %1706 = vmatprep.mubr.bf16.mxu0 %v1531
    %1707 = vmatmul.mubr.bf16.gmra.mxu0 %v1530
    %v1708 = vpop.f32.mrf.mxu0
    %v1709 = vadd.f32 0.0, %v1708
    %v1710 = vpop.f32.mrf.mxu0
    %v1711 = vadd.f32 0.0, %v1710
    %v1712 = vpop.f32.mrf.mxu0
    %v1713 = vadd.f32 0.0, %v1712
    %v1714 = vpop.f32.mrf.mxu0
    %v1715 = vadd.f32 0.0, %v1714
    %1716 = vmatprep.mubr.bf16.mxu0 %v1533
    %1717 = vmatmul.mubr.bf16.gmra.mxu0 %v1532
    %v1718 = vpop.f32.mrf.mxu0
    %v1719 = vadd.f32 0.0, %v1718
    %v1720 = vpop.f32.mrf.mxu0
    %v1721 = vadd.f32 0.0, %v1720
    %v1722 = vpop.f32.mrf.mxu0
    %v1723 = vadd.f32 0.0, %v1722
    %v1724 = vpop.f32.mrf.mxu0
    %v1725 = vadd.f32 0.0, %v1724
    %1726 = vdwg.mxu0
    %1727 = vmatprep.subr.bf16.mxu0 %v1469
    %1728 = vmatpush1.bf16.msra.mxu0 %v1468
    %1729 = vmatprep.subr.bf16.mxu0 %v1465
    %1730 = vmatpush1.bf16.msra.mxu0 %v1464
    %1731 = vmatprep.subr.bf16.mxu0 %v1461
    %1732 = vmatpush1.bf16.msra.mxu0 %v1460
    %1733 = vmatprep.subr.bf16.mxu0 %v1457
    %1734 = vmatpush1.bf16.msra.mxu0 %v1456
    %1735 = vmatprep.subr.bf16.mxu0 %v1453
    %1736 = vmatpush1.bf16.msra.mxu0 %v1452
    %1737 = vmatprep.subr.bf16.mxu0 %v1449
    %1738 = vmatpush1.bf16.msra.mxu0 %v1448
    %1739 = vmatprep.subr.bf16.mxu0 %v1445
    %1740 = vmatpush1.bf16.msra.mxu0 %v1444
    %1741 = vmatprep.subr.bf16.mxu0 %v1441
    %1742 = vmatpush1.bf16.msra.mxu0 %v1440
    %1743 = vmatprep.subr.bf16.mxu0 %v1501
    %1744 = vmatpush2.bf16.msra.mxu0 %v1500
    %1745 = vmatprep.subr.bf16.mxu0 %v1497
    %1746 = vmatpush2.bf16.msra.mxu0 %v1496
    %1747 = vmatprep.subr.bf16.mxu0 %v1493
    %1748 = vmatpush2.bf16.msra.mxu0 %v1492
    %1749 = vmatprep.subr.bf16.mxu0 %v1489
    %1750 = vmatpush2.bf16.msra.mxu0 %v1488
    %1751 = vmatprep.subr.bf16.mxu0 %v1485
    %1752 = vmatpush2.bf16.msra.mxu0 %v1484
    %1753 = vmatprep.subr.bf16.mxu0 %v1481
    %1754 = vmatpush2.bf16.msra.mxu0 %v1480
    %1755 = vmatprep.subr.bf16.mxu0 %v1477
    %1756 = vmatpush2.bf16.msra.mxu0 %v1476
    %1757 = vmatprep.subr.bf16.mxu0 %v1473
    %1758 = vmatpush2.bf16.msra.mxu0 %v1472
    %1759 = vmatprep.mubr.bf16.mxu0 %v1503
    %1760 = vmatmul.mubr.bf16.gmra.mxu0 %v1502
    %v1761 = vpop.f32.mrf.mxu0
    %v1762 = vadd.f32 0.0, %v1761
    %v1763 = vpop.f32.mrf.mxu0
    %v1764 = vadd.f32 0.0, %v1763
    %v1765 = vpop.f32.mrf.mxu0
    %v1766 = vadd.f32 0.0, %v1765
    %v1767 = vpop.f32.mrf.mxu0
    %v1768 = vadd.f32 0.0, %v1767
    %1769 = vmatprep.mubr.bf16.mxu0 %v1505
    %1770 = vmatmul.mubr.bf16.gmra.mxu0 %v1504
    %v1771 = vpop.f32.mrf.mxu0
    %v1772 = vadd.f32 0.0, %v1771
    %v1773 = vpop.f32.mrf.mxu0
    %v1774 = vadd.f32 0.0, %v1773
    %v1775 = vpop.f32.mrf.mxu0
    %v1776 = vadd.f32 0.0, %v1775
    %v1777 = vpop.f32.mrf.mxu0
    %v1778 = vadd.f32 0.0, %v1777
    %1779 = vmatprep.mubr.bf16.mxu0 %v1507
    %1780 = vmatmul.mubr.bf16.gmra.mxu0 %v1506
    %v1781 = vpop.f32.mrf.mxu0
    %v1782 = vadd.f32 0.0, %v1781
    %v1783 = vpop.f32.mrf.mxu0
    %v1784 = vadd.f32 0.0, %v1783
    %v1785 = vpop.f32.mrf.mxu0
    %v1786 = vadd.f32 0.0, %v1785
    %v1787 = vpop.f32.mrf.mxu0
    %v1788 = vadd.f32 0.0, %v1787
    %1789 = vmatprep.mubr.bf16.mxu0 %v1509
    %1790 = vmatmul.mubr.bf16.gmra.mxu0 %v1508
    %v1791 = vpop.f32.mrf.mxu0
    %v1792 = vadd.f32 0.0, %v1791
    %v1793 = vpop.f32.mrf.mxu0
    %v1794 = vadd.f32 0.0, %v1793
    %v1795 = vpop.f32.mrf.mxu0
    %v1796 = vadd.f32 0.0, %v1795
    %v1797 = vpop.f32.mrf.mxu0
    %v1798 = vadd.f32 0.0, %v1797
    %1799 = vmatprep.mubr.bf16.mxu0 %v1511
    %1800 = vmatmul.mubr.bf16.gmra.mxu0 %v1510
    %v1801 = vpop.f32.mrf.mxu0
    %v1802 = vadd.f32 0.0, %v1801
    %v1803 = vpop.f32.mrf.mxu0
    %v1804 = vadd.f32 0.0, %v1803
    %v1805 = vpop.f32.mrf.mxu0
    %v1806 = vadd.f32 0.0, %v1805
    %v1807 = vpop.f32.mrf.mxu0
    %v1808 = vadd.f32 0.0, %v1807
    %1809 = vmatprep.mubr.bf16.mxu0 %v1513
    %1810 = vmatmul.mubr.bf16.gmra.mxu0 %v1512
    %v1811 = vpop.f32.mrf.mxu0
    %v1812 = vadd.f32 0.0, %v1811
    %v1813 = vpop.f32.mrf.mxu0
    %v1814 = vadd.f32 0.0, %v1813
    %v1815 = vpop.f32.mrf.mxu0
    %v1816 = vadd.f32 0.0, %v1815
    %v1817 = vpop.f32.mrf.mxu0
    %v1818 = vadd.f32 0.0, %v1817
    %1819 = vmatprep.mubr.bf16.mxu0 %v1515
    %1820 = vmatmul.mubr.bf16.gmra.mxu0 %v1514
    %v1821 = vpop.f32.mrf.mxu0
    %v1822 = vadd.f32 0.0, %v1821
    %v1823 = vpop.f32.mrf.mxu0
    %v1824 = vadd.f32 0.0, %v1823
    %v1825 = vpop.f32.mrf.mxu0
    %v1826 = vadd.f32 0.0, %v1825
    %v1827 = vpop.f32.mrf.mxu0
    %v1828 = vadd.f32 0.0, %v1827
    %1829 = vmatprep.mubr.bf16.mxu0 %v1517
    %1830 = vmatmul.mubr.bf16.gmra.mxu0 %v1516
    %v1831 = vpop.f32.mrf.mxu0
    %v1832 = vadd.f32 0.0, %v1831
    %v1833 = vpop.f32.mrf.mxu0
    %v1834 = vadd.f32 0.0, %v1833
    %v1835 = vpop.f32.mrf.mxu0
    %v1836 = vadd.f32 0.0, %v1835
    %v1837 = vpop.f32.mrf.mxu0
    %v1838 = vadd.f32 0.0, %v1837
    %1839 = vmatprep.mubr.bf16.mxu0 %v1519
    %1840 = vmatmul.mubr.bf16.gmra.mxu0 %v1518
    %v1841 = vpop.f32.mrf.mxu0
    %v1842 = vadd.f32 0.0, %v1841
    %v1843 = vpop.f32.mrf.mxu0
    %v1844 = vadd.f32 0.0, %v1843
    %v1845 = vpop.f32.mrf.mxu0
    %v1846 = vadd.f32 0.0, %v1845
    %v1847 = vpop.f32.mrf.mxu0
    %v1848 = vadd.f32 0.0, %v1847
    %1849 = vmatprep.mubr.bf16.mxu0 %v1521
    %1850 = vmatmul.mubr.bf16.gmra.mxu0 %v1520
    %v1851 = vpop.f32.mrf.mxu0
    %v1852 = vadd.f32 0.0, %v1851
    %v1853 = vpop.f32.mrf.mxu0
    %v1854 = vadd.f32 0.0, %v1853
    %v1855 = vpop.f32.mrf.mxu0
    %v1856 = vadd.f32 0.0, %v1855
    %v1857 = vpop.f32.mrf.mxu0
    %v1858 = vadd.f32 0.0, %v1857
    %1859 = vmatprep.mubr.bf16.mxu0 %v1523
    %1860 = vmatmul.mubr.bf16.gmra.mxu0 %v1522
    %v1861 = vpop.f32.mrf.mxu0
    %v1862 = vadd.f32 0.0, %v1861
    %v1863 = vpop.f32.mrf.mxu0
    %v1864 = vadd.f32 0.0, %v1863
    %v1865 = vpop.f32.mrf.mxu0
    %v1866 = vadd.f32 0.0, %v1865
    %v1867 = vpop.f32.mrf.mxu0
    %v1868 = vadd.f32 0.0, %v1867
    %1869 = vmatprep.mubr.bf16.mxu0 %v1525
    %1870 = vmatmul.mubr.bf16.gmra.mxu0 %v1524
    %v1871 = vpop.f32.mrf.mxu0
    %v1872 = vadd.f32 0.0, %v1871
    %v1873 = vpop.f32.mrf.mxu0
    %v1874 = vadd.f32 0.0, %v1873
    %v1875 = vpop.f32.mrf.mxu0
    %v1876 = vadd.f32 0.0, %v1875
    %v1877 = vpop.f32.mrf.mxu0
    %v1878 = vadd.f32 0.0, %v1877
    %1879 = vmatprep.mubr.bf16.mxu0 %v1527
    %1880 = vmatmul.mubr.bf16.gmra.mxu0 %v1526
    %v1881 = vpop.f32.mrf.mxu0
    %v1882 = vadd.f32 0.0, %v1881
    %v1883 = vpop.f32.mrf.mxu0
    %v1884 = vadd.f32 0.0, %v1883
    %v1885 = vpop.f32.mrf.mxu0
    %v1886 = vadd.f32 0.0, %v1885
    %v1887 = vpop.f32.mrf.mxu0
    %v1888 = vadd.f32 0.0, %v1887
    %1889 = vmatprep.mubr.bf16.mxu0 %v1529
    %1890 = vmatmul.mubr.bf16.gmra.mxu0 %v1528
    %v1891 = vpop.f32.mrf.mxu0
    %v1892 = vadd.f32 0.0, %v1891
    %v1893 = vpop.f32.mrf.mxu0
    %v1894 = vadd.f32 0.0, %v1893
    %v1895 = vpop.f32.mrf.mxu0
    %v1896 = vadd.f32 0.0, %v1895
    %v1897 = vpop.f32.mrf.mxu0
    %v1898 = vadd.f32 0.0, %v1897
    %1899 = vmatprep.mubr.bf16.mxu0 %v1531
    %1900 = vmatmul.mubr.bf16.gmra.mxu0 %v1530
    %v1901 = vpop.f32.mrf.mxu0
    %v1902 = vadd.f32 0.0, %v1901
    %v1903 = vpop.f32.mrf.mxu0
    %v1904 = vadd.f32 0.0, %v1903
    %v1905 = vpop.f32.mrf.mxu0
    %v1906 = vadd.f32 0.0, %v1905
    %v1907 = vpop.f32.mrf.mxu0
    %v1908 = vadd.f32 0.0, %v1907
    %1909 = vmatprep.mubr.bf16.mxu0 %v1533
    %1910 = vmatmul.mubr.bf16.gmra.mxu0 %v1532
    %v1911 = vpop.f32.mrf.mxu0
    %v1912 = vadd.f32 0.0, %v1911
    %v1913 = vpop.f32.mrf.mxu0
    %v1914 = vadd.f32 0.0, %v1913
    %v1915 = vpop.f32.mrf.mxu0
    %v1916 = vadd.f32 0.0, %v1915
    %v1917 = vpop.f32.mrf.mxu0
    %v1918 = vadd.f32 0.0, %v1917
    %1919 = vdwg.mxu0
    %v1920 = vld [vmem:[#allocation7 + $0x8] sm:$0xf]
    %v1921 = vld [vmem:[#allocation7 + $0xc] sm:$0xf]
    %v1922 = vld [vmem:[#allocation7 + $0x10] sm:$0xf]
    %v1923 = vadd.f32 %v1569, %v1573
    %v1924 = vadd.f32 %v1923, %v1579
    %v1925 = vadd.f32 %v1924, %v1583
    %v1926 = vadd.f32 %v1925, %v1589
    %v1927 = vadd.f32 %v1926, %v1593
    %v1928 = vadd.f32 %v1927, %v1599
    %v1929 = vadd.f32 %v1928, %v1603
    %v1930 = vadd.f32 %v1929, %v1609
    %v1931 = vadd.f32 %v1930, %v1613
    %v1932 = vadd.f32 %v1931, %v1619
    %v1933 = vadd.f32 %v1932, %v1623
    %v1934 = vadd.f32 %v1933, %v1629
    %v1935 = vadd.f32 %v1934, %v1633
    %v1936 = vadd.f32 %v1935, %v1639
    %v1937 = vadd.f32 %v1936, %v1643
    %v1938 = vadd.f32 %v1937, %v1649
    %v1939 = vadd.f32 %v1938, %v1653
    %v1940 = vadd.f32 %v1939, %v1659
    %v1941 = vadd.f32 %v1940, %v1663
    %v1942 = vadd.f32 %v1941, %v1669
    %v1943 = vadd.f32 %v1942, %v1673
    %v1944 = vadd.f32 %v1943, %v1679
    %v1945 = vadd.f32 %v1944, %v1683
    %v1946 = vadd.f32 %v1945, %v1689
    %v1947 = vadd.f32 %v1946, %v1693
    %v1948 = vadd.f32 %v1947, %v1699
    %v1949 = vadd.f32 %v1948, %v1703
    %v1950 = vadd.f32 %v1949, %v1709
    %v1951 = vadd.f32 %v1950, %v1713
    %v1952 = vadd.f32 %v1951, %v1719
    %v1953 = vadd.f32 %v1952, %v1723
    %v1954 = vrot.slane %v1953, 4
    %v1955 = vadd.f32 %v1953, %v1954
    %v1956 = vrot.slane %v1955, 2
    %v1957 = vadd.f32 %v1955, %v1956
    %v1958 = vrot.slane %v1957, 1
    %v1959 = vadd.f32 %v1957, %v1958
    %v1960 = vadd.f32 %v1571, %v1575
    %v1961 = vadd.f32 %v1960, %v1581
    %v1962 = vadd.f32 %v1961, %v1585
    %v1963 = vadd.f32 %v1962, %v1591
    %v1964 = vadd.f32 %v1963, %v1595
    %v1965 = vadd.f32 %v1964, %v1601
    %v1966 = vadd.f32 %v1965, %v1605
    %v1967 = vadd.f32 %v1966, %v1611
    %v1968 = vadd.f32 %v1967, %v1615
    %v1969 = vadd.f32 %v1968, %v1621
    %v1970 = vadd.f32 %v1969, %v1625
    %v1971 = vadd.f32 %v1970, %v1631
    %v1972 = vadd.f32 %v1971, %v1635
    %v1973 = vadd.f32 %v1972, %v1641
    %v1974 = vadd.f32 %v1973, %v1645
    %v1975 = vadd.f32 %v1974, %v1651
    %v1976 = vadd.f32 %v1975, %v1655
    %v1977 = vadd.f32 %v1976, %v1661
    %v1978 = vadd.f32 %v1977, %v1665
    %v1979 = vadd.f32 %v1978, %v1671
    %v1980 = vadd.f32 %v1979, %v1675
    %v1981 = vadd.f32 %v1980, %v1681
    %v1982 = vadd.f32 %v1981, %v1685
    %v1983 = vadd.f32 %v1982, %v1691
    %v1984 = vadd.f32 %v1983, %v1695
    %v1985 = vadd.f32 %v1984, %v1701
    %v1986 = vadd.f32 %v1985, %v1705
    %v1987 = vadd.f32 %v1986, %v1711
    %v1988 = vadd.f32 %v1987, %v1715
    %v1989 = vadd.f32 %v1988, %v1721
    %v1990 = vadd.f32 %v1989, %v1725
    %v1991 = vrot.slane %v1990, 4
    %v1992 = vadd.f32 %v1990, %v1991
    %v1993 = vrot.slane %v1992, 2
    %v1994 = vadd.f32 %v1992, %v1993
    %v1995 = vrot.slane %v1994, 1
    %v1996 = vadd.f32 %v1994, %v1995
    %v1997 = vadd.f32 %v1762, %v1766
    %v1998 = vadd.f32 %v1997, %v1772
    %v1999 = vadd.f32 %v1998, %v1776
    %v2000 = vadd.f32 %v1999, %v1782
    %v2001 = vadd.f32 %v2000, %v1786
    %v2002 = vadd.f32 %v2001, %v1792
    %v2003 = vadd.f32 %v2002, %v1796
    %v2004 = vadd.f32 %v2003, %v1802
    %v2005 = vadd.f32 %v2004, %v1806
    %v2006 = vadd.f32 %v2005, %v1812
    %v2007 = vadd.f32 %v2006, %v1816
    %v2008 = vadd.f32 %v2007, %v1822
    %v2009 = vadd.f32 %v2008, %v1826
    %v2010 = vadd.f32 %v2009, %v1832
    %v2011 = vadd.f32 %v2010, %v1836
    %v2012 = vadd.f32 %v2011, %v1842
    %v2013 = vadd.f32 %v2012, %v1846
    %v2014 = vadd.f32 %v2013, %v1852
    %v2015 = vadd.f32 %v2014, %v1856
    %v2016 = vadd.f32 %v2015, %v1862
    %v2017 = vadd.f32 %v2016, %v1866
    %v2018 = vadd.f32 %v2017, %v1872
    %v2019 = vadd.f32 %v2018, %v1876
    %v2020 = vadd.f32 %v2019, %v1882
    %v2021 = vadd.f32 %v2020, %v1886
    %v2022 = vadd.f32 %v2021, %v1892
    %v2023 = vadd.f32 %v2022, %v1896
    %v2024 = vadd.f32 %v2023, %v1902
    %v2025 = vadd.f32 %v2024, %v1906
    %v2026 = vadd.f32 %v2025, %v1912
    %v2027 = vadd.f32 %v2026, %v1916
    %v2028 = vrot.slane %v2027, 4
    %v2029 = vadd.f32 %v2027, %v2028
    %v2030 = vrot.slane %v2029, 2
    %v2031 = vadd.f32 %v2029, %v2030
    %v2032 = vrot.slane %v2031, 1
    %v2033 = vadd.f32 %v2031, %v2032
    %v2034 = vadd.f32 %v1764, %v1768
    %v2035 = vadd.f32 %v2034, %v1774
    %v2036 = vadd.f32 %v2035, %v1778
    %v2037 = vadd.f32 %v2036, %v1784
    %v2038 = vadd.f32 %v2037, %v1788
    %v2039 = vadd.f32 %v2038, %v1794
    %v2040 = vadd.f32 %v2039, %v1798
    %v2041 = vadd.f32 %v2040, %v1804
    %v2042 = vadd.f32 %v2041, %v1808
    %v2043 = vadd.f32 %v2042, %v1814
    %v2044 = vadd.f32 %v2043, %v1818
    %v2045 = vadd.f32 %v2044, %v1824
    %v2046 = vadd.f32 %v2045, %v1828
    %v2047 = vadd.f32 %v2046, %v1834
    %v2048 = vadd.f32 %v2047, %v1838
    %v2049 = vadd.f32 %v2048, %v1844
    %v2050 = vadd.f32 %v2049, %v1848
    %v2051 = vadd.f32 %v2050, %v1854
    %v2052 = vadd.f32 %v2051, %v1858
    %v2053 = vadd.f32 %v2052, %v1864
    %v2054 = vadd.f32 %v2053, %v1868
    %v2055 = vadd.f32 %v2054, %v1874
    %v2056 = vadd.f32 %v2055, %v1878
    %v2057 = vadd.f32 %v2056, %v1884
    %v2058 = vadd.f32 %v2057, %v1888
    %v2059 = vadd.f32 %v2058, %v1894
    %v2060 = vadd.f32 %v2059, %v1898
    %v2061 = vadd.f32 %v2060, %v1904
    %v2062 = vadd.f32 %v2061, %v1908
    %v2063 = vadd.f32 %v2062, %v1914
    %v2064 = vadd.f32 %v2063, %v1918
    %v2065 = vrot.slane %v2064, 4
    %v2066 = vadd.f32 %v2064, %v2065
    %v2067 = vrot.slane %v2066, 2
    %v2068 = vadd.f32 %v2066, %v2067
    %v2069 = vrot.slane %v2068, 1
    %v2070 = vadd.f32 %v2068, %v2069
    %v2071 = vmul.f32 %v1959, %v815
    %v2072 = vmul.f32 %v1996, %v815
    %v2073 = vmul.f32 %v2033, %v815
    %v2074 = vmul.f32 %v2070, %v815
    %v2075 = vmul.f32 %v1569, %v1569
    %v2076 = vmul.f32 %v1571, %v1571
    %v2077 = vmul.f32 %v1762, %v1762
    %v2078 = vmul.f32 %v1764, %v1764
    %v2079 = vmul.f32 %v1573, %v1573
    %v2080 = vmul.f32 %v1575, %v1575
    %v2081 = vmul.f32 %v1766, %v1766
    %v2082 = vmul.f32 %v1768, %v1768
    %v2083 = vmul.f32 %v1579, %v1579
    %v2084 = vmul.f32 %v1581, %v1581
    %v2085 = vmul.f32 %v1772, %v1772
    %v2086 = vmul.f32 %v1774, %v1774
    %v2087 = vmul.f32 %v1583, %v1583
    %v2088 = vmul.f32 %v1585, %v1585
    %v2089 = vmul.f32 %v1776, %v1776
    %v2090 = vmul.f32 %v1778, %v1778
    %v2091 = vmul.f32 %v1589, %v1589
    %v2092 = vmul.f32 %v1591, %v1591
    %v2093 = vmul.f32 %v1782, %v1782
    %v2094 = vmul.f32 %v1784, %v1784
    %v2095 = vmul.f32 %v1593, %v1593
    %v2096 = vmul.f32 %v1595, %v1595
    %v2097 = vmul.f32 %v1786, %v1786
    %v2098 = vmul.f32 %v1788, %v1788
    %v2099 = vmul.f32 %v1599, %v1599
    %v2100 = vmul.f32 %v1601, %v1601
    %v2101 = vmul.f32 %v1792, %v1792
    %v2102 = vmul.f32 %v1794, %v1794
    %v2103 = vmul.f32 %v1603, %v1603
    %v2104 = vmul.f32 %v1605, %v1605
    %v2105 = vmul.f32 %v1796, %v1796
    %v2106 = vmul.f32 %v1798, %v1798
    %v2107 = vmul.f32 %v1609, %v1609
    %v2108 = vmul.f32 %v1611, %v1611
    %v2109 = vmul.f32 %v1802, %v1802
    %v2110 = vmul.f32 %v1804, %v1804
    %v2111 = vmul.f32 %v1613, %v1613
    %v2112 = vmul.f32 %v1615, %v1615
    %v2113 = vmul.f32 %v1806, %v1806
    %v2114 = vmul.f32 %v1808, %v1808
    %v2115 = vmul.f32 %v1619, %v1619
    %v2116 = vmul.f32 %v1621, %v1621
    %v2117 = vmul.f32 %v1812, %v1812
    %v2118 = vmul.f32 %v1814, %v1814
    %v2119 = vmul.f32 %v1623, %v1623
    %v2120 = vmul.f32 %v1625, %v1625
    %v2121 = vmul.f32 %v1816, %v1816
    %v2122 = vmul.f32 %v1818, %v1818
    %v2123 = vmul.f32 %v1629, %v1629
    %v2124 = vmul.f32 %v1631, %v1631
    %v2125 = vmul.f32 %v1822, %v1822
    %v2126 = vmul.f32 %v1824, %v1824
    %v2127 = vmul.f32 %v1633, %v1633
    %v2128 = vmul.f32 %v1635, %v1635
    %v2129 = vmul.f32 %v1826, %v1826
    %v2130 = vmul.f32 %v1828, %v1828
    %v2131 = vmul.f32 %v1639, %v1639
    %v2132 = vmul.f32 %v1641, %v1641
    %v2133 = vmul.f32 %v1832, %v1832
    %v2134 = vmul.f32 %v1834, %v1834
    %v2135 = vmul.f32 %v1643, %v1643
    %v2136 = vmul.f32 %v1645, %v1645
    %v2137 = vmul.f32 %v1836, %v1836
    %v2138 = vmul.f32 %v1838, %v1838
    %v2139 = vmul.f32 %v1649, %v1649
    %v2140 = vmul.f32 %v1651, %v1651
    %v2141 = vmul.f32 %v1842, %v1842
    %v2142 = vmul.f32 %v1844, %v1844
    %v2143 = vmul.f32 %v1653, %v1653
    %v2144 = vmul.f32 %v1655, %v1655
    %v2145 = vmul.f32 %v1846, %v1846
    %v2146 = vmul.f32 %v1848, %v1848
    %v2147 = vmul.f32 %v1659, %v1659
    %v2148 = vmul.f32 %v1661, %v1661
    %v2149 = vmul.f32 %v1852, %v1852
    %v2150 = vmul.f32 %v1854, %v1854
    %v2151 = vmul.f32 %v1663, %v1663
    %v2152 = vmul.f32 %v1665, %v1665
    %v2153 = vmul.f32 %v1856, %v1856
    %v2154 = vmul.f32 %v1858, %v1858
    %v2155 = vmul.f32 %v1669, %v1669
    %v2156 = vmul.f32 %v1671, %v1671
    %v2157 = vmul.f32 %v1862, %v1862
    %v2158 = vmul.f32 %v1864, %v1864
    %v2159 = vmul.f32 %v1673, %v1673
    %v2160 = vmul.f32 %v1675, %v1675
    %v2161 = vmul.f32 %v1866, %v1866
    %v2162 = vmul.f32 %v1868, %v1868
    %v2163 = vmul.f32 %v1679, %v1679
    %v2164 = vmul.f32 %v1681, %v1681
    %v2165 = vmul.f32 %v1872, %v1872
    %v2166 = vmul.f32 %v1874, %v1874
    %v2167 = vmul.f32 %v1683, %v1683
    %v2168 = vmul.f32 %v1685, %v1685
    %v2169 = vmul.f32 %v1876, %v1876
    %v2170 = vmul.f32 %v1878, %v1878
    %v2171 = vmul.f32 %v1689, %v1689
    %v2172 = vmul.f32 %v1691, %v1691
    %v2173 = vmul.f32 %v1882, %v1882
    %v2174 = vmul.f32 %v1884, %v1884
    %v2175 = vmul.f32 %v1693, %v1693
    %v2176 = vmul.f32 %v1695, %v1695
    %v2177 = vmul.f32 %v1886, %v1886
    %v2178 = vmul.f32 %v1888, %v1888
    %v2179 = vmul.f32 %v1699, %v1699
    %v2180 = vmul.f32 %v1701, %v1701
    %v2181 = vmul.f32 %v1892, %v1892
    %v2182 = vmul.f32 %v1894, %v1894
    %v2183 = vmul.f32 %v1703, %v1703
    %v2184 = vmul.f32 %v1705, %v1705
    %v2185 = vmul.f32 %v1896, %v1896
    %v2186 = vmul.f32 %v1898, %v1898
    %v2187 = vmul.f32 %v1709, %v1709
    %v2188 = vmul.f32 %v1711, %v1711
    %v2189 = vmul.f32 %v1902, %v1902
    %v2190 = vmul.f32 %v1904, %v1904
    %v2191 = vmul.f32 %v1713, %v1713
    %v2192 = vmul.f32 %v1715, %v1715
    %v2193 = vmul.f32 %v1906, %v1906
    %v2194 = vmul.f32 %v1908, %v1908
    %v2195 = vmul.f32 %v1719, %v1719
    %v2196 = vmul.f32 %v1721, %v1721
    %v2197 = vmul.f32 %v1912, %v1912
    %v2198 = vmul.f32 %v1914, %v1914
    %v2199 = vmul.f32 %v1723, %v1723
    %v2200 = vmul.f32 %v1725, %v1725
    %v2201 = vmul.f32 %v1916, %v1916
    %v2202 = vmul.f32 %v1918, %v1918
    %v2203 = vadd.f32 %v2075, %v2079
    %v2204 = vadd.f32 %v2203, %v2083
    %v2205 = vadd.f32 %v2204, %v2087
    %v2206 = vadd.f32 %v2205, %v2091
    %v2207 = vadd.f32 %v2206, %v2095
    %v2208 = vadd.f32 %v2207, %v2099
    %v2209 = vadd.f32 %v2208, %v2103
    %v2210 = vadd.f32 %v2209, %v2107
    %v2211 = vadd.f32 %v2210, %v2111
    %v2212 = vadd.f32 %v2211, %v2115
    %v2213 = vadd.f32 %v2212, %v2119
    %v2214 = vadd.f32 %v2213, %v2123
    %v2215 = vadd.f32 %v2214, %v2127
    %v2216 = vadd.f32 %v2215, %v2131
    %v2217 = vadd.f32 %v2216, %v2135
    %v2218 = vadd.f32 %v2217, %v2139
    %v2219 = vadd.f32 %v2218, %v2143
    %v2220 = vadd.f32 %v2219, %v2147
    %v2221 = vadd.f32 %v2220, %v2151
    %v2222 = vadd.f32 %v2221, %v2155
    %v2223 = vadd.f32 %v2222, %v2159
    %v2224 = vadd.f32 %v2223, %v2163
    %v2225 = vadd.f32 %v2224, %v2167
    %v2226 = vadd.f32 %v2225, %v2171
    %v2227 = vadd.f32 %v2226, %v2175
    %v2228 = vadd.f32 %v2227, %v2179
    %v2229 = vadd.f32 %v2228, %v2183
    %v2230 = vadd.f32 %v2229, %v2187
    %v2231 = vadd.f32 %v2230, %v2191
    %v2232 = vadd.f32 %v2231, %v2195
    %v2233 = vadd.f32 %v2232, %v2199
    %v2234 = vrot.slane %v2233, 4
    %v2235 = vadd.f32 %v2233, %v2234
    %v2236 = vrot.slane %v2235, 2
    %v2237 = vadd.f32 %v2235, %v2236
    %v2238 = vrot.slane %v2237, 1
    %v2239 = vadd.f32 %v2237, %v2238
    %v2240 = vadd.f32 %v2076, %v2080
    %v2241 = vadd.f32 %v2240, %v2084
    %v2242 = vadd.f32 %v2241, %v2088
    %v2243 = vadd.f32 %v2242, %v2092
    %v2244 = vadd.f32 %v2243, %v2096
    %v2245 = vadd.f32 %v2244, %v2100
    %v2246 = vadd.f32 %v2245, %v2104
    %v2247 = vadd.f32 %v2246, %v2108
    %v2248 = vadd.f32 %v2247, %v2112
    %v2249 = vadd.f32 %v2248, %v2116
    %v2250 = vadd.f32 %v2249, %v2120
    %v2251 = vadd.f32 %v2250, %v2124
    %v2252 = vadd.f32 %v2251, %v2128
    %v2253 = vadd.f32 %v2252, %v2132
    %v2254 = vadd.f32 %v2253, %v2136
    %v2255 = vadd.f32 %v2254, %v2140
    %v2256 = vadd.f32 %v2255, %v2144
    %v2257 = vadd.f32 %v2256, %v2148
    %v2258 = vadd.f32 %v2257, %v2152
    %v2259 = vadd.f32 %v2258, %v2156
    %v2260 = vadd.f32 %v2259, %v2160
    %v2261 = vadd.f32 %v2260, %v2164
    %v2262 = vadd.f32 %v2261, %v2168
    %v2263 = vadd.f32 %v2262, %v2172
    %v2264 = vadd.f32 %v2263, %v2176
    %v2265 = vadd.f32 %v2264, %v2180
    %v2266 = vadd.f32 %v2265, %v2184
    %v2267 = vadd.f32 %v2266, %v2188
    %v2268 = vadd.f32 %v2267, %v2192
    %v2269 = vadd.f32 %v2268, %v2196
    %v2270 = vadd.f32 %v2269, %v2200
    %v2271 = vrot.slane %v2270, 4
    %v2272 = vadd.f32 %v2270, %v2271
    %v2273 = vrot.slane %v2272, 2
    %v2274 = vadd.f32 %v2272, %v2273
    %v2275 = vrot.slane %v2274, 1
    %v2276 = vadd.f32 %v2274, %v2275
    %v2277 = vadd.f32 %v2077, %v2081
    %v2278 = vadd.f32 %v2277, %v2085
    %v2279 = vadd.f32 %v2278, %v2089
    %v2280 = vadd.f32 %v2279, %v2093
    %v2281 = vadd.f32 %v2280, %v2097
    %v2282 = vadd.f32 %v2281, %v2101
    %v2283 = vadd.f32 %v2282, %v2105
    %v2284 = vadd.f32 %v2283, %v2109
    %v2285 = vadd.f32 %v2284, %v2113
    %v2286 = vadd.f32 %v2285, %v2117
    %v2287 = vadd.f32 %v2286, %v2121
    %v2288 = vadd.f32 %v2287, %v2125
    %v2289 = vadd.f32 %v2288, %v2129
    %v2290 = vadd.f32 %v2289, %v2133
    %v2291 = vadd.f32 %v2290, %v2137
    %v2292 = vadd.f32 %v2291, %v2141
    %v2293 = vadd.f32 %v2292, %v2145
    %v2294 = vadd.f32 %v2293, %v2149
    %v2295 = vadd.f32 %v2294, %v2153
    %v2296 = vadd.f32 %v2295, %v2157
    %v2297 = vadd.f32 %v2296, %v2161
    %v2298 = vadd.f32 %v2297, %v2165
    %v2299 = vadd.f32 %v2298, %v2169
    %v2300 = vadd.f32 %v2299, %v2173
    %v2301 = vadd.f32 %v2300, %v2177
    %v2302 = vadd.f32 %v2301, %v2181
    %v2303 = vadd.f32 %v2302, %v2185
    %v2304 = vadd.f32 %v2303, %v2189
    %v2305 = vadd.f32 %v2304, %v2193
    %v2306 = vadd.f32 %v2305, %v2197
    %v2307 = vadd.f32 %v2306, %v2201
    %v2308 = vrot.slane %v2307, 4
    %v2309 = vadd.f32 %v2307, %v2308
    %v2310 = vrot.slane %v2309, 2
    %v2311 = vadd.f32 %v2309, %v2310
    %v2312 = vrot.slane %v2311, 1
    %v2313 = vadd.f32 %v2311, %v2312
    %v2314 = vadd.f32 %v2078, %v2082
    %v2315 = vadd.f32 %v2314, %v2086
    %v2316 = vadd.f32 %v2315, %v2090
    %v2317 = vadd.f32 %v2316, %v2094
    %v2318 = vadd.f32 %v2317, %v2098
    %v2319 = vadd.f32 %v2318, %v2102
    %v2320 = vadd.f32 %v2319, %v2106
    %v2321 = vadd.f32 %v2320, %v2110
    %v2322 = vadd.f32 %v2321, %v2114
    %v2323 = vadd.f32 %v2322, %v2118
    %v2324 = vadd.f32 %v2323, %v2122
    %v2325 = vadd.f32 %v2324, %v2126
    %v2326 = vadd.f32 %v2325, %v2130
    %v2327 = vadd.f32 %v2326, %v2134
    %v2328 = vadd.f32 %v2327, %v2138
    %v2329 = vadd.f32 %v2328, %v2142
    %v2330 = vadd.f32 %v2329, %v2146
    %v2331 = vadd.f32 %v2330, %v2150
    %v2332 = vadd.f32 %v2331, %v2154
    %v2333 = vadd.f32 %v2332, %v2158
    %v2334 = vadd.f32 %v2333, %v2162
    %v2335 = vadd.f32 %v2334, %v2166
    %v2336 = vadd.f32 %v2335, %v2170
    %v2337 = vadd.f32 %v2336, %v2174
    %v2338 = vadd.f32 %v2337, %v2178
    %v2339 = vadd.f32 %v2338, %v2182
    %v2340 = vadd.f32 %v2339, %v2186
    %v2341 = vadd.f32 %v2340, %v2190
    %v2342 = vadd.f32 %v2341, %v2194
    %v2343 = vadd.f32 %v2342, %v2198
    %v2344 = vadd.f32 %v2343, %v2202
    %v2345 = vrot.slane %v2344, 4
    %v2346 = vadd.f32 %v2344, %v2345
    %v2347 = vrot.slane %v2346, 2
    %v2348 = vadd.f32 %v2346, %v2347
    %v2349 = vrot.slane %v2348, 1
    %v2350 = vadd.f32 %v2348, %v2349
    %v2351 = vmul.f32 %v2239, %v815
    %v2352 = vmul.f32 %v2276, %v815
    %v2353 = vmul.f32 %v2313, %v815
    %v2354 = vmul.f32 %v2350, %v815
    %v2355 = vmul.f32 %v2071, %v2071
    %v2356 = vmul.f32 %v2072, %v2072
    %v2357 = vmul.f32 %v2073, %v2073
    %v2358 = vmul.f32 %v2074, %v2074
    %v2359 = vsub.f32 %v2351, %v2355
    %v2360 = vsub.f32 %v2352, %v2356
    %v2361 = vsub.f32 %v2353, %v2357
    %v2362 = vsub.f32 %v2354, %v2358
    %v2363 = vmul.f32 %v1921, %v1920
    %v2364 = vmul.f32 %v1920, %v1920
    %v2366 = vlaneseq
    %v2367 = vshrl.u32 %v2366, 7
    %v2368 = vsub.s32 0, %v2367
    %v2369 = vrot.slane %v2364, %v2368
    %v2370 = vlaneseq
    %v2371 = vshrl.u32 %v2370, 7
    %v2372 = vsub.s32 1, %v2371
    %v2373 = vrot.slane %v2364, %v2372
    %v2374 = vlaneseq
    %v2375 = vshrl.u32 %v2374, 7
    %v2376 = vsub.s32 2, %v2375
    %v2377 = vrot.slane %v2364, %v2376
    %v2378 = vlaneseq
    %v2379 = vshrl.u32 %v2378, 7
    %v2380 = vsub.s32 3, %v2379
    %v2381 = vrot.slane %v2364, %v2380
    %v2386 = vmul.f32 %v2359, %v2369
    %v2387 = vmul.f32 %v2360, %v2373
    %v2388 = vmul.f32 %v2361, %v2377
    %v2389 = vmul.f32 %v2362, %v2381
    %v2390 = vadd.f32 %v2386, 0.8
    %v2391 = vadd.f32 %v2387, 0.8
    %v2392 = vadd.f32 %v2388, 0.8
    %v2393 = vadd.f32 %v2389, 0.8
    %v2394 = vrsqrt.pop %v2390
    %v2395 = vrsqrt.pop %v2391
    %v2396 = vrsqrt.pop %v2392
    %v2397 = vrsqrt.pop %v2393
    %v2402 = vcombine.low %v2394, %v2395
    %v2403 = vcombine.low %v2396, %v2397
    %v2405 = vunpack.c.l.s4 1966171168
    %v2406 = vunpack.c.0.s8 %v2405
    %v2407 = vlaneseq
    %v2408 = vshrl.u32 %v2407, 7
    %v2409 = vsub.s32 %v2406, %v2408
    %v2410 = vrot.slane %v2402, %v2409
    %v2412 = vunpack.c.l.s4 1966171168
    %v2413 = vunpack.c.0.s8 %v2412
    %v2414 = vlaneseq
    %v2415 = vshrl.u32 %v2414, 7
    %v2416 = vsub.s32 %v2413, %v2415
    %v2417 = vrot.slane %v2403, %v2416
    %v2418 = vcombine.low %v2410, %v2417
    %v2420 = vunpack.c.l.s4 1966171168
    %v2421 = vunpack.c.0.s8 %v2420
    %v2422 = vlaneseq
    %v2423 = vshrl.u32 %v2422, 7
    %v2424 = vsub.s32 %v2421, %v2423
    %v2425 = vrot.slane %v2418, %v2424
    %v2427 = vmul.f32 %v2363, %v2425
    %v2428 = vsub.f32 %v1569, %v2071
    %v2429 = vsub.f32 %v1571, %v2072
    %v2430 = vsub.f32 %v1762, %v2073
    %v2431 = vsub.f32 %v1764, %v2074
    %v2432 = vsub.f32 %v1573, %v2071
    %v2433 = vsub.f32 %v1575, %v2072
    %v2434 = vsub.f32 %v1766, %v2073
    %v2435 = vsub.f32 %v1768, %v2074
    %v2436 = vsub.f32 %v1579, %v2071
    %v2437 = vsub.f32 %v1581, %v2072
    %v2438 = vsub.f32 %v1772, %v2073
    %v2439 = vsub.f32 %v1774, %v2074
    %v2440 = vsub.f32 %v1583, %v2071
    %v2441 = vsub.f32 %v1585, %v2072
    %v2442 = vsub.f32 %v1776, %v2073
    %v2443 = vsub.f32 %v1778, %v2074
    %v2444 = vsub.f32 %v1589, %v2071
    %v2445 = vsub.f32 %v1591, %v2072
    %v2446 = vsub.f32 %v1782, %v2073
    %v2447 = vsub.f32 %v1784, %v2074
    %v2448 = vsub.f32 %v1593, %v2071
    %v2449 = vsub.f32 %v1595, %v2072
    %v2450 = vsub.f32 %v1786, %v2073
    %v2451 = vsub.f32 %v1788, %v2074
    %v2452 = vsub.f32 %v1599, %v2071
    %v2453 = vsub.f32 %v1601, %v2072
    %v2454 = vsub.f32 %v1792, %v2073
    %v2455 = vsub.f32 %v1794, %v2074
    %v2456 = vsub.f32 %v1603, %v2071
    %v2457 = vsub.f32 %v1605, %v2072
    %v2458 = vsub.f32 %v1796, %v2073
    %v2459 = vsub.f32 %v1798, %v2074
    %v2460 = vsub.f32 %v1609, %v2071
    %v2461 = vsub.f32 %v1611, %v2072
    %v2462 = vsub.f32 %v1802, %v2073
    %v2463 = vsub.f32 %v1804, %v2074
    %v2464 = vsub.f32 %v1613, %v2071
    %v2465 = vsub.f32 %v1615, %v2072
    %v2466 = vsub.f32 %v1806, %v2073
    %v2467 = vsub.f32 %v1808, %v2074
    %v2468 = vsub.f32 %v1619, %v2071
    %v2469 = vsub.f32 %v1621, %v2072
    %v2470 = vsub.f32 %v1812, %v2073
    %v2471 = vsub.f32 %v1814, %v2074
    %v2472 = vsub.f32 %v1623, %v2071
    %v2473 = vsub.f32 %v1625, %v2072
    %v2474 = vsub.f32 %v1816, %v2073
    %v2475 = vsub.f32 %v1818, %v2074
    %v2476 = vsub.f32 %v1629, %v2071
    %v2477 = vsub.f32 %v1631, %v2072
    %v2478 = vsub.f32 %v1822, %v2073
    %v2479 = vsub.f32 %v1824, %v2074
    %v2480 = vsub.f32 %v1633, %v2071
    %v2481 = vsub.f32 %v1635, %v2072
    %v2482 = vsub.f32 %v1826, %v2073
    %v2483 = vsub.f32 %v1828, %v2074
    %v2484 = vsub.f32 %v1639, %v2071
    %v2485 = vsub.f32 %v1641, %v2072
    %v2486 = vsub.f32 %v1832, %v2073
    %v2487 = vsub.f32 %v1834, %v2074
    %v2488 = vsub.f32 %v1643, %v2071
    %v2489 = vsub.f32 %v1645, %v2072
    %v2490 = vsub.f32 %v1836, %v2073
    %v2491 = vsub.f32 %v1838, %v2074
    %v2492 = vsub.f32 %v1649, %v2071
    %v2493 = vsub.f32 %v1651, %v2072
    %v2494 = vsub.f32 %v1842, %v2073
    %v2495 = vsub.f32 %v1844, %v2074
    %v2496 = vsub.f32 %v1653, %v2071
    %v2497 = vsub.f32 %v1655, %v2072
    %v2498 = vsub.f32 %v1846, %v2073
    %v2499 = vsub.f32 %v1848, %v2074
    %v2500 = vsub.f32 %v1659, %v2071
    %v2501 = vsub.f32 %v1661, %v2072
    %v2502 = vsub.f32 %v1852, %v2073
    %v2503 = vsub.f32 %v1854, %v2074
    %v2504 = vsub.f32 %v1663, %v2071
    %v2505 = vsub.f32 %v1665, %v2072
    %v2506 = vsub.f32 %v1856, %v2073
    %v2507 = vsub.f32 %v1858, %v2074
    %v2508 = vsub.f32 %v1669, %v2071
    %v2509 = vsub.f32 %v1671, %v2072
    %v2510 = vsub.f32 %v1862, %v2073
    %v2511 = vsub.f32 %v1864, %v2074
    %v2512 = vsub.f32 %v1673, %v2071
    %v2513 = vsub.f32 %v1675, %v2072
    %v2514 = vsub.f32 %v1866, %v2073
    %v2515 = vsub.f32 %v1868, %v2074
    %v2516 = vsub.f32 %v1679, %v2071
    %v2517 = vsub.f32 %v1681, %v2072
    %v2518 = vsub.f32 %v1872, %v2073
    %v2519 = vsub.f32 %v1874, %v2074
    %v2520 = vsub.f32 %v1683, %v2071
    %v2521 = vsub.f32 %v1685, %v2072
    %v2522 = vsub.f32 %v1876, %v2073
    %v2523 = vsub.f32 %v1878, %v2074
    %v2524 = vsub.f32 %v1689, %v2071
    %v2525 = vsub.f32 %v1691, %v2072
    %v2526 = vsub.f32 %v1882, %v2073
    %v2527 = vsub.f32 %v1884, %v2074
    %v2528 = vsub.f32 %v1693, %v2071
    %v2529 = vsub.f32 %v1695, %v2072
    %v2530 = vsub.f32 %v1886, %v2073
    %v2531 = vsub.f32 %v1888, %v2074
    %v2532 = vsub.f32 %v1699, %v2071
    %v2533 = vsub.f32 %v1701, %v2072
    %v2534 = vsub.f32 %v1892, %v2073
    %v2535 = vsub.f32 %v1894, %v2074
    %v2536 = vsub.f32 %v1703, %v2071
    %v2537 = vsub.f32 %v1705, %v2072
    %v2538 = vsub.f32 %v1896, %v2073
    %v2539 = vsub.f32 %v1898, %v2074
    %v2540 = vsub.f32 %v1709, %v2071
    %v2541 = vsub.f32 %v1711, %v2072
    %v2542 = vsub.f32 %v1902, %v2073
    %v2543 = vsub.f32 %v1904, %v2074
    %v2544 = vsub.f32 %v1713, %v2071
    %v2545 = vsub.f32 %v1715, %v2072
    %v2546 = vsub.f32 %v1906, %v2073
    %v2547 = vsub.f32 %v1908, %v2074
    %v2548 = vsub.f32 %v1719, %v2071
    %v2549 = vsub.f32 %v1721, %v2072
    %v2550 = vsub.f32 %v1912, %v2073
    %v2551 = vsub.f32 %v1914, %v2074
    %v2552 = vsub.f32 %v1723, %v2071
    %v2553 = vsub.f32 %v1725, %v2072
    %v2554 = vsub.f32 %v1916, %v2073
    %v2555 = vsub.f32 %v1918, %v2074
    %v2557 = vlaneseq
    %v2558 = vshrl.u32 %v2557, 7
    %v2559 = vsub.s32 0, %v2558
    %v2560 = vrot.slane %v2427, %v2559
    %v2561 = vlaneseq
    %v2562 = vshrl.u32 %v2561, 7
    %v2563 = vsub.s32 1, %v2562
    %v2564 = vrot.slane %v2427, %v2563
    %v2565 = vlaneseq
    %v2566 = vshrl.u32 %v2565, 7
    %v2567 = vsub.s32 2, %v2566
    %v2568 = vrot.slane %v2427, %v2567
    %v2569 = vlaneseq
    %v2570 = vshrl.u32 %v2569, 7
    %v2571 = vsub.s32 3, %v2570
    %v2572 = vrot.slane %v2427, %v2571
    %v2577 = vmul.f32 %v2428, %v2560
    %v2578 = vmul.f32 %v2429, %v2564
    %v2579 = vmul.f32 %v2430, %v2568
    %v2580 = vmul.f32 %v2431, %v2572
    %v2581 = vmul.f32 %v2432, %v2560
    %v2582 = vmul.f32 %v2433, %v2564
    %v2583 = vmul.f32 %v2434, %v2568
    %v2584 = vmul.f32 %v2435, %v2572
    %v2585 = vmul.f32 %v2436, %v2560
    %v2586 = vmul.f32 %v2437, %v2564
    %v2587 = vmul.f32 %v2438, %v2568
    %v2588 = vmul.f32 %v2439, %v2572
    %v2589 = vmul.f32 %v2440, %v2560
    %v2590 = vmul.f32 %v2441, %v2564
    %v2591 = vmul.f32 %v2442, %v2568
    %v2592 = vmul.f32 %v2443, %v2572
    %v2593 = vmul.f32 %v2444, %v2560
    %v2594 = vmul.f32 %v2445, %v2564
    %v2595 = vmul.f32 %v2446, %v2568
    %v2596 = vmul.f32 %v2447, %v2572
    %v2597 = vmul.f32 %v2448, %v2560
    %v2598 = vmul.f32 %v2449, %v2564
    %v2599 = vmul.f32 %v2450, %v2568
    %v2600 = vmul.f32 %v2451, %v2572
    %v2601 = vmul.f32 %v2452, %v2560
    %v2602 = vmul.f32 %v2453, %v2564
    %v2603 = vmul.f32 %v2454, %v2568
    %v2604 = vmul.f32 %v2455, %v2572
    %v2605 = vmul.f32 %v2456, %v2560
    %v2606 = vmul.f32 %v2457, %v2564
    %v2607 = vmul.f32 %v2458, %v2568
    %v2608 = vmul.f32 %v2459, %v2572
    %v2609 = vmul.f32 %v2460, %v2560
    %v2610 = vmul.f32 %v2461, %v2564
    %v2611 = vmul.f32 %v2462, %v2568
    %v2612 = vmul.f32 %v2463, %v2572
    %v2613 = vmul.f32 %v2464, %v2560
    %v2614 = vmul.f32 %v2465, %v2564
    %v2615 = vmul.f32 %v2466, %v2568
    %v2616 = vmul.f32 %v2467, %v2572
    %v2617 = vmul.f32 %v2468, %v2560
    %v2618 = vmul.f32 %v2469, %v2564
    %v2619 = vmul.f32 %v2470, %v2568
    %v2620 = vmul.f32 %v2471, %v2572
    %v2621 = vmul.f32 %v2472, %v2560
    %v2622 = vmul.f32 %v2473, %v2564
    %v2623 = vmul.f32 %v2474, %v2568
    %v2624 = vmul.f32 %v2475, %v2572
    %v2625 = vmul.f32 %v2476, %v2560
    %v2626 = vmul.f32 %v2477, %v2564
    %v2627 = vmul.f32 %v2478, %v2568
    %v2628 = vmul.f32 %v2479, %v2572
    %v2629 = vmul.f32 %v2480, %v2560
    %v2630 = vmul.f32 %v2481, %v2564
    %v2631 = vmul.f32 %v2482, %v2568
    %v2632 = vmul.f32 %v2483, %v2572
    %v2633 = vmul.f32 %v2484, %v2560
    %v2634 = vmul.f32 %v2485, %v2564
    %v2635 = vmul.f32 %v2486, %v2568
    %v2636 = vmul.f32 %v2487, %v2572
    %v2637 = vmul.f32 %v2488, %v2560
    %v2638 = vmul.f32 %v2489, %v2564
    %v2639 = vmul.f32 %v2490, %v2568
    %v2640 = vmul.f32 %v2491, %v2572
    %v2641 = vmul.f32 %v2492, %v2560
    %v2642 = vmul.f32 %v2493, %v2564
    %v2643 = vmul.f32 %v2494, %v2568
    %v2644 = vmul.f32 %v2495, %v2572
    %v2645 = vmul.f32 %v2496, %v2560
    %v2646 = vmul.f32 %v2497, %v2564
    %v2647 = vmul.f32 %v2498, %v2568
    %v2648 = vmul.f32 %v2499, %v2572
    %v2649 = vmul.f32 %v2500, %v2560
    %v2650 = vmul.f32 %v2501, %v2564
    %v2651 = vmul.f32 %v2502, %v2568
    %v2652 = vmul.f32 %v2503, %v2572
    %v2653 = vmul.f32 %v2504, %v2560
    %v2654 = vmul.f32 %v2505, %v2564
    %v2655 = vmul.f32 %v2506, %v2568
    %v2656 = vmul.f32 %v2507, %v2572
    %v2657 = vmul.f32 %v2508, %v2560
    %v2658 = vmul.f32 %v2509, %v2564
    %v2659 = vmul.f32 %v2510, %v2568
    %v2660 = vmul.f32 %v2511, %v2572
    %v2661 = vmul.f32 %v2512, %v2560
    %v2662 = vmul.f32 %v2513, %v2564
    %v2663 = vmul.f32 %v2514, %v2568
    %v2664 = vmul.f32 %v2515, %v2572
    %v2665 = vmul.f32 %v2516, %v2560
    %v2666 = vmul.f32 %v2517, %v2564
    %v2667 = vmul.f32 %v2518, %v2568
    %v2668 = vmul.f32 %v2519, %v2572
    %v2669 = vmul.f32 %v2520, %v2560
    %v2670 = vmul.f32 %v2521, %v2564
    %v2671 = vmul.f32 %v2522, %v2568
    %v2672 = vmul.f32 %v2523, %v2572
    %v2673 = vmul.f32 %v2524, %v2560
    %v2674 = vmul.f32 %v2525, %v2564
    %v2675 = vmul.f32 %v2526, %v2568
    %v2676 = vmul.f32 %v2527, %v2572
    %v2677 = vmul.f32 %v2528, %v2560
    %v2678 = vmul.f32 %v2529, %v2564
    %v2679 = vmul.f32 %v2530, %v2568
    %v2680 = vmul.f32 %v2531, %v2572
    %v2681 = vmul.f32 %v2532, %v2560
    %v2682 = vmul.f32 %v2533, %v2564
    %v2683 = vmul.f32 %v2534, %v2568
    %v2684 = vmul.f32 %v2535, %v2572
    %v2685 = vmul.f32 %v2536, %v2560
    %v2686 = vmul.f32 %v2537, %v2564
    %v2687 = vmul.f32 %v2538, %v2568
    %v2688 = vmul.f32 %v2539, %v2572
    %v2689 = vmul.f32 %v2540, %v2560
    %v2690 = vmul.f32 %v2541, %v2564
    %v2691 = vmul.f32 %v2542, %v2568
    %v2692 = vmul.f32 %v2543, %v2572
    %v2693 = vmul.f32 %v2544, %v2560
    %v2694 = vmul.f32 %v2545, %v2564
    %v2695 = vmul.f32 %v2546, %v2568
    %v2696 = vmul.f32 %v2547, %v2572
    %v2697 = vmul.f32 %v2548, %v2560
    %v2698 = vmul.f32 %v2549, %v2564
    %v2699 = vmul.f32 %v2550, %v2568
    %v2700 = vmul.f32 %v2551, %v2572
    %v2701 = vmul.f32 %v2552, %v2560
    %v2702 = vmul.f32 %v2553, %v2564
    %v2703 = vmul.f32 %v2554, %v2568
    %v2704 = vmul.f32 %v2555, %v2572
    %v2706 = vlaneseq
    %v2707 = vshrl.u32 %v2706, 7
    %v2708 = vsub.s32 0, %v2707
    %v2709 = vrot.slane %v1922, %v2708
    %v2710 = vlaneseq
    %v2711 = vshrl.u32 %v2710, 7
    %v2712 = vsub.s32 1, %v2711
    %v2713 = vrot.slane %v1922, %v2712
    %v2714 = vlaneseq
    %v2715 = vshrl.u32 %v2714, 7
    %v2716 = vsub.s32 2, %v2715
    %v2717 = vrot.slane %v1922, %v2716
    %v2718 = vlaneseq
    %v2719 = vshrl.u32 %v2718, 7
    %v2720 = vsub.s32 3, %v2719
    %v2721 = vrot.slane %v1922, %v2720
    %v2726 = vadd.f32 %v2577, %v2709
    %v2727 = vadd.f32 %v2578, %v2713
    %v2728 = vadd.f32 %v2579, %v2717
    %v2729 = vadd.f32 %v2580, %v2721
    %v2730 = vadd.f32 %v2581, %v2709
    %v2731 = vadd.f32 %v2582, %v2713
    %v2732 = vadd.f32 %v2583, %v2717
    %v2733 = vadd.f32 %v2584, %v2721
    %v2734 = vadd.f32 %v2585, %v2709
    %v2735 = vadd.f32 %v2586, %v2713
    %v2736 = vadd.f32 %v2587, %v2717
    %v2737 = vadd.f32 %v2588, %v2721
    %v2738 = vadd.f32 %v2589, %v2709
    %v2739 = vadd.f32 %v2590, %v2713
    %v2740 = vadd.f32 %v2591, %v2717
    %v2741 = vadd.f32 %v2592, %v2721
    %v2742 = vadd.f32 %v2593, %v2709
    %v2743 = vadd.f32 %v2594, %v2713
    %v2744 = vadd.f32 %v2595, %v2717
    %v2745 = vadd.f32 %v2596, %v2721
    %v2746 = vadd.f32 %v2597, %v2709
    %v2747 = vadd.f32 %v2598, %v2713
    %v2748 = vadd.f32 %v2599, %v2717
    %v2749 = vadd.f32 %v2600, %v2721
    %v2750 = vadd.f32 %v2601, %v2709
    %v2751 = vadd.f32 %v2602, %v2713
    %v2752 = vadd.f32 %v2603, %v2717
    %v2753 = vadd.f32 %v2604, %v2721
    %v2754 = vadd.f32 %v2605, %v2709
    %v2755 = vadd.f32 %v2606, %v2713
    %v2756 = vadd.f32 %v2607, %v2717
    %v2757 = vadd.f32 %v2608, %v2721
    %v2758 = vadd.f32 %v2609, %v2709
    %v2759 = vadd.f32 %v2610, %v2713
    %v2760 = vadd.f32 %v2611, %v2717
    %v2761 = vadd.f32 %v2612, %v2721
    %v2762 = vadd.f32 %v2613, %v2709
    %v2763 = vadd.f32 %v2614, %v2713
    %v2764 = vadd.f32 %v2615, %v2717
    %v2765 = vadd.f32 %v2616, %v2721
    %v2766 = vadd.f32 %v2617, %v2709
    %v2767 = vadd.f32 %v2618, %v2713
    %v2768 = vadd.f32 %v2619, %v2717
    %v2769 = vadd.f32 %v2620, %v2721
    %v2770 = vadd.f32 %v2621, %v2709
    %v2771 = vadd.f32 %v2622, %v2713
    %v2772 = vadd.f32 %v2623, %v2717
    %v2773 = vadd.f32 %v2624, %v2721
    %v2774 = vadd.f32 %v2625, %v2709
    %v2775 = vadd.f32 %v2626, %v2713
    %v2776 = vadd.f32 %v2627, %v2717
    %v2777 = vadd.f32 %v2628, %v2721
    %v2778 = vadd.f32 %v2629, %v2709
    %v2779 = vadd.f32 %v2630, %v2713
    %v2780 = vadd.f32 %v2631, %v2717
    %v2781 = vadd.f32 %v2632, %v2721
    %v2782 = vadd.f32 %v2633, %v2709
    %v2783 = vadd.f32 %v2634, %v2713
    %v2784 = vadd.f32 %v2635, %v2717
    %v2785 = vadd.f32 %v2636, %v2721
    %v2786 = vadd.f32 %v2637, %v2709
    %v2787 = vadd.f32 %v2638, %v2713
    %v2788 = vadd.f32 %v2639, %v2717
    %v2789 = vadd.f32 %v2640, %v2721
    %v2790 = vadd.f32 %v2641, %v2709
    %v2791 = vadd.f32 %v2642, %v2713
    %v2792 = vadd.f32 %v2643, %v2717
    %v2793 = vadd.f32 %v2644, %v2721
    %v2794 = vadd.f32 %v2645, %v2709
    %v2795 = vadd.f32 %v2646, %v2713
    %v2796 = vadd.f32 %v2647, %v2717
    %v2797 = vadd.f32 %v2648, %v2721
    %v2798 = vadd.f32 %v2649, %v2709
    %v2799 = vadd.f32 %v2650, %v2713
    %v2800 = vadd.f32 %v2651, %v2717
    %v2801 = vadd.f32 %v2652, %v2721
    %v2802 = vadd.f32 %v2653, %v2709
    %v2803 = vadd.f32 %v2654, %v2713
    %v2804 = vadd.f32 %v2655, %v2717
    %v2805 = vadd.f32 %v2656, %v2721
    %v2806 = vadd.f32 %v2657, %v2709
    %v2807 = vadd.f32 %v2658, %v2713
    %v2808 = vadd.f32 %v2659, %v2717
    %v2809 = vadd.f32 %v2660, %v2721
    %v2810 = vadd.f32 %v2661, %v2709
    %v2811 = vadd.f32 %v2662, %v2713
    %v2812 = vadd.f32 %v2663, %v2717
    %v2813 = vadd.f32 %v2664, %v2721
    %v2814 = vadd.f32 %v2665, %v2709
    %v2815 = vadd.f32 %v2666, %v2713
    %v2816 = vadd.f32 %v2667, %v2717
    %v2817 = vadd.f32 %v2668, %v2721
    %v2818 = vadd.f32 %v2669, %v2709
    %v2819 = vadd.f32 %v2670, %v2713
    %v2820 = vadd.f32 %v2671, %v2717
    %v2821 = vadd.f32 %v2672, %v2721
    %v2822 = vadd.f32 %v2673, %v2709
    %v2823 = vadd.f32 %v2674, %v2713
    %v2824 = vadd.f32 %v2675, %v2717
    %v2825 = vadd.f32 %v2676, %v2721
    %v2826 = vadd.f32 %v2677, %v2709
    %v2827 = vadd.f32 %v2678, %v2713
    %v2828 = vadd.f32 %v2679, %v2717
    %v2829 = vadd.f32 %v2680, %v2721
    %v2830 = vadd.f32 %v2681, %v2709
    %v2831 = vadd.f32 %v2682, %v2713
    %v2832 = vadd.f32 %v2683, %v2717
    %v2833 = vadd.f32 %v2684, %v2721
    %v2834 = vadd.f32 %v2685, %v2709
    %v2835 = vadd.f32 %v2686, %v2713
    %v2836 = vadd.f32 %v2687, %v2717
    %v2837 = vadd.f32 %v2688, %v2721
    %v2838 = vadd.f32 %v2689, %v2709
    %v2839 = vadd.f32 %v2690, %v2713
    %v2840 = vadd.f32 %v2691, %v2717
    %v2841 = vadd.f32 %v2692, %v2721
    %v2842 = vadd.f32 %v2693, %v2709
    %v2843 = vadd.f32 %v2694, %v2713
    %v2844 = vadd.f32 %v2695, %v2717
    %v2845 = vadd.f32 %v2696, %v2721
    %v2846 = vadd.f32 %v2697, %v2709
    %v2847 = vadd.f32 %v2698, %v2713
    %v2848 = vadd.f32 %v2699, %v2717
    %v2849 = vadd.f32 %v2700, %v2721
    %v2850 = vadd.f32 %v2701, %v2709
    %v2851 = vadd.f32 %v2702, %v2713
    %v2852 = vadd.f32 %v2703, %v2717
    %v2853 = vadd.f32 %v2704, %v2721
    %vm2854 = vcmp.gt.f32.partialorder %v2726, 0.0
    %vm2855 = vcmp.gt.f32.partialorder %v2727, 0.0
    %vm2856 = vcmp.gt.f32.partialorder %v2728, 0.0
    %vm2857 = vcmp.gt.f32.partialorder %v2729, 0.0
    %vm2858 = vcmp.gt.f32.partialorder %v2730, 0.0
    %vm2859 = vcmp.gt.f32.partialorder %v2731, 0.0
    %vm2860 = vcmp.gt.f32.partialorder %v2732, 0.0
    %vm2861 = vcmp.gt.f32.partialorder %v2733, 0.0
    %vm2862 = vcmp.gt.f32.partialorder %v2734, 0.0
    %vm2863 = vcmp.gt.f32.partialorder %v2735, 0.0
    %vm2864 = vcmp.gt.f32.partialorder %v2736, 0.0
    %vm2865 = vcmp.gt.f32.partialorder %v2737, 0.0
    %vm2866 = vcmp.gt.f32.partialorder %v2738, 0.0
    %vm2867 = vcmp.gt.f32.partialorder %v2739, 0.0
    %vm2868 = vcmp.gt.f32.partialorder %v2740, 0.0
    %vm2869 = vcmp.gt.f32.partialorder %v2741, 0.0
    %vm2870 = vcmp.gt.f32.partialorder %v2742, 0.0
    %vm2871 = vcmp.gt.f32.partialorder %v2743, 0.0
    %vm2872 = vcmp.gt.f32.partialorder %v2744, 0.0
    %vm2873 = vcmp.gt.f32.partialorder %v2745, 0.0
    %vm2874 = vcmp.gt.f32.partialorder %v2746, 0.0
    %vm2875 = vcmp.gt.f32.partialorder %v2747, 0.0
    %vm2876 = vcmp.gt.f32.partialorder %v2748, 0.0
    %vm2877 = vcmp.gt.f32.partialorder %v2749, 0.0
    %vm2878 = vcmp.gt.f32.partialorder %v2750, 0.0
    %vm2879 = vcmp.gt.f32.partialorder %v2751, 0.0
    %vm2880 = vcmp.gt.f32.partialorder %v2752, 0.0
    %vm2881 = vcmp.gt.f32.partialorder %v2753, 0.0
    %vm2882 = vcmp.gt.f32.partialorder %v2754, 0.0
    %vm2883 = vcmp.gt.f32.partialorder %v2755, 0.0
    %vm2884 = vcmp.gt.f32.partialorder %v2756, 0.0
    %vm2885 = vcmp.gt.f32.partialorder %v2757, 0.0
    %vm2886 = vcmp.gt.f32.partialorder %v2758, 0.0
    %vm2887 = vcmp.gt.f32.partialorder %v2759, 0.0
    %vm2888 = vcmp.gt.f32.partialorder %v2760, 0.0
    %vm2889 = vcmp.gt.f32.partialorder %v2761, 0.0
    %vm2890 = vcmp.gt.f32.partialorder %v2762, 0.0
    %vm2891 = vcmp.gt.f32.partialorder %v2763, 0.0
    %vm2892 = vcmp.gt.f32.partialorder %v2764, 0.0
    %vm2893 = vcmp.gt.f32.partialorder %v2765, 0.0
    %vm2894 = vcmp.gt.f32.partialorder %v2766, 0.0
    %vm2895 = vcmp.gt.f32.partialorder %v2767, 0.0
    %vm2896 = vcmp.gt.f32.partialorder %v2768, 0.0
    %vm2897 = vcmp.gt.f32.partialorder %v2769, 0.0
    %vm2898 = vcmp.gt.f32.partialorder %v2770, 0.0
    %vm2899 = vcmp.gt.f32.partialorder %v2771, 0.0
    %vm2900 = vcmp.gt.f32.partialorder %v2772, 0.0
    %vm2901 = vcmp.gt.f32.partialorder %v2773, 0.0
    %vm2902 = vcmp.gt.f32.partialorder %v2774, 0.0
    %vm2903 = vcmp.gt.f32.partialorder %v2775, 0.0
    %vm2904 = vcmp.gt.f32.partialorder %v2776, 0.0
    %vm2905 = vcmp.gt.f32.partialorder %v2777, 0.0
    %vm2906 = vcmp.gt.f32.partialorder %v2778, 0.0
    %vm2907 = vcmp.gt.f32.partialorder %v2779, 0.0
    %vm2908 = vcmp.gt.f32.partialorder %v2780, 0.0
    %vm2909 = vcmp.gt.f32.partialorder %v2781, 0.0
    %vm2910 = vcmp.gt.f32.partialorder %v2782, 0.0
    %vm2911 = vcmp.gt.f32.partialorder %v2783, 0.0
    %vm2912 = vcmp.gt.f32.partialorder %v2784, 0.0
    %vm2913 = vcmp.gt.f32.partialorder %v2785, 0.0
    %vm2914 = vcmp.gt.f32.partialorder %v2786, 0.0
    %vm2915 = vcmp.gt.f32.partialorder %v2787, 0.0
    %vm2916 = vcmp.gt.f32.partialorder %v2788, 0.0
    %vm2917 = vcmp.gt.f32.partialorder %v2789, 0.0
    %vm2918 = vcmp.gt.f32.partialorder %v2790, 0.0
    %vm2919 = vcmp.gt.f32.partialorder %v2791, 0.0
    %vm2920 = vcmp.gt.f32.partialorder %v2792, 0.0
    %vm2921 = vcmp.gt.f32.partialorder %v2793, 0.0
    %vm2922 = vcmp.gt.f32.partialorder %v2794, 0.0
    %vm2923 = vcmp.gt.f32.partialorder %v2795, 0.0
    %vm2924 = vcmp.gt.f32.partialorder %v2796, 0.0
    %vm2925 = vcmp.gt.f32.partialorder %v2797, 0.0
    %vm2926 = vcmp.gt.f32.partialorder %v2798, 0.0
    %vm2927 = vcmp.gt.f32.partialorder %v2799, 0.0
    %vm2928 = vcmp.gt.f32.partialorder %v2800, 0.0
    %vm2929 = vcmp.gt.f32.partialorder %v2801, 0.0
    %vm2930 = vcmp.gt.f32.partialorder %v2802, 0.0
    %vm2931 = vcmp.gt.f32.partialorder %v2803, 0.0
    %vm2932 = vcmp.gt.f32.partialorder %v2804, 0.0
    %vm2933 = vcmp.gt.f32.partialorder %v2805, 0.0
    %vm2934 = vcmp.gt.f32.partialorder %v2806, 0.0
    %vm2935 = vcmp.gt.f32.partialorder %v2807, 0.0
    %vm2936 = vcmp.gt.f32.partialorder %v2808, 0.0
    %vm2937 = vcmp.gt.f32.partialorder %v2809, 0.0
    %vm2938 = vcmp.gt.f32.partialorder %v2810, 0.0
    %vm2939 = vcmp.gt.f32.partialorder %v2811, 0.0
    %vm2940 = vcmp.gt.f32.partialorder %v2812, 0.0
    %vm2941 = vcmp.gt.f32.partialorder %v2813, 0.0
    %vm2942 = vcmp.gt.f32.partialorder %v2814, 0.0
    %vm2943 = vcmp.gt.f32.partialorder %v2815, 0.0
    %vm2944 = vcmp.gt.f32.partialorder %v2816, 0.0
    %vm2945 = vcmp.gt.f32.partialorder %v2817, 0.0
    %vm2946 = vcmp.gt.f32.partialorder %v2818, 0.0
    %vm2947 = vcmp.gt.f32.partialorder %v2819, 0.0
    %vm2948 = vcmp.gt.f32.partialorder %v2820, 0.0
    %vm2949 = vcmp.gt.f32.partialorder %v2821, 0.0
    %vm2950 = vcmp.gt.f32.partialorder %v2822, 0.0
    %vm2951 = vcmp.gt.f32.partialorder %v2823, 0.0
    %vm2952 = vcmp.gt.f32.partialorder %v2824, 0.0
    %vm2953 = vcmp.gt.f32.partialorder %v2825, 0.0
    %vm2954 = vcmp.gt.f32.partialorder %v2826, 0.0
    %vm2955 = vcmp.gt.f32.partialorder %v2827, 0.0
    %vm2956 = vcmp.gt.f32.partialorder %v2828, 0.0
    %vm2957 = vcmp.gt.f32.partialorder %v2829, 0.0
    %vm2958 = vcmp.gt.f32.partialorder %v2830, 0.0
    %vm2959 = vcmp.gt.f32.partialorder %v2831, 0.0
    %vm2960 = vcmp.gt.f32.partialorder %v2832, 0.0
    %vm2961 = vcmp.gt.f32.partialorder %v2833, 0.0
    %vm2962 = vcmp.gt.f32.partialorder %v2834, 0.0
    %vm2963 = vcmp.gt.f32.partialorder %v2835, 0.0
    %vm2964 = vcmp.gt.f32.partialorder %v2836, 0.0
    %vm2965 = vcmp.gt.f32.partialorder %v2837, 0.0
    %vm2966 = vcmp.gt.f32.partialorder %v2838, 0.0
    %vm2967 = vcmp.gt.f32.partialorder %v2839, 0.0
    %vm2968 = vcmp.gt.f32.partialorder %v2840, 0.0
    %vm2969 = vcmp.gt.f32.partialorder %v2841, 0.0
    %vm2970 = vcmp.gt.f32.partialorder %v2842, 0.0
    %vm2971 = vcmp.gt.f32.partialorder %v2843, 0.0
    %vm2972 = vcmp.gt.f32.partialorder %v2844, 0.0
    %vm2973 = vcmp.gt.f32.partialorder %v2845, 0.0
    %vm2974 = vcmp.gt.f32.partialorder %v2846, 0.0
    %vm2975 = vcmp.gt.f32.partialorder %v2847, 0.0
    %vm2976 = vcmp.gt.f32.partialorder %v2848, 0.0
    %vm2977 = vcmp.gt.f32.partialorder %v2849, 0.0
    %vm2978 = vcmp.gt.f32.partialorder %v2850, 0.0
    %vm2979 = vcmp.gt.f32.partialorder %v2851, 0.0
    %vm2980 = vcmp.gt.f32.partialorder %v2852, 0.0
    %vm2981 = vcmp.gt.f32.partialorder %v2853, 0.0
    %v2982 = vmul.f32 %v2726, 0.2
    %v2983 = vmul.f32 %v2727, 0.2
    %v2984 = vmul.f32 %v2728, 0.2
    %v2985 = vmul.f32 %v2729, 0.2
    %v2986 = vmul.f32 %v2730, 0.2
    %v2987 = vmul.f32 %v2731, 0.2
    %v2988 = vmul.f32 %v2732, 0.2
    %v2989 = vmul.f32 %v2733, 0.2
    %v2990 = vmul.f32 %v2734, 0.2
    %v2991 = vmul.f32 %v2735, 0.2
    %v2992 = vmul.f32 %v2736, 0.2
    %v2993 = vmul.f32 %v2737, 0.2
    %v2994 = vmul.f32 %v2738, 0.2
    %v2995 = vmul.f32 %v2739, 0.2
    %v2996 = vmul.f32 %v2740, 0.2
    %v2997 = vmul.f32 %v2741, 0.2
    %v2998 = vmul.f32 %v2742, 0.2
    %v2999 = vmul.f32 %v2743, 0.2
    %v3000 = vmul.f32 %v2744, 0.2
    %v3001 = vmul.f32 %v2745, 0.2
    %v3002 = vmul.f32 %v2746, 0.2
    %v3003 = vmul.f32 %v2747, 0.2
    %v3004 = vmul.f32 %v2748, 0.2
    %v3005 = vmul.f32 %v2749, 0.2
    %v3006 = vmul.f32 %v2750, 0.2
    %v3007 = vmul.f32 %v2751, 0.2
    %v3008 = vmul.f32 %v2752, 0.2
    %v3009 = vmul.f32 %v2753, 0.2
    %v3010 = vmul.f32 %v2754, 0.2
    %v3011 = vmul.f32 %v2755, 0.2
    %v3012 = vmul.f32 %v2756, 0.2
    %v3013 = vmul.f32 %v2757, 0.2
    %v3014 = vmul.f32 %v2758, 0.2
    %v3015 = vmul.f32 %v2759, 0.2
    %v3016 = vmul.f32 %v2760, 0.2
    %v3017 = vmul.f32 %v2761, 0.2
    %v3018 = vmul.f32 %v2762, 0.2
    %v3019 = vmul.f32 %v2763, 0.2
    %v3020 = vmul.f32 %v2764, 0.2
    %v3021 = vmul.f32 %v2765, 0.2
    %v3022 = vmul.f32 %v2766, 0.2
    %v3023 = vmul.f32 %v2767, 0.2
    %v3024 = vmul.f32 %v2768, 0.2
    %v3025 = vmul.f32 %v2769, 0.2
    %v3026 = vmul.f32 %v2770, 0.2
    %v3027 = vmul.f32 %v2771, 0.2
    %v3028 = vmul.f32 %v2772, 0.2
    %v3029 = vmul.f32 %v2773, 0.2
    %v3030 = vmul.f32 %v2774, 0.2
    %v3031 = vmul.f32 %v2775, 0.2
    %v3032 = vmul.f32 %v2776, 0.2
    %v3033 = vmul.f32 %v2777, 0.2
    %v3034 = vmul.f32 %v2778, 0.2
    %v3035 = vmul.f32 %v2779, 0.2
    %v3036 = vmul.f32 %v2780, 0.2
    %v3037 = vmul.f32 %v2781, 0.2
    %v3038 = vmul.f32 %v2782, 0.2
    %v3039 = vmul.f32 %v2783, 0.2
    %v3040 = vmul.f32 %v2784, 0.2
    %v3041 = vmul.f32 %v2785, 0.2
    %v3042 = vmul.f32 %v2786, 0.2
    %v3043 = vmul.f32 %v2787, 0.2
    %v3044 = vmul.f32 %v2788, 0.2
    %v3045 = vmul.f32 %v2789, 0.2
    %v3046 = vmul.f32 %v2790, 0.2
    %v3047 = vmul.f32 %v2791, 0.2
    %v3048 = vmul.f32 %v2792, 0.2
    %v3049 = vmul.f32 %v2793, 0.2
    %v3050 = vmul.f32 %v2794, 0.2
    %v3051 = vmul.f32 %v2795, 0.2
    %v3052 = vmul.f32 %v2796, 0.2
    %v3053 = vmul.f32 %v2797, 0.2
    %v3054 = vmul.f32 %v2798, 0.2
    %v3055 = vmul.f32 %v2799, 0.2
    %v3056 = vmul.f32 %v2800, 0.2
    %v3057 = vmul.f32 %v2801, 0.2
    %v3058 = vmul.f32 %v2802, 0.2
    %v3059 = vmul.f32 %v2803, 0.2
    %v3060 = vmul.f32 %v2804, 0.2
    %v3061 = vmul.f32 %v2805, 0.2
    %v3062 = vmul.f32 %v2806, 0.2
    %v3063 = vmul.f32 %v2807, 0.2
    %v3064 = vmul.f32 %v2808, 0.2
    %v3065 = vmul.f32 %v2809, 0.2
    %v3066 = vmul.f32 %v2810, 0.2
    %v3067 = vmul.f32 %v2811, 0.2
    %v3068 = vmul.f32 %v2812, 0.2
    %v3069 = vmul.f32 %v2813, 0.2
    %v3070 = vmul.f32 %v2814, 0.2
    %v3071 = vmul.f32 %v2815, 0.2
    %v3072 = vmul.f32 %v2816, 0.2
    %v3073 = vmul.f32 %v2817, 0.2
    %v3074 = vmul.f32 %v2818, 0.2
    %v3075 = vmul.f32 %v2819, 0.2
    %v3076 = vmul.f32 %v2820, 0.2
    %v3077 = vmul.f32 %v2821, 0.2
    %v3078 = vmul.f32 %v2822, 0.2
    %v3079 = vmul.f32 %v2823, 0.2
    %v3080 = vmul.f32 %v2824, 0.2
    %v3081 = vmul.f32 %v2825, 0.2
    %v3082 = vmul.f32 %v2826, 0.2
    %v3083 = vmul.f32 %v2827, 0.2
    %v3084 = vmul.f32 %v2828, 0.2
    %v3085 = vmul.f32 %v2829, 0.2
    %v3086 = vmul.f32 %v2830, 0.2
    %v3087 = vmul.f32 %v2831, 0.2
    %v3088 = vmul.f32 %v2832, 0.2
    %v3089 = vmul.f32 %v2833, 0.2
    %v3090 = vmul.f32 %v2834, 0.2
    %v3091 = vmul.f32 %v2835, 0.2
    %v3092 = vmul.f32 %v2836, 0.2
    %v3093 = vmul.f32 %v2837, 0.2
    %v3094 = vmul.f32 %v2838, 0.2
    %v3095 = vmul.f32 %v2839, 0.2
    %v3096 = vmul.f32 %v2840, 0.2
    %v3097 = vmul.f32 %v2841, 0.2
    %v3098 = vmul.f32 %v2842, 0.2
    %v3099 = vmul.f32 %v2843, 0.2
    %v3100 = vmul.f32 %v2844, 0.2
    %v3101 = vmul.f32 %v2845, 0.2
    %v3102 = vmul.f32 %v2846, 0.2
    %v3103 = vmul.f32 %v2847, 0.2
    %v3104 = vmul.f32 %v2848, 0.2
    %v3105 = vmul.f32 %v2849, 0.2
    %v3106 = vmul.f32 %v2850, 0.2
    %v3107 = vmul.f32 %v2851, 0.2
    %v3108 = vmul.f32 %v2852, 0.2
    %v3109 = vmul.f32 %v2853, 0.2
    %v3110 = vsel %vm2854, %v2726, %v2982
    %v3111 = vsel %vm2855, %v2727, %v2983
    %v3112 = vsel %vm2856, %v2728, %v2984
    %v3113 = vsel %vm2857, %v2729, %v2985
    %v3114 = vsel %vm2858, %v2730, %v2986
    %v3115 = vsel %vm2859, %v2731, %v2987
    %v3116 = vsel %vm2860, %v2732, %v2988
    %v3117 = vsel %vm2861, %v2733, %v2989
    %v3118 = vsel %vm2862, %v2734, %v2990
    %v3119 = vsel %vm2863, %v2735, %v2991
    %v3120 = vsel %vm2864, %v2736, %v2992
    %v3121 = vsel %vm2865, %v2737, %v2993
    %v3122 = vsel %vm2866, %v2738, %v2994
    %v3123 = vsel %vm2867, %v2739, %v2995
    %v3124 = vsel %vm2868, %v2740, %v2996
    %v3125 = vsel %vm2869, %v2741, %v2997
    %v3126 = vsel %vm2870, %v2742, %v2998
    %v3127 = vsel %vm2871, %v2743, %v2999
    %v3128 = vsel %vm2872, %v2744, %v3000
    %v3129 = vsel %vm2873, %v2745, %v3001
    %v3130 = vsel %vm2874, %v2746, %v3002
    %v3131 = vsel %vm2875, %v2747, %v3003
    %v3132 = vsel %vm2876, %v2748, %v3004
    %v3133 = vsel %vm2877, %v2749, %v3005
    %v3134 = vsel %vm2878, %v2750, %v3006
    %v3135 = vsel %vm2879, %v2751, %v3007
    %v3136 = vsel %vm2880, %v2752, %v3008
    %v3137 = vsel %vm2881, %v2753, %v3009
    %v3138 = vsel %vm2882, %v2754, %v3010
    %v3139 = vsel %vm2883, %v2755, %v3011
    %v3140 = vsel %vm2884, %v2756, %v3012
    %v3141 = vsel %vm2885, %v2757, %v3013
    %v3142 = vsel %vm2886, %v2758, %v3014
    %v3143 = vsel %vm2887, %v2759, %v3015
    %v3144 = vsel %vm2888, %v2760, %v3016
    %v3145 = vsel %vm2889, %v2761, %v3017
    %v3146 = vsel %vm2890, %v2762, %v3018
    %v3147 = vsel %vm2891, %v2763, %v3019
    %v3148 = vsel %vm2892, %v2764, %v3020
    %v3149 = vsel %vm2893, %v2765, %v3021
    %v3150 = vsel %vm2894, %v2766, %v3022
    %v3151 = vsel %vm2895, %v2767, %v3023
    %v3152 = vsel %vm2896, %v2768, %v3024
    %v3153 = vsel %vm2897, %v2769, %v3025
    %v3154 = vsel %vm2898, %v2770, %v3026
    %v3155 = vsel %vm2899, %v2771, %v3027
    %v3156 = vsel %vm2900, %v2772, %v3028
    %v3157 = vsel %vm2901, %v2773, %v3029
    %v3158 = vsel %vm2902, %v2774, %v3030
    %v3159 = vsel %vm2903, %v2775, %v3031
    %v3160 = vsel %vm2904, %v2776, %v3032
    %v3161 = vsel %vm2905, %v2777, %v3033
    %v3162 = vsel %vm2906, %v2778, %v3034
    %v3163 = vsel %vm2907, %v2779, %v3035
    %v3164 = vsel %vm2908, %v2780, %v3036
    %v3165 = vsel %vm2909, %v2781, %v3037
    %v3166 = vsel %vm2910, %v2782, %v3038
    %v3167 = vsel %vm2911, %v2783, %v3039
    %v3168 = vsel %vm2912, %v2784, %v3040
    %v3169 = vsel %vm2913, %v2785, %v3041
    %v3170 = vsel %vm2914, %v2786, %v3042
    %v3171 = vsel %vm2915, %v2787, %v3043
    %v3172 = vsel %vm2916, %v2788, %v3044
    %v3173 = vsel %vm2917, %v2789, %v3045
    %v3174 = vsel %vm2918, %v2790, %v3046
    %v3175 = vsel %vm2919, %v2791, %v3047
    %v3176 = vsel %vm2920, %v2792, %v3048
    %v3177 = vsel %vm2921, %v2793, %v3049
    %v3178 = vsel %vm2922, %v2794, %v3050
    %v3179 = vsel %vm2923, %v2795, %v3051
    %v3180 = vsel %vm2924, %v2796, %v3052
    %v3181 = vsel %vm2925, %v2797, %v3053
    %v3182 = vsel %vm2926, %v2798, %v3054
    %v3183 = vsel %vm2927, %v2799, %v3055
    %v3184 = vsel %vm2928, %v2800, %v3056
    %v3185 = vsel %vm2929, %v2801, %v3057
    %v3186 = vsel %vm2930, %v2802, %v3058
    %v3187 = vsel %vm2931, %v2803, %v3059
    %v3188 = vsel %vm2932, %v2804, %v3060
    %v3189 = vsel %vm2933, %v2805, %v3061
    %v3190 = vsel %vm2934, %v2806, %v3062
    %v3191 = vsel %vm2935, %v2807, %v3063
    %v3192 = vsel %vm2936, %v2808, %v3064
    %v3193 = vsel %vm2937, %v2809, %v3065
    %v3194 = vsel %vm2938, %v2810, %v3066
    %v3195 = vsel %vm2939, %v2811, %v3067
    %v3196 = vsel %vm2940, %v2812, %v3068
    %v3197 = vsel %vm2941, %v2813, %v3069
    %v3198 = vsel %vm2942, %v2814, %v3070
    %v3199 = vsel %vm2943, %v2815, %v3071
    %v3200 = vsel %vm2944, %v2816, %v3072
    %v3201 = vsel %vm2945, %v2817, %v3073
    %v3202 = vsel %vm2946, %v2818, %v3074
    %v3203 = vsel %vm2947, %v2819, %v3075
    %v3204 = vsel %vm2948, %v2820, %v3076
    %v3205 = vsel %vm2949, %v2821, %v3077
    %v3206 = vsel %vm2950, %v2822, %v3078
    %v3207 = vsel %vm2951, %v2823, %v3079
    %v3208 = vsel %vm2952, %v2824, %v3080
    %v3209 = vsel %vm2953, %v2825, %v3081
    %v3210 = vsel %vm2954, %v2826, %v3082
    %v3211 = vsel %vm2955, %v2827, %v3083
    %v3212 = vsel %vm2956, %v2828, %v3084
    %v3213 = vsel %vm2957, %v2829, %v3085
    %v3214 = vsel %vm2958, %v2830, %v3086
    %v3215 = vsel %vm2959, %v2831, %v3087
    %v3216 = vsel %vm2960, %v2832, %v3088
    %v3217 = vsel %vm2961, %v2833, %v3089
    %v3218 = vsel %vm2962, %v2834, %v3090
    %v3219 = vsel %vm2963, %v2835, %v3091
    %v3220 = vsel %vm2964, %v2836, %v3092
    %v3221 = vsel %vm2965, %v2837, %v3093
    %v3222 = vsel %vm2966, %v2838, %v3094
    %v3223 = vsel %vm2967, %v2839, %v3095
    %v3224 = vsel %vm2968, %v2840, %v3096
    %v3225 = vsel %vm2969, %v2841, %v3097
    %v3226 = vsel %vm2970, %v2842, %v3098
    %v3227 = vsel %vm2971, %v2843, %v3099
    %v3228 = vsel %vm2972, %v2844, %v3100
    %v3229 = vsel %vm2973, %v2845, %v3101
    %v3230 = vsel %vm2974, %v2846, %v3102
    %v3231 = vsel %vm2975, %v2847, %v3103
    %v3232 = vsel %vm2976, %v2848, %v3104
    %v3233 = vsel %vm2977, %v2849, %v3105
    %v3234 = vsel %vm2978, %v2850, %v3106
    %v3235 = vsel %vm2979, %v2851, %v3107
    %v3236 = vsel %vm2980, %v2852, %v3108
    %v3237 = vsel %vm2981, %v2853, %v3109
    %s3238 = smul.u32 2, 64
    %s3239 = smul.u32 %s3238, 8
    %s3240 = sshll.u32 %s3239, 4
    %3241 = dma.done [#allocation4], %s3240
    %v3242 = vld [vmem:[#allocation2] sm:$0xff]
    %v3243 = vld [vmem:[#allocation2 + $0x8] sm:$0xff]
    %v3244 = vld [vmem:[#allocation2 + $0x10] sm:$0xff]
    %v3245 = vld [vmem:[#allocation2 + $0x18] sm:$0xff]
    %v3246 = vld [vmem:[#allocation2 + $0x20] sm:$0xff]
    %v3247 = vld [vmem:[#allocation2 + $0x28] sm:$0xff]
    %v3248 = vld [vmem:[#allocation2 + $0x30] sm:$0xff]
    %v3249 = vld [vmem:[#allocation2 + $0x38] sm:$0xff]
    %v3250 = vld [vmem:[#allocation2 + $0x40] sm:$0xff]
    %v3251 = vld [vmem:[#allocation2 + $0x48] sm:$0xff]
    %v3252 = vld [vmem:[#allocation2 + $0x50] sm:$0xff]
    %v3253 = vld [vmem:[#allocation2 + $0x58] sm:$0xff]
    %v3254 = vld [vmem:[#allocation2 + $0x60] sm:$0xff]
    %v3255 = vld [vmem:[#allocation2 + $0x68] sm:$0xff]
    %v3256 = vld [vmem:[#allocation2 + $0x70] sm:$0xff]
    %v3257 = vld [vmem:[#allocation2 + $0x78] sm:$0xff]
    %v3258 = vld [vmem:[#allocation2 + $0x80] sm:$0xff]
    %v3259 = vld [vmem:[#allocation2 + $0x88] sm:$0xff]
    %v3260 = vld [vmem:[#allocation2 + $0x90] sm:$0xff]
    %v3261 = vld [vmem:[#allocation2 + $0x98] sm:$0xff]
    %v3262 = vld [vmem:[#allocation2 + $0xa0] sm:$0xff]
    %v3263 = vld [vmem:[#allocation2 + $0xa8] sm:$0xff]
    %v3264 = vld [vmem:[#allocation2 + $0xb0] sm:$0xff]
    %v3265 = vld [vmem:[#allocation2 + $0xb8] sm:$0xff]
    %v3266 = vld [vmem:[#allocation2 + $0xc0] sm:$0xff]
    %v3267 = vld [vmem:[#allocation2 + $0xc8] sm:$0xff]
    %v3268 = vld [vmem:[#allocation2 + $0xd0] sm:$0xff]
    %v3269 = vld [vmem:[#allocation2 + $0xd8] sm:$0xff]
    %v3270 = vld [vmem:[#allocation2 + $0xe0] sm:$0xff]
    %v3271 = vld [vmem:[#allocation2 + $0xe8] sm:$0xff]
    %v3272 = vld [vmem:[#allocation2 + $0xf0] sm:$0xff]
    %v3273 = vld [vmem:[#allocation2 + $0xf8] sm:$0xff]
    %v3274 = vld [vmem:[#allocation2 + $0x100] sm:$0xff]
    %v3275 = vld [vmem:[#allocation2 + $0x108] sm:$0xff]
    %v3276 = vld [vmem:[#allocation2 + $0x110] sm:$0xff]
    %v3277 = vld [vmem:[#allocation2 + $0x118] sm:$0xff]
    %v3278 = vld [vmem:[#allocation2 + $0x120] sm:$0xff]
    %v3279 = vld [vmem:[#allocation2 + $0x128] sm:$0xff]
    %v3280 = vld [vmem:[#allocation2 + $0x130] sm:$0xff]
    %v3281 = vld [vmem:[#allocation2 + $0x138] sm:$0xff]
    %v3282 = vld [vmem:[#allocation2 + $0x140] sm:$0xff]
    %v3283 = vld [vmem:[#allocation2 + $0x148] sm:$0xff]
    %v3284 = vld [vmem:[#allocation2 + $0x150] sm:$0xff]
    %v3285 = vld [vmem:[#allocation2 + $0x158] sm:$0xff]
    %v3286 = vld [vmem:[#allocation2 + $0x160] sm:$0xff]
    %v3287 = vld [vmem:[#allocation2 + $0x168] sm:$0xff]
    %v3288 = vld [vmem:[#allocation2 + $0x170] sm:$0xff]
    %v3289 = vld [vmem:[#allocation2 + $0x178] sm:$0xff]
    %v3290 = vld [vmem:[#allocation2 + $0x180] sm:$0xff]
    %v3291 = vld [vmem:[#allocation2 + $0x188] sm:$0xff]
    %v3292 = vld [vmem:[#allocation2 + $0x190] sm:$0xff]
    %v3293 = vld [vmem:[#allocation2 + $0x198] sm:$0xff]
    %v3294 = vld [vmem:[#allocation2 + $0x1a0] sm:$0xff]
    %v3295 = vld [vmem:[#allocation2 + $0x1a8] sm:$0xff]
    %v3296 = vld [vmem:[#allocation2 + $0x1b0] sm:$0xff]
    %v3297 = vld [vmem:[#allocation2 + $0x1b8] sm:$0xff]
    %v3298 = vld [vmem:[#allocation2 + $0x1c0] sm:$0xff]
    %v3299 = vld [vmem:[#allocation2 + $0x1c8] sm:$0xff]
    %v3300 = vld [vmem:[#allocation2 + $0x1d0] sm:$0xff]
    %v3301 = vld [vmem:[#allocation2 + $0x1d8] sm:$0xff]
    %v3302 = vld [vmem:[#allocation2 + $0x1e0] sm:$0xff]
    %v3303 = vld [vmem:[#allocation2 + $0x1e8] sm:$0xff]
    %v3304 = vld [vmem:[#allocation2 + $0x1f0] sm:$0xff]
    %v3305 = vld [vmem:[#allocation2 + $0x1f8] sm:$0xff]
    %v3306 = vld [vmem:[#allocation2 + $0x200] sm:$0xff]
    %v3307 = vld [vmem:[#allocation2 + $0x208] sm:$0xff]
    %v3308 = vld [vmem:[#allocation2 + $0x210] sm:$0xff]
    %v3309 = vld [vmem:[#allocation2 + $0x218] sm:$0xff]
    %v3310 = vld [vmem:[#allocation2 + $0x220] sm:$0xff]
    %v3311 = vld [vmem:[#allocation2 + $0x228] sm:$0xff]
    %v3312 = vld [vmem:[#allocation2 + $0x230] sm:$0xff]
    %v3313 = vld [vmem:[#allocation2 + $0x238] sm:$0xff]
    %v3314 = vld [vmem:[#allocation2 + $0x240] sm:$0xff]
    %v3315 = vld [vmem:[#allocation2 + $0x248] sm:$0xff]
    %v3316 = vld [vmem:[#allocation2 + $0x250] sm:$0xff]
    %v3317 = vld [vmem:[#allocation2 + $0x258] sm:$0xff]
    %v3318 = vld [vmem:[#allocation2 + $0x260] sm:$0xff]
    %v3319 = vld [vmem:[#allocation2 + $0x268] sm:$0xff]
    %v3320 = vld [vmem:[#allocation2 + $0x270] sm:$0xff]
    %v3321 = vld [vmem:[#allocation2 + $0x278] sm:$0xff]
    %v3322 = vld [vmem:[#allocation2 + $0x280] sm:$0xff]
    %v3323 = vld [vmem:[#allocation2 + $0x288] sm:$0xff]
    %v3324 = vld [vmem:[#allocation2 + $0x290] sm:$0xff]
    %v3325 = vld [vmem:[#allocation2 + $0x298] sm:$0xff]
    %v3326 = vld [vmem:[#allocation2 + $0x2a0] sm:$0xff]
    %v3327 = vld [vmem:[#allocation2 + $0x2a8] sm:$0xff]
    %v3328 = vld [vmem:[#allocation2 + $0x2b0] sm:$0xff]
    %v3329 = vld [vmem:[#allocation2 + $0x2b8] sm:$0xff]
    %v3330 = vld [vmem:[#allocation2 + $0x2c0] sm:$0xff]
    %v3331 = vld [vmem:[#allocation2 + $0x2c8] sm:$0xff]
    %v3332 = vld [vmem:[#allocation2 + $0x2d0] sm:$0xff]
    %v3333 = vld [vmem:[#allocation2 + $0x2d8] sm:$0xff]
    %v3334 = vld [vmem:[#allocation2 + $0x2e0] sm:$0xff]
    %v3335 = vld [vmem:[#allocation2 + $0x2e8] sm:$0xff]
    %v3336 = vld [vmem:[#allocation2 + $0x2f0] sm:$0xff]
    %v3337 = vld [vmem:[#allocation2 + $0x2f8] sm:$0xff]
    %v3338 = vld [vmem:[#allocation2 + $0x300] sm:$0xff]
    %v3339 = vld [vmem:[#allocation2 + $0x308] sm:$0xff]
    %v3340 = vld [vmem:[#allocation2 + $0x310] sm:$0xff]
    %v3341 = vld [vmem:[#allocation2 + $0x318] sm:$0xff]
    %v3342 = vld [vmem:[#allocation2 + $0x320] sm:$0xff]
    %v3343 = vld [vmem:[#allocation2 + $0x328] sm:$0xff]
    %v3344 = vld [vmem:[#allocation2 + $0x330] sm:$0xff]
    %v3345 = vld [vmem:[#allocation2 + $0x338] sm:$0xff]
    %v3346 = vld [vmem:[#allocation2 + $0x340] sm:$0xff]
    %v3347 = vld [vmem:[#allocation2 + $0x348] sm:$0xff]
    %v3348 = vld [vmem:[#allocation2 + $0x350] sm:$0xff]
    %v3349 = vld [vmem:[#allocation2 + $0x358] sm:$0xff]
    %v3350 = vld [vmem:[#allocation2 + $0x360] sm:$0xff]
    %v3351 = vld [vmem:[#allocation2 + $0x368] sm:$0xff]
    %v3352 = vld [vmem:[#allocation2 + $0x370] sm:$0xff]
    %v3353 = vld [vmem:[#allocation2 + $0x378] sm:$0xff]
    %v3354 = vld [vmem:[#allocation2 + $0x380] sm:$0xff]
    %v3355 = vld [vmem:[#allocation2 + $0x388] sm:$0xff]
    %v3356 = vld [vmem:[#allocation2 + $0x390] sm:$0xff]
    %v3357 = vld [vmem:[#allocation2 + $0x398] sm:$0xff]
    %v3358 = vld [vmem:[#allocation2 + $0x3a0] sm:$0xff]
    %v3359 = vld [vmem:[#allocation2 + $0x3a8] sm:$0xff]
    %v3360 = vld [vmem:[#allocation2 + $0x3b0] sm:$0xff]
    %v3361 = vld [vmem:[#allocation2 + $0x3b8] sm:$0xff]
    %v3362 = vld [vmem:[#allocation2 + $0x3c0] sm:$0xff]
    %v3363 = vld [vmem:[#allocation2 + $0x3c8] sm:$0xff]
    %v3364 = vld [vmem:[#allocation2 + $0x3d0] sm:$0xff]
    %v3365 = vld [vmem:[#allocation2 + $0x3d8] sm:$0xff]
    %v3366 = vld [vmem:[#allocation2 + $0x3e0] sm:$0xff]
    %v3367 = vld [vmem:[#allocation2 + $0x3e8] sm:$0xff]
    %v3368 = vld [vmem:[#allocation2 + $0x3f0] sm:$0xff]
    %v3369 = vld [vmem:[#allocation2 + $0x3f8] sm:$0xff]
    %v3370 = vunpack.c.l.s8.bf16 %v3242
    %v3371 = vunpack.c.l.s8.bf16 %v3243
    %v3372 = vunpack.c.l.s8.bf16 %v3244
    %v3373 = vunpack.c.l.s8.bf16 %v3245
    %v3374 = vunpack.c.l.s8.bf16 %v3246
    %v3375 = vunpack.c.l.s8.bf16 %v3247
    %v3376 = vunpack.c.l.s8.bf16 %v3248
    %v3377 = vunpack.c.l.s8.bf16 %v3249
    %v3378 = vunpack.c.h.s8.bf16 %v3242
    %v3379 = vunpack.c.h.s8.bf16 %v3243
    %v3380 = vunpack.c.h.s8.bf16 %v3244
    %v3381 = vunpack.c.h.s8.bf16 %v3245
    %v3382 = vunpack.c.h.s8.bf16 %v3246
    %v3383 = vunpack.c.h.s8.bf16 %v3247
    %v3384 = vunpack.c.h.s8.bf16 %v3248
    %v3385 = vunpack.c.h.s8.bf16 %v3249
    %v3386 = vunpack.c.l.s8.bf16 %v3250
    %v3387 = vunpack.c.l.s8.bf16 %v3251
    %v3388 = vunpack.c.l.s8.bf16 %v3252
    %v3389 = vunpack.c.l.s8.bf16 %v3253
    %v3390 = vunpack.c.l.s8.bf16 %v3254
    %v3391 = vunpack.c.l.s8.bf16 %v3255
    %v3392 = vunpack.c.l.s8.bf16 %v3256
    %v3393 = vunpack.c.l.s8.bf16 %v3257
    %v3394 = vunpack.c.h.s8.bf16 %v3250
    %v3395 = vunpack.c.h.s8.bf16 %v3251
    %v3396 = vunpack.c.h.s8.bf16 %v3252
    %v3397 = vunpack.c.h.s8.bf16 %v3253
    %v3398 = vunpack.c.h.s8.bf16 %v3254
    %v3399 = vunpack.c.h.s8.bf16 %v3255
    %v3400 = vunpack.c.h.s8.bf16 %v3256
    %v3401 = vunpack.c.h.s8.bf16 %v3257
    %v3402 = vunpack.c.l.s8.bf16 %v3258
    %v3403 = vunpack.c.l.s8.bf16 %v3259
    %v3404 = vunpack.c.l.s8.bf16 %v3260
    %v3405 = vunpack.c.l.s8.bf16 %v3261
    %v3406 = vunpack.c.l.s8.bf16 %v3262
    %v3407 = vunpack.c.l.s8.bf16 %v3263
    %v3408 = vunpack.c.l.s8.bf16 %v3264
    %v3409 = vunpack.c.l.s8.bf16 %v3265
    %v3410 = vunpack.c.h.s8.bf16 %v3258
    %v3411 = vunpack.c.h.s8.bf16 %v3259
    %v3412 = vunpack.c.h.s8.bf16 %v3260
    %v3413 = vunpack.c.h.s8.bf16 %v3261
    %v3414 = vunpack.c.h.s8.bf16 %v3262
    %v3415 = vunpack.c.h.s8.bf16 %v3263
    %v3416 = vunpack.c.h.s8.bf16 %v3264
    %v3417 = vunpack.c.h.s8.bf16 %v3265
    %v3418 = vunpack.c.l.s8.bf16 %v3266
    %v3419 = vunpack.c.l.s8.bf16 %v3267
    %v3420 = vunpack.c.l.s8.bf16 %v3268
    %v3421 = vunpack.c.l.s8.bf16 %v3269
    %v3422 = vunpack.c.l.s8.bf16 %v3270
    %v3423 = vunpack.c.l.s8.bf16 %v3271
    %v3424 = vunpack.c.l.s8.bf16 %v3272
    %v3425 = vunpack.c.l.s8.bf16 %v3273
    %v3426 = vunpack.c.h.s8.bf16 %v3266
    %v3427 = vunpack.c.h.s8.bf16 %v3267
    %v3428 = vunpack.c.h.s8.bf16 %v3268
    %v3429 = vunpack.c.h.s8.bf16 %v3269
    %v3430 = vunpack.c.h.s8.bf16 %v3270
    %v3431 = vunpack.c.h.s8.bf16 %v3271
    %v3432 = vunpack.c.h.s8.bf16 %v3272
    %v3433 = vunpack.c.h.s8.bf16 %v3273
    %v3434 = vunpack.c.l.s8.bf16 %v3274
    %v3435 = vunpack.c.l.s8.bf16 %v3275
    %v3436 = vunpack.c.l.s8.bf16 %v3276
    %v3437 = vunpack.c.l.s8.bf16 %v3277
    %v3438 = vunpack.c.l.s8.bf16 %v3278
    %v3439 = vunpack.c.l.s8.bf16 %v3279
    %v3440 = vunpack.c.l.s8.bf16 %v3280
    %v3441 = vunpack.c.l.s8.bf16 %v3281
    %v3442 = vunpack.c.h.s8.bf16 %v3274
    %v3443 = vunpack.c.h.s8.bf16 %v3275
    %v3444 = vunpack.c.h.s8.bf16 %v3276
    %v3445 = vunpack.c.h.s8.bf16 %v3277
    %v3446 = vunpack.c.h.s8.bf16 %v3278
    %v3447 = vunpack.c.h.s8.bf16 %v3279
    %v3448 = vunpack.c.h.s8.bf16 %v3280
    %v3449 = vunpack.c.h.s8.bf16 %v3281
    %v3450 = vunpack.c.l.s8.bf16 %v3282
    %v3451 = vunpack.c.l.s8.bf16 %v3283
    %v3452 = vunpack.c.l.s8.bf16 %v3284
    %v3453 = vunpack.c.l.s8.bf16 %v3285
    %v3454 = vunpack.c.l.s8.bf16 %v3286
    %v3455 = vunpack.c.l.s8.bf16 %v3287
    %v3456 = vunpack.c.l.s8.bf16 %v3288
    %v3457 = vunpack.c.l.s8.bf16 %v3289
    %v3458 = vunpack.c.h.s8.bf16 %v3282
    %v3459 = vunpack.c.h.s8.bf16 %v3283
    %v3460 = vunpack.c.h.s8.bf16 %v3284
    %v3461 = vunpack.c.h.s8.bf16 %v3285
    %v3462 = vunpack.c.h.s8.bf16 %v3286
    %v3463 = vunpack.c.h.s8.bf16 %v3287
    %v3464 = vunpack.c.h.s8.bf16 %v3288
    %v3465 = vunpack.c.h.s8.bf16 %v3289
    %v3466 = vunpack.c.l.s8.bf16 %v3290
    %v3467 = vunpack.c.l.s8.bf16 %v3291
    %v3468 = vunpack.c.l.s8.bf16 %v3292
    %v3469 = vunpack.c.l.s8.bf16 %v3293
    %v3470 = vunpack.c.l.s8.bf16 %v3294
    %v3471 = vunpack.c.l.s8.bf16 %v3295
    %v3472 = vunpack.c.l.s8.bf16 %v3296
    %v3473 = vunpack.c.l.s8.bf16 %v3297
    %v3474 = vunpack.c.h.s8.bf16 %v3290
    %v3475 = vunpack.c.h.s8.bf16 %v3291
    %v3476 = vunpack.c.h.s8.bf16 %v3292
    %v3477 = vunpack.c.h.s8.bf16 %v3293
    %v3478 = vunpack.c.h.s8.bf16 %v3294
    %v3479 = vunpack.c.h.s8.bf16 %v3295
    %v3480 = vunpack.c.h.s8.bf16 %v3296
    %v3481 = vunpack.c.h.s8.bf16 %v3297
    %v3482 = vunpack.c.l.s8.bf16 %v3298
    %v3483 = vunpack.c.l.s8.bf16 %v3299
    %v3484 = vunpack.c.l.s8.bf16 %v3300
    %v3485 = vunpack.c.l.s8.bf16 %v3301
    %v3486 = vunpack.c.l.s8.bf16 %v3302
    %v3487 = vunpack.c.l.s8.bf16 %v3303
    %v3488 = vunpack.c.l.s8.bf16 %v3304
    %v3489 = vunpack.c.l.s8.bf16 %v3305
    %v3490 = vunpack.c.h.s8.bf16 %v3298
    %v3491 = vunpack.c.h.s8.bf16 %v3299
    %v3492 = vunpack.c.h.s8.bf16 %v3300
    %v3493 = vunpack.c.h.s8.bf16 %v3301
    %v3494 = vunpack.c.h.s8.bf16 %v3302
    %v3495 = vunpack.c.h.s8.bf16 %v3303
    %v3496 = vunpack.c.h.s8.bf16 %v3304
    %v3497 = vunpack.c.h.s8.bf16 %v3305
    %v3498 = vunpack.c.l.s8.bf16 %v3306
    %v3499 = vunpack.c.l.s8.bf16 %v3307
    %v3500 = vunpack.c.l.s8.bf16 %v3308
    %v3501 = vunpack.c.l.s8.bf16 %v3309
    %v3502 = vunpack.c.l.s8.bf16 %v3310
    %v3503 = vunpack.c.l.s8.bf16 %v3311
    %v3504 = vunpack.c.l.s8.bf16 %v3312
    %v3505 = vunpack.c.l.s8.bf16 %v3313
    %v3506 = vunpack.c.h.s8.bf16 %v3306
    %v3507 = vunpack.c.h.s8.bf16 %v3307
    %v3508 = vunpack.c.h.s8.bf16 %v3308
    %v3509 = vunpack.c.h.s8.bf16 %v3309
    %v3510 = vunpack.c.h.s8.bf16 %v3310
    %v3511 = vunpack.c.h.s8.bf16 %v3311
    %v3512 = vunpack.c.h.s8.bf16 %v3312
    %v3513 = vunpack.c.h.s8.bf16 %v3313
    %v3514 = vunpack.c.l.s8.bf16 %v3314
    %v3515 = vunpack.c.l.s8.bf16 %v3315
    %v3516 = vunpack.c.l.s8.bf16 %v3316
    %v3517 = vunpack.c.l.s8.bf16 %v3317
    %v3518 = vunpack.c.l.s8.bf16 %v3318
    %v3519 = vunpack.c.l.s8.bf16 %v3319
    %v3520 = vunpack.c.l.s8.bf16 %v3320
    %v3521 = vunpack.c.l.s8.bf16 %v3321
    %v3522 = vunpack.c.h.s8.bf16 %v3314
    %v3523 = vunpack.c.h.s8.bf16 %v3315
    %v3524 = vunpack.c.h.s8.bf16 %v3316
    %v3525 = vunpack.c.h.s8.bf16 %v3317
    %v3526 = vunpack.c.h.s8.bf16 %v3318
    %v3527 = vunpack.c.h.s8.bf16 %v3319
    %v3528 = vunpack.c.h.s8.bf16 %v3320
    %v3529 = vunpack.c.h.s8.bf16 %v3321
    %v3530 = vunpack.c.l.s8.bf16 %v3322
    %v3531 = vunpack.c.l.s8.bf16 %v3323
    %v3532 = vunpack.c.l.s8.bf16 %v3324
    %v3533 = vunpack.c.l.s8.bf16 %v3325
    %v3534 = vunpack.c.l.s8.bf16 %v3326
    %v3535 = vunpack.c.l.s8.bf16 %v3327
    %v3536 = vunpack.c.l.s8.bf16 %v3328
    %v3537 = vunpack.c.l.s8.bf16 %v3329
    %v3538 = vunpack.c.h.s8.bf16 %v3322
    %v3539 = vunpack.c.h.s8.bf16 %v3323
    %v3540 = vunpack.c.h.s8.bf16 %v3324
    %v3541 = vunpack.c.h.s8.bf16 %v3325
    %v3542 = vunpack.c.h.s8.bf16 %v3326
    %v3543 = vunpack.c.h.s8.bf16 %v3327
    %v3544 = vunpack.c.h.s8.bf16 %v3328
    %v3545 = vunpack.c.h.s8.bf16 %v3329
    %v3546 = vunpack.c.l.s8.bf16 %v3330
    %v3547 = vunpack.c.l.s8.bf16 %v3331
    %v3548 = vunpack.c.l.s8.bf16 %v3332
    %v3549 = vunpack.c.l.s8.bf16 %v3333
    %v3550 = vunpack.c.l.s8.bf16 %v3334
    %v3551 = vunpack.c.l.s8.bf16 %v3335
    %v3552 = vunpack.c.l.s8.bf16 %v3336
    %v3553 = vunpack.c.l.s8.bf16 %v3337
    %v3554 = vunpack.c.h.s8.bf16 %v3330
    %v3555 = vunpack.c.h.s8.bf16 %v3331
    %v3556 = vunpack.c.h.s8.bf16 %v3332
    %v3557 = vunpack.c.h.s8.bf16 %v3333
    %v3558 = vunpack.c.h.s8.bf16 %v3334
    %v3559 = vunpack.c.h.s8.bf16 %v3335
    %v3560 = vunpack.c.h.s8.bf16 %v3336
    %v3561 = vunpack.c.h.s8.bf16 %v3337
    %v3562 = vunpack.c.l.s8.bf16 %v3338
    %v3563 = vunpack.c.l.s8.bf16 %v3339
    %v3564 = vunpack.c.l.s8.bf16 %v3340
    %v3565 = vunpack.c.l.s8.bf16 %v3341
    %v3566 = vunpack.c.l.s8.bf16 %v3342
    %v3567 = vunpack.c.l.s8.bf16 %v3343
    %v3568 = vunpack.c.l.s8.bf16 %v3344
    %v3569 = vunpack.c.l.s8.bf16 %v3345
    %v3570 = vunpack.c.h.s8.bf16 %v3338
    %v3571 = vunpack.c.h.s8.bf16 %v3339
    %v3572 = vunpack.c.h.s8.bf16 %v3340
    %v3573 = vunpack.c.h.s8.bf16 %v3341
    %v3574 = vunpack.c.h.s8.bf16 %v3342
    %v3575 = vunpack.c.h.s8.bf16 %v3343
    %v3576 = vunpack.c.h.s8.bf16 %v3344
    %v3577 = vunpack.c.h.s8.bf16 %v3345
    %v3578 = vunpack.c.l.s8.bf16 %v3346
    %v3579 = vunpack.c.l.s8.bf16 %v3347
    %v3580 = vunpack.c.l.s8.bf16 %v3348
    %v3581 = vunpack.c.l.s8.bf16 %v3349
    %v3582 = vunpack.c.l.s8.bf16 %v3350
    %v3583 = vunpack.c.l.s8.bf16 %v3351
    %v3584 = vunpack.c.l.s8.bf16 %v3352
    %v3585 = vunpack.c.l.s8.bf16 %v3353
    %v3586 = vunpack.c.h.s8.bf16 %v3346
    %v3587 = vunpack.c.h.s8.bf16 %v3347
    %v3588 = vunpack.c.h.s8.bf16 %v3348
    %v3589 = vunpack.c.h.s8.bf16 %v3349
    %v3590 = vunpack.c.h.s8.bf16 %v3350
    %v3591 = vunpack.c.h.s8.bf16 %v3351
    %v3592 = vunpack.c.h.s8.bf16 %v3352
    %v3593 = vunpack.c.h.s8.bf16 %v3353
    %v3594 = vunpack.c.l.s8.bf16 %v3354
    %v3595 = vunpack.c.l.s8.bf16 %v3355
    %v3596 = vunpack.c.l.s8.bf16 %v3356
    %v3597 = vunpack.c.l.s8.bf16 %v3357
    %v3598 = vunpack.c.l.s8.bf16 %v3358
    %v3599 = vunpack.c.l.s8.bf16 %v3359
    %v3600 = vunpack.c.l.s8.bf16 %v3360
    %v3601 = vunpack.c.l.s8.bf16 %v3361
    %v3602 = vunpack.c.h.s8.bf16 %v3354
    %v3603 = vunpack.c.h.s8.bf16 %v3355
    %v3604 = vunpack.c.h.s8.bf16 %v3356
    %v3605 = vunpack.c.h.s8.bf16 %v3357
    %v3606 = vunpack.c.h.s8.bf16 %v3358
    %v3607 = vunpack.c.h.s8.bf16 %v3359
    %v3608 = vunpack.c.h.s8.bf16 %v3360
    %v3609 = vunpack.c.h.s8.bf16 %v3361
    %v3610 = vunpack.c.l.s8.bf16 %v3362
    %v3611 = vunpack.c.l.s8.bf16 %v3363
    %v3612 = vunpack.c.l.s8.bf16 %v3364
    %v3613 = vunpack.c.l.s8.bf16 %v3365
    %v3614 = vunpack.c.l.s8.bf16 %v3366
    %v3615 = vunpack.c.l.s8.bf16 %v3367
    %v3616 = vunpack.c.l.s8.bf16 %v3368
    %v3617 = vunpack.c.l.s8.bf16 %v3369
    %v3618 = vunpack.c.h.s8.bf16 %v3362
    %v3619 = vunpack.c.h.s8.bf16 %v3363
    %v3620 = vunpack.c.h.s8.bf16 %v3364
    %v3621 = vunpack.c.h.s8.bf16 %v3365
    %v3622 = vunpack.c.h.s8.bf16 %v3366
    %v3623 = vunpack.c.h.s8.bf16 %v3367
    %v3624 = vunpack.c.h.s8.bf16 %v3368
    %v3625 = vunpack.c.h.s8.bf16 %v3369
    %v3626 = vpack.c.bf16 %v3114, %v3110
    %v3627 = vpack.c.bf16 %v3115, %v3111
    %v3628 = vpack.c.bf16 %v3116, %v3112
    %v3629 = vpack.c.bf16 %v3117, %v3113
    %v3630 = vpack.c.bf16 %v3122, %v3118
    %v3631 = vpack.c.bf16 %v3123, %v3119
    %v3632 = vpack.c.bf16 %v3124, %v3120
    %v3633 = vpack.c.bf16 %v3125, %v3121
    %v3634 = vpack.c.bf16 %v3130, %v3126
    %v3635 = vpack.c.bf16 %v3131, %v3127
    %v3636 = vpack.c.bf16 %v3132, %v3128
    %v3637 = vpack.c.bf16 %v3133, %v3129
    %v3638 = vpack.c.bf16 %v3138, %v3134
    %v3639 = vpack.c.bf16 %v3139, %v3135
    %v3640 = vpack.c.bf16 %v3140, %v3136
    %v3641 = vpack.c.bf16 %v3141, %v3137
    %v3642 = vpack.c.bf16 %v3146, %v3142
    %v3643 = vpack.c.bf16 %v3147, %v3143
    %v3644 = vpack.c.bf16 %v3148, %v3144
    %v3645 = vpack.c.bf16 %v3149, %v3145
    %v3646 = vpack.c.bf16 %v3154, %v3150
    %v3647 = vpack.c.bf16 %v3155, %v3151
    %v3648 = vpack.c.bf16 %v3156, %v3152
    %v3649 = vpack.c.bf16 %v3157, %v3153
    %v3650 = vpack.c.bf16 %v3162, %v3158
    %v3651 = vpack.c.bf16 %v3163, %v3159
    %v3652 = vpack.c.bf16 %v3164, %v3160
    %v3653 = vpack.c.bf16 %v3165, %v3161
    %v3654 = vpack.c.bf16 %v3170, %v3166
    %v3655 = vpack.c.bf16 %v3171, %v3167
    %v3656 = vpack.c.bf16 %v3172, %v3168
    %v3657 = vpack.c.bf16 %v3173, %v3169
    %v3658 = vpack.c.bf16 %v3178, %v3174
    %v3659 = vpack.c.bf16 %v3179, %v3175
    %v3660 = vpack.c.bf16 %v3180, %v3176
    %v3661 = vpack.c.bf16 %v3181, %v3177
    %v3662 = vpack.c.bf16 %v3186, %v3182
    %v3663 = vpack.c.bf16 %v3187, %v3183
    %v3664 = vpack.c.bf16 %v3188, %v3184
    %v3665 = vpack.c.bf16 %v3189, %v3185
    %v3666 = vpack.c.bf16 %v3194, %v3190
    %v3667 = vpack.c.bf16 %v3195, %v3191
    %v3668 = vpack.c.bf16 %v3196, %v3192
    %v3669 = vpack.c.bf16 %v3197, %v3193
    %v3670 = vpack.c.bf16 %v3202, %v3198
    %v3671 = vpack.c.bf16 %v3203, %v3199
    %v3672 = vpack.c.bf16 %v3204, %v3200
    %v3673 = vpack.c.bf16 %v3205, %v3201
    %v3674 = vpack.c.bf16 %v3210, %v3206
    %v3675 = vpack.c.bf16 %v3211, %v3207
    %v3676 = vpack.c.bf16 %v3212, %v3208
    %v3677 = vpack.c.bf16 %v3213, %v3209
    %v3678 = vpack.c.bf16 %v3218, %v3214
    %v3679 = vpack.c.bf16 %v3219, %v3215
    %v3680 = vpack.c.bf16 %v3220, %v3216
    %v3681 = vpack.c.bf16 %v3221, %v3217
    %v3682 = vpack.c.bf16 %v3226, %v3222
    %v3683 = vpack.c.bf16 %v3227, %v3223
    %v3684 = vpack.c.bf16 %v3228, %v3224
    %v3685 = vpack.c.bf16 %v3229, %v3225
    %v3686 = vpack.c.bf16 %v3234, %v3230
    %v3687 = vpack.c.bf16 %v3235, %v3231
    %v3688 = vpack.c.bf16 %v3236, %v3232
    %v3689 = vpack.c.bf16 %v3237, %v3233
    %3690 = vmatprep.subr.bf16.mxu0 %v3427
    %3691 = vmatpush1.bf16.msra.mxu0 %v3426
    %3692 = vmatprep.subr.bf16.mxu0 %v3419
    %3693 = vmatpush1.bf16.msra.mxu0 %v3418
    %3694 = vmatprep.subr.bf16.mxu0 %v3411
    %3695 = vmatpush1.bf16.msra.mxu0 %v3410
    %3696 = vmatprep.subr.bf16.mxu0 %v3403
    %3697 = vmatpush1.bf16.msra.mxu0 %v3402
    %3698 = vmatprep.subr.bf16.mxu0 %v3395
    %3699 = vmatpush1.bf16.msra.mxu0 %v3394
    %3700 = vmatprep.subr.bf16.mxu0 %v3387
    %3701 = vmatpush1.bf16.msra.mxu0 %v3386
    %3702 = vmatprep.subr.bf16.mxu0 %v3379
    %3703 = vmatpush1.bf16.msra.mxu0 %v3378
    %3704 = vmatprep.subr.bf16.mxu0 %v3371
    %3705 = vmatpush1.bf16.msra.mxu0 %v3370
    %3706 = vmatprep.subr.bf16.mxu0 %v3491
    %3707 = vmatpush2.bf16.msra.mxu0 %v3490
    %3708 = vmatprep.subr.bf16.mxu0 %v3483
    %3709 = vmatpush2.bf16.msra.mxu0 %v3482
    %3710 = vmatprep.subr.bf16.mxu0 %v3475
    %3711 = vmatpush2.bf16.msra.mxu0 %v3474
    %3712 = vmatprep.subr.bf16.mxu0 %v3467
    %3713 = vmatpush2.bf16.msra.mxu0 %v3466
    %3714 = vmatprep.subr.bf16.mxu0 %v3459
    %3715 = vmatpush2.bf16.msra.mxu0 %v3458
    %3716 = vmatprep.subr.bf16.mxu0 %v3451
    %3717 = vmatpush2.bf16.msra.mxu0 %v3450
    %3718 = vmatprep.subr.bf16.mxu0 %v3443
    %3719 = vmatpush2.bf16.msra.mxu0 %v3442
    %3720 = vmatprep.subr.bf16.mxu0 %v3435
    %3721 = vmatpush2.bf16.msra.mxu0 %v3434
    %3722 = vmatprep.mubr.bf16.mxu0 %v3627
    %3723 = vmatmul.mubr.bf16.gmra.mxu0 %v3626
    %v3724 = vpop.f32.mrf.mxu0
    %v3725 = vadd.f32 0.0, %v3724
    %v3726 = vpop.f32.mrf.mxu0
    %v3727 = vadd.f32 0.0, %v3726
    %v3728 = vpop.f32.mrf.mxu0
    %v3729 = vadd.f32 0.0, %v3728
    %v3730 = vpop.f32.mrf.mxu0
    %v3731 = vadd.f32 0.0, %v3730
    %3732 = vmatprep.mubr.bf16.mxu0 %v3631
    %3733 = vmatmul.mubr.bf16.gmra.mxu0 %v3630
    %v3734 = vpop.f32.mrf.mxu0
    %v3735 = vadd.f32 0.0, %v3734
    %v3736 = vpop.f32.mrf.mxu0
    %v3737 = vadd.f32 0.0, %v3736
    %v3738 = vpop.f32.mrf.mxu0
    %v3739 = vadd.f32 0.0, %v3738
    %v3740 = vpop.f32.mrf.mxu0
    %v3741 = vadd.f32 0.0, %v3740
    %3742 = vmatprep.mubr.bf16.mxu0 %v3635
    %3743 = vmatmul.mubr.bf16.gmra.mxu0 %v3634
    %v3744 = vpop.f32.mrf.mxu0
    %v3745 = vadd.f32 0.0, %v3744
    %v3746 = vpop.f32.mrf.mxu0
    %v3747 = vadd.f32 0.0, %v3746
    %v3748 = vpop.f32.mrf.mxu0
    %v3749 = vadd.f32 0.0, %v3748
    %v3750 = vpop.f32.mrf.mxu0
    %v3751 = vadd.f32 0.0, %v3750
    %3752 = vmatprep.mubr.bf16.mxu0 %v3639
    %3753 = vmatmul.mubr.bf16.gmra.mxu0 %v3638
    %v3754 = vpop.f32.mrf.mxu0
    %v3755 = vadd.f32 0.0, %v3754
    %v3756 = vpop.f32.mrf.mxu0
    %v3757 = vadd.f32 0.0, %v3756
    %v3758 = vpop.f32.mrf.mxu0
    %v3759 = vadd.f32 0.0, %v3758
    %v3760 = vpop.f32.mrf.mxu0
    %v3761 = vadd.f32 0.0, %v3760
    %3762 = vmatprep.mubr.bf16.mxu0 %v3643
    %3763 = vmatmul.mubr.bf16.gmra.mxu0 %v3642
    %v3764 = vpop.f32.mrf.mxu0
    %v3765 = vadd.f32 0.0, %v3764
    %v3766 = vpop.f32.mrf.mxu0
    %v3767 = vadd.f32 0.0, %v3766
    %v3768 = vpop.f32.mrf.mxu0
    %v3769 = vadd.f32 0.0, %v3768
    %v3770 = vpop.f32.mrf.mxu0
    %v3771 = vadd.f32 0.0, %v3770
    %3772 = vmatprep.mubr.bf16.mxu0 %v3647
    %3773 = vmatmul.mubr.bf16.gmra.mxu0 %v3646
    %v3774 = vpop.f32.mrf.mxu0
    %v3775 = vadd.f32 0.0, %v3774
    %v3776 = vpop.f32.mrf.mxu0
    %v3777 = vadd.f32 0.0, %v3776
    %v3778 = vpop.f32.mrf.mxu0
    %v3779 = vadd.f32 0.0, %v3778
    %v3780 = vpop.f32.mrf.mxu0
    %v3781 = vadd.f32 0.0, %v3780
    %3782 = vmatprep.mubr.bf16.mxu0 %v3651
    %3783 = vmatmul.mubr.bf16.gmra.mxu0 %v3650
    %v3784 = vpop.f32.mrf.mxu0
    %v3785 = vadd.f32 0.0, %v3784
    %v3786 = vpop.f32.mrf.mxu0
    %v3787 = vadd.f32 0.0, %v3786
    %v3788 = vpop.f32.mrf.mxu0
    %v3789 = vadd.f32 0.0, %v3788
    %v3790 = vpop.f32.mrf.mxu0
    %v3791 = vadd.f32 0.0, %v3790
    %3792 = vmatprep.mubr.bf16.mxu0 %v3655
    %3793 = vmatmul.mubr.bf16.gmra.mxu0 %v3654
    %v3794 = vpop.f32.mrf.mxu0
    %v3795 = vadd.f32 0.0, %v3794
    %v3796 = vpop.f32.mrf.mxu0
    %v3797 = vadd.f32 0.0, %v3796
    %v3798 = vpop.f32.mrf.mxu0
    %v3799 = vadd.f32 0.0, %v3798
    %v3800 = vpop.f32.mrf.mxu0
    %v3801 = vadd.f32 0.0, %v3800
    %3802 = vmatprep.mubr.bf16.mxu0 %v3659
    %3803 = vmatmul.mubr.bf16.gmra.mxu0 %v3658
    %v3804 = vpop.f32.mrf.mxu0
    %v3805 = vadd.f32 0.0, %v3804
    %v3806 = vpop.f32.mrf.mxu0
    %v3807 = vadd.f32 0.0, %v3806
    %v3808 = vpop.f32.mrf.mxu0
    %v3809 = vadd.f32 0.0, %v3808
    %v3810 = vpop.f32.mrf.mxu0
    %v3811 = vadd.f32 0.0, %v3810
    %3812 = vmatprep.mubr.bf16.mxu0 %v3663
    %3813 = vmatmul.mubr.bf16.gmra.mxu0 %v3662
    %v3814 = vpop.f32.mrf.mxu0
    %v3815 = vadd.f32 0.0, %v3814
    %v3816 = vpop.f32.mrf.mxu0
    %v3817 = vadd.f32 0.0, %v3816
    %v3818 = vpop.f32.mrf.mxu0
    %v3819 = vadd.f32 0.0, %v3818
    %v3820 = vpop.f32.mrf.mxu0
    %v3821 = vadd.f32 0.0, %v3820
    %3822 = vmatprep.mubr.bf16.mxu0 %v3667
    %3823 = vmatmul.mubr.bf16.gmra.mxu0 %v3666
    %v3824 = vpop.f32.mrf.mxu0
    %v3825 = vadd.f32 0.0, %v3824
    %v3826 = vpop.f32.mrf.mxu0
    %v3827 = vadd.f32 0.0, %v3826
    %v3828 = vpop.f32.mrf.mxu0
    %v3829 = vadd.f32 0.0, %v3828
    %v3830 = vpop.f32.mrf.mxu0
    %v3831 = vadd.f32 0.0, %v3830
    %3832 = vmatprep.mubr.bf16.mxu0 %v3671
    %3833 = vmatmul.mubr.bf16.gmra.mxu0 %v3670
    %v3834 = vpop.f32.mrf.mxu0
    %v3835 = vadd.f32 0.0, %v3834
    %v3836 = vpop.f32.mrf.mxu0
    %v3837 = vadd.f32 0.0, %v3836
    %v3838 = vpop.f32.mrf.mxu0
    %v3839 = vadd.f32 0.0, %v3838
    %v3840 = vpop.f32.mrf.mxu0
    %v3841 = vadd.f32 0.0, %v3840
    %3842 = vmatprep.mubr.bf16.mxu0 %v3675
    %3843 = vmatmul.mubr.bf16.gmra.mxu0 %v3674
    %v3844 = vpop.f32.mrf.mxu0
    %v3845 = vadd.f32 0.0, %v3844
    %v3846 = vpop.f32.mrf.mxu0
    %v3847 = vadd.f32 0.0, %v3846
    %v3848 = vpop.f32.mrf.mxu0
    %v3849 = vadd.f32 0.0, %v3848
    %v3850 = vpop.f32.mrf.mxu0
    %v3851 = vadd.f32 0.0, %v3850
    %3852 = vmatprep.mubr.bf16.mxu0 %v3679
    %3853 = vmatmul.mubr.bf16.gmra.mxu0 %v3678
    %v3854 = vpop.f32.mrf.mxu0
    %v3855 = vadd.f32 0.0, %v3854
    %v3856 = vpop.f32.mrf.mxu0
    %v3857 = vadd.f32 0.0, %v3856
    %v3858 = vpop.f32.mrf.mxu0
    %v3859 = vadd.f32 0.0, %v3858
    %v3860 = vpop.f32.mrf.mxu0
    %v3861 = vadd.f32 0.0, %v3860
    %3862 = vmatprep.mubr.bf16.mxu0 %v3683
    %3863 = vmatmul.mubr.bf16.gmra.mxu0 %v3682
    %v3864 = vpop.f32.mrf.mxu0
    %v3865 = vadd.f32 0.0, %v3864
    %v3866 = vpop.f32.mrf.mxu0
    %v3867 = vadd.f32 0.0, %v3866
    %v3868 = vpop.f32.mrf.mxu0
    %v3869 = vadd.f32 0.0, %v3868
    %v3870 = vpop.f32.mrf.mxu0
    %v3871 = vadd.f32 0.0, %v3870
    %3872 = vmatprep.mubr.bf16.mxu0 %v3687
    %3873 = vmatmul.mubr.bf16.gmra.mxu0 %v3686
    %v3874 = vpop.f32.mrf.mxu0
    %v3875 = vadd.f32 0.0, %v3874
    %v3876 = vpop.f32.mrf.mxu0
    %v3877 = vadd.f32 0.0, %v3876
    %v3878 = vpop.f32.mrf.mxu0
    %v3879 = vadd.f32 0.0, %v3878
    %v3880 = vpop.f32.mrf.mxu0
    %v3881 = vadd.f32 0.0, %v3880
    %3882 = vdwg.mxu0
    %3883 = vmatprep.subr.bf16.mxu0 %v3555
    %3884 = vmatpush1.bf16.msra.mxu0 %v3554
    %3885 = vmatprep.subr.bf16.mxu0 %v3547
    %3886 = vmatpush1.bf16.msra.mxu0 %v3546
    %3887 = vmatprep.subr.bf16.mxu0 %v3539
    %3888 = vmatpush1.bf16.msra.mxu0 %v3538
    %3889 = vmatprep.subr.bf16.mxu0 %v3531
    %3890 = vmatpush1.bf16.msra.mxu0 %v3530
    %3891 = vmatprep.subr.bf16.mxu0 %v3523
    %3892 = vmatpush1.bf16.msra.mxu0 %v3522
    %3893 = vmatprep.subr.bf16.mxu0 %v3515
    %3894 = vmatpush1.bf16.msra.mxu0 %v3514
    %3895 = vmatprep.subr.bf16.mxu0 %v3507
    %3896 = vmatpush1.bf16.msra.mxu0 %v3506
    %3897 = vmatprep.subr.bf16.mxu0 %v3499
    %3898 = vmatpush1.bf16.msra.mxu0 %v3498
    %3899 = vmatprep.subr.bf16.mxu0 %v3619
    %3900 = vmatpush2.bf16.msra.mxu0 %v3618
    %3901 = vmatprep.subr.bf16.mxu0 %v3611
    %3902 = vmatpush2.bf16.msra.mxu0 %v3610
    %3903 = vmatprep.subr.bf16.mxu0 %v3603
    %3904 = vmatpush2.bf16.msra.mxu0 %v3602
    %3905 = vmatprep.subr.bf16.mxu0 %v3595
    %3906 = vmatpush2.bf16.msra.mxu0 %v3594
    %3907 = vmatprep.subr.bf16.mxu0 %v3587
    %3908 = vmatpush2.bf16.msra.mxu0 %v3586
    %3909 = vmatprep.subr.bf16.mxu0 %v3579
    %3910 = vmatpush2.bf16.msra.mxu0 %v3578
    %3911 = vmatprep.subr.bf16.mxu0 %v3571
    %3912 = vmatpush2.bf16.msra.mxu0 %v3570
    %3913 = vmatprep.subr.bf16.mxu0 %v3563
    %3914 = vmatpush2.bf16.msra.mxu0 %v3562
    %3915 = vmatprep.mubr.bf16.mxu0 %v3629
    %3916 = vmatmul.mubr.bf16.gmra.mxu0 %v3628
    %v3917 = vpop.f32.mrf.mxu0
    %v3918 = vadd.f32 %v3725, %v3917
    %v3919 = vpop.f32.mrf.mxu0
    %v3920 = vadd.f32 %v3727, %v3919
    %v3921 = vpop.f32.mrf.mxu0
    %v3922 = vadd.f32 %v3729, %v3921
    %v3923 = vpop.f32.mrf.mxu0
    %v3924 = vadd.f32 %v3731, %v3923
    %3925 = vmatprep.mubr.bf16.mxu0 %v3633
    %3926 = vmatmul.mubr.bf16.gmra.mxu0 %v3632
    %v3927 = vpop.f32.mrf.mxu0
    %v3928 = vadd.f32 %v3735, %v3927
    %v3929 = vpop.f32.mrf.mxu0
    %v3930 = vadd.f32 %v3737, %v3929
    %v3931 = vpop.f32.mrf.mxu0
    %v3932 = vadd.f32 %v3739, %v3931
    %v3933 = vpop.f32.mrf.mxu0
    %v3934 = vadd.f32 %v3741, %v3933
    %3935 = vmatprep.mubr.bf16.mxu0 %v3637
    %3936 = vmatmul.mubr.bf16.gmra.mxu0 %v3636
    %v3937 = vpop.f32.mrf.mxu0
    %v3938 = vadd.f32 %v3745, %v3937
    %v3939 = vpop.f32.mrf.mxu0
    %v3940 = vadd.f32 %v3747, %v3939
    %v3941 = vpop.f32.mrf.mxu0
    %v3942 = vadd.f32 %v3749, %v3941
    %v3943 = vpop.f32.mrf.mxu0
    %v3944 = vadd.f32 %v3751, %v3943
    %3945 = vmatprep.mubr.bf16.mxu0 %v3641
    %3946 = vmatmul.mubr.bf16.gmra.mxu0 %v3640
    %v3947 = vpop.f32.mrf.mxu0
    %v3948 = vadd.f32 %v3755, %v3947
    %v3949 = vpop.f32.mrf.mxu0
    %v3950 = vadd.f32 %v3757, %v3949
    %v3951 = vpop.f32.mrf.mxu0
    %v3952 = vadd.f32 %v3759, %v3951
    %v3953 = vpop.f32.mrf.mxu0
    %v3954 = vadd.f32 %v3761, %v3953
    %3955 = vmatprep.mubr.bf16.mxu0 %v3645
    %3956 = vmatmul.mubr.bf16.gmra.mxu0 %v3644
    %v3957 = vpop.f32.mrf.mxu0
    %v3958 = vadd.f32 %v3765, %v3957
    %v3959 = vpop.f32.mrf.mxu0
    %v3960 = vadd.f32 %v3767, %v3959
    %v3961 = vpop.f32.mrf.mxu0
    %v3962 = vadd.f32 %v3769, %v3961
    %v3963 = vpop.f32.mrf.mxu0
    %v3964 = vadd.f32 %v3771, %v3963
    %3965 = vmatprep.mubr.bf16.mxu0 %v3649
    %3966 = vmatmul.mubr.bf16.gmra.mxu0 %v3648
    %v3967 = vpop.f32.mrf.mxu0
    %v3968 = vadd.f32 %v3775, %v3967
    %v3969 = vpop.f32.mrf.mxu0
    %v3970 = vadd.f32 %v3777, %v3969
    %v3971 = vpop.f32.mrf.mxu0
    %v3972 = vadd.f32 %v3779, %v3971
    %v3973 = vpop.f32.mrf.mxu0
    %v3974 = vadd.f32 %v3781, %v3973
    %3975 = vmatprep.mubr.bf16.mxu0 %v3653
    %3976 = vmatmul.mubr.bf16.gmra.mxu0 %v3652
    %v3977 = vpop.f32.mrf.mxu0
    %v3978 = vadd.f32 %v3785, %v3977
    %v3979 = vpop.f32.mrf.mxu0
    %v3980 = vadd.f32 %v3787, %v3979
    %v3981 = vpop.f32.mrf.mxu0
    %v3982 = vadd.f32 %v3789, %v3981
    %v3983 = vpop.f32.mrf.mxu0
    %v3984 = vadd.f32 %v3791, %v3983
    %3985 = vmatprep.mubr.bf16.mxu0 %v3657
    %3986 = vmatmul.mubr.bf16.gmra.mxu0 %v3656
    %v3987 = vpop.f32.mrf.mxu0
    %v3988 = vadd.f32 %v3795, %v3987
    %v3989 = vpop.f32.mrf.mxu0
    %v3990 = vadd.f32 %v3797, %v3989
    %v3991 = vpop.f32.mrf.mxu0
    %v3992 = vadd.f32 %v3799, %v3991
    %v3993 = vpop.f32.mrf.mxu0
    %v3994 = vadd.f32 %v3801, %v3993
    %3995 = vmatprep.mubr.bf16.mxu0 %v3661
    %3996 = vmatmul.mubr.bf16.gmra.mxu0 %v3660
    %v3997 = vpop.f32.mrf.mxu0
    %v3998 = vadd.f32 %v3805, %v3997
    %v3999 = vpop.f32.mrf.mxu0
    %v4000 = vadd.f32 %v3807, %v3999
    %v4001 = vpop.f32.mrf.mxu0
    %v4002 = vadd.f32 %v3809, %v4001
    %v4003 = vpop.f32.mrf.mxu0
    %v4004 = vadd.f32 %v3811, %v4003
    %4005 = vmatprep.mubr.bf16.mxu0 %v3665
    %4006 = vmatmul.mubr.bf16.gmra.mxu0 %v3664
    %v4007 = vpop.f32.mrf.mxu0
    %v4008 = vadd.f32 %v3815, %v4007
    %v4009 = vpop.f32.mrf.mxu0
    %v4010 = vadd.f32 %v3817, %v4009
    %v4011 = vpop.f32.mrf.mxu0
    %v4012 = vadd.f32 %v3819, %v4011
    %v4013 = vpop.f32.mrf.mxu0
    %v4014 = vadd.f32 %v3821, %v4013
    %4015 = vmatprep.mubr.bf16.mxu0 %v3669
    %4016 = vmatmul.mubr.bf16.gmra.mxu0 %v3668
    %v4017 = vpop.f32.mrf.mxu0
    %v4018 = vadd.f32 %v3825, %v4017
    %v4019 = vpop.f32.mrf.mxu0
    %v4020 = vadd.f32 %v3827, %v4019
    %v4021 = vpop.f32.mrf.mxu0
    %v4022 = vadd.f32 %v3829, %v4021
    %v4023 = vpop.f32.mrf.mxu0
    %v4024 = vadd.f32 %v3831, %v4023
    %4025 = vmatprep.mubr.bf16.mxu0 %v3673
    %4026 = vmatmul.mubr.bf16.gmra.mxu0 %v3672
    %v4027 = vpop.f32.mrf.mxu0
    %v4028 = vadd.f32 %v3835, %v4027
    %v4029 = vpop.f32.mrf.mxu0
    %v4030 = vadd.f32 %v3837, %v4029
    %v4031 = vpop.f32.mrf.mxu0
    %v4032 = vadd.f32 %v3839, %v4031
    %v4033 = vpop.f32.mrf.mxu0
    %v4034 = vadd.f32 %v3841, %v4033
    %4035 = vmatprep.mubr.bf16.mxu0 %v3677
    %4036 = vmatmul.mubr.bf16.gmra.mxu0 %v3676
    %v4037 = vpop.f32.mrf.mxu0
    %v4038 = vadd.f32 %v3845, %v4037
    %v4039 = vpop.f32.mrf.mxu0
    %v4040 = vadd.f32 %v3847, %v4039
    %v4041 = vpop.f32.mrf.mxu0
    %v4042 = vadd.f32 %v3849, %v4041
    %v4043 = vpop.f32.mrf.mxu0
    %v4044 = vadd.f32 %v3851, %v4043
    %4045 = vmatprep.mubr.bf16.mxu0 %v3681
    %4046 = vmatmul.mubr.bf16.gmra.mxu0 %v3680
    %v4047 = vpop.f32.mrf.mxu0
    %v4048 = vadd.f32 %v3855, %v4047
    %v4049 = vpop.f32.mrf.mxu0
    %v4050 = vadd.f32 %v3857, %v4049
    %v4051 = vpop.f32.mrf.mxu0
    %v4052 = vadd.f32 %v3859, %v4051
    %v4053 = vpop.f32.mrf.mxu0
    %v4054 = vadd.f32 %v3861, %v4053
    %4055 = vmatprep.mubr.bf16.mxu0 %v3685
    %4056 = vmatmul.mubr.bf16.gmra.mxu0 %v3684
    %v4057 = vpop.f32.mrf.mxu0
    %v4058 = vadd.f32 %v3865, %v4057
    %v4059 = vpop.f32.mrf.mxu0
    %v4060 = vadd.f32 %v3867, %v4059
    %v4061 = vpop.f32.mrf.mxu0
    %v4062 = vadd.f32 %v3869, %v4061
    %v4063 = vpop.f32.mrf.mxu0
    %v4064 = vadd.f32 %v3871, %v4063
    %4065 = vmatprep.mubr.bf16.mxu0 %v3689
    %4066 = vmatmul.mubr.bf16.gmra.mxu0 %v3688
    %v4067 = vpop.f32.mrf.mxu0
    %v4068 = vadd.f32 %v3875, %v4067
    %v4069 = vpop.f32.mrf.mxu0
    %v4070 = vadd.f32 %v3877, %v4069
    %v4071 = vpop.f32.mrf.mxu0
    %v4072 = vadd.f32 %v3879, %v4071
    %v4073 = vpop.f32.mrf.mxu0
    %v4074 = vadd.f32 %v3881, %v4073
    %4075 = vdwg.mxu0
    %4076 = vmatprep.subr.bf16.mxu0 %v3429
    %4077 = vmatpush1.bf16.msra.mxu0 %v3428
    %4078 = vmatprep.subr.bf16.mxu0 %v3421
    %4079 = vmatpush1.bf16.msra.mxu0 %v3420
    %4080 = vmatprep.subr.bf16.mxu0 %v3413
    %4081 = vmatpush1.bf16.msra.mxu0 %v3412
    %4082 = vmatprep.subr.bf16.mxu0 %v3405
    %4083 = vmatpush1.bf16.msra.mxu0 %v3404
    %4084 = vmatprep.subr.bf16.mxu0 %v3397
    %4085 = vmatpush1.bf16.msra.mxu0 %v3396
    %4086 = vmatprep.subr.bf16.mxu0 %v3389
    %4087 = vmatpush1.bf16.msra.mxu0 %v3388
    %4088 = vmatprep.subr.bf16.mxu0 %v3381
    %4089 = vmatpush1.bf16.msra.mxu0 %v3380
    %4090 = vmatprep.subr.bf16.mxu0 %v3373
    %4091 = vmatpush1.bf16.msra.mxu0 %v3372
    %4092 = vmatprep.subr.bf16.mxu0 %v3493
    %4093 = vmatpush2.bf16.msra.mxu0 %v3492
    %4094 = vmatprep.subr.bf16.mxu0 %v3485
    %4095 = vmatpush2.bf16.msra.mxu0 %v3484
    %4096 = vmatprep.subr.bf16.mxu0 %v3477
    %4097 = vmatpush2.bf16.msra.mxu0 %v3476
    %4098 = vmatprep.subr.bf16.mxu0 %v3469
    %4099 = vmatpush2.bf16.msra.mxu0 %v3468
    %4100 = vmatprep.subr.bf16.mxu0 %v3461
    %4101 = vmatpush2.bf16.msra.mxu0 %v3460
    %4102 = vmatprep.subr.bf16.mxu0 %v3453
    %4103 = vmatpush2.bf16.msra.mxu0 %v3452
    %4104 = vmatprep.subr.bf16.mxu0 %v3445
    %4105 = vmatpush2.bf16.msra.mxu0 %v3444
    %4106 = vmatprep.subr.bf16.mxu0 %v3437
    %4107 = vmatpush2.bf16.msra.mxu0 %v3436
    %4108 = vmatprep.mubr.bf16.mxu0 %v3627
    %4109 = vmatmul.mubr.bf16.gmra.mxu0 %v3626
    %v4110 = vpop.f32.mrf.mxu0
    %v4111 = vadd.f32 0.0, %v4110
    %v4112 = vpop.f32.mrf.mxu0
    %v4113 = vadd.f32 0.0, %v4112
    %v4114 = vpop.f32.mrf.mxu0
    %v4115 = vadd.f32 0.0, %v4114
    %v4116 = vpop.f32.mrf.mxu0
    %v4117 = vadd.f32 0.0, %v4116
    %4118 = vmatprep.mubr.bf16.mxu0 %v3631
    %4119 = vmatmul.mubr.bf16.gmra.mxu0 %v3630
    %v4120 = vpop.f32.mrf.mxu0
    %v4121 = vadd.f32 0.0, %v4120
    %v4122 = vpop.f32.mrf.mxu0
    %v4123 = vadd.f32 0.0, %v4122
    %v4124 = vpop.f32.mrf.mxu0
    %v4125 = vadd.f32 0.0, %v4124
    %v4126 = vpop.f32.mrf.mxu0
    %v4127 = vadd.f32 0.0, %v4126
    %4128 = vmatprep.mubr.bf16.mxu0 %v3635
    %4129 = vmatmul.mubr.bf16.gmra.mxu0 %v3634
    %v4130 = vpop.f32.mrf.mxu0
    %v4131 = vadd.f32 0.0, %v4130
    %v4132 = vpop.f32.mrf.mxu0
    %v4133 = vadd.f32 0.0, %v4132
    %v4134 = vpop.f32.mrf.mxu0
    %v4135 = vadd.f32 0.0, %v4134
    %v4136 = vpop.f32.mrf.mxu0
    %v4137 = vadd.f32 0.0, %v4136
    %4138 = vmatprep.mubr.bf16.mxu0 %v3639
    %4139 = vmatmul.mubr.bf16.gmra.mxu0 %v3638
    %v4140 = vpop.f32.mrf.mxu0
    %v4141 = vadd.f32 0.0, %v4140
    %v4142 = vpop.f32.mrf.mxu0
    %v4143 = vadd.f32 0.0, %v4142
    %v4144 = vpop.f32.mrf.mxu0
    %v4145 = vadd.f32 0.0, %v4144
    %v4146 = vpop.f32.mrf.mxu0
    %v4147 = vadd.f32 0.0, %v4146
    %4148 = vmatprep.mubr.bf16.mxu0 %v3643
    %4149 = vmatmul.mubr.bf16.gmra.mxu0 %v3642
    %v4150 = vpop.f32.mrf.mxu0
    %v4151 = vadd.f32 0.0, %v4150
    %v4152 = vpop.f32.mrf.mxu0
    %v4153 = vadd.f32 0.0, %v4152
    %v4154 = vpop.f32.mrf.mxu0
    %v4155 = vadd.f32 0.0, %v4154
    %v4156 = vpop.f32.mrf.mxu0
    %v4157 = vadd.f32 0.0, %v4156
    %4158 = vmatprep.mubr.bf16.mxu0 %v3647
    %4159 = vmatmul.mubr.bf16.gmra.mxu0 %v3646
    %v4160 = vpop.f32.mrf.mxu0
    %v4161 = vadd.f32 0.0, %v4160
    %v4162 = vpop.f32.mrf.mxu0
    %v4163 = vadd.f32 0.0, %v4162
    %v4164 = vpop.f32.mrf.mxu0
    %v4165 = vadd.f32 0.0, %v4164
    %v4166 = vpop.f32.mrf.mxu0
    %v4167 = vadd.f32 0.0, %v4166
    %4168 = vmatprep.mubr.bf16.mxu0 %v3651
    %4169 = vmatmul.mubr.bf16.gmra.mxu0 %v3650
    %v4170 = vpop.f32.mrf.mxu0
    %v4171 = vadd.f32 0.0, %v4170
    %v4172 = vpop.f32.mrf.mxu0
    %v4173 = vadd.f32 0.0, %v4172
    %v4174 = vpop.f32.mrf.mxu0
    %v4175 = vadd.f32 0.0, %v4174
    %v4176 = vpop.f32.mrf.mxu0
    %v4177 = vadd.f32 0.0, %v4176
    %4178 = vmatprep.mubr.bf16.mxu0 %v3655
    %4179 = vmatmul.mubr.bf16.gmra.mxu0 %v3654
    %v4180 = vpop.f32.mrf.mxu0
    %v4181 = vadd.f32 0.0, %v4180
    %v4182 = vpop.f32.mrf.mxu0
    %v4183 = vadd.f32 0.0, %v4182
    %v4184 = vpop.f32.mrf.mxu0
    %v4185 = vadd.f32 0.0, %v4184
    %v4186 = vpop.f32.mrf.mxu0
    %v4187 = vadd.f32 0.0, %v4186
    %4188 = vmatprep.mubr.bf16.mxu0 %v3659
    %4189 = vmatmul.mubr.bf16.gmra.mxu0 %v3658
    %v4190 = vpop.f32.mrf.mxu0
    %v4191 = vadd.f32 0.0, %v4190
    %v4192 = vpop.f32.mrf.mxu0
    %v4193 = vadd.f32 0.0, %v4192
    %v4194 = vpop.f32.mrf.mxu0
    %v4195 = vadd.f32 0.0, %v4194
    %v4196 = vpop.f32.mrf.mxu0
    %v4197 = vadd.f32 0.0, %v4196
    %4198 = vmatprep.mubr.bf16.mxu0 %v3663
    %4199 = vmatmul.mubr.bf16.gmra.mxu0 %v3662
    %v4200 = vpop.f32.mrf.mxu0
    %v4201 = vadd.f32 0.0, %v4200
    %v4202 = vpop.f32.mrf.mxu0
    %v4203 = vadd.f32 0.0, %v4202
    %v4204 = vpop.f32.mrf.mxu0
    %v4205 = vadd.f32 0.0, %v4204
    %v4206 = vpop.f32.mrf.mxu0
    %v4207 = vadd.f32 0.0, %v4206
    %4208 = vmatprep.mubr.bf16.mxu0 %v3667
    %4209 = vmatmul.mubr.bf16.gmra.mxu0 %v3666
    %v4210 = vpop.f32.mrf.mxu0
    %v4211 = vadd.f32 0.0, %v4210
    %v4212 = vpop.f32.mrf.mxu0
    %v4213 = vadd.f32 0.0, %v4212
    %v4214 = vpop.f32.mrf.mxu0
    %v4215 = vadd.f32 0.0, %v4214
    %v4216 = vpop.f32.mrf.mxu0
    %v4217 = vadd.f32 0.0, %v4216
    %4218 = vmatprep.mubr.bf16.mxu0 %v3671
    %4219 = vmatmul.mubr.bf16.gmra.mxu0 %v3670
    %v4220 = vpop.f32.mrf.mxu0
    %v4221 = vadd.f32 0.0, %v4220
    %v4222 = vpop.f32.mrf.mxu0
    %v4223 = vadd.f32 0.0, %v4222
    %v4224 = vpop.f32.mrf.mxu0
    %v4225 = vadd.f32 0.0, %v4224
    %v4226 = vpop.f32.mrf.mxu0
    %v4227 = vadd.f32 0.0, %v4226
    %4228 = vmatprep.mubr.bf16.mxu0 %v3675
    %4229 = vmatmul.mubr.bf16.gmra.mxu0 %v3674
    %v4230 = vpop.f32.mrf.mxu0
    %v4231 = vadd.f32 0.0, %v4230
    %v4232 = vpop.f32.mrf.mxu0
    %v4233 = vadd.f32 0.0, %v4232
    %v4234 = vpop.f32.mrf.mxu0
    %v4235 = vadd.f32 0.0, %v4234
    %v4236 = vpop.f32.mrf.mxu0
    %v4237 = vadd.f32 0.0, %v4236
    %4238 = vmatprep.mubr.bf16.mxu0 %v3679
    %4239 = vmatmul.mubr.bf16.gmra.mxu0 %v3678
    %v4240 = vpop.f32.mrf.mxu0
    %v4241 = vadd.f32 0.0, %v4240
    %v4242 = vpop.f32.mrf.mxu0
    %v4243 = vadd.f32 0.0, %v4242
    %v4244 = vpop.f32.mrf.mxu0
    %v4245 = vadd.f32 0.0, %v4244
    %v4246 = vpop.f32.mrf.mxu0
    %v4247 = vadd.f32 0.0, %v4246
    %4248 = vmatprep.mubr.bf16.mxu0 %v3683
    %4249 = vmatmul.mubr.bf16.gmra.mxu0 %v3682
    %v4250 = vpop.f32.mrf.mxu0
    %v4251 = vadd.f32 0.0, %v4250
    %v4252 = vpop.f32.mrf.mxu0
    %v4253 = vadd.f32 0.0, %v4252
    %v4254 = vpop.f32.mrf.mxu0
    %v4255 = vadd.f32 0.0, %v4254
    %v4256 = vpop.f32.mrf.mxu0
    %v4257 = vadd.f32 0.0, %v4256
    %4258 = vmatprep.mubr.bf16.mxu0 %v3687
    %4259 = vmatmul.mubr.bf16.gmra.mxu0 %v3686
    %v4260 = vpop.f32.mrf.mxu0
    %v4261 = vadd.f32 0.0, %v4260
    %v4262 = vpop.f32.mrf.mxu0
    %v4263 = vadd.f32 0.0, %v4262
    %v4264 = vpop.f32.mrf.mxu0
    %v4265 = vadd.f32 0.0, %v4264
    %v4266 = vpop.f32.mrf.mxu0
    %v4267 = vadd.f32 0.0, %v4266
    %4268 = vdwg.mxu0
    %4269 = vmatprep.subr.bf16.mxu0 %v3557
    %4270 = vmatpush1.bf16.msra.mxu0 %v3556
    %4271 = vmatprep.subr.bf16.mxu0 %v3549
    %4272 = vmatpush1.bf16.msra.mxu0 %v3548
    %4273 = vmatprep.subr.bf16.mxu0 %v3541
    %4274 = vmatpush1.bf16.msra.mxu0 %v3540
    %4275 = vmatprep.subr.bf16.mxu0 %v3533
    %4276 = vmatpush1.bf16.msra.mxu0 %v3532
    %4277 = vmatprep.subr.bf16.mxu0 %v3525
    %4278 = vmatpush1.bf16.msra.mxu0 %v3524
    %4279 = vmatprep.subr.bf16.mxu0 %v3517
    %4280 = vmatpush1.bf16.msra.mxu0 %v3516
    %4281 = vmatprep.subr.bf16.mxu0 %v3509
    %4282 = vmatpush1.bf16.msra.mxu0 %v3508
    %4283 = vmatprep.subr.bf16.mxu0 %v3501
    %4284 = vmatpush1.bf16.msra.mxu0 %v3500
    %4285 = vmatprep.subr.bf16.mxu0 %v3621
    %4286 = vmatpush2.bf16.msra.mxu0 %v3620
    %4287 = vmatprep.subr.bf16.mxu0 %v3613
    %4288 = vmatpush2.bf16.msra.mxu0 %v3612
    %4289 = vmatprep.subr.bf16.mxu0 %v3605
    %4290 = vmatpush2.bf16.msra.mxu0 %v3604
    %4291 = vmatprep.subr.bf16.mxu0 %v3597
    %4292 = vmatpush2.bf16.msra.mxu0 %v3596
    %4293 = vmatprep.subr.bf16.mxu0 %v3589
    %4294 = vmatpush2.bf16.msra.mxu0 %v3588
    %4295 = vmatprep.subr.bf16.mxu0 %v3581
    %4296 = vmatpush2.bf16.msra.mxu0 %v3580
    %4297 = vmatprep.subr.bf16.mxu0 %v3573
    %4298 = vmatpush2.bf16.msra.mxu0 %v3572
    %4299 = vmatprep.subr.bf16.mxu0 %v3565
    %4300 = vmatpush2.bf16.msra.mxu0 %v3564
    %4301 = vmatprep.mubr.bf16.mxu0 %v3629
    %4302 = vmatmul.mubr.bf16.gmra.mxu0 %v3628
    %v4303 = vpop.f32.mrf.mxu0
    %v4304 = vadd.f32 %v4111, %v4303
    %v4305 = vpop.f32.mrf.mxu0
    %v4306 = vadd.f32 %v4113, %v4305
    %v4307 = vpop.f32.mrf.mxu0
    %v4308 = vadd.f32 %v4115, %v4307
    %v4309 = vpop.f32.mrf.mxu0
    %v4310 = vadd.f32 %v4117, %v4309
    %4311 = vmatprep.mubr.bf16.mxu0 %v3633
    %4312 = vmatmul.mubr.bf16.gmra.mxu0 %v3632
    %v4313 = vpop.f32.mrf.mxu0
    %v4314 = vadd.f32 %v4121, %v4313
    %v4315 = vpop.f32.mrf.mxu0
    %v4316 = vadd.f32 %v4123, %v4315
    %v4317 = vpop.f32.mrf.mxu0
    %v4318 = vadd.f32 %v4125, %v4317
    %v4319 = vpop.f32.mrf.mxu0
    %v4320 = vadd.f32 %v4127, %v4319
    %4321 = vmatprep.mubr.bf16.mxu0 %v3637
    %4322 = vmatmul.mubr.bf16.gmra.mxu0 %v3636
    %v4323 = vpop.f32.mrf.mxu0
    %v4324 = vadd.f32 %v4131, %v4323
    %v4325 = vpop.f32.mrf.mxu0
    %v4326 = vadd.f32 %v4133, %v4325
    %v4327 = vpop.f32.mrf.mxu0
    %v4328 = vadd.f32 %v4135, %v4327
    %v4329 = vpop.f32.mrf.mxu0
    %v4330 = vadd.f32 %v4137, %v4329
    %4331 = vmatprep.mubr.bf16.mxu0 %v3641
    %4332 = vmatmul.mubr.bf16.gmra.mxu0 %v3640
    %v4333 = vpop.f32.mrf.mxu0
    %v4334 = vadd.f32 %v4141, %v4333
    %v4335 = vpop.f32.mrf.mxu0
    %v4336 = vadd.f32 %v4143, %v4335
    %v4337 = vpop.f32.mrf.mxu0
    %v4338 = vadd.f32 %v4145, %v4337
    %v4339 = vpop.f32.mrf.mxu0
    %v4340 = vadd.f32 %v4147, %v4339
    %4341 = vmatprep.mubr.bf16.mxu0 %v3645
    %4342 = vmatmul.mubr.bf16.gmra.mxu0 %v3644
    %v4343 = vpop.f32.mrf.mxu0
    %v4344 = vadd.f32 %v4151, %v4343
    %v4345 = vpop.f32.mrf.mxu0
    %v4346 = vadd.f32 %v4153, %v4345
    %v4347 = vpop.f32.mrf.mxu0
    %v4348 = vadd.f32 %v4155, %v4347
    %v4349 = vpop.f32.mrf.mxu0
    %v4350 = vadd.f32 %v4157, %v4349
    %4351 = vmatprep.mubr.bf16.mxu0 %v3649
    %4352 = vmatmul.mubr.bf16.gmra.mxu0 %v3648
    %v4353 = vpop.f32.mrf.mxu0
    %v4354 = vadd.f32 %v4161, %v4353
    %v4355 = vpop.f32.mrf.mxu0
    %v4356 = vadd.f32 %v4163, %v4355
    %v4357 = vpop.f32.mrf.mxu0
    %v4358 = vadd.f32 %v4165, %v4357
    %v4359 = vpop.f32.mrf.mxu0
    %v4360 = vadd.f32 %v4167, %v4359
    %4361 = vmatprep.mubr.bf16.mxu0 %v3653
    %4362 = vmatmul.mubr.bf16.gmra.mxu0 %v3652
    %v4363 = vpop.f32.mrf.mxu0
    %v4364 = vadd.f32 %v4171, %v4363
    %v4365 = vpop.f32.mrf.mxu0
    %v4366 = vadd.f32 %v4173, %v4365
    %v4367 = vpop.f32.mrf.mxu0
    %v4368 = vadd.f32 %v4175, %v4367
    %v4369 = vpop.f32.mrf.mxu0
    %v4370 = vadd.f32 %v4177, %v4369
    %4371 = vmatprep.mubr.bf16.mxu0 %v3657
    %4372 = vmatmul.mubr.bf16.gmra.mxu0 %v3656
    %v4373 = vpop.f32.mrf.mxu0
    %v4374 = vadd.f32 %v4181, %v4373
    %v4375 = vpop.f32.mrf.mxu0
    %v4376 = vadd.f32 %v4183, %v4375
    %v4377 = vpop.f32.mrf.mxu0
    %v4378 = vadd.f32 %v4185, %v4377
    %v4379 = vpop.f32.mrf.mxu0
    %v4380 = vadd.f32 %v4187, %v4379
    %4381 = vmatprep.mubr.bf16.mxu0 %v3661
    %4382 = vmatmul.mubr.bf16.gmra.mxu0 %v3660
    %v4383 = vpop.f32.mrf.mxu0
    %v4384 = vadd.f32 %v4191, %v4383
    %v4385 = vpop.f32.mrf.mxu0
    %v4386 = vadd.f32 %v4193, %v4385
    %v4387 = vpop.f32.mrf.mxu0
    %v4388 = vadd.f32 %v4195, %v4387
    %v4389 = vpop.f32.mrf.mxu0
    %v4390 = vadd.f32 %v4197, %v4389
    %4391 = vmatprep.mubr.bf16.mxu0 %v3665
    %4392 = vmatmul.mubr.bf16.gmra.mxu0 %v3664
    %v4393 = vpop.f32.mrf.mxu0
    %v4394 = vadd.f32 %v4201, %v4393
    %v4395 = vpop.f32.mrf.mxu0
    %v4396 = vadd.f32 %v4203, %v4395
    %v4397 = vpop.f32.mrf.mxu0
    %v4398 = vadd.f32 %v4205, %v4397
    %v4399 = vpop.f32.mrf.mxu0
    %v4400 = vadd.f32 %v4207, %v4399
    %4401 = vmatprep.mubr.bf16.mxu0 %v3669
    %4402 = vmatmul.mubr.bf16.gmra.mxu0 %v3668
    %v4403 = vpop.f32.mrf.mxu0
    %v4404 = vadd.f32 %v4211, %v4403
    %v4405 = vpop.f32.mrf.mxu0
    %v4406 = vadd.f32 %v4213, %v4405
    %v4407 = vpop.f32.mrf.mxu0
    %v4408 = vadd.f32 %v4215, %v4407
    %v4409 = vpop.f32.mrf.mxu0
    %v4410 = vadd.f32 %v4217, %v4409
    %4411 = vmatprep.mubr.bf16.mxu0 %v3673
    %4412 = vmatmul.mubr.bf16.gmra.mxu0 %v3672
    %v4413 = vpop.f32.mrf.mxu0
    %v4414 = vadd.f32 %v4221, %v4413
    %v4415 = vpop.f32.mrf.mxu0
    %v4416 = vadd.f32 %v4223, %v4415
    %v4417 = vpop.f32.mrf.mxu0
    %v4418 = vadd.f32 %v4225, %v4417
    %v4419 = vpop.f32.mrf.mxu0
    %v4420 = vadd.f32 %v4227, %v4419
    %4421 = vmatprep.mubr.bf16.mxu0 %v3677
    %4422 = vmatmul.mubr.bf16.gmra.mxu0 %v3676
    %v4423 = vpop.f32.mrf.mxu0
    %v4424 = vadd.f32 %v4231, %v4423
    %v4425 = vpop.f32.mrf.mxu0
    %v4426 = vadd.f32 %v4233, %v4425
    %v4427 = vpop.f32.mrf.mxu0
    %v4428 = vadd.f32 %v4235, %v4427
    %v4429 = vpop.f32.mrf.mxu0
    %v4430 = vadd.f32 %v4237, %v4429
    %4431 = vmatprep.mubr.bf16.mxu0 %v3681
    %4432 = vmatmul.mubr.bf16.gmra.mxu0 %v3680
    %v4433 = vpop.f32.mrf.mxu0
    %v4434 = vadd.f32 %v4241, %v4433
    %v4435 = vpop.f32.mrf.mxu0
    %v4436 = vadd.f32 %v4243, %v4435
    %v4437 = vpop.f32.mrf.mxu0
    %v4438 = vadd.f32 %v4245, %v4437
    %v4439 = vpop.f32.mrf.mxu0
    %v4440 = vadd.f32 %v4247, %v4439
    %4441 = vmatprep.mubr.bf16.mxu0 %v3685
    %4442 = vmatmul.mubr.bf16.gmra.mxu0 %v3684
    %v4443 = vpop.f32.mrf.mxu0
    %v4444 = vadd.f32 %v4251, %v4443
    %v4445 = vpop.f32.mrf.mxu0
    %v4446 = vadd.f32 %v4253, %v4445
    %v4447 = vpop.f32.mrf.mxu0
    %v4448 = vadd.f32 %v4255, %v4447
    %v4449 = vpop.f32.mrf.mxu0
    %v4450 = vadd.f32 %v4257, %v4449
    %4451 = vmatprep.mubr.bf16.mxu0 %v3689
    %4452 = vmatmul.mubr.bf16.gmra.mxu0 %v3688
    %v4453 = vpop.f32.mrf.mxu0
    %v4454 = vadd.f32 %v4261, %v4453
    %v4455 = vpop.f32.mrf.mxu0
    %v4456 = vadd.f32 %v4263, %v4455
    %v4457 = vpop.f32.mrf.mxu0
    %v4458 = vadd.f32 %v4265, %v4457
    %v4459 = vpop.f32.mrf.mxu0
    %v4460 = vadd.f32 %v4267, %v4459
    %4461 = vdwg.mxu0
    %4462 = vmatprep.subr.bf16.mxu0 %v3431
    %4463 = vmatpush1.bf16.msra.mxu0 %v3430
    %4464 = vmatprep.subr.bf16.mxu0 %v3423
    %4465 = vmatpush1.bf16.msra.mxu0 %v3422
    %4466 = vmatprep.subr.bf16.mxu0 %v3415
    %4467 = vmatpush1.bf16.msra.mxu0 %v3414
    %4468 = vmatprep.subr.bf16.mxu0 %v3407
    %4469 = vmatpush1.bf16.msra.mxu0 %v3406
    %4470 = vmatprep.subr.bf16.mxu0 %v3399
    %4471 = vmatpush1.bf16.msra.mxu0 %v3398
    %4472 = vmatprep.subr.bf16.mxu0 %v3391
    %4473 = vmatpush1.bf16.msra.mxu0 %v3390
    %4474 = vmatprep.subr.bf16.mxu0 %v3383
    %4475 = vmatpush1.bf16.msra.mxu0 %v3382
    %4476 = vmatprep.subr.bf16.mxu0 %v3375
    %4477 = vmatpush1.bf16.msra.mxu0 %v3374
    %4478 = vmatprep.subr.bf16.mxu0 %v3495
    %4479 = vmatpush2.bf16.msra.mxu0 %v3494
    %4480 = vmatprep.subr.bf16.mxu0 %v3487
    %4481 = vmatpush2.bf16.msra.mxu0 %v3486
    %4482 = vmatprep.subr.bf16.mxu0 %v3479
    %4483 = vmatpush2.bf16.msra.mxu0 %v3478
    %4484 = vmatprep.subr.bf16.mxu0 %v3471
    %4485 = vmatpush2.bf16.msra.mxu0 %v3470
    %4486 = vmatprep.subr.bf16.mxu0 %v3463
    %4487 = vmatpush2.bf16.msra.mxu0 %v3462
    %4488 = vmatprep.subr.bf16.mxu0 %v3455
    %4489 = vmatpush2.bf16.msra.mxu0 %v3454
    %4490 = vmatprep.subr.bf16.mxu0 %v3447
    %4491 = vmatpush2.bf16.msra.mxu0 %v3446
    %4492 = vmatprep.subr.bf16.mxu0 %v3439
    %4493 = vmatpush2.bf16.msra.mxu0 %v3438
    %4494 = vmatprep.mubr.bf16.mxu0 %v3627
    %4495 = vmatmul.mubr.bf16.gmra.mxu0 %v3626
    %v4496 = vpop.f32.mrf.mxu0
    %v4497 = vadd.f32 0.0, %v4496
    %v4498 = vpop.f32.mrf.mxu0
    %v4499 = vadd.f32 0.0, %v4498
    %v4500 = vpop.f32.mrf.mxu0
    %v4501 = vadd.f32 0.0, %v4500
    %v4502 = vpop.f32.mrf.mxu0
    %v4503 = vadd.f32 0.0, %v4502
    %4504 = vmatprep.mubr.bf16.mxu0 %v3631
    %4505 = vmatmul.mubr.bf16.gmra.mxu0 %v3630
    %v4506 = vpop.f32.mrf.mxu0
    %v4507 = vadd.f32 0.0, %v4506
    %v4508 = vpop.f32.mrf.mxu0
    %v4509 = vadd.f32 0.0, %v4508
    %v4510 = vpop.f32.mrf.mxu0
    %v4511 = vadd.f32 0.0, %v4510
    %v4512 = vpop.f32.mrf.mxu0
    %v4513 = vadd.f32 0.0, %v4512
    %4514 = vmatprep.mubr.bf16.mxu0 %v3635
    %4515 = vmatmul.mubr.bf16.gmra.mxu0 %v3634
    %v4516 = vpop.f32.mrf.mxu0
    %v4517 = vadd.f32 0.0, %v4516
    %v4518 = vpop.f32.mrf.mxu0
    %v4519 = vadd.f32 0.0, %v4518
    %v4520 = vpop.f32.mrf.mxu0
    %v4521 = vadd.f32 0.0, %v4520
    %v4522 = vpop.f32.mrf.mxu0
    %v4523 = vadd.f32 0.0, %v4522
    %4524 = vmatprep.mubr.bf16.mxu0 %v3639
    %4525 = vmatmul.mubr.bf16.gmra.mxu0 %v3638
    %v4526 = vpop.f32.mrf.mxu0
    %v4527 = vadd.f32 0.0, %v4526
    %v4528 = vpop.f32.mrf.mxu0
    %v4529 = vadd.f32 0.0, %v4528
    %v4530 = vpop.f32.mrf.mxu0
    %v4531 = vadd.f32 0.0, %v4530
    %v4532 = vpop.f32.mrf.mxu0
    %v4533 = vadd.f32 0.0, %v4532
    %4534 = vmatprep.mubr.bf16.mxu0 %v3643
    %4535 = vmatmul.mubr.bf16.gmra.mxu0 %v3642
    %v4536 = vpop.f32.mrf.mxu0
    %v4537 = vadd.f32 0.0, %v4536
    %v4538 = vpop.f32.mrf.mxu0
    %v4539 = vadd.f32 0.0, %v4538
    %v4540 = vpop.f32.mrf.mxu0
    %v4541 = vadd.f32 0.0, %v4540
    %v4542 = vpop.f32.mrf.mxu0
    %v4543 = vadd.f32 0.0, %v4542
    %4544 = vmatprep.mubr.bf16.mxu0 %v3647
    %4545 = vmatmul.mubr.bf16.gmra.mxu0 %v3646
    %v4546 = vpop.f32.mrf.mxu0
    %v4547 = vadd.f32 0.0, %v4546
    %v4548 = vpop.f32.mrf.mxu0
    %v4549 = vadd.f32 0.0, %v4548
    %v4550 = vpop.f32.mrf.mxu0
    %v4551 = vadd.f32 0.0, %v4550
    %v4552 = vpop.f32.mrf.mxu0
    %v4553 = vadd.f32 0.0, %v4552
    %4554 = vmatprep.mubr.bf16.mxu0 %v3651
    %4555 = vmatmul.mubr.bf16.gmra.mxu0 %v3650
    %v4556 = vpop.f32.mrf.mxu0
    %v4557 = vadd.f32 0.0, %v4556
    %v4558 = vpop.f32.mrf.mxu0
    %v4559 = vadd.f32 0.0, %v4558
    %v4560 = vpop.f32.mrf.mxu0
    %v4561 = vadd.f32 0.0, %v4560
    %v4562 = vpop.f32.mrf.mxu0
    %v4563 = vadd.f32 0.0, %v4562
    %4564 = vmatprep.mubr.bf16.mxu0 %v3655
    %4565 = vmatmul.mubr.bf16.gmra.mxu0 %v3654
    %v4566 = vpop.f32.mrf.mxu0
    %v4567 = vadd.f32 0.0, %v4566
    %v4568 = vpop.f32.mrf.mxu0
    %v4569 = vadd.f32 0.0, %v4568
    %v4570 = vpop.f32.mrf.mxu0
    %v4571 = vadd.f32 0.0, %v4570
    %v4572 = vpop.f32.mrf.mxu0
    %v4573 = vadd.f32 0.0, %v4572
    %4574 = vmatprep.mubr.bf16.mxu0 %v3659
    %4575 = vmatmul.mubr.bf16.gmra.mxu0 %v3658
    %v4576 = vpop.f32.mrf.mxu0
    %v4577 = vadd.f32 0.0, %v4576
    %v4578 = vpop.f32.mrf.mxu0
    %v4579 = vadd.f32 0.0, %v4578
    %v4580 = vpop.f32.mrf.mxu0
    %v4581 = vadd.f32 0.0, %v4580
    %v4582 = vpop.f32.mrf.mxu0
    %v4583 = vadd.f32 0.0, %v4582
    %4584 = vmatprep.mubr.bf16.mxu0 %v3663
    %4585 = vmatmul.mubr.bf16.gmra.mxu0 %v3662
    %v4586 = vpop.f32.mrf.mxu0
    %v4587 = vadd.f32 0.0, %v4586
    %v4588 = vpop.f32.mrf.mxu0
    %v4589 = vadd.f32 0.0, %v4588
    %v4590 = vpop.f32.mrf.mxu0
    %v4591 = vadd.f32 0.0, %v4590
    %v4592 = vpop.f32.mrf.mxu0
    %v4593 = vadd.f32 0.0, %v4592
    %4594 = vmatprep.mubr.bf16.mxu0 %v3667
    %4595 = vmatmul.mubr.bf16.gmra.mxu0 %v3666
    %v4596 = vpop.f32.mrf.mxu0
    %v4597 = vadd.f32 0.0, %v4596
    %v4598 = vpop.f32.mrf.mxu0
    %v4599 = vadd.f32 0.0, %v4598
    %v4600 = vpop.f32.mrf.mxu0
    %v4601 = vadd.f32 0.0, %v4600
    %v4602 = vpop.f32.mrf.mxu0
    %v4603 = vadd.f32 0.0, %v4602
    %4604 = vmatprep.mubr.bf16.mxu0 %v3671
    %4605 = vmatmul.mubr.bf16.gmra.mxu0 %v3670
    %v4606 = vpop.f32.mrf.mxu0
    %v4607 = vadd.f32 0.0, %v4606
    %v4608 = vpop.f32.mrf.mxu0
    %v4609 = vadd.f32 0.0, %v4608
    %v4610 = vpop.f32.mrf.mxu0
    %v4611 = vadd.f32 0.0, %v4610
    %v4612 = vpop.f32.mrf.mxu0
    %v4613 = vadd.f32 0.0, %v4612
    %4614 = vmatprep.mubr.bf16.mxu0 %v3675
    %4615 = vmatmul.mubr.bf16.gmra.mxu0 %v3674
    %v4616 = vpop.f32.mrf.mxu0
    %v4617 = vadd.f32 0.0, %v4616
    %v4618 = vpop.f32.mrf.mxu0
    %v4619 = vadd.f32 0.0, %v4618
    %v4620 = vpop.f32.mrf.mxu0
    %v4621 = vadd.f32 0.0, %v4620
    %v4622 = vpop.f32.mrf.mxu0
    %v4623 = vadd.f32 0.0, %v4622
    %4624 = vmatprep.mubr.bf16.mxu0 %v3679
    %4625 = vmatmul.mubr.bf16.gmra.mxu0 %v3678
    %v4626 = vpop.f32.mrf.mxu0
    %v4627 = vadd.f32 0.0, %v4626
    %v4628 = vpop.f32.mrf.mxu0
    %v4629 = vadd.f32 0.0, %v4628
    %v4630 = vpop.f32.mrf.mxu0
    %v4631 = vadd.f32 0.0, %v4630
    %v4632 = vpop.f32.mrf.mxu0
    %v4633 = vadd.f32 0.0, %v4632
    %4634 = vmatprep.mubr.bf16.mxu0 %v3683
    %4635 = vmatmul.mubr.bf16.gmra.mxu0 %v3682
    %v4636 = vpop.f32.mrf.mxu0
    %v4637 = vadd.f32 0.0, %v4636
    %v4638 = vpop.f32.mrf.mxu0
    %v4639 = vadd.f32 0.0, %v4638
    %v4640 = vpop.f32.mrf.mxu0
    %v4641 = vadd.f32 0.0, %v4640
    %v4642 = vpop.f32.mrf.mxu0
    %v4643 = vadd.f32 0.0, %v4642
    %4644 = vmatprep.mubr.bf16.mxu0 %v3687
    %4645 = vmatmul.mubr.bf16.gmra.mxu0 %v3686
    %v4646 = vpop.f32.mrf.mxu0
    %v4647 = vadd.f32 0.0, %v4646
    %v4648 = vpop.f32.mrf.mxu0
    %v4649 = vadd.f32 0.0, %v4648
    %v4650 = vpop.f32.mrf.mxu0
    %v4651 = vadd.f32 0.0, %v4650
    %v4652 = vpop.f32.mrf.mxu0
    %v4653 = vadd.f32 0.0, %v4652
    %4654 = vdwg.mxu0
    %4655 = vmatprep.subr.bf16.mxu0 %v3559
    %4656 = vmatpush1.bf16.msra.mxu0 %v3558
    %4657 = vmatprep.subr.bf16.mxu0 %v3551
    %4658 = vmatpush1.bf16.msra.mxu0 %v3550
    %4659 = vmatprep.subr.bf16.mxu0 %v3543
    %4660 = vmatpush1.bf16.msra.mxu0 %v3542
    %4661 = vmatprep.subr.bf16.mxu0 %v3535
    %4662 = vmatpush1.bf16.msra.mxu0 %v3534
    %4663 = vmatprep.subr.bf16.mxu0 %v3527
    %4664 = vmatpush1.bf16.msra.mxu0 %v3526
    %4665 = vmatprep.subr.bf16.mxu0 %v3519
    %4666 = vmatpush1.bf16.msra.mxu0 %v3518
    %4667 = vmatprep.subr.bf16.mxu0 %v3511
    %4668 = vmatpush1.bf16.msra.mxu0 %v3510
    %4669 = vmatprep.subr.bf16.mxu0 %v3503
    %4670 = vmatpush1.bf16.msra.mxu0 %v3502
    %4671 = vmatprep.subr.bf16.mxu0 %v3623
    %4672 = vmatpush2.bf16.msra.mxu0 %v3622
    %4673 = vmatprep.subr.bf16.mxu0 %v3615
    %4674 = vmatpush2.bf16.msra.mxu0 %v3614
    %4675 = vmatprep.subr.bf16.mxu0 %v3607
    %4676 = vmatpush2.bf16.msra.mxu0 %v3606
    %4677 = vmatprep.subr.bf16.mxu0 %v3599
    %4678 = vmatpush2.bf16.msra.mxu0 %v3598
    %4679 = vmatprep.subr.bf16.mxu0 %v3591
    %4680 = vmatpush2.bf16.msra.mxu0 %v3590
    %4681 = vmatprep.subr.bf16.mxu0 %v3583
    %4682 = vmatpush2.bf16.msra.mxu0 %v3582
    %4683 = vmatprep.subr.bf16.mxu0 %v3575
    %4684 = vmatpush2.bf16.msra.mxu0 %v3574
    %4685 = vmatprep.subr.bf16.mxu0 %v3567
    %4686 = vmatpush2.bf16.msra.mxu0 %v3566
    %4687 = vmatprep.mubr.bf16.mxu0 %v3629
    %4688 = vmatmul.mubr.bf16.gmra.mxu0 %v3628
    %v4689 = vpop.f32.mrf.mxu0
    %v4690 = vadd.f32 %v4497, %v4689
    %v4691 = vpop.f32.mrf.mxu0
    %v4692 = vadd.f32 %v4499, %v4691
    %v4693 = vpop.f32.mrf.mxu0
    %v4694 = vadd.f32 %v4501, %v4693
    %v4695 = vpop.f32.mrf.mxu0
    %v4696 = vadd.f32 %v4503, %v4695
    %4697 = vmatprep.mubr.bf16.mxu0 %v3633
    %4698 = vmatmul.mubr.bf16.gmra.mxu0 %v3632
    %v4699 = vpop.f32.mrf.mxu0
    %v4700 = vadd.f32 %v4507, %v4699
    %v4701 = vpop.f32.mrf.mxu0
    %v4702 = vadd.f32 %v4509, %v4701
    %v4703 = vpop.f32.mrf.mxu0
    %v4704 = vadd.f32 %v4511, %v4703
    %v4705 = vpop.f32.mrf.mxu0
    %v4706 = vadd.f32 %v4513, %v4705
    %4707 = vmatprep.mubr.bf16.mxu0 %v3637
    %4708 = vmatmul.mubr.bf16.gmra.mxu0 %v3636
    %v4709 = vpop.f32.mrf.mxu0
    %v4710 = vadd.f32 %v4517, %v4709
    %v4711 = vpop.f32.mrf.mxu0
    %v4712 = vadd.f32 %v4519, %v4711
    %v4713 = vpop.f32.mrf.mxu0
    %v4714 = vadd.f32 %v4521, %v4713
    %v4715 = vpop.f32.mrf.mxu0
    %v4716 = vadd.f32 %v4523, %v4715
    %4717 = vmatprep.mubr.bf16.mxu0 %v3641
    %4718 = vmatmul.mubr.bf16.gmra.mxu0 %v3640
    %v4719 = vpop.f32.mrf.mxu0
    %v4720 = vadd.f32 %v4527, %v4719
    %v4721 = vpop.f32.mrf.mxu0
    %v4722 = vadd.f32 %v4529, %v4721
    %v4723 = vpop.f32.mrf.mxu0
    %v4724 = vadd.f32 %v4531, %v4723
    %v4725 = vpop.f32.mrf.mxu0
    %v4726 = vadd.f32 %v4533, %v4725
    %4727 = vmatprep.mubr.bf16.mxu0 %v3645
    %4728 = vmatmul.mubr.bf16.gmra.mxu0 %v3644
    %v4729 = vpop.f32.mrf.mxu0
    %v4730 = vadd.f32 %v4537, %v4729
    %v4731 = vpop.f32.mrf.mxu0
    %v4732 = vadd.f32 %v4539, %v4731
    %v4733 = vpop.f32.mrf.mxu0
    %v4734 = vadd.f32 %v4541, %v4733
    %v4735 = vpop.f32.mrf.mxu0
    %v4736 = vadd.f32 %v4543, %v4735
    %4737 = vmatprep.mubr.bf16.mxu0 %v3649
    %4738 = vmatmul.mubr.bf16.gmra.mxu0 %v3648
    %v4739 = vpop.f32.mrf.mxu0
    %v4740 = vadd.f32 %v4547, %v4739
    %v4741 = vpop.f32.mrf.mxu0
    %v4742 = vadd.f32 %v4549, %v4741
    %v4743 = vpop.f32.mrf.mxu0
    %v4744 = vadd.f32 %v4551, %v4743
    %v4745 = vpop.f32.mrf.mxu0
    %v4746 = vadd.f32 %v4553, %v4745
    %4747 = vmatprep.mubr.bf16.mxu0 %v3653
    %4748 = vmatmul.mubr.bf16.gmra.mxu0 %v3652
    %v4749 = vpop.f32.mrf.mxu0
    %v4750 = vadd.f32 %v4557, %v4749
    %v4751 = vpop.f32.mrf.mxu0
    %v4752 = vadd.f32 %v4559, %v4751
    %v4753 = vpop.f32.mrf.mxu0
    %v4754 = vadd.f32 %v4561, %v4753
    %v4755 = vpop.f32.mrf.mxu0
    %v4756 = vadd.f32 %v4563, %v4755
    %4757 = vmatprep.mubr.bf16.mxu0 %v3657
    %4758 = vmatmul.mubr.bf16.gmra.mxu0 %v3656
    %v4759 = vpop.f32.mrf.mxu0
    %v4760 = vadd.f32 %v4567, %v4759
    %v4761 = vpop.f32.mrf.mxu0
    %v4762 = vadd.f32 %v4569, %v4761
    %v4763 = vpop.f32.mrf.mxu0
    %v4764 = vadd.f32 %v4571, %v4763
    %v4765 = vpop.f32.mrf.mxu0
    %v4766 = vadd.f32 %v4573, %v4765
    %4767 = vmatprep.mubr.bf16.mxu0 %v3661
    %4768 = vmatmul.mubr.bf16.gmra.mxu0 %v3660
    %v4769 = vpop.f32.mrf.mxu0
    %v4770 = vadd.f32 %v4577, %v4769
    %v4771 = vpop.f32.mrf.mxu0
    %v4772 = vadd.f32 %v4579, %v4771
    %v4773 = vpop.f32.mrf.mxu0
    %v4774 = vadd.f32 %v4581, %v4773
    %v4775 = vpop.f32.mrf.mxu0
    %v4776 = vadd.f32 %v4583, %v4775
    %4777 = vmatprep.mubr.bf16.mxu0 %v3665
    %4778 = vmatmul.mubr.bf16.gmra.mxu0 %v3664
    %v4779 = vpop.f32.mrf.mxu0
    %v4780 = vadd.f32 %v4587, %v4779
    %v4781 = vpop.f32.mrf.mxu0
    %v4782 = vadd.f32 %v4589, %v4781
    %v4783 = vpop.f32.mrf.mxu0
    %v4784 = vadd.f32 %v4591, %v4783
    %v4785 = vpop.f32.mrf.mxu0
    %v4786 = vadd.f32 %v4593, %v4785
    %4787 = vmatprep.mubr.bf16.mxu0 %v3669
    %4788 = vmatmul.mubr.bf16.gmra.mxu0 %v3668
    %v4789 = vpop.f32.mrf.mxu0
    %v4790 = vadd.f32 %v4597, %v4789
    %v4791 = vpop.f32.mrf.mxu0
    %v4792 = vadd.f32 %v4599, %v4791
    %v4793 = vpop.f32.mrf.mxu0
    %v4794 = vadd.f32 %v4601, %v4793
    %v4795 = vpop.f32.mrf.mxu0
    %v4796 = vadd.f32 %v4603, %v4795
    %4797 = vmatprep.mubr.bf16.mxu0 %v3673
    %4798 = vmatmul.mubr.bf16.gmra.mxu0 %v3672
    %v4799 = vpop.f32.mrf.mxu0
    %v4800 = vadd.f32 %v4607, %v4799
    %v4801 = vpop.f32.mrf.mxu0
    %v4802 = vadd.f32 %v4609, %v4801
    %v4803 = vpop.f32.mrf.mxu0
    %v4804 = vadd.f32 %v4611, %v4803
    %v4805 = vpop.f32.mrf.mxu0
    %v4806 = vadd.f32 %v4613, %v4805
    %4807 = vmatprep.mubr.bf16.mxu0 %v3677
    %4808 = vmatmul.mubr.bf16.gmra.mxu0 %v3676
    %v4809 = vpop.f32.mrf.mxu0
    %v4810 = vadd.f32 %v4617, %v4809
    %v4811 = vpop.f32.mrf.mxu0
    %v4812 = vadd.f32 %v4619, %v4811
    %v4813 = vpop.f32.mrf.mxu0
    %v4814 = vadd.f32 %v4621, %v4813
    %v4815 = vpop.f32.mrf.mxu0
    %v4816 = vadd.f32 %v4623, %v4815
    %4817 = vmatprep.mubr.bf16.mxu0 %v3681
    %4818 = vmatmul.mubr.bf16.gmra.mxu0 %v3680
    %v4819 = vpop.f32.mrf.mxu0
    %v4820 = vadd.f32 %v4627, %v4819
    %v4821 = vpop.f32.mrf.mxu0
    %v4822 = vadd.f32 %v4629, %v4821
    %v4823 = vpop.f32.mrf.mxu0
    %v4824 = vadd.f32 %v4631, %v4823
    %v4825 = vpop.f32.mrf.mxu0
    %v4826 = vadd.f32 %v4633, %v4825
    %4827 = vmatprep.mubr.bf16.mxu0 %v3685
    %4828 = vmatmul.mubr.bf16.gmra.mxu0 %v3684
    %v4829 = vpop.f32.mrf.mxu0
    %v4830 = vadd.f32 %v4637, %v4829
    %v4831 = vpop.f32.mrf.mxu0
    %v4832 = vadd.f32 %v4639, %v4831
    %v4833 = vpop.f32.mrf.mxu0
    %v4834 = vadd.f32 %v4641, %v4833
    %v4835 = vpop.f32.mrf.mxu0
    %v4836 = vadd.f32 %v4643, %v4835
    %4837 = vmatprep.mubr.bf16.mxu0 %v3689
    %4838 = vmatmul.mubr.bf16.gmra.mxu0 %v3688
    %v4839 = vpop.f32.mrf.mxu0
    %v4840 = vadd.f32 %v4647, %v4839
    %v4841 = vpop.f32.mrf.mxu0
    %v4842 = vadd.f32 %v4649, %v4841
    %v4843 = vpop.f32.mrf.mxu0
    %v4844 = vadd.f32 %v4651, %v4843
    %v4845 = vpop.f32.mrf.mxu0
    %v4846 = vadd.f32 %v4653, %v4845
    %4847 = vdwg.mxu0
    %4848 = vmatprep.subr.bf16.mxu0 %v3433
    %4849 = vmatpush1.bf16.msra.mxu0 %v3432
    %4850 = vmatprep.subr.bf16.mxu0 %v3425
    %4851 = vmatpush1.bf16.msra.mxu0 %v3424
    %4852 = vmatprep.subr.bf16.mxu0 %v3417
    %4853 = vmatpush1.bf16.msra.mxu0 %v3416
    %4854 = vmatprep.subr.bf16.mxu0 %v3409
    %4855 = vmatpush1.bf16.msra.mxu0 %v3408
    %4856 = vmatprep.subr.bf16.mxu0 %v3401
    %4857 = vmatpush1.bf16.msra.mxu0 %v3400
    %4858 = vmatprep.subr.bf16.mxu0 %v3393
    %4859 = vmatpush1.bf16.msra.mxu0 %v3392
    %4860 = vmatprep.subr.bf16.mxu0 %v3385
    %4861 = vmatpush1.bf16.msra.mxu0 %v3384
    %4862 = vmatprep.subr.bf16.mxu0 %v3377
    %4863 = vmatpush1.bf16.msra.mxu0 %v3376
    %4864 = vmatprep.subr.bf16.mxu0 %v3497
    %4865 = vmatpush2.bf16.msra.mxu0 %v3496
    %4866 = vmatprep.subr.bf16.mxu0 %v3489
    %4867 = vmatpush2.bf16.msra.mxu0 %v3488
    %4868 = vmatprep.subr.bf16.mxu0 %v3481
    %4869 = vmatpush2.bf16.msra.mxu0 %v3480
    %4870 = vmatprep.subr.bf16.mxu0 %v3473
    %4871 = vmatpush2.bf16.msra.mxu0 %v3472
    %4872 = vmatprep.subr.bf16.mxu0 %v3465
    %4873 = vmatpush2.bf16.msra.mxu0 %v3464
    %4874 = vmatprep.subr.bf16.mxu0 %v3457
    %4875 = vmatpush2.bf16.msra.mxu0 %v3456
    %4876 = vmatprep.subr.bf16.mxu0 %v3449
    %4877 = vmatpush2.bf16.msra.mxu0 %v3448
    %4878 = vmatprep.subr.bf16.mxu0 %v3441
    %4879 = vmatpush2.bf16.msra.mxu0 %v3440
    %4880 = vmatprep.mubr.bf16.mxu0 %v3627
    %4881 = vmatmul.mubr.bf16.gmra.mxu0 %v3626
    %v4882 = vpop.f32.mrf.mxu0
    %v4883 = vadd.f32 0.0, %v4882
    %v4884 = vpop.f32.mrf.mxu0
    %v4885 = vadd.f32 0.0, %v4884
    %v4886 = vpop.f32.mrf.mxu0
    %v4887 = vadd.f32 0.0, %v4886
    %v4888 = vpop.f32.mrf.mxu0
    %v4889 = vadd.f32 0.0, %v4888
    %4890 = vmatprep.mubr.bf16.mxu0 %v3631
    %4891 = vmatmul.mubr.bf16.gmra.mxu0 %v3630
    %v4892 = vpop.f32.mrf.mxu0
    %v4893 = vadd.f32 0.0, %v4892
    %v4894 = vpop.f32.mrf.mxu0
    %v4895 = vadd.f32 0.0, %v4894
    %v4896 = vpop.f32.mrf.mxu0
    %v4897 = vadd.f32 0.0, %v4896
    %v4898 = vpop.f32.mrf.mxu0
    %v4899 = vadd.f32 0.0, %v4898
    %4900 = vmatprep.mubr.bf16.mxu0 %v3635
    %4901 = vmatmul.mubr.bf16.gmra.mxu0 %v3634
    %v4902 = vpop.f32.mrf.mxu0
    %v4903 = vadd.f32 0.0, %v4902
    %v4904 = vpop.f32.mrf.mxu0
    %v4905 = vadd.f32 0.0, %v4904
    %v4906 = vpop.f32.mrf.mxu0
    %v4907 = vadd.f32 0.0, %v4906
    %v4908 = vpop.f32.mrf.mxu0
    %v4909 = vadd.f32 0.0, %v4908
    %4910 = vmatprep.mubr.bf16.mxu0 %v3639
    %4911 = vmatmul.mubr.bf16.gmra.mxu0 %v3638
    %v4912 = vpop.f32.mrf.mxu0
    %v4913 = vadd.f32 0.0, %v4912
    %v4914 = vpop.f32.mrf.mxu0
    %v4915 = vadd.f32 0.0, %v4914
    %v4916 = vpop.f32.mrf.mxu0
    %v4917 = vadd.f32 0.0, %v4916
    %v4918 = vpop.f32.mrf.mxu0
    %v4919 = vadd.f32 0.0, %v4918
    %4920 = vmatprep.mubr.bf16.mxu0 %v3643
    %4921 = vmatmul.mubr.bf16.gmra.mxu0 %v3642
    %v4922 = vpop.f32.mrf.mxu0
    %v4923 = vadd.f32 0.0, %v4922
    %v4924 = vpop.f32.mrf.mxu0
    %v4925 = vadd.f32 0.0, %v4924
    %v4926 = vpop.f32.mrf.mxu0
    %v4927 = vadd.f32 0.0, %v4926
    %v4928 = vpop.f32.mrf.mxu0
    %v4929 = vadd.f32 0.0, %v4928
    %4930 = vmatprep.mubr.bf16.mxu0 %v3647
    %4931 = vmatmul.mubr.bf16.gmra.mxu0 %v3646
    %v4932 = vpop.f32.mrf.mxu0
    %v4933 = vadd.f32 0.0, %v4932
    %v4934 = vpop.f32.mrf.mxu0
    %v4935 = vadd.f32 0.0, %v4934
    %v4936 = vpop.f32.mrf.mxu0
    %v4937 = vadd.f32 0.0, %v4936
    %v4938 = vpop.f32.mrf.mxu0
    %v4939 = vadd.f32 0.0, %v4938
    %4940 = vmatprep.mubr.bf16.mxu0 %v3651
    %4941 = vmatmul.mubr.bf16.gmra.mxu0 %v3650
    %v4942 = vpop.f32.mrf.mxu0
    %v4943 = vadd.f32 0.0, %v4942
    %v4944 = vpop.f32.mrf.mxu0
    %v4945 = vadd.f32 0.0, %v4944
    %v4946 = vpop.f32.mrf.mxu0
    %v4947 = vadd.f32 0.0, %v4946
    %v4948 = vpop.f32.mrf.mxu0
    %v4949 = vadd.f32 0.0, %v4948
    %4950 = vmatprep.mubr.bf16.mxu0 %v3655
    %4951 = vmatmul.mubr.bf16.gmra.mxu0 %v3654
    %v4952 = vpop.f32.mrf.mxu0
    %v4953 = vadd.f32 0.0, %v4952
    %v4954 = vpop.f32.mrf.mxu0
    %v4955 = vadd.f32 0.0, %v4954
    %v4956 = vpop.f32.mrf.mxu0
    %v4957 = vadd.f32 0.0, %v4956
    %v4958 = vpop.f32.mrf.mxu0
    %v4959 = vadd.f32 0.0, %v4958
    %4960 = vmatprep.mubr.bf16.mxu0 %v3659
    %4961 = vmatmul.mubr.bf16.gmra.mxu0 %v3658
    %v4962 = vpop.f32.mrf.mxu0
    %v4963 = vadd.f32 0.0, %v4962
    %v4964 = vpop.f32.mrf.mxu0
    %v4965 = vadd.f32 0.0, %v4964
    %v4966 = vpop.f32.mrf.mxu0
    %v4967 = vadd.f32 0.0, %v4966
    %v4968 = vpop.f32.mrf.mxu0
    %v4969 = vadd.f32 0.0, %v4968
    %4970 = vmatprep.mubr.bf16.mxu0 %v3663
    %4971 = vmatmul.mubr.bf16.gmra.mxu0 %v3662
    %v4972 = vpop.f32.mrf.mxu0
    %v4973 = vadd.f32 0.0, %v4972
    %v4974 = vpop.f32.mrf.mxu0
    %v4975 = vadd.f32 0.0, %v4974
    %v4976 = vpop.f32.mrf.mxu0
    %v4977 = vadd.f32 0.0, %v4976
    %v4978 = vpop.f32.mrf.mxu0
    %v4979 = vadd.f32 0.0, %v4978
    %4980 = vmatprep.mubr.bf16.mxu0 %v3667
    %4981 = vmatmul.mubr.bf16.gmra.mxu0 %v3666
    %v4982 = vpop.f32.mrf.mxu0
    %v4983 = vadd.f32 0.0, %v4982
    %v4984 = vpop.f32.mrf.mxu0
    %v4985 = vadd.f32 0.0, %v4984
    %v4986 = vpop.f32.mrf.mxu0
    %v4987 = vadd.f32 0.0, %v4986
    %v4988 = vpop.f32.mrf.mxu0
    %v4989 = vadd.f32 0.0, %v4988
    %4990 = vmatprep.mubr.bf16.mxu0 %v3671
    %4991 = vmatmul.mubr.bf16.gmra.mxu0 %v3670
    %v4992 = vpop.f32.mrf.mxu0
    %v4993 = vadd.f32 0.0, %v4992
    %v4994 = vpop.f32.mrf.mxu0
    %v4995 = vadd.f32 0.0, %v4994
    %v4996 = vpop.f32.mrf.mxu0
    %v4997 = vadd.f32 0.0, %v4996
    %v4998 = vpop.f32.mrf.mxu0
    %v4999 = vadd.f32 0.0, %v4998
    %5000 = vmatprep.mubr.bf16.mxu0 %v3675
    %5001 = vmatmul.mubr.bf16.gmra.mxu0 %v3674
    %v5002 = vpop.f32.mrf.mxu0
    %v5003 = vadd.f32 0.0, %v5002
    %v5004 = vpop.f32.mrf.mxu0
    %v5005 = vadd.f32 0.0, %v5004
    %v5006 = vpop.f32.mrf.mxu0
    %v5007 = vadd.f32 0.0, %v5006
    %v5008 = vpop.f32.mrf.mxu0
    %v5009 = vadd.f32 0.0, %v5008
    %5010 = vmatprep.mubr.bf16.mxu0 %v3679
    %5011 = vmatmul.mubr.bf16.gmra.mxu0 %v3678
    %v5012 = vpop.f32.mrf.mxu0
    %v5013 = vadd.f32 0.0, %v5012
    %v5014 = vpop.f32.mrf.mxu0
    %v5015 = vadd.f32 0.0, %v5014
    %v5016 = vpop.f32.mrf.mxu0
    %v5017 = vadd.f32 0.0, %v5016
    %v5018 = vpop.f32.mrf.mxu0
    %v5019 = vadd.f32 0.0, %v5018
    %5020 = vmatprep.mubr.bf16.mxu0 %v3683
    %5021 = vmatmul.mubr.bf16.gmra.mxu0 %v3682
    %v5022 = vpop.f32.mrf.mxu0
    %v5023 = vadd.f32 0.0, %v5022
    %v5024 = vpop.f32.mrf.mxu0
    %v5025 = vadd.f32 0.0, %v5024
    %v5026 = vpop.f32.mrf.mxu0
    %v5027 = vadd.f32 0.0, %v5026
    %v5028 = vpop.f32.mrf.mxu0
    %v5029 = vadd.f32 0.0, %v5028
    %5030 = vmatprep.mubr.bf16.mxu0 %v3687
    %5031 = vmatmul.mubr.bf16.gmra.mxu0 %v3686
    %v5032 = vpop.f32.mrf.mxu0
    %v5033 = vadd.f32 0.0, %v5032
    %v5034 = vpop.f32.mrf.mxu0
    %v5035 = vadd.f32 0.0, %v5034
    %v5036 = vpop.f32.mrf.mxu0
    %v5037 = vadd.f32 0.0, %v5036
    %v5038 = vpop.f32.mrf.mxu0
    %v5039 = vadd.f32 0.0, %v5038
    %5040 = vdwg.mxu0
    %5041 = vmatprep.subr.bf16.mxu0 %v3561
    %5042 = vmatpush1.bf16.msra.mxu0 %v3560
    %5043 = vmatprep.subr.bf16.mxu0 %v3553
    %5044 = vmatpush1.bf16.msra.mxu0 %v3552
    %5045 = vmatprep.subr.bf16.mxu0 %v3545
    %5046 = vmatpush1.bf16.msra.mxu0 %v3544
    %5047 = vmatprep.subr.bf16.mxu0 %v3537
    %5048 = vmatpush1.bf16.msra.mxu0 %v3536
    %5049 = vmatprep.subr.bf16.mxu0 %v3529
    %5050 = vmatpush1.bf16.msra.mxu0 %v3528
    %5051 = vmatprep.subr.bf16.mxu0 %v3521
    %5052 = vmatpush1.bf16.msra.mxu0 %v3520
    %5053 = vmatprep.subr.bf16.mxu0 %v3513
    %5054 = vmatpush1.bf16.msra.mxu0 %v3512
    %5055 = vmatprep.subr.bf16.mxu0 %v3505
    %5056 = vmatpush1.bf16.msra.mxu0 %v3504
    %5057 = vmatprep.subr.bf16.mxu0 %v3625
    %5058 = vmatpush2.bf16.msra.mxu0 %v3624
    %5059 = vmatprep.subr.bf16.mxu0 %v3617
    %5060 = vmatpush2.bf16.msra.mxu0 %v3616
    %5061 = vmatprep.subr.bf16.mxu0 %v3609
    %5062 = vmatpush2.bf16.msra.mxu0 %v3608
    %5063 = vmatprep.subr.bf16.mxu0 %v3601
    %5064 = vmatpush2.bf16.msra.mxu0 %v3600
    %5065 = vmatprep.subr.bf16.mxu0 %v3593
    %5066 = vmatpush2.bf16.msra.mxu0 %v3592
    %5067 = vmatprep.subr.bf16.mxu0 %v3585
    %5068 = vmatpush2.bf16.msra.mxu0 %v3584
    %5069 = vmatprep.subr.bf16.mxu0 %v3577
    %5070 = vmatpush2.bf16.msra.mxu0 %v3576
    %5071 = vmatprep.subr.bf16.mxu0 %v3569
    %5072 = vmatpush2.bf16.msra.mxu0 %v3568
    %5073 = vmatprep.mubr.bf16.mxu0 %v3629
    %5074 = vmatmul.mubr.bf16.gmra.mxu0 %v3628
    %v5075 = vpop.f32.mrf.mxu0
    %v5076 = vadd.f32 %v4883, %v5075
    %v5077 = vpop.f32.mrf.mxu0
    %v5078 = vadd.f32 %v4885, %v5077
    %v5079 = vpop.f32.mrf.mxu0
    %v5080 = vadd.f32 %v4887, %v5079
    %v5081 = vpop.f32.mrf.mxu0
    %v5082 = vadd.f32 %v4889, %v5081
    %5083 = vmatprep.mubr.bf16.mxu0 %v3633
    %5084 = vmatmul.mubr.bf16.gmra.mxu0 %v3632
    %v5085 = vpop.f32.mrf.mxu0
    %v5086 = vadd.f32 %v4893, %v5085
    %v5087 = vpop.f32.mrf.mxu0
    %v5088 = vadd.f32 %v4895, %v5087
    %v5089 = vpop.f32.mrf.mxu0
    %v5090 = vadd.f32 %v4897, %v5089
    %v5091 = vpop.f32.mrf.mxu0
    %v5092 = vadd.f32 %v4899, %v5091
    %5093 = vmatprep.mubr.bf16.mxu0 %v3637
    %5094 = vmatmul.mubr.bf16.gmra.mxu0 %v3636
    %v5095 = vpop.f32.mrf.mxu0
    %v5096 = vadd.f32 %v4903, %v5095
    %v5097 = vpop.f32.mrf.mxu0
    %v5098 = vadd.f32 %v4905, %v5097
    %v5099 = vpop.f32.mrf.mxu0
    %v5100 = vadd.f32 %v4907, %v5099
    %v5101 = vpop.f32.mrf.mxu0
    %v5102 = vadd.f32 %v4909, %v5101
    %5103 = vmatprep.mubr.bf16.mxu0 %v3641
    %5104 = vmatmul.mubr.bf16.gmra.mxu0 %v3640
    %v5105 = vpop.f32.mrf.mxu0
    %v5106 = vadd.f32 %v4913, %v5105
    %v5107 = vpop.f32.mrf.mxu0
    %v5108 = vadd.f32 %v4915, %v5107
    %v5109 = vpop.f32.mrf.mxu0
    %v5110 = vadd.f32 %v4917, %v5109
    %v5111 = vpop.f32.mrf.mxu0
    %v5112 = vadd.f32 %v4919, %v5111
    %5113 = vmatprep.mubr.bf16.mxu0 %v3645
    %5114 = vmatmul.mubr.bf16.gmra.mxu0 %v3644
    %v5115 = vpop.f32.mrf.mxu0
    %v5116 = vadd.f32 %v4923, %v5115
    %v5117 = vpop.f32.mrf.mxu0
    %v5118 = vadd.f32 %v4925, %v5117
    %v5119 = vpop.f32.mrf.mxu0
    %v5120 = vadd.f32 %v4927, %v5119
    %v5121 = vpop.f32.mrf.mxu0
    %v5122 = vadd.f32 %v4929, %v5121
    %5123 = vmatprep.mubr.bf16.mxu0 %v3649
    %5124 = vmatmul.mubr.bf16.gmra.mxu0 %v3648
    %v5125 = vpop.f32.mrf.mxu0
    %v5126 = vadd.f32 %v4933, %v5125
    %v5127 = vpop.f32.mrf.mxu0
    %v5128 = vadd.f32 %v4935, %v5127
    %v5129 = vpop.f32.mrf.mxu0
    %v5130 = vadd.f32 %v4937, %v5129
    %v5131 = vpop.f32.mrf.mxu0
    %v5132 = vadd.f32 %v4939, %v5131
    %5133 = vmatprep.mubr.bf16.mxu0 %v3653
    %5134 = vmatmul.mubr.bf16.gmra.mxu0 %v3652
    %v5135 = vpop.f32.mrf.mxu0
    %v5136 = vadd.f32 %v4943, %v5135
    %v5137 = vpop.f32.mrf.mxu0
    %v5138 = vadd.f32 %v4945, %v5137
    %v5139 = vpop.f32.mrf.mxu0
    %v5140 = vadd.f32 %v4947, %v5139
    %v5141 = vpop.f32.mrf.mxu0
    %v5142 = vadd.f32 %v4949, %v5141
    %5143 = vmatprep.mubr.bf16.mxu0 %v3657
    %5144 = vmatmul.mubr.bf16.gmra.mxu0 %v3656
    %v5145 = vpop.f32.mrf.mxu0
    %v5146 = vadd.f32 %v4953, %v5145
    %v5147 = vpop.f32.mrf.mxu0
    %v5148 = vadd.f32 %v4955, %v5147
    %v5149 = vpop.f32.mrf.mxu0
    %v5150 = vadd.f32 %v4957, %v5149
    %v5151 = vpop.f32.mrf.mxu0
    %v5152 = vadd.f32 %v4959, %v5151
    %5153 = vmatprep.mubr.bf16.mxu0 %v3661
    %5154 = vmatmul.mubr.bf16.gmra.mxu0 %v3660
    %v5155 = vpop.f32.mrf.mxu0
    %v5156 = vadd.f32 %v4963, %v5155
    %v5157 = vpop.f32.mrf.mxu0
    %v5158 = vadd.f32 %v4965, %v5157
    %v5159 = vpop.f32.mrf.mxu0
    %v5160 = vadd.f32 %v4967, %v5159
    %v5161 = vpop.f32.mrf.mxu0
    %v5162 = vadd.f32 %v4969, %v5161
    %5163 = vmatprep.mubr.bf16.mxu0 %v3665
    %5164 = vmatmul.mubr.bf16.gmra.mxu0 %v3664
    %v5165 = vpop.f32.mrf.mxu0
    %v5166 = vadd.f32 %v4973, %v5165
    %v5167 = vpop.f32.mrf.mxu0
    %v5168 = vadd.f32 %v4975, %v5167
    %v5169 = vpop.f32.mrf.mxu0
    %v5170 = vadd.f32 %v4977, %v5169
    %v5171 = vpop.f32.mrf.mxu0
    %v5172 = vadd.f32 %v4979, %v5171
    %5173 = vmatprep.mubr.bf16.mxu0 %v3669
    %5174 = vmatmul.mubr.bf16.gmra.mxu0 %v3668
    %v5175 = vpop.f32.mrf.mxu0
    %v5176 = vadd.f32 %v4983, %v5175
    %v5177 = vpop.f32.mrf.mxu0
    %v5178 = vadd.f32 %v4985, %v5177
    %v5179 = vpop.f32.mrf.mxu0
    %v5180 = vadd.f32 %v4987, %v5179
    %v5181 = vpop.f32.mrf.mxu0
    %v5182 = vadd.f32 %v4989, %v5181
    %5183 = vmatprep.mubr.bf16.mxu0 %v3673
    %5184 = vmatmul.mubr.bf16.gmra.mxu0 %v3672
    %v5185 = vpop.f32.mrf.mxu0
    %v5186 = vadd.f32 %v4993, %v5185
    %v5187 = vpop.f32.mrf.mxu0
    %v5188 = vadd.f32 %v4995, %v5187
    %v5189 = vpop.f32.mrf.mxu0
    %v5190 = vadd.f32 %v4997, %v5189
    %v5191 = vpop.f32.mrf.mxu0
    %v5192 = vadd.f32 %v4999, %v5191
    %5193 = vmatprep.mubr.bf16.mxu0 %v3677
    %5194 = vmatmul.mubr.bf16.gmra.mxu0 %v3676
    %v5195 = vpop.f32.mrf.mxu0
    %v5196 = vadd.f32 %v5003, %v5195
    %v5197 = vpop.f32.mrf.mxu0
    %v5198 = vadd.f32 %v5005, %v5197
    %v5199 = vpop.f32.mrf.mxu0
    %v5200 = vadd.f32 %v5007, %v5199
    %v5201 = vpop.f32.mrf.mxu0
    %v5202 = vadd.f32 %v5009, %v5201
    %5203 = vmatprep.mubr.bf16.mxu0 %v3681
    %5204 = vmatmul.mubr.bf16.gmra.mxu0 %v3680
    %v5205 = vpop.f32.mrf.mxu0
    %v5206 = vadd.f32 %v5013, %v5205
    %v5207 = vpop.f32.mrf.mxu0
    %v5208 = vadd.f32 %v5015, %v5207
    %v5209 = vpop.f32.mrf.mxu0
    %v5210 = vadd.f32 %v5017, %v5209
    %v5211 = vpop.f32.mrf.mxu0
    %v5212 = vadd.f32 %v5019, %v5211
    %5213 = vmatprep.mubr.bf16.mxu0 %v3685
    %5214 = vmatmul.mubr.bf16.gmra.mxu0 %v3684
    %v5215 = vpop.f32.mrf.mxu0
    %v5216 = vadd.f32 %v5023, %v5215
    %v5217 = vpop.f32.mrf.mxu0
    %v5218 = vadd.f32 %v5025, %v5217
    %v5219 = vpop.f32.mrf.mxu0
    %v5220 = vadd.f32 %v5027, %v5219
    %v5221 = vpop.f32.mrf.mxu0
    %v5222 = vadd.f32 %v5029, %v5221
    %5223 = vmatprep.mubr.bf16.mxu0 %v3689
    %5224 = vmatmul.mubr.bf16.gmra.mxu0 %v3688
    %v5225 = vpop.f32.mrf.mxu0
    %v5226 = vadd.f32 %v5033, %v5225
    %v5227 = vpop.f32.mrf.mxu0
    %v5228 = vadd.f32 %v5035, %v5227
    %v5229 = vpop.f32.mrf.mxu0
    %v5230 = vadd.f32 %v5037, %v5229
    %v5231 = vpop.f32.mrf.mxu0
    %v5232 = vadd.f32 %v5039, %v5231
    %5233 = vdwg.mxu0
    %v5234 = vld [vmem:[#allocation7 + $0x14] sm:$0xff]
    %v5235 = vld [vmem:[#allocation7 + $0x1c] sm:$0xff]
    %v5236 = vld [vmem:[#allocation7 + $0x24] sm:$0xff]
    %v5237 = vadd.f32 %v3918, %v3922
    %v5238 = vadd.f32 %v5237, %v3928
    %v5239 = vadd.f32 %v5238, %v3932
    %v5240 = vadd.f32 %v5239, %v3938
    %v5241 = vadd.f32 %v5240, %v3942
    %v5242 = vadd.f32 %v5241, %v3948
    %v5243 = vadd.f32 %v5242, %v3952
    %v5244 = vadd.f32 %v5243, %v3958
    %v5245 = vadd.f32 %v5244, %v3962
    %v5246 = vadd.f32 %v5245, %v3968
    %v5247 = vadd.f32 %v5246, %v3972
    %v5248 = vadd.f32 %v5247, %v3978
    %v5249 = vadd.f32 %v5248, %v3982
    %v5250 = vadd.f32 %v5249, %v3988
    %v5251 = vadd.f32 %v5250, %v3992
    %v5252 = vadd.f32 %v5251, %v3998
    %v5253 = vadd.f32 %v5252, %v4002
    %v5254 = vadd.f32 %v5253, %v4008
    %v5255 = vadd.f32 %v5254, %v4012
    %v5256 = vadd.f32 %v5255, %v4018
    %v5257 = vadd.f32 %v5256, %v4022
    %v5258 = vadd.f32 %v5257, %v4028
    %v5259 = vadd.f32 %v5258, %v4032
    %v5260 = vadd.f32 %v5259, %v4038
    %v5261 = vadd.f32 %v5260, %v4042
    %v5262 = vadd.f32 %v5261, %v4048
    %v5263 = vadd.f32 %v5262, %v4052
    %v5264 = vadd.f32 %v5263, %v4058
    %v5265 = vadd.f32 %v5264, %v4062
    %v5266 = vadd.f32 %v5265, %v4068
    %v5267 = vadd.f32 %v5266, %v4072
    %v5268 = vrot.slane %v5267, 4
    %v5269 = vadd.f32 %v5267, %v5268
    %v5270 = vrot.slane %v5269, 2
    %v5271 = vadd.f32 %v5269, %v5270
    %v5272 = vrot.slane %v5271, 1
    %v5273 = vadd.f32 %v5271, %v5272
    %v5274 = vadd.f32 %v3920, %v3924
    %v5275 = vadd.f32 %v5274, %v3930
    %v5276 = vadd.f32 %v5275, %v3934
    %v5277 = vadd.f32 %v5276, %v3940
    %v5278 = vadd.f32 %v5277, %v3944
    %v5279 = vadd.f32 %v5278, %v3950
    %v5280 = vadd.f32 %v5279, %v3954
    %v5281 = vadd.f32 %v5280, %v3960
    %v5282 = vadd.f32 %v5281, %v3964
    %v5283 = vadd.f32 %v5282, %v3970
    %v5284 = vadd.f32 %v5283, %v3974
    %v5285 = vadd.f32 %v5284, %v3980
    %v5286 = vadd.f32 %v5285, %v3984
    %v5287 = vadd.f32 %v5286, %v3990
    %v5288 = vadd.f32 %v5287, %v3994
    %v5289 = vadd.f32 %v5288, %v4000
    %v5290 = vadd.f32 %v5289, %v4004
    %v5291 = vadd.f32 %v5290, %v4010
    %v5292 = vadd.f32 %v5291, %v4014
    %v5293 = vadd.f32 %v5292, %v4020
    %v5294 = vadd.f32 %v5293, %v4024
    %v5295 = vadd.f32 %v5294, %v4030
    %v5296 = vadd.f32 %v5295, %v4034
    %v5297 = vadd.f32 %v5296, %v4040
    %v5298 = vadd.f32 %v5297, %v4044
    %v5299 = vadd.f32 %v5298, %v4050
    %v5300 = vadd.f32 %v5299, %v4054
    %v5301 = vadd.f32 %v5300, %v4060
    %v5302 = vadd.f32 %v5301, %v4064
    %v5303 = vadd.f32 %v5302, %v4070
    %v5304 = vadd.f32 %v5303, %v4074
    %v5305 = vrot.slane %v5304, 4
    %v5306 = vadd.f32 %v5304, %v5305
    %v5307 = vrot.slane %v5306, 2
    %v5308 = vadd.f32 %v5306, %v5307
    %v5309 = vrot.slane %v5308, 1
    %v5310 = vadd.f32 %v5308, %v5309
    %v5311 = vadd.f32 %v4304, %v4308
    %v5312 = vadd.f32 %v5311, %v4314
    %v5313 = vadd.f32 %v5312, %v4318
    %v5314 = vadd.f32 %v5313, %v4324
    %v5315 = vadd.f32 %v5314, %v4328
    %v5316 = vadd.f32 %v5315, %v4334
    %v5317 = vadd.f32 %v5316, %v4338
    %v5318 = vadd.f32 %v5317, %v4344
    %v5319 = vadd.f32 %v5318, %v4348
    %v5320 = vadd.f32 %v5319, %v4354
    %v5321 = vadd.f32 %v5320, %v4358
    %v5322 = vadd.f32 %v5321, %v4364
    %v5323 = vadd.f32 %v5322, %v4368
    %v5324 = vadd.f32 %v5323, %v4374
    %v5325 = vadd.f32 %v5324, %v4378
    %v5326 = vadd.f32 %v5325, %v4384
    %v5327 = vadd.f32 %v5326, %v4388
    %v5328 = vadd.f32 %v5327, %v4394
    %v5329 = vadd.f32 %v5328, %v4398
    %v5330 = vadd.f32 %v5329, %v4404
    %v5331 = vadd.f32 %v5330, %v4408
    %v5332 = vadd.f32 %v5331, %v4414
    %v5333 = vadd.f32 %v5332, %v4418
    %v5334 = vadd.f32 %v5333, %v4424
    %v5335 = vadd.f32 %v5334, %v4428
    %v5336 = vadd.f32 %v5335, %v4434
    %v5337 = vadd.f32 %v5336, %v4438
    %v5338 = vadd.f32 %v5337, %v4444
    %v5339 = vadd.f32 %v5338, %v4448
    %v5340 = vadd.f32 %v5339, %v4454
    %v5341 = vadd.f32 %v5340, %v4458
    %v5342 = vrot.slane %v5341, 4
    %v5343 = vadd.f32 %v5341, %v5342
    %v5344 = vrot.slane %v5343, 2
    %v5345 = vadd.f32 %v5343, %v5344
    %v5346 = vrot.slane %v5345, 1
    %v5347 = vadd.f32 %v5345, %v5346
    %v5348 = vadd.f32 %v4306, %v4310
    %v5349 = vadd.f32 %v5348, %v4316
    %v5350 = vadd.f32 %v5349, %v4320
    %v5351 = vadd.f32 %v5350, %v4326
    %v5352 = vadd.f32 %v5351, %v4330
    %v5353 = vadd.f32 %v5352, %v4336
    %v5354 = vadd.f32 %v5353, %v4340
    %v5355 = vadd.f32 %v5354, %v4346
    %v5356 = vadd.f32 %v5355, %v4350
    %v5357 = vadd.f32 %v5356, %v4356
    %v5358 = vadd.f32 %v5357, %v4360
    %v5359 = vadd.f32 %v5358, %v4366
    %v5360 = vadd.f32 %v5359, %v4370
    %v5361 = vadd.f32 %v5360, %v4376
    %v5362 = vadd.f32 %v5361, %v4380
    %v5363 = vadd.f32 %v5362, %v4386
    %v5364 = vadd.f32 %v5363, %v4390
    %v5365 = vadd.f32 %v5364, %v4396
    %v5366 = vadd.f32 %v5365, %v4400
    %v5367 = vadd.f32 %v5366, %v4406
    %v5368 = vadd.f32 %v5367, %v4410
    %v5369 = vadd.f32 %v5368, %v4416
    %v5370 = vadd.f32 %v5369, %v4420
    %v5371 = vadd.f32 %v5370, %v4426
    %v5372 = vadd.f32 %v5371, %v4430
    %v5373 = vadd.f32 %v5372, %v4436
    %v5374 = vadd.f32 %v5373, %v4440
    %v5375 = vadd.f32 %v5374, %v4446
    %v5376 = vadd.f32 %v5375, %v4450
    %v5377 = vadd.f32 %v5376, %v4456
    %v5378 = vadd.f32 %v5377, %v4460
    %v5379 = vrot.slane %v5378, 4
    %v5380 = vadd.f32 %v5378, %v5379
    %v5381 = vrot.slane %v5380, 2
    %v5382 = vadd.f32 %v5380, %v5381
    %v5383 = vrot.slane %v5382, 1
    %v5384 = vadd.f32 %v5382, %v5383
    %v5385 = vadd.f32 %v4690, %v4694
    %v5386 = vadd.f32 %v5385, %v4700
    %v5387 = vadd.f32 %v5386, %v4704
    %v5388 = vadd.f32 %v5387, %v4710
    %v5389 = vadd.f32 %v5388, %v4714
    %v5390 = vadd.f32 %v5389, %v4720
    %v5391 = vadd.f32 %v5390, %v4724
    %v5392 = vadd.f32 %v5391, %v4730
    %v5393 = vadd.f32 %v5392, %v4734
    %v5394 = vadd.f32 %v5393, %v4740
    %v5395 = vadd.f32 %v5394, %v4744
    %v5396 = vadd.f32 %v5395, %v4750
    %v5397 = vadd.f32 %v5396, %v4754
    %v5398 = vadd.f32 %v5397, %v4760
    %v5399 = vadd.f32 %v5398, %v4764
    %v5400 = vadd.f32 %v5399, %v4770
    %v5401 = vadd.f32 %v5400, %v4774
    %v5402 = vadd.f32 %v5401, %v4780
    %v5403 = vadd.f32 %v5402, %v4784
    %v5404 = vadd.f32 %v5403, %v4790
    %v5405 = vadd.f32 %v5404, %v4794
    %v5406 = vadd.f32 %v5405, %v4800
    %v5407 = vadd.f32 %v5406, %v4804
    %v5408 = vadd.f32 %v5407, %v4810
    %v5409 = vadd.f32 %v5408, %v4814
    %v5410 = vadd.f32 %v5409, %v4820
    %v5411 = vadd.f32 %v5410, %v4824
    %v5412 = vadd.f32 %v5411, %v4830
    %v5413 = vadd.f32 %v5412, %v4834
    %v5414 = vadd.f32 %v5413, %v4840
    %v5415 = vadd.f32 %v5414, %v4844
    %v5416 = vrot.slane %v5415, 4
    %v5417 = vadd.f32 %v5415, %v5416
    %v5418 = vrot.slane %v5417, 2
    %v5419 = vadd.f32 %v5417, %v5418
    %v5420 = vrot.slane %v5419, 1
    %v5421 = vadd.f32 %v5419, %v5420
    %v5422 = vadd.f32 %v4692, %v4696
    %v5423 = vadd.f32 %v5422, %v4702
    %v5424 = vadd.f32 %v5423, %v4706
    %v5425 = vadd.f32 %v5424, %v4712
    %v5426 = vadd.f32 %v5425, %v4716
    %v5427 = vadd.f32 %v5426, %v4722
    %v5428 = vadd.f32 %v5427, %v4726
    %v5429 = vadd.f32 %v5428, %v4732
    %v5430 = vadd.f32 %v5429, %v4736
    %v5431 = vadd.f32 %v5430, %v4742
    %v5432 = vadd.f32 %v5431, %v4746
    %v5433 = vadd.f32 %v5432, %v4752
    %v5434 = vadd.f32 %v5433, %v4756
    %v5435 = vadd.f32 %v5434, %v4762
    %v5436 = vadd.f32 %v5435, %v4766
    %v5437 = vadd.f32 %v5436, %v4772
    %v5438 = vadd.f32 %v5437, %v4776
    %v5439 = vadd.f32 %v5438, %v4782
    %v5440 = vadd.f32 %v5439, %v4786
    %v5441 = vadd.f32 %v5440, %v4792
    %v5442 = vadd.f32 %v5441, %v4796
    %v5443 = vadd.f32 %v5442, %v4802
    %v5444 = vadd.f32 %v5443, %v4806
    %v5445 = vadd.f32 %v5444, %v4812
    %v5446 = vadd.f32 %v5445, %v4816
    %v5447 = vadd.f32 %v5446, %v4822
    %v5448 = vadd.f32 %v5447, %v4826
    %v5449 = vadd.f32 %v5448, %v4832
    %v5450 = vadd.f32 %v5449, %v4836
    %v5451 = vadd.f32 %v5450, %v4842
    %v5452 = vadd.f32 %v5451, %v4846
    %v5453 = vrot.slane %v5452, 4
    %v5454 = vadd.f32 %v5452, %v5453
    %v5455 = vrot.slane %v5454, 2
    %v5456 = vadd.f32 %v5454, %v5455
    %v5457 = vrot.slane %v5456, 1
    %v5458 = vadd.f32 %v5456, %v5457
    %v5459 = vadd.f32 %v5076, %v5080
    %v5460 = vadd.f32 %v5459, %v5086
    %v5461 = vadd.f32 %v5460, %v5090
    %v5462 = vadd.f32 %v5461, %v5096
    %v5463 = vadd.f32 %v5462, %v5100
    %v5464 = vadd.f32 %v5463, %v5106
    %v5465 = vadd.f32 %v5464, %v5110
    %v5466 = vadd.f32 %v5465, %v5116
    %v5467 = vadd.f32 %v5466, %v5120
    %v5468 = vadd.f32 %v5467, %v5126
    %v5469 = vadd.f32 %v5468, %v5130
    %v5470 = vadd.f32 %v5469, %v5136
    %v5471 = vadd.f32 %v5470, %v5140
    %v5472 = vadd.f32 %v5471, %v5146
    %v5473 = vadd.f32 %v5472, %v5150
    %v5474 = vadd.f32 %v5473, %v5156
    %v5475 = vadd.f32 %v5474, %v5160
    %v5476 = vadd.f32 %v5475, %v5166
    %v5477 = vadd.f32 %v5476, %v5170
    %v5478 = vadd.f32 %v5477, %v5176
    %v5479 = vadd.f32 %v5478, %v5180
    %v5480 = vadd.f32 %v5479, %v5186
    %v5481 = vadd.f32 %v5480, %v5190
    %v5482 = vadd.f32 %v5481, %v5196
    %v5483 = vadd.f32 %v5482, %v5200
    %v5484 = vadd.f32 %v5483, %v5206
    %v5485 = vadd.f32 %v5484, %v5210
    %v5486 = vadd.f32 %v5485, %v5216
    %v5487 = vadd.f32 %v5486, %v5220
    %v5488 = vadd.f32 %v5487, %v5226
    %v5489 = vadd.f32 %v5488, %v5230
    %v5490 = vrot.slane %v5489, 4
    %v5491 = vadd.f32 %v5489, %v5490
    %v5492 = vrot.slane %v5491, 2
    %v5493 = vadd.f32 %v5491, %v5492
    %v5494 = vrot.slane %v5493, 1
    %v5495 = vadd.f32 %v5493, %v5494
    %v5496 = vadd.f32 %v5078, %v5082
    %v5497 = vadd.f32 %v5496, %v5088
    %v5498 = vadd.f32 %v5497, %v5092
    %v5499 = vadd.f32 %v5498, %v5098
    %v5500 = vadd.f32 %v5499, %v5102
    %v5501 = vadd.f32 %v5500, %v5108
    %v5502 = vadd.f32 %v5501, %v5112
    %v5503 = vadd.f32 %v5502, %v5118
    %v5504 = vadd.f32 %v5503, %v5122
    %v5505 = vadd.f32 %v5504, %v5128
    %v5506 = vadd.f32 %v5505, %v5132
    %v5507 = vadd.f32 %v5506, %v5138
    %v5508 = vadd.f32 %v5507, %v5142
    %v5509 = vadd.f32 %v5508, %v5148
    %v5510 = vadd.f32 %v5509, %v5152
    %v5511 = vadd.f32 %v5510, %v5158
    %v5512 = vadd.f32 %v5511, %v5162
    %v5513 = vadd.f32 %v5512, %v5168
    %v5514 = vadd.f32 %v5513, %v5172
    %v5515 = vadd.f32 %v5514, %v5178
    %v5516 = vadd.f32 %v5515, %v5182
    %v5517 = vadd.f32 %v5516, %v5188
    %v5518 = vadd.f32 %v5517, %v5192
    %v5519 = vadd.f32 %v5518, %v5198
    %v5520 = vadd.f32 %v5519, %v5202
    %v5521 = vadd.f32 %v5520, %v5208
    %v5522 = vadd.f32 %v5521, %v5212
    %v5523 = vadd.f32 %v5522, %v5218
    %v5524 = vadd.f32 %v5523, %v5222
    %v5525 = vadd.f32 %v5524, %v5228
    %v5526 = vadd.f32 %v5525, %v5232
    %v5527 = vrot.slane %v5526, 4
    %v5528 = vadd.f32 %v5526, %v5527
    %v5529 = vrot.slane %v5528, 2
    %v5530 = vadd.f32 %v5528, %v5529
    %v5531 = vrot.slane %v5530, 1
    %v5532 = vadd.f32 %v5530, %v5531
    %v5533 = vmul.f32 %v5273, %v815
    %v5534 = vmul.f32 %v5310, %v815
    %v5535 = vmul.f32 %v5347, %v815
    %v5536 = vmul.f32 %v5384, %v815
    %v5537 = vmul.f32 %v5421, %v815
    %v5538 = vmul.f32 %v5458, %v815
    %v5539 = vmul.f32 %v5495, %v815
    %v5540 = vmul.f32 %v5532, %v815
    %v5541 = vmul.f32 %v3918, %v3918
    %v5542 = vmul.f32 %v3920, %v3920
    %v5543 = vmul.f32 %v4304, %v4304
    %v5544 = vmul.f32 %v4306, %v4306
    %v5545 = vmul.f32 %v4690, %v4690
    %v5546 = vmul.f32 %v4692, %v4692
    %v5547 = vmul.f32 %v5076, %v5076
    %v5548 = vmul.f32 %v5078, %v5078
    %v5549 = vmul.f32 %v3922, %v3922
    %v5550 = vmul.f32 %v3924, %v3924
    %v5551 = vmul.f32 %v4308, %v4308
    %v5552 = vmul.f32 %v4310, %v4310
    %v5553 = vmul.f32 %v4694, %v4694
    %v5554 = vmul.f32 %v4696, %v4696
    %v5555 = vmul.f32 %v5080, %v5080
    %v5556 = vmul.f32 %v5082, %v5082
    %v5557 = vmul.f32 %v3928, %v3928
    %v5558 = vmul.f32 %v3930, %v3930
    %v5559 = vmul.f32 %v4314, %v4314
    %v5560 = vmul.f32 %v4316, %v4316
    %v5561 = vmul.f32 %v4700, %v4700
    %v5562 = vmul.f32 %v4702, %v4702
    %v5563 = vmul.f32 %v5086, %v5086
    %v5564 = vmul.f32 %v5088, %v5088
    %v5565 = vmul.f32 %v3932, %v3932
    %v5566 = vmul.f32 %v3934, %v3934
    %v5567 = vmul.f32 %v4318, %v4318
    %v5568 = vmul.f32 %v4320, %v4320
    %v5569 = vmul.f32 %v4704, %v4704
    %v5570 = vmul.f32 %v4706, %v4706
    %v5571 = vmul.f32 %v5090, %v5090
    %v5572 = vmul.f32 %v5092, %v5092
    %v5573 = vmul.f32 %v3938, %v3938
    %v5574 = vmul.f32 %v3940, %v3940
    %v5575 = vmul.f32 %v4324, %v4324
    %v5576 = vmul.f32 %v4326, %v4326
    %v5577 = vmul.f32 %v4710, %v4710
    %v5578 = vmul.f32 %v4712, %v4712
    %v5579 = vmul.f32 %v5096, %v5096
    %v5580 = vmul.f32 %v5098, %v5098
    %v5581 = vmul.f32 %v3942, %v3942
    %v5582 = vmul.f32 %v3944, %v3944
    %v5583 = vmul.f32 %v4328, %v4328
    %v5584 = vmul.f32 %v4330, %v4330
    %v5585 = vmul.f32 %v4714, %v4714
    %v5586 = vmul.f32 %v4716, %v4716
    %v5587 = vmul.f32 %v5100, %v5100
    %v5588 = vmul.f32 %v5102, %v5102
    %v5589 = vmul.f32 %v3948, %v3948
    %v5590 = vmul.f32 %v3950, %v3950
    %v5591 = vmul.f32 %v4334, %v4334
    %v5592 = vmul.f32 %v4336, %v4336
    %v5593 = vmul.f32 %v4720, %v4720
    %v5594 = vmul.f32 %v4722, %v4722
    %v5595 = vmul.f32 %v5106, %v5106
    %v5596 = vmul.f32 %v5108, %v5108
    %v5597 = vmul.f32 %v3952, %v3952
    %v5598 = vmul.f32 %v3954, %v3954
    %v5599 = vmul.f32 %v4338, %v4338
    %v5600 = vmul.f32 %v4340, %v4340
    %v5601 = vmul.f32 %v4724, %v4724
    %v5602 = vmul.f32 %v4726, %v4726
    %v5603 = vmul.f32 %v5110, %v5110
    %v5604 = vmul.f32 %v5112, %v5112
    %v5605 = vmul.f32 %v3958, %v3958
    %v5606 = vmul.f32 %v3960, %v3960
    %v5607 = vmul.f32 %v4344, %v4344
    %v5608 = vmul.f32 %v4346, %v4346
    %v5609 = vmul.f32 %v4730, %v4730
    %v5610 = vmul.f32 %v4732, %v4732
    %v5611 = vmul.f32 %v5116, %v5116
    %v5612 = vmul.f32 %v5118, %v5118
    %v5613 = vmul.f32 %v3962, %v3962
    %v5614 = vmul.f32 %v3964, %v3964
    %v5615 = vmul.f32 %v4348, %v4348
    %v5616 = vmul.f32 %v4350, %v4350
    %v5617 = vmul.f32 %v4734, %v4734
    %v5618 = vmul.f32 %v4736, %v4736
    %v5619 = vmul.f32 %v5120, %v5120
    %v5620 = vmul.f32 %v5122, %v5122
    %v5621 = vmul.f32 %v3968, %v3968
    %v5622 = vmul.f32 %v3970, %v3970
    %v5623 = vmul.f32 %v4354, %v4354
    %v5624 = vmul.f32 %v4356, %v4356
    %v5625 = vmul.f32 %v4740, %v4740
    %v5626 = vmul.f32 %v4742, %v4742
    %v5627 = vmul.f32 %v5126, %v5126
    %v5628 = vmul.f32 %v5128, %v5128
    %v5629 = vmul.f32 %v3972, %v3972
    %v5630 = vmul.f32 %v3974, %v3974
    %v5631 = vmul.f32 %v4358, %v4358
    %v5632 = vmul.f32 %v4360, %v4360
    %v5633 = vmul.f32 %v4744, %v4744
    %v5634 = vmul.f32 %v4746, %v4746
    %v5635 = vmul.f32 %v5130, %v5130
    %v5636 = vmul.f32 %v5132, %v5132
    %v5637 = vmul.f32 %v3978, %v3978
    %v5638 = vmul.f32 %v3980, %v3980
    %v5639 = vmul.f32 %v4364, %v4364
    %v5640 = vmul.f32 %v4366, %v4366
    %v5641 = vmul.f32 %v4750, %v4750
    %v5642 = vmul.f32 %v4752, %v4752
    %v5643 = vmul.f32 %v5136, %v5136
    %v5644 = vmul.f32 %v5138, %v5138
    %v5645 = vmul.f32 %v3982, %v3982
    %v5646 = vmul.f32 %v3984, %v3984
    %v5647 = vmul.f32 %v4368, %v4368
    %v5648 = vmul.f32 %v4370, %v4370
    %v5649 = vmul.f32 %v4754, %v4754
    %v5650 = vmul.f32 %v4756, %v4756
    %v5651 = vmul.f32 %v5140, %v5140
    %v5652 = vmul.f32 %v5142, %v5142
    %v5653 = vmul.f32 %v3988, %v3988
    %v5654 = vmul.f32 %v3990, %v3990
    %v5655 = vmul.f32 %v4374, %v4374
    %v5656 = vmul.f32 %v4376, %v4376
    %v5657 = vmul.f32 %v4760, %v4760
    %v5658 = vmul.f32 %v4762, %v4762
    %v5659 = vmul.f32 %v5146, %v5146
    %v5660 = vmul.f32 %v5148, %v5148
    %v5661 = vmul.f32 %v3992, %v3992
    %v5662 = vmul.f32 %v3994, %v3994
    %v5663 = vmul.f32 %v4378, %v4378
    %v5664 = vmul.f32 %v4380, %v4380
    %v5665 = vmul.f32 %v4764, %v4764
    %v5666 = vmul.f32 %v4766, %v4766
    %v5667 = vmul.f32 %v5150, %v5150
    %v5668 = vmul.f32 %v5152, %v5152
    %v5669 = vmul.f32 %v3998, %v3998
    %v5670 = vmul.f32 %v4000, %v4000
    %v5671 = vmul.f32 %v4384, %v4384
    %v5672 = vmul.f32 %v4386, %v4386
    %v5673 = vmul.f32 %v4770, %v4770
    %v5674 = vmul.f32 %v4772, %v4772
    %v5675 = vmul.f32 %v5156, %v5156
    %v5676 = vmul.f32 %v5158, %v5158
    %v5677 = vmul.f32 %v4002, %v4002
    %v5678 = vmul.f32 %v4004, %v4004
    %v5679 = vmul.f32 %v4388, %v4388
    %v5680 = vmul.f32 %v4390, %v4390
    %v5681 = vmul.f32 %v4774, %v4774
    %v5682 = vmul.f32 %v4776, %v4776
    %v5683 = vmul.f32 %v5160, %v5160
    %v5684 = vmul.f32 %v5162, %v5162
    %v5685 = vmul.f32 %v4008, %v4008
    %v5686 = vmul.f32 %v4010, %v4010
    %v5687 = vmul.f32 %v4394, %v4394
    %v5688 = vmul.f32 %v4396, %v4396
    %v5689 = vmul.f32 %v4780, %v4780
    %v5690 = vmul.f32 %v4782, %v4782
    %v5691 = vmul.f32 %v5166, %v5166
    %v5692 = vmul.f32 %v5168, %v5168
    %v5693 = vmul.f32 %v4012, %v4012
    %v5694 = vmul.f32 %v4014, %v4014
    %v5695 = vmul.f32 %v4398, %v4398
    %v5696 = vmul.f32 %v4400, %v4400
    %v5697 = vmul.f32 %v4784, %v4784
    %v5698 = vmul.f32 %v4786, %v4786
    %v5699 = vmul.f32 %v5170, %v5170
    %v5700 = vmul.f32 %v5172, %v5172
    %v5701 = vmul.f32 %v4018, %v4018
    %v5702 = vmul.f32 %v4020, %v4020
    %v5703 = vmul.f32 %v4404, %v4404
    %v5704 = vmul.f32 %v4406, %v4406
    %v5705 = vmul.f32 %v4790, %v4790
    %v5706 = vmul.f32 %v4792, %v4792
    %v5707 = vmul.f32 %v5176, %v5176
    %v5708 = vmul.f32 %v5178, %v5178
    %v5709 = vmul.f32 %v4022, %v4022
    %v5710 = vmul.f32 %v4024, %v4024
    %v5711 = vmul.f32 %v4408, %v4408
    %v5712 = vmul.f32 %v4410, %v4410
    %v5713 = vmul.f32 %v4794, %v4794
    %v5714 = vmul.f32 %v4796, %v4796
    %v5715 = vmul.f32 %v5180, %v5180
    %v5716 = vmul.f32 %v5182, %v5182
    %v5717 = vmul.f32 %v4028, %v4028
    %v5718 = vmul.f32 %v4030, %v4030
    %v5719 = vmul.f32 %v4414, %v4414
    %v5720 = vmul.f32 %v4416, %v4416
    %v5721 = vmul.f32 %v4800, %v4800
    %v5722 = vmul.f32 %v4802, %v4802
    %v5723 = vmul.f32 %v5186, %v5186
    %v5724 = vmul.f32 %v5188, %v5188
    %v5725 = vmul.f32 %v4032, %v4032
    %v5726 = vmul.f32 %v4034, %v4034
    %v5727 = vmul.f32 %v4418, %v4418
    %v5728 = vmul.f32 %v4420, %v4420
    %v5729 = vmul.f32 %v4804, %v4804
    %v5730 = vmul.f32 %v4806, %v4806
    %v5731 = vmul.f32 %v5190, %v5190
    %v5732 = vmul.f32 %v5192, %v5192
    %v5733 = vmul.f32 %v4038, %v4038
    %v5734 = vmul.f32 %v4040, %v4040
    %v5735 = vmul.f32 %v4424, %v4424
    %v5736 = vmul.f32 %v4426, %v4426
    %v5737 = vmul.f32 %v4810, %v4810
    %v5738 = vmul.f32 %v4812, %v4812
    %v5739 = vmul.f32 %v5196, %v5196
    %v5740 = vmul.f32 %v5198, %v5198
    %v5741 = vmul.f32 %v4042, %v4042
    %v5742 = vmul.f32 %v4044, %v4044
    %v5743 = vmul.f32 %v4428, %v4428
    %v5744 = vmul.f32 %v4430, %v4430
    %v5745 = vmul.f32 %v4814, %v4814
    %v5746 = vmul.f32 %v4816, %v4816
    %v5747 = vmul.f32 %v5200, %v5200
    %v5748 = vmul.f32 %v5202, %v5202
    %v5749 = vmul.f32 %v4048, %v4048
    %v5750 = vmul.f32 %v4050, %v4050
    %v5751 = vmul.f32 %v4434, %v4434
    %v5752 = vmul.f32 %v4436, %v4436
    %v5753 = vmul.f32 %v4820, %v4820
    %v5754 = vmul.f32 %v4822, %v4822
    %v5755 = vmul.f32 %v5206, %v5206
    %v5756 = vmul.f32 %v5208, %v5208
    %v5757 = vmul.f32 %v4052, %v4052
    %v5758 = vmul.f32 %v4054, %v4054
    %v5759 = vmul.f32 %v4438, %v4438
    %v5760 = vmul.f32 %v4440, %v4440
    %v5761 = vmul.f32 %v4824, %v4824
    %v5762 = vmul.f32 %v4826, %v4826
    %v5763 = vmul.f32 %v5210, %v5210
    %v5764 = vmul.f32 %v5212, %v5212
    %v5765 = vmul.f32 %v4058, %v4058
    %v5766 = vmul.f32 %v4060, %v4060
    %v5767 = vmul.f32 %v4444, %v4444
    %v5768 = vmul.f32 %v4446, %v4446
    %v5769 = vmul.f32 %v4830, %v4830
    %v5770 = vmul.f32 %v4832, %v4832
    %v5771 = vmul.f32 %v5216, %v5216
    %v5772 = vmul.f32 %v5218, %v5218
    %v5773 = vmul.f32 %v4062, %v4062
    %v5774 = vmul.f32 %v4064, %v4064
    %v5775 = vmul.f32 %v4448, %v4448
    %v5776 = vmul.f32 %v4450, %v4450
    %v5777 = vmul.f32 %v4834, %v4834
    %v5778 = vmul.f32 %v4836, %v4836
    %v5779 = vmul.f32 %v5220, %v5220
    %v5780 = vmul.f32 %v5222, %v5222
    %v5781 = vmul.f32 %v4068, %v4068
    %v5782 = vmul.f32 %v4070, %v4070
    %v5783 = vmul.f32 %v4454, %v4454
    %v5784 = vmul.f32 %v4456, %v4456
    %v5785 = vmul.f32 %v4840, %v4840
    %v5786 = vmul.f32 %v4842, %v4842
    %v5787 = vmul.f32 %v5226, %v5226
    %v5788 = vmul.f32 %v5228, %v5228
    %v5789 = vmul.f32 %v4072, %v4072
    %v5790 = vmul.f32 %v4074, %v4074
    %v5791 = vmul.f32 %v4458, %v4458
    %v5792 = vmul.f32 %v4460, %v4460
    %v5793 = vmul.f32 %v4844, %v4844
    %v5794 = vmul.f32 %v4846, %v4846
    %v5795 = vmul.f32 %v5230, %v5230
    %v5796 = vmul.f32 %v5232, %v5232
    %v5797 = vadd.f32 %v5541, %v5549
    %v5798 = vadd.f32 %v5797, %v5557
    %v5799 = vadd.f32 %v5798, %v5565
    %v5800 = vadd.f32 %v5799, %v5573
    %v5801 = vadd.f32 %v5800, %v5581
    %v5802 = vadd.f32 %v5801, %v5589
    %v5803 = vadd.f32 %v5802, %v5597
    %v5804 = vadd.f32 %v5803, %v5605
    %v5805 = vadd.f32 %v5804, %v5613
    %v5806 = vadd.f32 %v5805, %v5621
    %v5807 = vadd.f32 %v5806, %v5629
    %v5808 = vadd.f32 %v5807, %v5637
    %v5809 = vadd.f32 %v5808, %v5645
    %v5810 = vadd.f32 %v5809, %v5653
    %v5811 = vadd.f32 %v5810, %v5661
    %v5812 = vadd.f32 %v5811, %v5669
    %v5813 = vadd.f32 %v5812, %v5677
    %v5814 = vadd.f32 %v5813, %v5685
    %v5815 = vadd.f32 %v5814, %v5693
    %v5816 = vadd.f32 %v5815, %v5701
    %v5817 = vadd.f32 %v5816, %v5709
    %v5818 = vadd.f32 %v5817, %v5717
    %v5819 = vadd.f32 %v5818, %v5725
    %v5820 = vadd.f32 %v5819, %v5733
    %v5821 = vadd.f32 %v5820, %v5741
    %v5822 = vadd.f32 %v5821, %v5749
    %v5823 = vadd.f32 %v5822, %v5757
    %v5824 = vadd.f32 %v5823, %v5765
    %v5825 = vadd.f32 %v5824, %v5773
    %v5826 = vadd.f32 %v5825, %v5781
    %v5827 = vadd.f32 %v5826, %v5789
    %v5828 = vrot.slane %v5827, 4
    %v5829 = vadd.f32 %v5827, %v5828
    %v5830 = vrot.slane %v5829, 2
    %v5831 = vadd.f32 %v5829, %v5830
    %v5832 = vrot.slane %v5831, 1
    %v5833 = vadd.f32 %v5831, %v5832
    %v5834 = vadd.f32 %v5542, %v5550
    %v5835 = vadd.f32 %v5834, %v5558
    %v5836 = vadd.f32 %v5835, %v5566
    %v5837 = vadd.f32 %v5836, %v5574
    %v5838 = vadd.f32 %v5837, %v5582
    %v5839 = vadd.f32 %v5838, %v5590
    %v5840 = vadd.f32 %v5839, %v5598
    %v5841 = vadd.f32 %v5840, %v5606
    %v5842 = vadd.f32 %v5841, %v5614
    %v5843 = vadd.f32 %v5842, %v5622
    %v5844 = vadd.f32 %v5843, %v5630
    %v5845 = vadd.f32 %v5844, %v5638
    %v5846 = vadd.f32 %v5845, %v5646
    %v5847 = vadd.f32 %v5846, %v5654
    %v5848 = vadd.f32 %v5847, %v5662
    %v5849 = vadd.f32 %v5848, %v5670
    %v5850 = vadd.f32 %v5849, %v5678
    %v5851 = vadd.f32 %v5850, %v5686
    %v5852 = vadd.f32 %v5851, %v5694
    %v5853 = vadd.f32 %v5852, %v5702
    %v5854 = vadd.f32 %v5853, %v5710
    %v5855 = vadd.f32 %v5854, %v5718
    %v5856 = vadd.f32 %v5855, %v5726
    %v5857 = vadd.f32 %v5856, %v5734
    %v5858 = vadd.f32 %v5857, %v5742
    %v5859 = vadd.f32 %v5858, %v5750
    %v5860 = vadd.f32 %v5859, %v5758
    %v5861 = vadd.f32 %v5860, %v5766
    %v5862 = vadd.f32 %v5861, %v5774
    %v5863 = vadd.f32 %v5862, %v5782
    %v5864 = vadd.f32 %v5863, %v5790
    %v5865 = vrot.slane %v5864, 4
    %v5866 = vadd.f32 %v5864, %v5865
    %v5867 = vrot.slane %v5866, 2
    %v5868 = vadd.f32 %v5866, %v5867
    %v5869 = vrot.slane %v5868, 1
    %v5870 = vadd.f32 %v5868, %v5869
    %v5871 = vadd.f32 %v5543, %v5551
    %v5872 = vadd.f32 %v5871, %v5559
    %v5873 = vadd.f32 %v5872, %v5567
    %v5874 = vadd.f32 %v5873, %v5575
    %v5875 = vadd.f32 %v5874, %v5583
    %v5876 = vadd.f32 %v5875, %v5591
    %v5877 = vadd.f32 %v5876, %v5599
    %v5878 = vadd.f32 %v5877, %v5607
    %v5879 = vadd.f32 %v5878, %v5615
    %v5880 = vadd.f32 %v5879, %v5623
    %v5881 = vadd.f32 %v5880, %v5631
    %v5882 = vadd.f32 %v5881, %v5639
    %v5883 = vadd.f32 %v5882, %v5647
    %v5884 = vadd.f32 %v5883, %v5655
    %v5885 = vadd.f32 %v5884, %v5663
    %v5886 = vadd.f32 %v5885, %v5671
    %v5887 = vadd.f32 %v5886, %v5679
    %v5888 = vadd.f32 %v5887, %v5687
    %v5889 = vadd.f32 %v5888, %v5695
    %v5890 = vadd.f32 %v5889, %v5703
    %v5891 = vadd.f32 %v5890, %v5711
    %v5892 = vadd.f32 %v5891, %v5719
    %v5893 = vadd.f32 %v5892, %v5727
    %v5894 = vadd.f32 %v5893, %v5735
    %v5895 = vadd.f32 %v5894, %v5743
    %v5896 = vadd.f32 %v5895, %v5751
    %v5897 = vadd.f32 %v5896, %v5759
    %v5898 = vadd.f32 %v5897, %v5767
    %v5899 = vadd.f32 %v5898, %v5775
    %v5900 = vadd.f32 %v5899, %v5783
    %v5901 = vadd.f32 %v5900, %v5791
    %v5902 = vrot.slane %v5901, 4
    %v5903 = vadd.f32 %v5901, %v5902
    %v5904 = vrot.slane %v5903, 2
    %v5905 = vadd.f32 %v5903, %v5904
    %v5906 = vrot.slane %v5905, 1
    %v5907 = vadd.f32 %v5905, %v5906
    %v5908 = vadd.f32 %v5544, %v5552
    %v5909 = vadd.f32 %v5908, %v5560
    %v5910 = vadd.f32 %v5909, %v5568
    %v5911 = vadd.f32 %v5910, %v5576
    %v5912 = vadd.f32 %v5911, %v5584
    %v5913 = vadd.f32 %v5912, %v5592
    %v5914 = vadd.f32 %v5913, %v5600
    %v5915 = vadd.f32 %v5914, %v5608
    %v5916 = vadd.f32 %v5915, %v5616
    %v5917 = vadd.f32 %v5916, %v5624
    %v5918 = vadd.f32 %v5917, %v5632
    %v5919 = vadd.f32 %v5918, %v5640
    %v5920 = vadd.f32 %v5919, %v5648
    %v5921 = vadd.f32 %v5920, %v5656
    %v5922 = vadd.f32 %v5921, %v5664
    %v5923 = vadd.f32 %v5922, %v5672
    %v5924 = vadd.f32 %v5923, %v5680
    %v5925 = vadd.f32 %v5924, %v5688
    %v5926 = vadd.f32 %v5925, %v5696
    %v5927 = vadd.f32 %v5926, %v5704
    %v5928 = vadd.f32 %v5927, %v5712
    %v5929 = vadd.f32 %v5928, %v5720
    %v5930 = vadd.f32 %v5929, %v5728
    %v5931 = vadd.f32 %v5930, %v5736
    %v5932 = vadd.f32 %v5931, %v5744
    %v5933 = vadd.f32 %v5932, %v5752
    %v5934 = vadd.f32 %v5933, %v5760
    %v5935 = vadd.f32 %v5934, %v5768
    %v5936 = vadd.f32 %v5935, %v5776
    %v5937 = vadd.f32 %v5936, %v5784
    %v5938 = vadd.f32 %v5937, %v5792
    %v5939 = vrot.slane %v5938, 4
    %v5940 = vadd.f32 %v5938, %v5939
    %v5941 = vrot.slane %v5940, 2
    %v5942 = vadd.f32 %v5940, %v5941
    %v5943 = vrot.slane %v5942, 1
    %v5944 = vadd.f32 %v5942, %v5943
    %v5945 = vadd.f32 %v5545, %v5553
    %v5946 = vadd.f32 %v5945, %v5561
    %v5947 = vadd.f32 %v5946, %v5569
    %v5948 = vadd.f32 %v5947, %v5577
    %v5949 = vadd.f32 %v5948, %v5585
    %v5950 = vadd.f32 %v5949, %v5593
    %v5951 = vadd.f32 %v5950, %v5601
    %v5952 = vadd.f32 %v5951, %v5609
    %v5953 = vadd.f32 %v5952, %v5617
    %v5954 = vadd.f32 %v5953, %v5625
    %v5955 = vadd.f32 %v5954, %v5633
    %v5956 = vadd.f32 %v5955, %v5641
    %v5957 = vadd.f32 %v5956, %v5649
    %v5958 = vadd.f32 %v5957, %v5657
    %v5959 = vadd.f32 %v5958, %v5665
    %v5960 = vadd.f32 %v5959, %v5673
    %v5961 = vadd.f32 %v5960, %v5681
    %v5962 = vadd.f32 %v5961, %v5689
    %v5963 = vadd.f32 %v5962, %v5697
    %v5964 = vadd.f32 %v5963, %v5705
    %v5965 = vadd.f32 %v5964, %v5713
    %v5966 = vadd.f32 %v5965, %v5721
    %v5967 = vadd.f32 %v5966, %v5729
    %v5968 = vadd.f32 %v5967, %v5737
    %v5969 = vadd.f32 %v5968, %v5745
    %v5970 = vadd.f32 %v5969, %v5753
    %v5971 = vadd.f32 %v5970, %v5761
    %v5972 = vadd.f32 %v5971, %v5769
    %v5973 = vadd.f32 %v5972, %v5777
    %v5974 = vadd.f32 %v5973, %v5785
    %v5975 = vadd.f32 %v5974, %v5793
    %v5976 = vrot.slane %v5975, 4
    %v5977 = vadd.f32 %v5975, %v5976
    %v5978 = vrot.slane %v5977, 2
    %v5979 = vadd.f32 %v5977, %v5978
    %v5980 = vrot.slane %v5979, 1
    %v5981 = vadd.f32 %v5979, %v5980
    %v5982 = vadd.f32 %v5546, %v5554
    %v5983 = vadd.f32 %v5982, %v5562
    %v5984 = vadd.f32 %v5983, %v5570
    %v5985 = vadd.f32 %v5984, %v5578
    %v5986 = vadd.f32 %v5985, %v5586
    %v5987 = vadd.f32 %v5986, %v5594
    %v5988 = vadd.f32 %v5987, %v5602
    %v5989 = vadd.f32 %v5988, %v5610
    %v5990 = vadd.f32 %v5989, %v5618
    %v5991 = vadd.f32 %v5990, %v5626
    %v5992 = vadd.f32 %v5991, %v5634
    %v5993 = vadd.f32 %v5992, %v5642
    %v5994 = vadd.f32 %v5993, %v5650
    %v5995 = vadd.f32 %v5994, %v5658
    %v5996 = vadd.f32 %v5995, %v5666
    %v5997 = vadd.f32 %v5996, %v5674
    %v5998 = vadd.f32 %v5997, %v5682
    %v5999 = vadd.f32 %v5998, %v5690
    %v6000 = vadd.f32 %v5999, %v5698
    %v6001 = vadd.f32 %v6000, %v5706
    %v6002 = vadd.f32 %v6001, %v5714
    %v6003 = vadd.f32 %v6002, %v5722
    %v6004 = vadd.f32 %v6003, %v5730
    %v6005 = vadd.f32 %v6004, %v5738
    %v6006 = vadd.f32 %v6005, %v5746
    %v6007 = vadd.f32 %v6006, %v5754
    %v6008 = vadd.f32 %v6007, %v5762
    %v6009 = vadd.f32 %v6008, %v5770
    %v6010 = vadd.f32 %v6009, %v5778
    %v6011 = vadd.f32 %v6010, %v5786
    %v6012 = vadd.f32 %v6011, %v5794
    %v6013 = vrot.slane %v6012, 4
    %v6014 = vadd.f32 %v6012, %v6013
    %v6015 = vrot.slane %v6014, 2
    %v6016 = vadd.f32 %v6014, %v6015
    %v6017 = vrot.slane %v6016, 1
    %v6018 = vadd.f32 %v6016, %v6017
    %v6019 = vadd.f32 %v5547, %v5555
    %v6020 = vadd.f32 %v6019, %v5563
    %v6021 = vadd.f32 %v6020, %v5571
    %v6022 = vadd.f32 %v6021, %v5579
    %v6023 = vadd.f32 %v6022, %v5587
    %v6024 = vadd.f32 %v6023, %v5595
    %v6025 = vadd.f32 %v6024, %v5603
    %v6026 = vadd.f32 %v6025, %v5611
    %v6027 = vadd.f32 %v6026, %v5619
    %v6028 = vadd.f32 %v6027, %v5627
    %v6029 = vadd.f32 %v6028, %v5635
    %v6030 = vadd.f32 %v6029, %v5643
    %v6031 = vadd.f32 %v6030, %v5651
    %v6032 = vadd.f32 %v6031, %v5659
    %v6033 = vadd.f32 %v6032, %v5667
    %v6034 = vadd.f32 %v6033, %v5675
    %v6035 = vadd.f32 %v6034, %v5683
    %v6036 = vadd.f32 %v6035, %v5691
    %v6037 = vadd.f32 %v6036, %v5699
    %v6038 = vadd.f32 %v6037, %v5707
    %v6039 = vadd.f32 %v6038, %v5715
    %v6040 = vadd.f32 %v6039, %v5723
    %v6041 = vadd.f32 %v6040, %v5731
    %v6042 = vadd.f32 %v6041, %v5739
    %v6043 = vadd.f32 %v6042, %v5747
    %v6044 = vadd.f32 %v6043, %v5755
    %v6045 = vadd.f32 %v6044, %v5763
    %v6046 = vadd.f32 %v6045, %v5771
    %v6047 = vadd.f32 %v6046, %v5779
    %v6048 = vadd.f32 %v6047, %v5787
    %v6049 = vadd.f32 %v6048, %v5795
    %v6050 = vrot.slane %v6049, 4
    %v6051 = vadd.f32 %v6049, %v6050
    %v6052 = vrot.slane %v6051, 2
    %v6053 = vadd.f32 %v6051, %v6052
    %v6054 = vrot.slane %v6053, 1
    %v6055 = vadd.f32 %v6053, %v6054
    %v6056 = vadd.f32 %v5548, %v5556
    %v6057 = vadd.f32 %v6056, %v5564
    %v6058 = vadd.f32 %v6057, %v5572
    %v6059 = vadd.f32 %v6058, %v5580
    %v6060 = vadd.f32 %v6059, %v5588
    %v6061 = vadd.f32 %v6060, %v5596
    %v6062 = vadd.f32 %v6061, %v5604
    %v6063 = vadd.f32 %v6062, %v5612
    %v6064 = vadd.f32 %v6063, %v5620
    %v6065 = vadd.f32 %v6064, %v5628
    %v6066 = vadd.f32 %v6065, %v5636
    %v6067 = vadd.f32 %v6066, %v5644
    %v6068 = vadd.f32 %v6067, %v5652
    %v6069 = vadd.f32 %v6068, %v5660
    %v6070 = vadd.f32 %v6069, %v5668
    %v6071 = vadd.f32 %v6070, %v5676
    %v6072 = vadd.f32 %v6071, %v5684
    %v6073 = vadd.f32 %v6072, %v5692
    %v6074 = vadd.f32 %v6073, %v5700
    %v6075 = vadd.f32 %v6074, %v5708
    %v6076 = vadd.f32 %v6075, %v5716
    %v6077 = vadd.f32 %v6076, %v5724
    %v6078 = vadd.f32 %v6077, %v5732
    %v6079 = vadd.f32 %v6078, %v5740
    %v6080 = vadd.f32 %v6079, %v5748
    %v6081 = vadd.f32 %v6080, %v5756
    %v6082 = vadd.f32 %v6081, %v5764
    %v6083 = vadd.f32 %v6082, %v5772
    %v6084 = vadd.f32 %v6083, %v5780
    %v6085 = vadd.f32 %v6084, %v5788
    %v6086 = vadd.f32 %v6085, %v5796
    %v6087 = vrot.slane %v6086, 4
    %v6088 = vadd.f32 %v6086, %v6087
    %v6089 = vrot.slane %v6088, 2
    %v6090 = vadd.f32 %v6088, %v6089
    %v6091 = vrot.slane %v6090, 1
    %v6092 = vadd.f32 %v6090, %v6091
    %v6093 = vmul.f32 %v5833, %v815
    %v6094 = vmul.f32 %v5870, %v815
    %v6095 = vmul.f32 %v5907, %v815
    %v6096 = vmul.f32 %v5944, %v815
    %v6097 = vmul.f32 %v5981, %v815
    %v6098 = vmul.f32 %v6018, %v815
    %v6099 = vmul.f32 %v6055, %v815
    %v6100 = vmul.f32 %v6092, %v815
    %v6101 = vmul.f32 %v5533, %v5533
    %v6102 = vmul.f32 %v5534, %v5534
    %v6103 = vmul.f32 %v5535, %v5535
    %v6104 = vmul.f32 %v5536, %v5536
    %v6105 = vmul.f32 %v5537, %v5537
    %v6106 = vmul.f32 %v5538, %v5538
    %v6107 = vmul.f32 %v5539, %v5539
    %v6108 = vmul.f32 %v5540, %v5540
    %v6109 = vsub.f32 %v6093, %v6101
    %v6110 = vsub.f32 %v6094, %v6102
    %v6111 = vsub.f32 %v6095, %v6103
    %v6112 = vsub.f32 %v6096, %v6104
    %v6113 = vsub.f32 %v6097, %v6105
    %v6114 = vsub.f32 %v6098, %v6106
    %v6115 = vsub.f32 %v6099, %v6107
    %v6116 = vsub.f32 %v6100, %v6108
    %v6117 = vmul.f32 %v5235, %v5234
    %v6118 = vmul.f32 %v5234, %v5234
    %v6120 = vlaneseq
    %v6121 = vshrl.u32 %v6120, 7
    %v6122 = vsub.s32 0, %v6121
    %v6123 = vrot.slane %v6118, %v6122
    %v6124 = vlaneseq
    %v6125 = vshrl.u32 %v6124, 7
    %v6126 = vsub.s32 1, %v6125
    %v6127 = vrot.slane %v6118, %v6126
    %v6128 = vlaneseq
    %v6129 = vshrl.u32 %v6128, 7
    %v6130 = vsub.s32 2, %v6129
    %v6131 = vrot.slane %v6118, %v6130
    %v6132 = vlaneseq
    %v6133 = vshrl.u32 %v6132, 7
    %v6134 = vsub.s32 3, %v6133
    %v6135 = vrot.slane %v6118, %v6134
    %v6136 = vlaneseq
    %v6137 = vshrl.u32 %v6136, 7
    %v6138 = vsub.s32 4, %v6137
    %v6139 = vrot.slane %v6118, %v6138
    %v6140 = vlaneseq
    %v6141 = vshrl.u32 %v6140, 7
    %v6142 = vsub.s32 5, %v6141
    %v6143 = vrot.slane %v6118, %v6142
    %v6144 = vlaneseq
    %v6145 = vshrl.u32 %v6144, 7
    %v6146 = vsub.s32 6, %v6145
    %v6147 = vrot.slane %v6118, %v6146
    %v6148 = vlaneseq
    %v6149 = vshrl.u32 %v6148, 7
    %v6150 = vsub.s32 7, %v6149
    %v6151 = vrot.slane %v6118, %v6150
    %v6160 = vmul.f32 %v6109, %v6123
    %v6161 = vmul.f32 %v6110, %v6127
    %v6162 = vmul.f32 %v6111, %v6131
    %v6163 = vmul.f32 %v6112, %v6135
    %v6164 = vmul.f32 %v6113, %v6139
    %v6165 = vmul.f32 %v6114, %v6143
    %v6166 = vmul.f32 %v6115, %v6147
    %v6167 = vmul.f32 %v6116, %v6151
    %v6168 = vadd.f32 %v6160, 0.8
    %v6169 = vadd.f32 %v6161, 0.8
    %v6170 = vadd.f32 %v6162, 0.8
    %v6171 = vadd.f32 %v6163, 0.8
    %v6172 = vadd.f32 %v6164, 0.8
    %v6173 = vadd.f32 %v6165, 0.8
    %v6174 = vadd.f32 %v6166, 0.8
    %v6175 = vadd.f32 %v6167, 0.8
    %v6176 = vrsqrt.pop %v6168
    %v6177 = vrsqrt.pop %v6169
    %v6178 = vrsqrt.pop %v6170
    %v6179 = vrsqrt.pop %v6171
    %v6180 = vrsqrt.pop %v6172
    %v6181 = vrsqrt.pop %v6173
    %v6182 = vrsqrt.pop %v6174
    %v6183 = vrsqrt.pop %v6175
    %v6192 = vcombine.low %v6176, %v6177
    %v6193 = vcombine.low %v6178, %v6179
    %v6194 = vcombine.low %v6180, %v6181
    %v6195 = vcombine.low %v6182, %v6183
    %v6197 = vunpack.c.l.s4 1966171168
    %v6198 = vunpack.c.0.s8 %v6197
    %v6199 = vlaneseq
    %v6200 = vshrl.u32 %v6199, 7
    %v6201 = vsub.s32 %v6198, %v6200
    %v6202 = vrot.slane %v6192, %v6201
    %v6204 = vunpack.c.l.s4 1966171168
    %v6205 = vunpack.c.0.s8 %v6204
    %v6206 = vlaneseq
    %v6207 = vshrl.u32 %v6206, 7
    %v6208 = vsub.s32 %v6205, %v6207
    %v6209 = vrot.slane %v6193, %v6208
    %v6211 = vunpack.c.l.s4 1966171168
    %v6212 = vunpack.c.0.s8 %v6211
    %v6213 = vlaneseq
    %v6214 = vshrl.u32 %v6213, 7
    %v6215 = vsub.s32 %v6212, %v6214
    %v6216 = vrot.slane %v6194, %v6215
    %v6218 = vunpack.c.l.s4 1966171168
    %v6219 = vunpack.c.0.s8 %v6218
    %v6220 = vlaneseq
    %v6221 = vshrl.u32 %v6220, 7
    %v6222 = vsub.s32 %v6219, %v6221
    %v6223 = vrot.slane %v6195, %v6222
    %v6224 = vcombine.low %v6202, %v6209
    %v6225 = vcombine.low %v6216, %v6223
    %v6227 = vunpack.c.l.s4 1966171168
    %v6228 = vunpack.c.0.s8 %v6227
    %v6229 = vlaneseq
    %v6230 = vshrl.u32 %v6229, 7
    %v6231 = vsub.s32 %v6228, %v6230
    %v6232 = vrot.slane %v6224, %v6231
    %v6234 = vunpack.c.l.s4 1966171168
    %v6235 = vunpack.c.0.s8 %v6234
    %v6236 = vlaneseq
    %v6237 = vshrl.u32 %v6236, 7
    %v6238 = vsub.s32 %v6235, %v6237
    %v6239 = vrot.slane %v6225, %v6238
    %v6240 = vcombine.low %v6232, %v6239
    %v6242 = vmul.f32 %v6117, %v6240
    %v6243 = vsub.f32 %v3918, %v5533
    %v6244 = vsub.f32 %v3920, %v5534
    %v6245 = vsub.f32 %v4304, %v5535
    %v6246 = vsub.f32 %v4306, %v5536
    %v6247 = vsub.f32 %v4690, %v5537
    %v6248 = vsub.f32 %v4692, %v5538
    %v6249 = vsub.f32 %v5076, %v5539
    %v6250 = vsub.f32 %v5078, %v5540
    %v6251 = vsub.f32 %v3922, %v5533
    %v6252 = vsub.f32 %v3924, %v5534
    %v6253 = vsub.f32 %v4308, %v5535
    %v6254 = vsub.f32 %v4310, %v5536
    %v6255 = vsub.f32 %v4694, %v5537
    %v6256 = vsub.f32 %v4696, %v5538
    %v6257 = vsub.f32 %v5080, %v5539
    %v6258 = vsub.f32 %v5082, %v5540
    %v6259 = vsub.f32 %v3928, %v5533
    %v6260 = vsub.f32 %v3930, %v5534
    %v6261 = vsub.f32 %v4314, %v5535
    %v6262 = vsub.f32 %v4316, %v5536
    %v6263 = vsub.f32 %v4700, %v5537
    %v6264 = vsub.f32 %v4702, %v5538
    %v6265 = vsub.f32 %v5086, %v5539
    %v6266 = vsub.f32 %v5088, %v5540
    %v6267 = vsub.f32 %v3932, %v5533
    %v6268 = vsub.f32 %v3934, %v5534
    %v6269 = vsub.f32 %v4318, %v5535
    %v6270 = vsub.f32 %v4320, %v5536
    %v6271 = vsub.f32 %v4704, %v5537
    %v6272 = vsub.f32 %v4706, %v5538
    %v6273 = vsub.f32 %v5090, %v5539
    %v6274 = vsub.f32 %v5092, %v5540
    %v6275 = vsub.f32 %v3938, %v5533
    %v6276 = vsub.f32 %v3940, %v5534
    %v6277 = vsub.f32 %v4324, %v5535
    %v6278 = vsub.f32 %v4326, %v5536
    %v6279 = vsub.f32 %v4710, %v5537
    %v6280 = vsub.f32 %v4712, %v5538
    %v6281 = vsub.f32 %v5096, %v5539
    %v6282 = vsub.f32 %v5098, %v5540
    %v6283 = vsub.f32 %v3942, %v5533
    %v6284 = vsub.f32 %v3944, %v5534
    %v6285 = vsub.f32 %v4328, %v5535
    %v6286 = vsub.f32 %v4330, %v5536
    %v6287 = vsub.f32 %v4714, %v5537
    %v6288 = vsub.f32 %v4716, %v5538
    %v6289 = vsub.f32 %v5100, %v5539
    %v6290 = vsub.f32 %v5102, %v5540
    %v6291 = vsub.f32 %v3948, %v5533
    %v6292 = vsub.f32 %v3950, %v5534
    %v6293 = vsub.f32 %v4334, %v5535
    %v6294 = vsub.f32 %v4336, %v5536
    %v6295 = vsub.f32 %v4720, %v5537
    %v6296 = vsub.f32 %v4722, %v5538
    %v6297 = vsub.f32 %v5106, %v5539
    %v6298 = vsub.f32 %v5108, %v5540
    %v6299 = vsub.f32 %v3952, %v5533
    %v6300 = vsub.f32 %v3954, %v5534
    %v6301 = vsub.f32 %v4338, %v5535
    %v6302 = vsub.f32 %v4340, %v5536
    %v6303 = vsub.f32 %v4724, %v5537
    %v6304 = vsub.f32 %v4726, %v5538
    %v6305 = vsub.f32 %v5110, %v5539
    %v6306 = vsub.f32 %v5112, %v5540
    %v6307 = vsub.f32 %v3958, %v5533
    %v6308 = vsub.f32 %v3960, %v5534
    %v6309 = vsub.f32 %v4344, %v5535
    %v6310 = vsub.f32 %v4346, %v5536
    %v6311 = vsub.f32 %v4730, %v5537
    %v6312 = vsub.f32 %v4732, %v5538
    %v6313 = vsub.f32 %v5116, %v5539
    %v6314 = vsub.f32 %v5118, %v5540
    %v6315 = vsub.f32 %v3962, %v5533
    %v6316 = vsub.f32 %v3964, %v5534
    %v6317 = vsub.f32 %v4348, %v5535
    %v6318 = vsub.f32 %v4350, %v5536
    %v6319 = vsub.f32 %v4734, %v5537
    %v6320 = vsub.f32 %v4736, %v5538
    %v6321 = vsub.f32 %v5120, %v5539
    %v6322 = vsub.f32 %v5122, %v5540
    %v6323 = vsub.f32 %v3968, %v5533
    %v6324 = vsub.f32 %v3970, %v5534
    %v6325 = vsub.f32 %v4354, %v5535
    %v6326 = vsub.f32 %v4356, %v5536
    %v6327 = vsub.f32 %v4740, %v5537
    %v6328 = vsub.f32 %v4742, %v5538
    %v6329 = vsub.f32 %v5126, %v5539
    %v6330 = vsub.f32 %v5128, %v5540
    %v6331 = vsub.f32 %v3972, %v5533
    %v6332 = vsub.f32 %v3974, %v5534
    %v6333 = vsub.f32 %v4358, %v5535
    %v6334 = vsub.f32 %v4360, %v5536
    %v6335 = vsub.f32 %v4744, %v5537
    %v6336 = vsub.f32 %v4746, %v5538
    %v6337 = vsub.f32 %v5130, %v5539
    %v6338 = vsub.f32 %v5132, %v5540
    %v6339 = vsub.f32 %v3978, %v5533
    %v6340 = vsub.f32 %v3980, %v5534
    %v6341 = vsub.f32 %v4364, %v5535
    %v6342 = vsub.f32 %v4366, %v5536
    %v6343 = vsub.f32 %v4750, %v5537
    %v6344 = vsub.f32 %v4752, %v5538
    %v6345 = vsub.f32 %v5136, %v5539
    %v6346 = vsub.f32 %v5138, %v5540
    %v6347 = vsub.f32 %v3982, %v5533
    %v6348 = vsub.f32 %v3984, %v5534
    %v6349 = vsub.f32 %v4368, %v5535
    %v6350 = vsub.f32 %v4370, %v5536
    %v6351 = vsub.f32 %v4754, %v5537
    %v6352 = vsub.f32 %v4756, %v5538
    %v6353 = vsub.f32 %v5140, %v5539
    %v6354 = vsub.f32 %v5142, %v5540
    %v6355 = vsub.f32 %v3988, %v5533
    %v6356 = vsub.f32 %v3990, %v5534
    %v6357 = vsub.f32 %v4374, %v5535
    %v6358 = vsub.f32 %v4376, %v5536
    %v6359 = vsub.f32 %v4760, %v5537
    %v6360 = vsub.f32 %v4762, %v5538
    %v6361 = vsub.f32 %v5146, %v5539
    %v6362 = vsub.f32 %v5148, %v5540
    %v6363 = vsub.f32 %v3992, %v5533
    %v6364 = vsub.f32 %v3994, %v5534
    %v6365 = vsub.f32 %v4378, %v5535
    %v6366 = vsub.f32 %v4380, %v5536
    %v6367 = vsub.f32 %v4764, %v5537
    %v6368 = vsub.f32 %v4766, %v5538
    %v6369 = vsub.f32 %v5150, %v5539
    %v6370 = vsub.f32 %v5152, %v5540
    %v6371 = vsub.f32 %v3998, %v5533
    %v6372 = vsub.f32 %v4000, %v5534
    %v6373 = vsub.f32 %v4384, %v5535
    %v6374 = vsub.f32 %v4386, %v5536
    %v6375 = vsub.f32 %v4770, %v5537
    %v6376 = vsub.f32 %v4772, %v5538
    %v6377 = vsub.f32 %v5156, %v5539
    %v6378 = vsub.f32 %v5158, %v5540
    %v6379 = vsub.f32 %v4002, %v5533
    %v6380 = vsub.f32 %v4004, %v5534
    %v6381 = vsub.f32 %v4388, %v5535
    %v6382 = vsub.f32 %v4390, %v5536
    %v6383 = vsub.f32 %v4774, %v5537
    %v6384 = vsub.f32 %v4776, %v5538
    %v6385 = vsub.f32 %v5160, %v5539
    %v6386 = vsub.f32 %v5162, %v5540
    %v6387 = vsub.f32 %v4008, %v5533
    %v6388 = vsub.f32 %v4010, %v5534
    %v6389 = vsub.f32 %v4394, %v5535
    %v6390 = vsub.f32 %v4396, %v5536
    %v6391 = vsub.f32 %v4780, %v5537
    %v6392 = vsub.f32 %v4782, %v5538
    %v6393 = vsub.f32 %v5166, %v5539
    %v6394 = vsub.f32 %v5168, %v5540
    %v6395 = vsub.f32 %v4012, %v5533
    %v6396 = vsub.f32 %v4014, %v5534
    %v6397 = vsub.f32 %v4398, %v5535
    %v6398 = vsub.f32 %v4400, %v5536
    %v6399 = vsub.f32 %v4784, %v5537
    %v6400 = vsub.f32 %v4786, %v5538
    %v6401 = vsub.f32 %v5170, %v5539
    %v6402 = vsub.f32 %v5172, %v5540
    %v6403 = vsub.f32 %v4018, %v5533
    %v6404 = vsub.f32 %v4020, %v5534
    %v6405 = vsub.f32 %v4404, %v5535
    %v6406 = vsub.f32 %v4406, %v5536
    %v6407 = vsub.f32 %v4790, %v5537
    %v6408 = vsub.f32 %v4792, %v5538
    %v6409 = vsub.f32 %v5176, %v5539
    %v6410 = vsub.f32 %v5178, %v5540
    %v6411 = vsub.f32 %v4022, %v5533
    %v6412 = vsub.f32 %v4024, %v5534
    %v6413 = vsub.f32 %v4408, %v5535
    %v6414 = vsub.f32 %v4410, %v5536
    %v6415 = vsub.f32 %v4794, %v5537
    %v6416 = vsub.f32 %v4796, %v5538
    %v6417 = vsub.f32 %v5180, %v5539
    %v6418 = vsub.f32 %v5182, %v5540
    %v6419 = vsub.f32 %v4028, %v5533
    %v6420 = vsub.f32 %v4030, %v5534
    %v6421 = vsub.f32 %v4414, %v5535
    %v6422 = vsub.f32 %v4416, %v5536
    %v6423 = vsub.f32 %v4800, %v5537
    %v6424 = vsub.f32 %v4802, %v5538
    %v6425 = vsub.f32 %v5186, %v5539
    %v6426 = vsub.f32 %v5188, %v5540
    %v6427 = vsub.f32 %v4032, %v5533
    %v6428 = vsub.f32 %v4034, %v5534
    %v6429 = vsub.f32 %v4418, %v5535
    %v6430 = vsub.f32 %v4420, %v5536
    %v6431 = vsub.f32 %v4804, %v5537
    %v6432 = vsub.f32 %v4806, %v5538
    %v6433 = vsub.f32 %v5190, %v5539
    %v6434 = vsub.f32 %v5192, %v5540
    %v6435 = vsub.f32 %v4038, %v5533
    %v6436 = vsub.f32 %v4040, %v5534
    %v6437 = vsub.f32 %v4424, %v5535
    %v6438 = vsub.f32 %v4426, %v5536
    %v6439 = vsub.f32 %v4810, %v5537
    %v6440 = vsub.f32 %v4812, %v5538
    %v6441 = vsub.f32 %v5196, %v5539
    %v6442 = vsub.f32 %v5198, %v5540
    %v6443 = vsub.f32 %v4042, %v5533
    %v6444 = vsub.f32 %v4044, %v5534
    %v6445 = vsub.f32 %v4428, %v5535
    %v6446 = vsub.f32 %v4430, %v5536
    %v6447 = vsub.f32 %v4814, %v5537
    %v6448 = vsub.f32 %v4816, %v5538
    %v6449 = vsub.f32 %v5200, %v5539
    %v6450 = vsub.f32 %v5202, %v5540
    %v6451 = vsub.f32 %v4048, %v5533
    %v6452 = vsub.f32 %v4050, %v5534
    %v6453 = vsub.f32 %v4434, %v5535
    %v6454 = vsub.f32 %v4436, %v5536
    %v6455 = vsub.f32 %v4820, %v5537
    %v6456 = vsub.f32 %v4822, %v5538
    %v6457 = vsub.f32 %v5206, %v5539
    %v6458 = vsub.f32 %v5208, %v5540
    %v6459 = vsub.f32 %v4052, %v5533
    %v6460 = vsub.f32 %v4054, %v5534
    %v6461 = vsub.f32 %v4438, %v5535
    %v6462 = vsub.f32 %v4440, %v5536
    %v6463 = vsub.f32 %v4824, %v5537
    %v6464 = vsub.f32 %v4826, %v5538
    %v6465 = vsub.f32 %v5210, %v5539
    %v6466 = vsub.f32 %v5212, %v5540
    %v6467 = vsub.f32 %v4058, %v5533
    %v6468 = vsub.f32 %v4060, %v5534
    %v6469 = vsub.f32 %v4444, %v5535
    %v6470 = vsub.f32 %v4446, %v5536
    %v6471 = vsub.f32 %v4830, %v5537
    %v6472 = vsub.f32 %v4832, %v5538
    %v6473 = vsub.f32 %v5216, %v5539
    %v6474 = vsub.f32 %v5218, %v5540
    %v6475 = vsub.f32 %v4062, %v5533
    %v6476 = vsub.f32 %v4064, %v5534
    %v6477 = vsub.f32 %v4448, %v5535
    %v6478 = vsub.f32 %v4450, %v5536
    %v6479 = vsub.f32 %v4834, %v5537
    %v6480 = vsub.f32 %v4836, %v5538
    %v6481 = vsub.f32 %v5220, %v5539
    %v6482 = vsub.f32 %v5222, %v5540
    %v6483 = vsub.f32 %v4068, %v5533
    %v6484 = vsub.f32 %v4070, %v5534
    %v6485 = vsub.f32 %v4454, %v5535
    %v6486 = vsub.f32 %v4456, %v5536
    %v6487 = vsub.f32 %v4840, %v5537
    %v6488 = vsub.f32 %v4842, %v5538
    %v6489 = vsub.f32 %v5226, %v5539
    %v6490 = vsub.f32 %v5228, %v5540
    %v6491 = vsub.f32 %v4072, %v5533
    %v6492 = vsub.f32 %v4074, %v5534
    %v6493 = vsub.f32 %v4458, %v5535
    %v6494 = vsub.f32 %v4460, %v5536
    %v6495 = vsub.f32 %v4844, %v5537
    %v6496 = vsub.f32 %v4846, %v5538
    %v6497 = vsub.f32 %v5230, %v5539
    %v6498 = vsub.f32 %v5232, %v5540
    %v6500 = vlaneseq
    %v6501 = vshrl.u32 %v6500, 7
    %v6502 = vsub.s32 0, %v6501
    %v6503 = vrot.slane %v6242, %v6502
    %v6504 = vlaneseq
    %v6505 = vshrl.u32 %v6504, 7
    %v6506 = vsub.s32 1, %v6505
    %v6507 = vrot.slane %v6242, %v6506
    %v6508 = vlaneseq
    %v6509 = vshrl.u32 %v6508, 7
    %v6510 = vsub.s32 2, %v6509
    %v6511 = vrot.slane %v6242, %v6510
    %v6512 = vlaneseq
    %v6513 = vshrl.u32 %v6512, 7
    %v6514 = vsub.s32 3, %v6513
    %v6515 = vrot.slane %v6242, %v6514
    %v6516 = vlaneseq
    %v6517 = vshrl.u32 %v6516, 7
    %v6518 = vsub.s32 4, %v6517
    %v6519 = vrot.slane %v6242, %v6518
    %v6520 = vlaneseq
    %v6521 = vshrl.u32 %v6520, 7
    %v6522 = vsub.s32 5, %v6521
    %v6523 = vrot.slane %v6242, %v6522
    %v6524 = vlaneseq
    %v6525 = vshrl.u32 %v6524, 7
    %v6526 = vsub.s32 6, %v6525
    %v6527 = vrot.slane %v6242, %v6526
    %v6528 = vlaneseq
    %v6529 = vshrl.u32 %v6528, 7
    %v6530 = vsub.s32 7, %v6529
    %v6531 = vrot.slane %v6242, %v6530
    %v6540 = vmul.f32 %v6243, %v6503
    %v6541 = vmul.f32 %v6244, %v6507
    %v6542 = vmul.f32 %v6245, %v6511
    %v6543 = vmul.f32 %v6246, %v6515
    %v6544 = vmul.f32 %v6247, %v6519
    %v6545 = vmul.f32 %v6248, %v6523
    %v6546 = vmul.f32 %v6249, %v6527
    %v6547 = vmul.f32 %v6250, %v6531
    %v6548 = vmul.f32 %v6251, %v6503
    %v6549 = vmul.f32 %v6252, %v6507
    %v6550 = vmul.f32 %v6253, %v6511
    %v6551 = vmul.f32 %v6254, %v6515
    %v6552 = vmul.f32 %v6255, %v6519
    %v6553 = vmul.f32 %v6256, %v6523
    %v6554 = vmul.f32 %v6257, %v6527
    %v6555 = vmul.f32 %v6258, %v6531
    %v6556 = vmul.f32 %v6259, %v6503
    %v6557 = vmul.f32 %v6260, %v6507
    %v6558 = vmul.f32 %v6261, %v6511
    %v6559 = vmul.f32 %v6262, %v6515
    %v6560 = vmul.f32 %v6263, %v6519
    %v6561 = vmul.f32 %v6264, %v6523
    %v6562 = vmul.f32 %v6265, %v6527
    %v6563 = vmul.f32 %v6266, %v6531
    %v6564 = vmul.f32 %v6267, %v6503
    %v6565 = vmul.f32 %v6268, %v6507
    %v6566 = vmul.f32 %v6269, %v6511
    %v6567 = vmul.f32 %v6270, %v6515
    %v6568 = vmul.f32 %v6271, %v6519
    %v6569 = vmul.f32 %v6272, %v6523
    %v6570 = vmul.f32 %v6273, %v6527
    %v6571 = vmul.f32 %v6274, %v6531
    %v6572 = vmul.f32 %v6275, %v6503
    %v6573 = vmul.f32 %v6276, %v6507
    %v6574 = vmul.f32 %v6277, %v6511
    %v6575 = vmul.f32 %v6278, %v6515
    %v6576 = vmul.f32 %v6279, %v6519
    %v6577 = vmul.f32 %v6280, %v6523
    %v6578 = vmul.f32 %v6281, %v6527
    %v6579 = vmul.f32 %v6282, %v6531
    %v6580 = vmul.f32 %v6283, %v6503
    %v6581 = vmul.f32 %v6284, %v6507
    %v6582 = vmul.f32 %v6285, %v6511
    %v6583 = vmul.f32 %v6286, %v6515
    %v6584 = vmul.f32 %v6287, %v6519
    %v6585 = vmul.f32 %v6288, %v6523
    %v6586 = vmul.f32 %v6289, %v6527
    %v6587 = vmul.f32 %v6290, %v6531
    %v6588 = vmul.f32 %v6291, %v6503
    %v6589 = vmul.f32 %v6292, %v6507
    %v6590 = vmul.f32 %v6293, %v6511
    %v6591 = vmul.f32 %v6294, %v6515
    %v6592 = vmul.f32 %v6295, %v6519
    %v6593 = vmul.f32 %v6296, %v6523
    %v6594 = vmul.f32 %v6297, %v6527
    %v6595 = vmul.f32 %v6298, %v6531
    %v6596 = vmul.f32 %v6299, %v6503
    %v6597 = vmul.f32 %v6300, %v6507
    %v6598 = vmul.f32 %v6301, %v6511
    %v6599 = vmul.f32 %v6302, %v6515
    %v6600 = vmul.f32 %v6303, %v6519
    %v6601 = vmul.f32 %v6304, %v6523
    %v6602 = vmul.f32 %v6305, %v6527
    %v6603 = vmul.f32 %v6306, %v6531
    %v6604 = vmul.f32 %v6307, %v6503
    %v6605 = vmul.f32 %v6308, %v6507
    %v6606 = vmul.f32 %v6309, %v6511
    %v6607 = vmul.f32 %v6310, %v6515
    %v6608 = vmul.f32 %v6311, %v6519
    %v6609 = vmul.f32 %v6312, %v6523
    %v6610 = vmul.f32 %v6313, %v6527
    %v6611 = vmul.f32 %v6314, %v6531
    %v6612 = vmul.f32 %v6315, %v6503
    %v6613 = vmul.f32 %v6316, %v6507
    %v6614 = vmul.f32 %v6317, %v6511
    %v6615 = vmul.f32 %v6318, %v6515
    %v6616 = vmul.f32 %v6319, %v6519
    %v6617 = vmul.f32 %v6320, %v6523
    %v6618 = vmul.f32 %v6321, %v6527
    %v6619 = vmul.f32 %v6322, %v6531
    %v6620 = vmul.f32 %v6323, %v6503
    %v6621 = vmul.f32 %v6324, %v6507
    %v6622 = vmul.f32 %v6325, %v6511
    %v6623 = vmul.f32 %v6326, %v6515
    %v6624 = vmul.f32 %v6327, %v6519
    %v6625 = vmul.f32 %v6328, %v6523
    %v6626 = vmul.f32 %v6329, %v6527
    %v6627 = vmul.f32 %v6330, %v6531
    %v6628 = vmul.f32 %v6331, %v6503
    %v6629 = vmul.f32 %v6332, %v6507
    %v6630 = vmul.f32 %v6333, %v6511
    %v6631 = vmul.f32 %v6334, %v6515
    %v6632 = vmul.f32 %v6335, %v6519
    %v6633 = vmul.f32 %v6336, %v6523
    %v6634 = vmul.f32 %v6337, %v6527
    %v6635 = vmul.f32 %v6338, %v6531
    %v6636 = vmul.f32 %v6339, %v6503
    %v6637 = vmul.f32 %v6340, %v6507
    %v6638 = vmul.f32 %v6341, %v6511
    %v6639 = vmul.f32 %v6342, %v6515
    %v6640 = vmul.f32 %v6343, %v6519
    %v6641 = vmul.f32 %v6344, %v6523
    %v6642 = vmul.f32 %v6345, %v6527
    %v6643 = vmul.f32 %v6346, %v6531
    %v6644 = vmul.f32 %v6347, %v6503
    %v6645 = vmul.f32 %v6348, %v6507
    %v6646 = vmul.f32 %v6349, %v6511
    %v6647 = vmul.f32 %v6350, %v6515
    %v6648 = vmul.f32 %v6351, %v6519
    %v6649 = vmul.f32 %v6352, %v6523
    %v6650 = vmul.f32 %v6353, %v6527
    %v6651 = vmul.f32 %v6354, %v6531
    %v6652 = vmul.f32 %v6355, %v6503
    %v6653 = vmul.f32 %v6356, %v6507
    %v6654 = vmul.f32 %v6357, %v6511
    %v6655 = vmul.f32 %v6358, %v6515
    %v6656 = vmul.f32 %v6359, %v6519
    %v6657 = vmul.f32 %v6360, %v6523
    %v6658 = vmul.f32 %v6361, %v6527
    %v6659 = vmul.f32 %v6362, %v6531
    %v6660 = vmul.f32 %v6363, %v6503
    %v6661 = vmul.f32 %v6364, %v6507
    %v6662 = vmul.f32 %v6365, %v6511
    %v6663 = vmul.f32 %v6366, %v6515
    %v6664 = vmul.f32 %v6367, %v6519
    %v6665 = vmul.f32 %v6368, %v6523
    %v6666 = vmul.f32 %v6369, %v6527
    %v6667 = vmul.f32 %v6370, %v6531
    %v6668 = vmul.f32 %v6371, %v6503
    %v6669 = vmul.f32 %v6372, %v6507
    %v6670 = vmul.f32 %v6373, %v6511
    %v6671 = vmul.f32 %v6374, %v6515
    %v6672 = vmul.f32 %v6375, %v6519
    %v6673 = vmul.f32 %v6376, %v6523
    %v6674 = vmul.f32 %v6377, %v6527
    %v6675 = vmul.f32 %v6378, %v6531
    %v6676 = vmul.f32 %v6379, %v6503
    %v6677 = vmul.f32 %v6380, %v6507
    %v6678 = vmul.f32 %v6381, %v6511
    %v6679 = vmul.f32 %v6382, %v6515
    %v6680 = vmul.f32 %v6383, %v6519
    %v6681 = vmul.f32 %v6384, %v6523
    %v6682 = vmul.f32 %v6385, %v6527
    %v6683 = vmul.f32 %v6386, %v6531
    %v6684 = vmul.f32 %v6387, %v6503
    %v6685 = vmul.f32 %v6388, %v6507
    %v6686 = vmul.f32 %v6389, %v6511
    %v6687 = vmul.f32 %v6390, %v6515
    %v6688 = vmul.f32 %v6391, %v6519
    %v6689 = vmul.f32 %v6392, %v6523
    %v6690 = vmul.f32 %v6393, %v6527
    %v6691 = vmul.f32 %v6394, %v6531
    %v6692 = vmul.f32 %v6395, %v6503
    %v6693 = vmul.f32 %v6396, %v6507
    %v6694 = vmul.f32 %v6397, %v6511
    %v6695 = vmul.f32 %v6398, %v6515
    %v6696 = vmul.f32 %v6399, %v6519
    %v6697 = vmul.f32 %v6400, %v6523
    %v6698 = vmul.f32 %v6401, %v6527
    %v6699 = vmul.f32 %v6402, %v6531
    %v6700 = vmul.f32 %v6403, %v6503
    %v6701 = vmul.f32 %v6404, %v6507
    %v6702 = vmul.f32 %v6405, %v6511
    %v6703 = vmul.f32 %v6406, %v6515
    %v6704 = vmul.f32 %v6407, %v6519
    %v6705 = vmul.f32 %v6408, %v6523
    %v6706 = vmul.f32 %v6409, %v6527
    %v6707 = vmul.f32 %v6410, %v6531
    %v6708 = vmul.f32 %v6411, %v6503
    %v6709 = vmul.f32 %v6412, %v6507
    %v6710 = vmul.f32 %v6413, %v6511
    %v6711 = vmul.f32 %v6414, %v6515
    %v6712 = vmul.f32 %v6415, %v6519
    %v6713 = vmul.f32 %v6416, %v6523
    %v6714 = vmul.f32 %v6417, %v6527
    %v6715 = vmul.f32 %v6418, %v6531
    %v6716 = vmul.f32 %v6419, %v6503
    %v6717 = vmul.f32 %v6420, %v6507
    %v6718 = vmul.f32 %v6421, %v6511
    %v6719 = vmul.f32 %v6422, %v6515
    %v6720 = vmul.f32 %v6423, %v6519
    %v6721 = vmul.f32 %v6424, %v6523
    %v6722 = vmul.f32 %v6425, %v6527
    %v6723 = vmul.f32 %v6426, %v6531
    %v6724 = vmul.f32 %v6427, %v6503
    %v6725 = vmul.f32 %v6428, %v6507
    %v6726 = vmul.f32 %v6429, %v6511
    %v6727 = vmul.f32 %v6430, %v6515
    %v6728 = vmul.f32 %v6431, %v6519
    %v6729 = vmul.f32 %v6432, %v6523
    %v6730 = vmul.f32 %v6433, %v6527
    %v6731 = vmul.f32 %v6434, %v6531
    %v6732 = vmul.f32 %v6435, %v6503
    %v6733 = vmul.f32 %v6436, %v6507
    %v6734 = vmul.f32 %v6437, %v6511
    %v6735 = vmul.f32 %v6438, %v6515
    %v6736 = vmul.f32 %v6439, %v6519
    %v6737 = vmul.f32 %v6440, %v6523
    %v6738 = vmul.f32 %v6441, %v6527
    %v6739 = vmul.f32 %v6442, %v6531
    %v6740 = vmul.f32 %v6443, %v6503
    %v6741 = vmul.f32 %v6444, %v6507
    %v6742 = vmul.f32 %v6445, %v6511
    %v6743 = vmul.f32 %v6446, %v6515
    %v6744 = vmul.f32 %v6447, %v6519
    %v6745 = vmul.f32 %v6448, %v6523
    %v6746 = vmul.f32 %v6449, %v6527
    %v6747 = vmul.f32 %v6450, %v6531
    %v6748 = vmul.f32 %v6451, %v6503
    %v6749 = vmul.f32 %v6452, %v6507
    %v6750 = vmul.f32 %v6453, %v6511
    %v6751 = vmul.f32 %v6454, %v6515
    %v6752 = vmul.f32 %v6455, %v6519
    %v6753 = vmul.f32 %v6456, %v6523
    %v6754 = vmul.f32 %v6457, %v6527
    %v6755 = vmul.f32 %v6458, %v6531
    %v6756 = vmul.f32 %v6459, %v6503
    %v6757 = vmul.f32 %v6460, %v6507
    %v6758 = vmul.f32 %v6461, %v6511
    %v6759 = vmul.f32 %v6462, %v6515
    %v6760 = vmul.f32 %v6463, %v6519
    %v6761 = vmul.f32 %v6464, %v6523
    %v6762 = vmul.f32 %v6465, %v6527
    %v6763 = vmul.f32 %v6466, %v6531
    %v6764 = vmul.f32 %v6467, %v6503
    %v6765 = vmul.f32 %v6468, %v6507
    %v6766 = vmul.f32 %v6469, %v6511
    %v6767 = vmul.f32 %v6470, %v6515
    %v6768 = vmul.f32 %v6471, %v6519
    %v6769 = vmul.f32 %v6472, %v6523
    %v6770 = vmul.f32 %v6473, %v6527
    %v6771 = vmul.f32 %v6474, %v6531
    %v6772 = vmul.f32 %v6475, %v6503
    %v6773 = vmul.f32 %v6476, %v6507
    %v6774 = vmul.f32 %v6477, %v6511
    %v6775 = vmul.f32 %v6478, %v6515
    %v6776 = vmul.f32 %v6479, %v6519
    %v6777 = vmul.f32 %v6480, %v6523
    %v6778 = vmul.f32 %v6481, %v6527
    %v6779 = vmul.f32 %v6482, %v6531
    %v6780 = vmul.f32 %v6483, %v6503
    %v6781 = vmul.f32 %v6484, %v6507
    %v6782 = vmul.f32 %v6485, %v6511
    %v6783 = vmul.f32 %v6486, %v6515
    %v6784 = vmul.f32 %v6487, %v6519
    %v6785 = vmul.f32 %v6488, %v6523
    %v6786 = vmul.f32 %v6489, %v6527
    %v6787 = vmul.f32 %v6490, %v6531
    %v6788 = vmul.f32 %v6491, %v6503
    %v6789 = vmul.f32 %v6492, %v6507
    %v6790 = vmul.f32 %v6493, %v6511
    %v6791 = vmul.f32 %v6494, %v6515
    %v6792 = vmul.f32 %v6495, %v6519
    %v6793 = vmul.f32 %v6496, %v6523
    %v6794 = vmul.f32 %v6497, %v6527
    %v6795 = vmul.f32 %v6498, %v6531
    %v6797 = vlaneseq
    %v6798 = vshrl.u32 %v6797, 7
    %v6799 = vsub.s32 0, %v6798
    %v6800 = vrot.slane %v5236, %v6799
    %v6801 = vlaneseq
    %v6802 = vshrl.u32 %v6801, 7
    %v6803 = vsub.s32 1, %v6802
    %v6804 = vrot.slane %v5236, %v6803
    %v6805 = vlaneseq
    %v6806 = vshrl.u32 %v6805, 7
    %v6807 = vsub.s32 2, %v6806
    %v6808 = vrot.slane %v5236, %v6807
    %v6809 = vlaneseq
    %v6810 = vshrl.u32 %v6809, 7
    %v6811 = vsub.s32 3, %v6810
    %v6812 = vrot.slane %v5236, %v6811
    %v6813 = vlaneseq
    %v6814 = vshrl.u32 %v6813, 7
    %v6815 = vsub.s32 4, %v6814
    %v6816 = vrot.slane %v5236, %v6815
    %v6817 = vlaneseq
    %v6818 = vshrl.u32 %v6817, 7
    %v6819 = vsub.s32 5, %v6818
    %v6820 = vrot.slane %v5236, %v6819
    %v6821 = vlaneseq
    %v6822 = vshrl.u32 %v6821, 7
    %v6823 = vsub.s32 6, %v6822
    %v6824 = vrot.slane %v5236, %v6823
    %v6825 = vlaneseq
    %v6826 = vshrl.u32 %v6825, 7
    %v6827 = vsub.s32 7, %v6826
    %v6828 = vrot.slane %v5236, %v6827
    %v6837 = vadd.f32 %v6540, %v6800
    %v6838 = vadd.f32 %v6541, %v6804
    %v6839 = vadd.f32 %v6542, %v6808
    %v6840 = vadd.f32 %v6543, %v6812
    %v6841 = vadd.f32 %v6544, %v6816
    %v6842 = vadd.f32 %v6545, %v6820
    %v6843 = vadd.f32 %v6546, %v6824
    %v6844 = vadd.f32 %v6547, %v6828
    %v6845 = vadd.f32 %v6548, %v6800
    %v6846 = vadd.f32 %v6549, %v6804
    %v6847 = vadd.f32 %v6550, %v6808
    %v6848 = vadd.f32 %v6551, %v6812
    %v6849 = vadd.f32 %v6552, %v6816
    %v6850 = vadd.f32 %v6553, %v6820
    %v6851 = vadd.f32 %v6554, %v6824
    %v6852 = vadd.f32 %v6555, %v6828
    %v6853 = vadd.f32 %v6556, %v6800
    %v6854 = vadd.f32 %v6557, %v6804
    %v6855 = vadd.f32 %v6558, %v6808
    %v6856 = vadd.f32 %v6559, %v6812
    %v6857 = vadd.f32 %v6560, %v6816
    %v6858 = vadd.f32 %v6561, %v6820
    %v6859 = vadd.f32 %v6562, %v6824
    %v6860 = vadd.f32 %v6563, %v6828
    %v6861 = vadd.f32 %v6564, %v6800
    %v6862 = vadd.f32 %v6565, %v6804
    %v6863 = vadd.f32 %v6566, %v6808
    %v6864 = vadd.f32 %v6567, %v6812
    %v6865 = vadd.f32 %v6568, %v6816
    %v6866 = vadd.f32 %v6569, %v6820
    %v6867 = vadd.f32 %v6570, %v6824
    %v6868 = vadd.f32 %v6571, %v6828
    %v6869 = vadd.f32 %v6572, %v6800
    %v6870 = vadd.f32 %v6573, %v6804
    %v6871 = vadd.f32 %v6574, %v6808
    %v6872 = vadd.f32 %v6575, %v6812
    %v6873 = vadd.f32 %v6576, %v6816
    %v6874 = vadd.f32 %v6577, %v6820
    %v6875 = vadd.f32 %v6578, %v6824
    %v6876 = vadd.f32 %v6579, %v6828
    %v6877 = vadd.f32 %v6580, %v6800
    %v6878 = vadd.f32 %v6581, %v6804
    %v6879 = vadd.f32 %v6582, %v6808
    %v6880 = vadd.f32 %v6583, %v6812
    %v6881 = vadd.f32 %v6584, %v6816
    %v6882 = vadd.f32 %v6585, %v6820
    %v6883 = vadd.f32 %v6586, %v6824
    %v6884 = vadd.f32 %v6587, %v6828
    %v6885 = vadd.f32 %v6588, %v6800
    %v6886 = vadd.f32 %v6589, %v6804
    %v6887 = vadd.f32 %v6590, %v6808
    %v6888 = vadd.f32 %v6591, %v6812
    %v6889 = vadd.f32 %v6592, %v6816
    %v6890 = vadd.f32 %v6593, %v6820
    %v6891 = vadd.f32 %v6594, %v6824
    %v6892 = vadd.f32 %v6595, %v6828
    %v6893 = vadd.f32 %v6596, %v6800
    %v6894 = vadd.f32 %v6597, %v6804
    %v6895 = vadd.f32 %v6598, %v6808
    %v6896 = vadd.f32 %v6599, %v6812
    %v6897 = vadd.f32 %v6600, %v6816
    %v6898 = vadd.f32 %v6601, %v6820
    %v6899 = vadd.f32 %v6602, %v6824
    %v6900 = vadd.f32 %v6603, %v6828
    %v6901 = vadd.f32 %v6604, %v6800
    %v6902 = vadd.f32 %v6605, %v6804
    %v6903 = vadd.f32 %v6606, %v6808
    %v6904 = vadd.f32 %v6607, %v6812
    %v6905 = vadd.f32 %v6608, %v6816
    %v6906 = vadd.f32 %v6609, %v6820
    %v6907 = vadd.f32 %v6610, %v6824
    %v6908 = vadd.f32 %v6611, %v6828
    %v6909 = vadd.f32 %v6612, %v6800
    %v6910 = vadd.f32 %v6613, %v6804
    %v6911 = vadd.f32 %v6614, %v6808
    %v6912 = vadd.f32 %v6615, %v6812
    %v6913 = vadd.f32 %v6616, %v6816
    %v6914 = vadd.f32 %v6617, %v6820
    %v6915 = vadd.f32 %v6618, %v6824
    %v6916 = vadd.f32 %v6619, %v6828
    %v6917 = vadd.f32 %v6620, %v6800
    %v6918 = vadd.f32 %v6621, %v6804
    %v6919 = vadd.f32 %v6622, %v6808
    %v6920 = vadd.f32 %v6623, %v6812
    %v6921 = vadd.f32 %v6624, %v6816
    %v6922 = vadd.f32 %v6625, %v6820
    %v6923 = vadd.f32 %v6626, %v6824
    %v6924 = vadd.f32 %v6627, %v6828
    %v6925 = vadd.f32 %v6628, %v6800
    %v6926 = vadd.f32 %v6629, %v6804
    %v6927 = vadd.f32 %v6630, %v6808
    %v6928 = vadd.f32 %v6631, %v6812
    %v6929 = vadd.f32 %v6632, %v6816
    %v6930 = vadd.f32 %v6633, %v6820
    %v6931 = vadd.f32 %v6634, %v6824
    %v6932 = vadd.f32 %v6635, %v6828
    %v6933 = vadd.f32 %v6636, %v6800
    %v6934 = vadd.f32 %v6637, %v6804
    %v6935 = vadd.f32 %v6638, %v6808
    %v6936 = vadd.f32 %v6639, %v6812
    %v6937 = vadd.f32 %v6640, %v6816
    %v6938 = vadd.f32 %v6641, %v6820
    %v6939 = vadd.f32 %v6642, %v6824
    %v6940 = vadd.f32 %v6643, %v6828
    %v6941 = vadd.f32 %v6644, %v6800
    %v6942 = vadd.f32 %v6645, %v6804
    %v6943 = vadd.f32 %v6646, %v6808
    %v6944 = vadd.f32 %v6647, %v6812
    %v6945 = vadd.f32 %v6648, %v6816
    %v6946 = vadd.f32 %v6649, %v6820
    %v6947 = vadd.f32 %v6650, %v6824
    %v6948 = vadd.f32 %v6651, %v6828
    %v6949 = vadd.f32 %v6652, %v6800
    %v6950 = vadd.f32 %v6653, %v6804
    %v6951 = vadd.f32 %v6654, %v6808
    %v6952 = vadd.f32 %v6655, %v6812
    %v6953 = vadd.f32 %v6656, %v6816
    %v6954 = vadd.f32 %v6657, %v6820
    %v6955 = vadd.f32 %v6658, %v6824
    %v6956 = vadd.f32 %v6659, %v6828
    %v6957 = vadd.f32 %v6660, %v6800
    %v6958 = vadd.f32 %v6661, %v6804
    %v6959 = vadd.f32 %v6662, %v6808
    %v6960 = vadd.f32 %v6663, %v6812
    %v6961 = vadd.f32 %v6664, %v6816
    %v6962 = vadd.f32 %v6665, %v6820
    %v6963 = vadd.f32 %v6666, %v6824
    %v6964 = vadd.f32 %v6667, %v6828
    %v6965 = vadd.f32 %v6668, %v6800
    %v6966 = vadd.f32 %v6669, %v6804
    %v6967 = vadd.f32 %v6670, %v6808
    %v6968 = vadd.f32 %v6671, %v6812
    %v6969 = vadd.f32 %v6672, %v6816
    %v6970 = vadd.f32 %v6673, %v6820
    %v6971 = vadd.f32 %v6674, %v6824
    %v6972 = vadd.f32 %v6675, %v6828
    %v6973 = vadd.f32 %v6676, %v6800
    %v6974 = vadd.f32 %v6677, %v6804
    %v6975 = vadd.f32 %v6678, %v6808
    %v6976 = vadd.f32 %v6679, %v6812
    %v6977 = vadd.f32 %v6680, %v6816
    %v6978 = vadd.f32 %v6681, %v6820
    %v6979 = vadd.f32 %v6682, %v6824
    %v6980 = vadd.f32 %v6683, %v6828
    %v6981 = vadd.f32 %v6684, %v6800
    %v6982 = vadd.f32 %v6685, %v6804
    %v6983 = vadd.f32 %v6686, %v6808
    %v6984 = vadd.f32 %v6687, %v6812
    %v6985 = vadd.f32 %v6688, %v6816
    %v6986 = vadd.f32 %v6689, %v6820
    %v6987 = vadd.f32 %v6690, %v6824
    %v6988 = vadd.f32 %v6691, %v6828
    %v6989 = vadd.f32 %v6692, %v6800
    %v6990 = vadd.f32 %v6693, %v6804
    %v6991 = vadd.f32 %v6694, %v6808
    %v6992 = vadd.f32 %v6695, %v6812
    %v6993 = vadd.f32 %v6696, %v6816
    %v6994 = vadd.f32 %v6697, %v6820
    %v6995 = vadd.f32 %v6698, %v6824
    %v6996 = vadd.f32 %v6699, %v6828
    %v6997 = vadd.f32 %v6700, %v6800
    %v6998 = vadd.f32 %v6701, %v6804
    %v6999 = vadd.f32 %v6702, %v6808
    %v7000 = vadd.f32 %v6703, %v6812
    %v7001 = vadd.f32 %v6704, %v6816
    %v7002 = vadd.f32 %v6705, %v6820
    %v7003 = vadd.f32 %v6706, %v6824
    %v7004 = vadd.f32 %v6707, %v6828
    %v7005 = vadd.f32 %v6708, %v6800
    %v7006 = vadd.f32 %v6709, %v6804
    %v7007 = vadd.f32 %v6710, %v6808
    %v7008 = vadd.f32 %v6711, %v6812
    %v7009 = vadd.f32 %v6712, %v6816
    %v7010 = vadd.f32 %v6713, %v6820
    %v7011 = vadd.f32 %v6714, %v6824
    %v7012 = vadd.f32 %v6715, %v6828
    %v7013 = vadd.f32 %v6716, %v6800
    %v7014 = vadd.f32 %v6717, %v6804
    %v7015 = vadd.f32 %v6718, %v6808
    %v7016 = vadd.f32 %v6719, %v6812
    %v7017 = vadd.f32 %v6720, %v6816
    %v7018 = vadd.f32 %v6721, %v6820
    %v7019 = vadd.f32 %v6722, %v6824
    %v7020 = vadd.f32 %v6723, %v6828
    %v7021 = vadd.f32 %v6724, %v6800
    %v7022 = vadd.f32 %v6725, %v6804
    %v7023 = vadd.f32 %v6726, %v6808
    %v7024 = vadd.f32 %v6727, %v6812
    %v7025 = vadd.f32 %v6728, %v6816
    %v7026 = vadd.f32 %v6729, %v6820
    %v7027 = vadd.f32 %v6730, %v6824
    %v7028 = vadd.f32 %v6731, %v6828
    %v7029 = vadd.f32 %v6732, %v6800
    %v7030 = vadd.f32 %v6733, %v6804
    %v7031 = vadd.f32 %v6734, %v6808
    %v7032 = vadd.f32 %v6735, %v6812
    %v7033 = vadd.f32 %v6736, %v6816
    %v7034 = vadd.f32 %v6737, %v6820
    %v7035 = vadd.f32 %v6738, %v6824
    %v7036 = vadd.f32 %v6739, %v6828
    %v7037 = vadd.f32 %v6740, %v6800
    %v7038 = vadd.f32 %v6741, %v6804
    %v7039 = vadd.f32 %v6742, %v6808
    %v7040 = vadd.f32 %v6743, %v6812
    %v7041 = vadd.f32 %v6744, %v6816
    %v7042 = vadd.f32 %v6745, %v6820
    %v7043 = vadd.f32 %v6746, %v6824
    %v7044 = vadd.f32 %v6747, %v6828
    %v7045 = vadd.f32 %v6748, %v6800
    %v7046 = vadd.f32 %v6749, %v6804
    %v7047 = vadd.f32 %v6750, %v6808
    %v7048 = vadd.f32 %v6751, %v6812
    %v7049 = vadd.f32 %v6752, %v6816
    %v7050 = vadd.f32 %v6753, %v6820
    %v7051 = vadd.f32 %v6754, %v6824
    %v7052 = vadd.f32 %v6755, %v6828
    %v7053 = vadd.f32 %v6756, %v6800
    %v7054 = vadd.f32 %v6757, %v6804
    %v7055 = vadd.f32 %v6758, %v6808
    %v7056 = vadd.f32 %v6759, %v6812
    %v7057 = vadd.f32 %v6760, %v6816
    %v7058 = vadd.f32 %v6761, %v6820
    %v7059 = vadd.f32 %v6762, %v6824
    %v7060 = vadd.f32 %v6763, %v6828
    %v7061 = vadd.f32 %v6764, %v6800
    %v7062 = vadd.f32 %v6765, %v6804
    %v7063 = vadd.f32 %v6766, %v6808
    %v7064 = vadd.f32 %v6767, %v6812
    %v7065 = vadd.f32 %v6768, %v6816
    %v7066 = vadd.f32 %v6769, %v6820
    %v7067 = vadd.f32 %v6770, %v6824
    %v7068 = vadd.f32 %v6771, %v6828
    %v7069 = vadd.f32 %v6772, %v6800
    %v7070 = vadd.f32 %v6773, %v6804
    %v7071 = vadd.f32 %v6774, %v6808
    %v7072 = vadd.f32 %v6775, %v6812
    %v7073 = vadd.f32 %v6776, %v6816
    %v7074 = vadd.f32 %v6777, %v6820
    %v7075 = vadd.f32 %v6778, %v6824
    %v7076 = vadd.f32 %v6779, %v6828
    %v7077 = vadd.f32 %v6780, %v6800
    %v7078 = vadd.f32 %v6781, %v6804
    %v7079 = vadd.f32 %v6782, %v6808
    %v7080 = vadd.f32 %v6783, %v6812
    %v7081 = vadd.f32 %v6784, %v6816
    %v7082 = vadd.f32 %v6785, %v6820
    %v7083 = vadd.f32 %v6786, %v6824
    %v7084 = vadd.f32 %v6787, %v6828
    %v7085 = vadd.f32 %v6788, %v6800
    %v7086 = vadd.f32 %v6789, %v6804
    %v7087 = vadd.f32 %v6790, %v6808
    %v7088 = vadd.f32 %v6791, %v6812
    %v7089 = vadd.f32 %v6792, %v6816
    %v7090 = vadd.f32 %v6793, %v6820
    %v7091 = vadd.f32 %v6794, %v6824
    %v7092 = vadd.f32 %v6795, %v6828
    %vm7093 = vcmp.gt.f32.partialorder %v6837, 0.0
    %vm7094 = vcmp.gt.f32.partialorder %v6838, 0.0
    %vm7095 = vcmp.gt.f32.partialorder %v6839, 0.0
    %vm7096 = vcmp.gt.f32.partialorder %v6840, 0.0
    %vm7097 = vcmp.gt.f32.partialorder %v6841, 0.0
    %vm7098 = vcmp.gt.f32.partialorder %v6842, 0.0
    %vm7099 = vcmp.gt.f32.partialorder %v6843, 0.0
    %vm7100 = vcmp.gt.f32.partialorder %v6844, 0.0
    %vm7101 = vcmp.gt.f32.partialorder %v6845, 0.0
    %vm7102 = vcmp.gt.f32.partialorder %v6846, 0.0
    %vm7103 = vcmp.gt.f32.partialorder %v6847, 0.0
    %vm7104 = vcmp.gt.f32.partialorder %v6848, 0.0
    %vm7105 = vcmp.gt.f32.partialorder %v6849, 0.0
    %vm7106 = vcmp.gt.f32.partialorder %v6850, 0.0
    %vm7107 = vcmp.gt.f32.partialorder %v6851, 0.0
    %vm7108 = vcmp.gt.f32.partialorder %v6852, 0.0
    %vm7109 = vcmp.gt.f32.partialorder %v6853, 0.0
    %vm7110 = vcmp.gt.f32.partialorder %v6854, 0.0
    %vm7111 = vcmp.gt.f32.partialorder %v6855, 0.0
    %vm7112 = vcmp.gt.f32.partialorder %v6856, 0.0
    %vm7113 = vcmp.gt.f32.partialorder %v6857, 0.0
    %vm7114 = vcmp.gt.f32.partialorder %v6858, 0.0
    %vm7115 = vcmp.gt.f32.partialorder %v6859, 0.0
    %vm7116 = vcmp.gt.f32.partialorder %v6860, 0.0
    %vm7117 = vcmp.gt.f32.partialorder %v6861, 0.0
    %vm7118 = vcmp.gt.f32.partialorder %v6862, 0.0
    %vm7119 = vcmp.gt.f32.partialorder %v6863, 0.0
    %vm7120 = vcmp.gt.f32.partialorder %v6864, 0.0
    %vm7121 = vcmp.gt.f32.partialorder %v6865, 0.0
    %vm7122 = vcmp.gt.f32.partialorder %v6866, 0.0
    %vm7123 = vcmp.gt.f32.partialorder %v6867, 0.0
    %vm7124 = vcmp.gt.f32.partialorder %v6868, 0.0
    %vm7125 = vcmp.gt.f32.partialorder %v6869, 0.0
    %vm7126 = vcmp.gt.f32.partialorder %v6870, 0.0
    %vm7127 = vcmp.gt.f32.partialorder %v6871, 0.0
    %vm7128 = vcmp.gt.f32.partialorder %v6872, 0.0
    %vm7129 = vcmp.gt.f32.partialorder %v6873, 0.0
    %vm7130 = vcmp.gt.f32.partialorder %v6874, 0.0
    %vm7131 = vcmp.gt.f32.partialorder %v6875, 0.0
    %vm7132 = vcmp.gt.f32.partialorder %v6876, 0.0
    %vm7133 = vcmp.gt.f32.partialorder %v6877, 0.0
    %vm7134 = vcmp.gt.f32.partialorder %v6878, 0.0
    %vm7135 = vcmp.gt.f32.partialorder %v6879, 0.0
    %vm7136 = vcmp.gt.f32.partialorder %v6880, 0.0
    %vm7137 = vcmp.gt.f32.partialorder %v6881, 0.0
    %vm7138 = vcmp.gt.f32.partialorder %v6882, 0.0
    %vm7139 = vcmp.gt.f32.partialorder %v6883, 0.0
    %vm7140 = vcmp.gt.f32.partialorder %v6884, 0.0
    %vm7141 = vcmp.gt.f32.partialorder %v6885, 0.0
    %vm7142 = vcmp.gt.f32.partialorder %v6886, 0.0
    %vm7143 = vcmp.gt.f32.partialorder %v6887, 0.0
    %vm7144 = vcmp.gt.f32.partialorder %v6888, 0.0
    %vm7145 = vcmp.gt.f32.partialorder %v6889, 0.0
    %vm7146 = vcmp.gt.f32.partialorder %v6890, 0.0
    %vm7147 = vcmp.gt.f32.partialorder %v6891, 0.0
    %vm7148 = vcmp.gt.f32.partialorder %v6892, 0.0
    %vm7149 = vcmp.gt.f32.partialorder %v6893, 0.0
    %vm7150 = vcmp.gt.f32.partialorder %v6894, 0.0
    %vm7151 = vcmp.gt.f32.partialorder %v6895, 0.0
    %vm7152 = vcmp.gt.f32.partialorder %v6896, 0.0
    %vm7153 = vcmp.gt.f32.partialorder %v6897, 0.0
    %vm7154 = vcmp.gt.f32.partialorder %v6898, 0.0
    %vm7155 = vcmp.gt.f32.partialorder %v6899, 0.0
    %vm7156 = vcmp.gt.f32.partialorder %v6900, 0.0
    %vm7157 = vcmp.gt.f32.partialorder %v6901, 0.0
    %vm7158 = vcmp.gt.f32.partialorder %v6902, 0.0
    %vm7159 = vcmp.gt.f32.partialorder %v6903, 0.0
    %vm7160 = vcmp.gt.f32.partialorder %v6904, 0.0
    %vm7161 = vcmp.gt.f32.partialorder %v6905, 0.0
    %vm7162 = vcmp.gt.f32.partialorder %v6906, 0.0
    %vm7163 = vcmp.gt.f32.partialorder %v6907, 0.0
    %vm7164 = vcmp.gt.f32.partialorder %v6908, 0.0
    %vm7165 = vcmp.gt.f32.partialorder %v6909, 0.0
    %vm7166 = vcmp.gt.f32.partialorder %v6910, 0.0
    %vm7167 = vcmp.gt.f32.partialorder %v6911, 0.0
    %vm7168 = vcmp.gt.f32.partialorder %v6912, 0.0
    %vm7169 = vcmp.gt.f32.partialorder %v6913, 0.0
    %vm7170 = vcmp.gt.f32.partialorder %v6914, 0.0
    %vm7171 = vcmp.gt.f32.partialorder %v6915, 0.0
    %vm7172 = vcmp.gt.f32.partialorder %v6916, 0.0
    %vm7173 = vcmp.gt.f32.partialorder %v6917, 0.0
    %vm7174 = vcmp.gt.f32.partialorder %v6918, 0.0
    %vm7175 = vcmp.gt.f32.partialorder %v6919, 0.0
    %vm7176 = vcmp.gt.f32.partialorder %v6920, 0.0
    %vm7177 = vcmp.gt.f32.partialorder %v6921, 0.0
    %vm7178 = vcmp.gt.f32.partialorder %v6922, 0.0
    %vm7179 = vcmp.gt.f32.partialorder %v6923, 0.0
    %vm7180 = vcmp.gt.f32.partialorder %v6924, 0.0
    %vm7181 = vcmp.gt.f32.partialorder %v6925, 0.0
    %vm7182 = vcmp.gt.f32.partialorder %v6926, 0.0
    %vm7183 = vcmp.gt.f32.partialorder %v6927, 0.0
    %vm7184 = vcmp.gt.f32.partialorder %v6928, 0.0
    %vm7185 = vcmp.gt.f32.partialorder %v6929, 0.0
    %vm7186 = vcmp.gt.f32.partialorder %v6930, 0.0
    %vm7187 = vcmp.gt.f32.partialorder %v6931, 0.0
    %vm7188 = vcmp.gt.f32.partialorder %v6932, 0.0
    %vm7189 = vcmp.gt.f32.partialorder %v6933, 0.0
    %vm7190 = vcmp.gt.f32.partialorder %v6934, 0.0
    %vm7191 = vcmp.gt.f32.partialorder %v6935, 0.0
    %vm7192 = vcmp.gt.f32.partialorder %v6936, 0.0
    %vm7193 = vcmp.gt.f32.partialorder %v6937, 0.0
    %vm7194 = vcmp.gt.f32.partialorder %v6938, 0.0
    %vm7195 = vcmp.gt.f32.partialorder %v6939, 0.0
    %vm7196 = vcmp.gt.f32.partialorder %v6940, 0.0
    %vm7197 = vcmp.gt.f32.partialorder %v6941, 0.0
    %vm7198 = vcmp.gt.f32.partialorder %v6942, 0.0
    %vm7199 = vcmp.gt.f32.partialorder %v6943, 0.0
    %vm7200 = vcmp.gt.f32.partialorder %v6944, 0.0
    %vm7201 = vcmp.gt.f32.partialorder %v6945, 0.0
    %vm7202 = vcmp.gt.f32.partialorder %v6946, 0.0
    %vm7203 = vcmp.gt.f32.partialorder %v6947, 0.0
    %vm7204 = vcmp.gt.f32.partialorder %v6948, 0.0
    %vm7205 = vcmp.gt.f32.partialorder %v6949, 0.0
    %vm7206 = vcmp.gt.f32.partialorder %v6950, 0.0
    %vm7207 = vcmp.gt.f32.partialorder %v6951, 0.0
    %vm7208 = vcmp.gt.f32.partialorder %v6952, 0.0
    %vm7209 = vcmp.gt.f32.partialorder %v6953, 0.0
    %vm7210 = vcmp.gt.f32.partialorder %v6954, 0.0
    %vm7211 = vcmp.gt.f32.partialorder %v6955, 0.0
    %vm7212 = vcmp.gt.f32.partialorder %v6956, 0.0
    %vm7213 = vcmp.gt.f32.partialorder %v6957, 0.0
    %vm7214 = vcmp.gt.f32.partialorder %v6958, 0.0
    %vm7215 = vcmp.gt.f32.partialorder %v6959, 0.0
    %vm7216 = vcmp.gt.f32.partialorder %v6960, 0.0
    %vm7217 = vcmp.gt.f32.partialorder %v6961, 0.0
    %vm7218 = vcmp.gt.f32.partialorder %v6962, 0.0
    %vm7219 = vcmp.gt.f32.partialorder %v6963, 0.0
    %vm7220 = vcmp.gt.f32.partialorder %v6964, 0.0
    %vm7221 = vcmp.gt.f32.partialorder %v6965, 0.0
    %vm7222 = vcmp.gt.f32.partialorder %v6966, 0.0
    %vm7223 = vcmp.gt.f32.partialorder %v6967, 0.0
    %vm7224 = vcmp.gt.f32.partialorder %v6968, 0.0
    %vm7225 = vcmp.gt.f32.partialorder %v6969, 0.0
    %vm7226 = vcmp.gt.f32.partialorder %v6970, 0.0
    %vm7227 = vcmp.gt.f32.partialorder %v6971, 0.0
    %vm7228 = vcmp.gt.f32.partialorder %v6972, 0.0
    %vm7229 = vcmp.gt.f32.partialorder %v6973, 0.0
    %vm7230 = vcmp.gt.f32.partialorder %v6974, 0.0
    %vm7231 = vcmp.gt.f32.partialorder %v6975, 0.0
    %vm7232 = vcmp.gt.f32.partialorder %v6976, 0.0
    %vm7233 = vcmp.gt.f32.partialorder %v6977, 0.0
    %vm7234 = vcmp.gt.f32.partialorder %v6978, 0.0
    %vm7235 = vcmp.gt.f32.partialorder %v6979, 0.0
    %vm7236 = vcmp.gt.f32.partialorder %v6980, 0.0
    %vm7237 = vcmp.gt.f32.partialorder %v6981, 0.0
    %vm7238 = vcmp.gt.f32.partialorder %v6982, 0.0
    %vm7239 = vcmp.gt.f32.partialorder %v6983, 0.0
    %vm7240 = vcmp.gt.f32.partialorder %v6984, 0.0
    %vm7241 = vcmp.gt.f32.partialorder %v6985, 0.0
    %vm7242 = vcmp.gt.f32.partialorder %v6986, 0.0
    %vm7243 = vcmp.gt.f32.partialorder %v6987, 0.0
    %vm7244 = vcmp.gt.f32.partialorder %v6988, 0.0
    %vm7245 = vcmp.gt.f32.partialorder %v6989, 0.0
    %vm7246 = vcmp.gt.f32.partialorder %v6990, 0.0
    %vm7247 = vcmp.gt.f32.partialorder %v6991, 0.0
    %vm7248 = vcmp.gt.f32.partialorder %v6992, 0.0
    %vm7249 = vcmp.gt.f32.partialorder %v6993, 0.0
    %vm7250 = vcmp.gt.f32.partialorder %v6994, 0.0
    %vm7251 = vcmp.gt.f32.partialorder %v6995, 0.0
    %vm7252 = vcmp.gt.f32.partialorder %v6996, 0.0
    %vm7253 = vcmp.gt.f32.partialorder %v6997, 0.0
    %vm7254 = vcmp.gt.f32.partialorder %v6998, 0.0
    %vm7255 = vcmp.gt.f32.partialorder %v6999, 0.0
    %vm7256 = vcmp.gt.f32.partialorder %v7000, 0.0
    %vm7257 = vcmp.gt.f32.partialorder %v7001, 0.0
    %vm7258 = vcmp.gt.f32.partialorder %v7002, 0.0
    %vm7259 = vcmp.gt.f32.partialorder %v7003, 0.0
    %vm7260 = vcmp.gt.f32.partialorder %v7004, 0.0
    %vm7261 = vcmp.gt.f32.partialorder %v7005, 0.0
    %vm7262 = vcmp.gt.f32.partialorder %v7006, 0.0
    %vm7263 = vcmp.gt.f32.partialorder %v7007, 0.0
    %vm7264 = vcmp.gt.f32.partialorder %v7008, 0.0
    %vm7265 = vcmp.gt.f32.partialorder %v7009, 0.0
    %vm7266 = vcmp.gt.f32.partialorder %v7010, 0.0
    %vm7267 = vcmp.gt.f32.partialorder %v7011, 0.0
    %vm7268 = vcmp.gt.f32.partialorder %v7012, 0.0
    %vm7269 = vcmp.gt.f32.partialorder %v7013, 0.0
    %vm7270 = vcmp.gt.f32.partialorder %v7014, 0.0
    %vm7271 = vcmp.gt.f32.partialorder %v7015, 0.0
    %vm7272 = vcmp.gt.f32.partialorder %v7016, 0.0
    %vm7273 = vcmp.gt.f32.partialorder %v7017, 0.0
    %vm7274 = vcmp.gt.f32.partialorder %v7018, 0.0
    %vm7275 = vcmp.gt.f32.partialorder %v7019, 0.0
    %vm7276 = vcmp.gt.f32.partialorder %v7020, 0.0
    %vm7277 = vcmp.gt.f32.partialorder %v7021, 0.0
    %vm7278 = vcmp.gt.f32.partialorder %v7022, 0.0
    %vm7279 = vcmp.gt.f32.partialorder %v7023, 0.0
    %vm7280 = vcmp.gt.f32.partialorder %v7024, 0.0
    %vm7281 = vcmp.gt.f32.partialorder %v7025, 0.0
    %vm7282 = vcmp.gt.f32.partialorder %v7026, 0.0
    %vm7283 = vcmp.gt.f32.partialorder %v7027, 0.0
    %vm7284 = vcmp.gt.f32.partialorder %v7028, 0.0
    %vm7285 = vcmp.gt.f32.partialorder %v7029, 0.0
    %vm7286 = vcmp.gt.f32.partialorder %v7030, 0.0
    %vm7287 = vcmp.gt.f32.partialorder %v7031, 0.0
    %vm7288 = vcmp.gt.f32.partialorder %v7032, 0.0
    %vm7289 = vcmp.gt.f32.partialorder %v7033, 0.0
    %vm7290 = vcmp.gt.f32.partialorder %v7034, 0.0
    %vm7291 = vcmp.gt.f32.partialorder %v7035, 0.0
    %vm7292 = vcmp.gt.f32.partialorder %v7036, 0.0
    %vm7293 = vcmp.gt.f32.partialorder %v7037, 0.0
    %vm7294 = vcmp.gt.f32.partialorder %v7038, 0.0
    %vm7295 = vcmp.gt.f32.partialorder %v7039, 0.0
    %vm7296 = vcmp.gt.f32.partialorder %v7040, 0.0
    %vm7297 = vcmp.gt.f32.partialorder %v7041, 0.0
    %vm7298 = vcmp.gt.f32.partialorder %v7042, 0.0
    %vm7299 = vcmp.gt.f32.partialorder %v7043, 0.0
    %vm7300 = vcmp.gt.f32.partialorder %v7044, 0.0
    %vm7301 = vcmp.gt.f32.partialorder %v7045, 0.0
    %vm7302 = vcmp.gt.f32.partialorder %v7046, 0.0
    %vm7303 = vcmp.gt.f32.partialorder %v7047, 0.0
    %vm7304 = vcmp.gt.f32.partialorder %v7048, 0.0
    %vm7305 = vcmp.gt.f32.partialorder %v7049, 0.0
    %vm7306 = vcmp.gt.f32.partialorder %v7050, 0.0
    %vm7307 = vcmp.gt.f32.partialorder %v7051, 0.0
    %vm7308 = vcmp.gt.f32.partialorder %v7052, 0.0
    %vm7309 = vcmp.gt.f32.partialorder %v7053, 0.0
    %vm7310 = vcmp.gt.f32.partialorder %v7054, 0.0
    %vm7311 = vcmp.gt.f32.partialorder %v7055, 0.0
    %vm7312 = vcmp.gt.f32.partialorder %v7056, 0.0
    %vm7313 = vcmp.gt.f32.partialorder %v7057, 0.0
    %vm7314 = vcmp.gt.f32.partialorder %v7058, 0.0
    %vm7315 = vcmp.gt.f32.partialorder %v7059, 0.0
    %vm7316 = vcmp.gt.f32.partialorder %v7060, 0.0
    %vm7317 = vcmp.gt.f32.partialorder %v7061, 0.0
    %vm7318 = vcmp.gt.f32.partialorder %v7062, 0.0
    %vm7319 = vcmp.gt.f32.partialorder %v7063, 0.0
    %vm7320 = vcmp.gt.f32.partialorder %v7064, 0.0
    %vm7321 = vcmp.gt.f32.partialorder %v7065, 0.0
    %vm7322 = vcmp.gt.f32.partialorder %v7066, 0.0
    %vm7323 = vcmp.gt.f32.partialorder %v7067, 0.0
    %vm7324 = vcmp.gt.f32.partialorder %v7068, 0.0
    %vm7325 = vcmp.gt.f32.partialorder %v7069, 0.0
    %vm7326 = vcmp.gt.f32.partialorder %v7070, 0.0
    %vm7327 = vcmp.gt.f32.partialorder %v7071, 0.0
    %vm7328 = vcmp.gt.f32.partialorder %v7072, 0.0
    %vm7329 = vcmp.gt.f32.partialorder %v7073, 0.0
    %vm7330 = vcmp.gt.f32.partialorder %v7074, 0.0
    %vm7331 = vcmp.gt.f32.partialorder %v7075, 0.0
    %vm7332 = vcmp.gt.f32.partialorder %v7076, 0.0
    %vm7333 = vcmp.gt.f32.partialorder %v7077, 0.0
    %vm7334 = vcmp.gt.f32.partialorder %v7078, 0.0
    %vm7335 = vcmp.gt.f32.partialorder %v7079, 0.0
    %vm7336 = vcmp.gt.f32.partialorder %v7080, 0.0
    %vm7337 = vcmp.gt.f32.partialorder %v7081, 0.0
    %vm7338 = vcmp.gt.f32.partialorder %v7082, 0.0
    %vm7339 = vcmp.gt.f32.partialorder %v7083, 0.0
    %vm7340 = vcmp.gt.f32.partialorder %v7084, 0.0
    %vm7341 = vcmp.gt.f32.partialorder %v7085, 0.0
    %vm7342 = vcmp.gt.f32.partialorder %v7086, 0.0
    %vm7343 = vcmp.gt.f32.partialorder %v7087, 0.0
    %vm7344 = vcmp.gt.f32.partialorder %v7088, 0.0
    %vm7345 = vcmp.gt.f32.partialorder %v7089, 0.0
    %vm7346 = vcmp.gt.f32.partialorder %v7090, 0.0
    %vm7347 = vcmp.gt.f32.partialorder %v7091, 0.0
    %vm7348 = vcmp.gt.f32.partialorder %v7092, 0.0
    %v7349 = vmul.f32 %v6837, 0.2
    %v7350 = vmul.f32 %v6838, 0.2
    %v7351 = vmul.f32 %v6839, 0.2
    %v7352 = vmul.f32 %v6840, 0.2
    %v7353 = vmul.f32 %v6841, 0.2
    %v7354 = vmul.f32 %v6842, 0.2
    %v7355 = vmul.f32 %v6843, 0.2
    %v7356 = vmul.f32 %v6844, 0.2
    %v7357 = vmul.f32 %v6845, 0.2
    %v7358 = vmul.f32 %v6846, 0.2
    %v7359 = vmul.f32 %v6847, 0.2
    %v7360 = vmul.f32 %v6848, 0.2
    %v7361 = vmul.f32 %v6849, 0.2
    %v7362 = vmul.f32 %v6850, 0.2
    %v7363 = vmul.f32 %v6851, 0.2
    %v7364 = vmul.f32 %v6852, 0.2
    %v7365 = vmul.f32 %v6853, 0.2
    %v7366 = vmul.f32 %v6854, 0.2
    %v7367 = vmul.f32 %v6855, 0.2
    %v7368 = vmul.f32 %v6856, 0.2
    %v7369 = vmul.f32 %v6857, 0.2
    %v7370 = vmul.f32 %v6858, 0.2
    %v7371 = vmul.f32 %v6859, 0.2
    %v7372 = vmul.f32 %v6860, 0.2
    %v7373 = vmul.f32 %v6861, 0.2
    %v7374 = vmul.f32 %v6862, 0.2
    %v7375 = vmul.f32 %v6863, 0.2
    %v7376 = vmul.f32 %v6864, 0.2
    %v7377 = vmul.f32 %v6865, 0.2
    %v7378 = vmul.f32 %v6866, 0.2
    %v7379 = vmul.f32 %v6867, 0.2
    %v7380 = vmul.f32 %v6868, 0.2
    %v7381 = vmul.f32 %v6869, 0.2
    %v7382 = vmul.f32 %v6870, 0.2
    %v7383 = vmul.f32 %v6871, 0.2
    %v7384 = vmul.f32 %v6872, 0.2
    %v7385 = vmul.f32 %v6873, 0.2
    %v7386 = vmul.f32 %v6874, 0.2
    %v7387 = vmul.f32 %v6875, 0.2
    %v7388 = vmul.f32 %v6876, 0.2
    %v7389 = vmul.f32 %v6877, 0.2
    %v7390 = vmul.f32 %v6878, 0.2
    %v7391 = vmul.f32 %v6879, 0.2
    %v7392 = vmul.f32 %v6880, 0.2
    %v7393 = vmul.f32 %v6881, 0.2
    %v7394 = vmul.f32 %v6882, 0.2
    %v7395 = vmul.f32 %v6883, 0.2
    %v7396 = vmul.f32 %v6884, 0.2
    %v7397 = vmul.f32 %v6885, 0.2
    %v7398 = vmul.f32 %v6886, 0.2
    %v7399 = vmul.f32 %v6887, 0.2
    %v7400 = vmul.f32 %v6888, 0.2
    %v7401 = vmul.f32 %v6889, 0.2
    %v7402 = vmul.f32 %v6890, 0.2
    %v7403 = vmul.f32 %v6891, 0.2
    %v7404 = vmul.f32 %v6892, 0.2
    %v7405 = vmul.f32 %v6893, 0.2
    %v7406 = vmul.f32 %v6894, 0.2
    %v7407 = vmul.f32 %v6895, 0.2
    %v7408 = vmul.f32 %v6896, 0.2
    %v7409 = vmul.f32 %v6897, 0.2
    %v7410 = vmul.f32 %v6898, 0.2
    %v7411 = vmul.f32 %v6899, 0.2
    %v7412 = vmul.f32 %v6900, 0.2
    %v7413 = vmul.f32 %v6901, 0.2
    %v7414 = vmul.f32 %v6902, 0.2
    %v7415 = vmul.f32 %v6903, 0.2
    %v7416 = vmul.f32 %v6904, 0.2
    %v7417 = vmul.f32 %v6905, 0.2
    %v7418 = vmul.f32 %v6906, 0.2
    %v7419 = vmul.f32 %v6907, 0.2
    %v7420 = vmul.f32 %v6908, 0.2
    %v7421 = vmul.f32 %v6909, 0.2
    %v7422 = vmul.f32 %v6910, 0.2
    %v7423 = vmul.f32 %v6911, 0.2
    %v7424 = vmul.f32 %v6912, 0.2
    %v7425 = vmul.f32 %v6913, 0.2
    %v7426 = vmul.f32 %v6914, 0.2
    %v7427 = vmul.f32 %v6915, 0.2
    %v7428 = vmul.f32 %v6916, 0.2
    %v7429 = vmul.f32 %v6917, 0.2
    %v7430 = vmul.f32 %v6918, 0.2
    %v7431 = vmul.f32 %v6919, 0.2
    %v7432 = vmul.f32 %v6920, 0.2
    %v7433 = vmul.f32 %v6921, 0.2
    %v7434 = vmul.f32 %v6922, 0.2
    %v7435 = vmul.f32 %v6923, 0.2
    %v7436 = vmul.f32 %v6924, 0.2
    %v7437 = vmul.f32 %v6925, 0.2
    %v7438 = vmul.f32 %v6926, 0.2
    %v7439 = vmul.f32 %v6927, 0.2
    %v7440 = vmul.f32 %v6928, 0.2
    %v7441 = vmul.f32 %v6929, 0.2
    %v7442 = vmul.f32 %v6930, 0.2
    %v7443 = vmul.f32 %v6931, 0.2
    %v7444 = vmul.f32 %v6932, 0.2
    %v7445 = vmul.f32 %v6933, 0.2
    %v7446 = vmul.f32 %v6934, 0.2
    %v7447 = vmul.f32 %v6935, 0.2
    %v7448 = vmul.f32 %v6936, 0.2
    %v7449 = vmul.f32 %v6937, 0.2
    %v7450 = vmul.f32 %v6938, 0.2
    %v7451 = vmul.f32 %v6939, 0.2
    %v7452 = vmul.f32 %v6940, 0.2
    %v7453 = vmul.f32 %v6941, 0.2
    %v7454 = vmul.f32 %v6942, 0.2
    %v7455 = vmul.f32 %v6943, 0.2
    %v7456 = vmul.f32 %v6944, 0.2
    %v7457 = vmul.f32 %v6945, 0.2
    %v7458 = vmul.f32 %v6946, 0.2
    %v7459 = vmul.f32 %v6947, 0.2
    %v7460 = vmul.f32 %v6948, 0.2
    %v7461 = vmul.f32 %v6949, 0.2
    %v7462 = vmul.f32 %v6950, 0.2
    %v7463 = vmul.f32 %v6951, 0.2
    %v7464 = vmul.f32 %v6952, 0.2
    %v7465 = vmul.f32 %v6953, 0.2
    %v7466 = vmul.f32 %v6954, 0.2
    %v7467 = vmul.f32 %v6955, 0.2
    %v7468 = vmul.f32 %v6956, 0.2
    %v7469 = vmul.f32 %v6957, 0.2
    %v7470 = vmul.f32 %v6958, 0.2
    %v7471 = vmul.f32 %v6959, 0.2
    %v7472 = vmul.f32 %v6960, 0.2
    %v7473 = vmul.f32 %v6961, 0.2
    %v7474 = vmul.f32 %v6962, 0.2
    %v7475 = vmul.f32 %v6963, 0.2
    %v7476 = vmul.f32 %v6964, 0.2
    %v7477 = vmul.f32 %v6965, 0.2
    %v7478 = vmul.f32 %v6966, 0.2
    %v7479 = vmul.f32 %v6967, 0.2
    %v7480 = vmul.f32 %v6968, 0.2
    %v7481 = vmul.f32 %v6969, 0.2
    %v7482 = vmul.f32 %v6970, 0.2
    %v7483 = vmul.f32 %v6971, 0.2
    %v7484 = vmul.f32 %v6972, 0.2
    %v7485 = vmul.f32 %v6973, 0.2
    %v7486 = vmul.f32 %v6974, 0.2
    %v7487 = vmul.f32 %v6975, 0.2
    %v7488 = vmul.f32 %v6976, 0.2
    %v7489 = vmul.f32 %v6977, 0.2
    %v7490 = vmul.f32 %v6978, 0.2
    %v7491 = vmul.f32 %v6979, 0.2
    %v7492 = vmul.f32 %v6980, 0.2
    %v7493 = vmul.f32 %v6981, 0.2
    %v7494 = vmul.f32 %v6982, 0.2
    %v7495 = vmul.f32 %v6983, 0.2
    %v7496 = vmul.f32 %v6984, 0.2
    %v7497 = vmul.f32 %v6985, 0.2
    %v7498 = vmul.f32 %v6986, 0.2
    %v7499 = vmul.f32 %v6987, 0.2
    %v7500 = vmul.f32 %v6988, 0.2
    %v7501 = vmul.f32 %v6989, 0.2
    %v7502 = vmul.f32 %v6990, 0.2
    %v7503 = vmul.f32 %v6991, 0.2
    %v7504 = vmul.f32 %v6992, 0.2
    %v7505 = vmul.f32 %v6993, 0.2
    %v7506 = vmul.f32 %v6994, 0.2
    %v7507 = vmul.f32 %v6995, 0.2
    %v7508 = vmul.f32 %v6996, 0.2
    %v7509 = vmul.f32 %v6997, 0.2
    %v7510 = vmul.f32 %v6998, 0.2
    %v7511 = vmul.f32 %v6999, 0.2
    %v7512 = vmul.f32 %v7000, 0.2
    %v7513 = vmul.f32 %v7001, 0.2
    %v7514 = vmul.f32 %v7002, 0.2
    %v7515 = vmul.f32 %v7003, 0.2
    %v7516 = vmul.f32 %v7004, 0.2
    %v7517 = vmul.f32 %v7005, 0.2
    %v7518 = vmul.f32 %v7006, 0.2
    %v7519 = vmul.f32 %v7007, 0.2
    %v7520 = vmul.f32 %v7008, 0.2
    %v7521 = vmul.f32 %v7009, 0.2
    %v7522 = vmul.f32 %v7010, 0.2
    %v7523 = vmul.f32 %v7011, 0.2
    %v7524 = vmul.f32 %v7012, 0.2
    %v7525 = vmul.f32 %v7013, 0.2
    %v7526 = vmul.f32 %v7014, 0.2
    %v7527 = vmul.f32 %v7015, 0.2
    %v7528 = vmul.f32 %v7016, 0.2
    %v7529 = vmul.f32 %v7017, 0.2
    %v7530 = vmul.f32 %v7018, 0.2
    %v7531 = vmul.f32 %v7019, 0.2
    %v7532 = vmul.f32 %v7020, 0.2
    %v7533 = vmul.f32 %v7021, 0.2
    %v7534 = vmul.f32 %v7022, 0.2
    %v7535 = vmul.f32 %v7023, 0.2
    %v7536 = vmul.f32 %v7024, 0.2
    %v7537 = vmul.f32 %v7025, 0.2
    %v7538 = vmul.f32 %v7026, 0.2
    %v7539 = vmul.f32 %v7027, 0.2
    %v7540 = vmul.f32 %v7028, 0.2
    %v7541 = vmul.f32 %v7029, 0.2
    %v7542 = vmul.f32 %v7030, 0.2
    %v7543 = vmul.f32 %v7031, 0.2
    %v7544 = vmul.f32 %v7032, 0.2
    %v7545 = vmul.f32 %v7033, 0.2
    %v7546 = vmul.f32 %v7034, 0.2
    %v7547 = vmul.f32 %v7035, 0.2
    %v7548 = vmul.f32 %v7036, 0.2
    %v7549 = vmul.f32 %v7037, 0.2
    %v7550 = vmul.f32 %v7038, 0.2
    %v7551 = vmul.f32 %v7039, 0.2
    %v7552 = vmul.f32 %v7040, 0.2
    %v7553 = vmul.f32 %v7041, 0.2
    %v7554 = vmul.f32 %v7042, 0.2
    %v7555 = vmul.f32 %v7043, 0.2
    %v7556 = vmul.f32 %v7044, 0.2
    %v7557 = vmul.f32 %v7045, 0.2
    %v7558 = vmul.f32 %v7046, 0.2
    %v7559 = vmul.f32 %v7047, 0.2
    %v7560 = vmul.f32 %v7048, 0.2
    %v7561 = vmul.f32 %v7049, 0.2
    %v7562 = vmul.f32 %v7050, 0.2
    %v7563 = vmul.f32 %v7051, 0.2
    %v7564 = vmul.f32 %v7052, 0.2
    %v7565 = vmul.f32 %v7053, 0.2
    %v7566 = vmul.f32 %v7054, 0.2
    %v7567 = vmul.f32 %v7055, 0.2
    %v7568 = vmul.f32 %v7056, 0.2
    %v7569 = vmul.f32 %v7057, 0.2
    %v7570 = vmul.f32 %v7058, 0.2
    %v7571 = vmul.f32 %v7059, 0.2
    %v7572 = vmul.f32 %v7060, 0.2
    %v7573 = vmul.f32 %v7061, 0.2
    %v7574 = vmul.f32 %v7062, 0.2
    %v7575 = vmul.f32 %v7063, 0.2
    %v7576 = vmul.f32 %v7064, 0.2
    %v7577 = vmul.f32 %v7065, 0.2
    %v7578 = vmul.f32 %v7066, 0.2
    %v7579 = vmul.f32 %v7067, 0.2
    %v7580 = vmul.f32 %v7068, 0.2
    %v7581 = vmul.f32 %v7069, 0.2
    %v7582 = vmul.f32 %v7070, 0.2
    %v7583 = vmul.f32 %v7071, 0.2
    %v7584 = vmul.f32 %v7072, 0.2
    %v7585 = vmul.f32 %v7073, 0.2
    %v7586 = vmul.f32 %v7074, 0.2
    %v7587 = vmul.f32 %v7075, 0.2
    %v7588 = vmul.f32 %v7076, 0.2
    %v7589 = vmul.f32 %v7077, 0.2
    %v7590 = vmul.f32 %v7078, 0.2
    %v7591 = vmul.f32 %v7079, 0.2
    %v7592 = vmul.f32 %v7080, 0.2
    %v7593 = vmul.f32 %v7081, 0.2
    %v7594 = vmul.f32 %v7082, 0.2
    %v7595 = vmul.f32 %v7083, 0.2
    %v7596 = vmul.f32 %v7084, 0.2
    %v7597 = vmul.f32 %v7085, 0.2
    %v7598 = vmul.f32 %v7086, 0.2
    %v7599 = vmul.f32 %v7087, 0.2
    %v7600 = vmul.f32 %v7088, 0.2
    %v7601 = vmul.f32 %v7089, 0.2
    %v7602 = vmul.f32 %v7090, 0.2
    %v7603 = vmul.f32 %v7091, 0.2
    %v7604 = vmul.f32 %v7092, 0.2
    %v7605 = vsel %vm7093, %v6837, %v7349
    %v7606 = vsel %vm7094, %v6838, %v7350
    %v7607 = vsel %vm7095, %v6839, %v7351
    %v7608 = vsel %vm7096, %v6840, %v7352
    %v7609 = vsel %vm7097, %v6841, %v7353
    %v7610 = vsel %vm7098, %v6842, %v7354
    %v7611 = vsel %vm7099, %v6843, %v7355
    %v7612 = vsel %vm7100, %v6844, %v7356
    %v7613 = vsel %vm7101, %v6845, %v7357
    %v7614 = vsel %vm7102, %v6846, %v7358
    %v7615 = vsel %vm7103, %v6847, %v7359
    %v7616 = vsel %vm7104, %v6848, %v7360
    %v7617 = vsel %vm7105, %v6849, %v7361
    %v7618 = vsel %vm7106, %v6850, %v7362
    %v7619 = vsel %vm7107, %v6851, %v7363
    %v7620 = vsel %vm7108, %v6852, %v7364
    %v7621 = vsel %vm7109, %v6853, %v7365
    %v7622 = vsel %vm7110, %v6854, %v7366
    %v7623 = vsel %vm7111, %v6855, %v7367
    %v7624 = vsel %vm7112, %v6856, %v7368
    %v7625 = vsel %vm7113, %v6857, %v7369
    %v7626 = vsel %vm7114, %v6858, %v7370
    %v7627 = vsel %vm7115, %v6859, %v7371
    %v7628 = vsel %vm7116, %v6860, %v7372
    %v7629 = vsel %vm7117, %v6861, %v7373
    %v7630 = vsel %vm7118, %v6862, %v7374
    %v7631 = vsel %vm7119, %v6863, %v7375
    %v7632 = vsel %vm7120, %v6864, %v7376
    %v7633 = vsel %vm7121, %v6865, %v7377
    %v7634 = vsel %vm7122, %v6866, %v7378
    %v7635 = vsel %vm7123, %v6867, %v7379
    %v7636 = vsel %vm7124, %v6868, %v7380
    %v7637 = vsel %vm7125, %v6869, %v7381
    %v7638 = vsel %vm7126, %v6870, %v7382
    %v7639 = vsel %vm7127, %v6871, %v7383
    %v7640 = vsel %vm7128, %v6872, %v7384
    %v7641 = vsel %vm7129, %v6873, %v7385
    %v7642 = vsel %vm7130, %v6874, %v7386
    %v7643 = vsel %vm7131, %v6875, %v7387
    %v7644 = vsel %vm7132, %v6876, %v7388
    %v7645 = vsel %vm7133, %v6877, %v7389
    %v7646 = vsel %vm7134, %v6878, %v7390
    %v7647 = vsel %vm7135, %v6879, %v7391
    %v7648 = vsel %vm7136, %v6880, %v7392
    %v7649 = vsel %vm7137, %v6881, %v7393
    %v7650 = vsel %vm7138, %v6882, %v7394
    %v7651 = vsel %vm7139, %v6883, %v7395
    %v7652 = vsel %vm7140, %v6884, %v7396
    %v7653 = vsel %vm7141, %v6885, %v7397
    %v7654 = vsel %vm7142, %v6886, %v7398
    %v7655 = vsel %vm7143, %v6887, %v7399
    %v7656 = vsel %vm7144, %v6888, %v7400
    %v7657 = vsel %vm7145, %v6889, %v7401
    %v7658 = vsel %vm7146, %v6890, %v7402
    %v7659 = vsel %vm7147, %v6891, %v7403
    %v7660 = vsel %vm7148, %v6892, %v7404
    %v7661 = vsel %vm7149, %v6893, %v7405
    %v7662 = vsel %vm7150, %v6894, %v7406
    %v7663 = vsel %vm7151, %v6895, %v7407
    %v7664 = vsel %vm7152, %v6896, %v7408
    %v7665 = vsel %vm7153, %v6897, %v7409
    %v7666 = vsel %vm7154, %v6898, %v7410
    %v7667 = vsel %vm7155, %v6899, %v7411
    %v7668 = vsel %vm7156, %v6900, %v7412
    %v7669 = vsel %vm7157, %v6901, %v7413
    %v7670 = vsel %vm7158, %v6902, %v7414
    %v7671 = vsel %vm7159, %v6903, %v7415
    %v7672 = vsel %vm7160, %v6904, %v7416
    %v7673 = vsel %vm7161, %v6905, %v7417
    %v7674 = vsel %vm7162, %v6906, %v7418
    %v7675 = vsel %vm7163, %v6907, %v7419
    %v7676 = vsel %vm7164, %v6908, %v7420
    %v7677 = vsel %vm7165, %v6909, %v7421
    %v7678 = vsel %vm7166, %v6910, %v7422
    %v7679 = vsel %vm7167, %v6911, %v7423
    %v7680 = vsel %vm7168, %v6912, %v7424
    %v7681 = vsel %vm7169, %v6913, %v7425
    %v7682 = vsel %vm7170, %v6914, %v7426
    %v7683 = vsel %vm7171, %v6915, %v7427
    %v7684 = vsel %vm7172, %v6916, %v7428
    %v7685 = vsel %vm7173, %v6917, %v7429
    %v7686 = vsel %vm7174, %v6918, %v7430
    %v7687 = vsel %vm7175, %v6919, %v7431
    %v7688 = vsel %vm7176, %v6920, %v7432
    %v7689 = vsel %vm7177, %v6921, %v7433
    %v7690 = vsel %vm7178, %v6922, %v7434
    %v7691 = vsel %vm7179, %v6923, %v7435
    %v7692 = vsel %vm7180, %v6924, %v7436
    %v7693 = vsel %vm7181, %v6925, %v7437
    %v7694 = vsel %vm7182, %v6926, %v7438
    %v7695 = vsel %vm7183, %v6927, %v7439
    %v7696 = vsel %vm7184, %v6928, %v7440
    %v7697 = vsel %vm7185, %v6929, %v7441
    %v7698 = vsel %vm7186, %v6930, %v7442
    %v7699 = vsel %vm7187, %v6931, %v7443
    %v7700 = vsel %vm7188, %v6932, %v7444
    %v7701 = vsel %vm7189, %v6933, %v7445
    %v7702 = vsel %vm7190, %v6934, %v7446
    %v7703 = vsel %vm7191, %v6935, %v7447
    %v7704 = vsel %vm7192, %v6936, %v7448
    %v7705 = vsel %vm7193, %v6937, %v7449
    %v7706 = vsel %vm7194, %v6938, %v7450
    %v7707 = vsel %vm7195, %v6939, %v7451
    %v7708 = vsel %vm7196, %v6940, %v7452
    %v7709 = vsel %vm7197, %v6941, %v7453
    %v7710 = vsel %vm7198, %v6942, %v7454
    %v7711 = vsel %vm7199, %v6943, %v7455
    %v7712 = vsel %vm7200, %v6944, %v7456
    %v7713 = vsel %vm7201, %v6945, %v7457
    %v7714 = vsel %vm7202, %v6946, %v7458
    %v7715 = vsel %vm7203, %v6947, %v7459
    %v7716 = vsel %vm7204, %v6948, %v7460
    %v7717 = vsel %vm7205, %v6949, %v7461
    %v7718 = vsel %vm7206, %v6950, %v7462
    %v7719 = vsel %vm7207, %v6951, %v7463
    %v7720 = vsel %vm7208, %v6952, %v7464
    %v7721 = vsel %vm7209, %v6953, %v7465
    %v7722 = vsel %vm7210, %v6954, %v7466
    %v7723 = vsel %vm7211, %v6955, %v7467
    %v7724 = vsel %vm7212, %v6956, %v7468
    %v7725 = vsel %vm7213, %v6957, %v7469
    %v7726 = vsel %vm7214, %v6958, %v7470
    %v7727 = vsel %vm7215, %v6959, %v7471
    %v7728 = vsel %vm7216, %v6960, %v7472
    %v7729 = vsel %vm7217, %v6961, %v7473
    %v7730 = vsel %vm7218, %v6962, %v7474
    %v7731 = vsel %vm7219, %v6963, %v7475
    %v7732 = vsel %vm7220, %v6964, %v7476
    %v7733 = vsel %vm7221, %v6965, %v7477
    %v7734 = vsel %vm7222, %v6966, %v7478
    %v7735 = vsel %vm7223, %v6967, %v7479
    %v7736 = vsel %vm7224, %v6968, %v7480
    %v7737 = vsel %vm7225, %v6969, %v7481
    %v7738 = vsel %vm7226, %v6970, %v7482
    %v7739 = vsel %vm7227, %v6971, %v7483
    %v7740 = vsel %vm7228, %v6972, %v7484
    %v7741 = vsel %vm7229, %v6973, %v7485
    %v7742 = vsel %vm7230, %v6974, %v7486
    %v7743 = vsel %vm7231, %v6975, %v7487
    %v7744 = vsel %vm7232, %v6976, %v7488
    %v7745 = vsel %vm7233, %v6977, %v7489
    %v7746 = vsel %vm7234, %v6978, %v7490
    %v7747 = vsel %vm7235, %v6979, %v7491
    %v7748 = vsel %vm7236, %v6980, %v7492
    %v7749 = vsel %vm7237, %v6981, %v7493
    %v7750 = vsel %vm7238, %v6982, %v7494
    %v7751 = vsel %vm7239, %v6983, %v7495
    %v7752 = vsel %vm7240, %v6984, %v7496
    %v7753 = vsel %vm7241, %v6985, %v7497
    %v7754 = vsel %vm7242, %v6986, %v7498
    %v7755 = vsel %vm7243, %v6987, %v7499
    %v7756 = vsel %vm7244, %v6988, %v7500
    %v7757 = vsel %vm7245, %v6989, %v7501
    %v7758 = vsel %vm7246, %v6990, %v7502
    %v7759 = vsel %vm7247, %v6991, %v7503
    %v7760 = vsel %vm7248, %v6992, %v7504
    %v7761 = vsel %vm7249, %v6993, %v7505
    %v7762 = vsel %vm7250, %v6994, %v7506
    %v7763 = vsel %vm7251, %v6995, %v7507
    %v7764 = vsel %vm7252, %v6996, %v7508
    %v7765 = vsel %vm7253, %v6997, %v7509
    %v7766 = vsel %vm7254, %v6998, %v7510
    %v7767 = vsel %vm7255, %v6999, %v7511
    %v7768 = vsel %vm7256, %v7000, %v7512
    %v7769 = vsel %vm7257, %v7001, %v7513
    %v7770 = vsel %vm7258, %v7002, %v7514
    %v7771 = vsel %vm7259, %v7003, %v7515
    %v7772 = vsel %vm7260, %v7004, %v7516
    %v7773 = vsel %vm7261, %v7005, %v7517
    %v7774 = vsel %vm7262, %v7006, %v7518
    %v7775 = vsel %vm7263, %v7007, %v7519
    %v7776 = vsel %vm7264, %v7008, %v7520
    %v7777 = vsel %vm7265, %v7009, %v7521
    %v7778 = vsel %vm7266, %v7010, %v7522
    %v7779 = vsel %vm7267, %v7011, %v7523
    %v7780 = vsel %vm7268, %v7012, %v7524
    %v7781 = vsel %vm7269, %v7013, %v7525
    %v7782 = vsel %vm7270, %v7014, %v7526
    %v7783 = vsel %vm7271, %v7015, %v7527
    %v7784 = vsel %vm7272, %v7016, %v7528
    %v7785 = vsel %vm7273, %v7017, %v7529
    %v7786 = vsel %vm7274, %v7018, %v7530
    %v7787 = vsel %vm7275, %v7019, %v7531
    %v7788 = vsel %vm7276, %v7020, %v7532
    %v7789 = vsel %vm7277, %v7021, %v7533
    %v7790 = vsel %vm7278, %v7022, %v7534
    %v7791 = vsel %vm7279, %v7023, %v7535
    %v7792 = vsel %vm7280, %v7024, %v7536
    %v7793 = vsel %vm7281, %v7025, %v7537
    %v7794 = vsel %vm7282, %v7026, %v7538
    %v7795 = vsel %vm7283, %v7027, %v7539
    %v7796 = vsel %vm7284, %v7028, %v7540
    %v7797 = vsel %vm7285, %v7029, %v7541
    %v7798 = vsel %vm7286, %v7030, %v7542
    %v7799 = vsel %vm7287, %v7031, %v7543
    %v7800 = vsel %vm7288, %v7032, %v7544
    %v7801 = vsel %vm7289, %v7033, %v7545
    %v7802 = vsel %vm7290, %v7034, %v7546
    %v7803 = vsel %vm7291, %v7035, %v7547
    %v7804 = vsel %vm7292, %v7036, %v7548
    %v7805 = vsel %vm7293, %v7037, %v7549
    %v7806 = vsel %vm7294, %v7038, %v7550
    %v7807 = vsel %vm7295, %v7039, %v7551
    %v7808 = vsel %vm7296, %v7040, %v7552
    %v7809 = vsel %vm7297, %v7041, %v7553
    %v7810 = vsel %vm7298, %v7042, %v7554
    %v7811 = vsel %vm7299, %v7043, %v7555
    %v7812 = vsel %vm7300, %v7044, %v7556
    %v7813 = vsel %vm7301, %v7045, %v7557
    %v7814 = vsel %vm7302, %v7046, %v7558
    %v7815 = vsel %vm7303, %v7047, %v7559
    %v7816 = vsel %vm7304, %v7048, %v7560
    %v7817 = vsel %vm7305, %v7049, %v7561
    %v7818 = vsel %vm7306, %v7050, %v7562
    %v7819 = vsel %vm7307, %v7051, %v7563
    %v7820 = vsel %vm7308, %v7052, %v7564
    %v7821 = vsel %vm7309, %v7053, %v7565
    %v7822 = vsel %vm7310, %v7054, %v7566
    %v7823 = vsel %vm7311, %v7055, %v7567
    %v7824 = vsel %vm7312, %v7056, %v7568
    %v7825 = vsel %vm7313, %v7057, %v7569
    %v7826 = vsel %vm7314, %v7058, %v7570
    %v7827 = vsel %vm7315, %v7059, %v7571
    %v7828 = vsel %vm7316, %v7060, %v7572
    %v7829 = vsel %vm7317, %v7061, %v7573
    %v7830 = vsel %vm7318, %v7062, %v7574
    %v7831 = vsel %vm7319, %v7063, %v7575
    %v7832 = vsel %vm7320, %v7064, %v7576
    %v7833 = vsel %vm7321, %v7065, %v7577
    %v7834 = vsel %vm7322, %v7066, %v7578
    %v7835 = vsel %vm7323, %v7067, %v7579
    %v7836 = vsel %vm7324, %v7068, %v7580
    %v7837 = vsel %vm7325, %v7069, %v7581
    %v7838 = vsel %vm7326, %v7070, %v7582
    %v7839 = vsel %vm7327, %v7071, %v7583
    %v7840 = vsel %vm7328, %v7072, %v7584
    %v7841 = vsel %vm7329, %v7073, %v7585
    %v7842 = vsel %vm7330, %v7074, %v7586
    %v7843 = vsel %vm7331, %v7075, %v7587
    %v7844 = vsel %vm7332, %v7076, %v7588
    %v7845 = vsel %vm7333, %v7077, %v7589
    %v7846 = vsel %vm7334, %v7078, %v7590
    %v7847 = vsel %vm7335, %v7079, %v7591
    %v7848 = vsel %vm7336, %v7080, %v7592
    %v7849 = vsel %vm7337, %v7081, %v7593
    %v7850 = vsel %vm7338, %v7082, %v7594
    %v7851 = vsel %vm7339, %v7083, %v7595
    %v7852 = vsel %vm7340, %v7084, %v7596
    %v7853 = vsel %vm7341, %v7085, %v7597
    %v7854 = vsel %vm7342, %v7086, %v7598
    %v7855 = vsel %vm7343, %v7087, %v7599
    %v7856 = vsel %vm7344, %v7088, %v7600
    %v7857 = vsel %vm7345, %v7089, %v7601
    %v7858 = vsel %vm7346, %v7090, %v7602
    %v7859 = vsel %vm7347, %v7091, %v7603
    %v7860 = vsel %vm7348, %v7092, %v7604
    %s7861 = smul.u32 2, 128
    %s7862 = smul.u32 %s7861, 2
    %s7863 = sshll.u32 %s7862, 4
    %7864 = dma.done %s58, %s7863
    %v7865 = vld [vmem:[#allocation3] sm:$0xff]
    %v7866 = vld [vmem:[#allocation3 + $0x8] sm:$0xff]
    %v7867 = vld [vmem:[#allocation3 + $0x10] sm:$0xff]
    %v7868 = vld [vmem:[#allocation3 + $0x18] sm:$0xff]
    %v7869 = vld [vmem:[#allocation3 + $0x20] sm:$0xff]
    %v7870 = vld [vmem:[#allocation3 + $0x28] sm:$0xff]
    %v7871 = vld [vmem:[#allocation3 + $0x30] sm:$0xff]
    %v7872 = vld [vmem:[#allocation3 + $0x38] sm:$0xff]
    %v7873 = vld [vmem:[#allocation3 + $0x40] sm:$0xff]
    %v7874 = vld [vmem:[#allocation3 + $0x48] sm:$0xff]
    %v7875 = vld [vmem:[#allocation3 + $0x50] sm:$0xff]
    %v7876 = vld [vmem:[#allocation3 + $0x58] sm:$0xff]
    %v7877 = vld [vmem:[#allocation3 + $0x60] sm:$0xff]
    %v7878 = vld [vmem:[#allocation3 + $0x68] sm:$0xff]
    %v7879 = vld [vmem:[#allocation3 + $0x70] sm:$0xff]
    %v7880 = vld [vmem:[#allocation3 + $0x78] sm:$0xff]
    %v7881 = vld [vmem:[#allocation3 + $0x80] sm:$0xff]
    %v7882 = vld [vmem:[#allocation3 + $0x88] sm:$0xff]
    %v7883 = vld [vmem:[#allocation3 + $0x90] sm:$0xff]
    %v7884 = vld [vmem:[#allocation3 + $0x98] sm:$0xff]
    %v7885 = vld [vmem:[#allocation3 + $0xa0] sm:$0xff]
    %v7886 = vld [vmem:[#allocation3 + $0xa8] sm:$0xff]
    %v7887 = vld [vmem:[#allocation3 + $0xb0] sm:$0xff]
    %v7888 = vld [vmem:[#allocation3 + $0xb8] sm:$0xff]
    %v7889 = vld [vmem:[#allocation3 + $0xc0] sm:$0xff]
    %v7890 = vld [vmem:[#allocation3 + $0xc8] sm:$0xff]
    %v7891 = vld [vmem:[#allocation3 + $0xd0] sm:$0xff]
    %v7892 = vld [vmem:[#allocation3 + $0xd8] sm:$0xff]
    %v7893 = vld [vmem:[#allocation3 + $0xe0] sm:$0xff]
    %v7894 = vld [vmem:[#allocation3 + $0xe8] sm:$0xff]
    %v7895 = vld [vmem:[#allocation3 + $0xf0] sm:$0xff]
    %v7896 = vld [vmem:[#allocation3 + $0xf8] sm:$0xff]
    %v7897 = vld [vmem:[#allocation3 + $0x100] sm:$0xff]
    %v7898 = vld [vmem:[#allocation3 + $0x108] sm:$0xff]
    %v7899 = vld [vmem:[#allocation3 + $0x110] sm:$0xff]
    %v7900 = vld [vmem:[#allocation3 + $0x118] sm:$0xff]
    %v7901 = vld [vmem:[#allocation3 + $0x120] sm:$0xff]
    %v7902 = vld [vmem:[#allocation3 + $0x128] sm:$0xff]
    %v7903 = vld [vmem:[#allocation3 + $0x130] sm:$0xff]
    %v7904 = vld [vmem:[#allocation3 + $0x138] sm:$0xff]
    %v7905 = vld [vmem:[#allocation3 + $0x140] sm:$0xff]
    %v7906 = vld [vmem:[#allocation3 + $0x148] sm:$0xff]
    %v7907 = vld [vmem:[#allocation3 + $0x150] sm:$0xff]
    %v7908 = vld [vmem:[#allocation3 + $0x158] sm:$0xff]
    %v7909 = vld [vmem:[#allocation3 + $0x160] sm:$0xff]
    %v7910 = vld [vmem:[#allocation3 + $0x168] sm:$0xff]
    %v7911 = vld [vmem:[#allocation3 + $0x170] sm:$0xff]
    %v7912 = vld [vmem:[#allocation3 + $0x178] sm:$0xff]
    %v7913 = vld [vmem:[#allocation3 + $0x180] sm:$0xff]
    %v7914 = vld [vmem:[#allocation3 + $0x188] sm:$0xff]
    %v7915 = vld [vmem:[#allocation3 + $0x190] sm:$0xff]
    %v7916 = vld [vmem:[#allocation3 + $0x198] sm:$0xff]
    %v7917 = vld [vmem:[#allocation3 + $0x1a0] sm:$0xff]
    %v7918 = vld [vmem:[#allocation3 + $0x1a8] sm:$0xff]
    %v7919 = vld [vmem:[#allocation3 + $0x1b0] sm:$0xff]
    %v7920 = vld [vmem:[#allocation3 + $0x1b8] sm:$0xff]
    %v7921 = vld [vmem:[#allocation3 + $0x1c0] sm:$0xff]
    %v7922 = vld [vmem:[#allocation3 + $0x1c8] sm:$0xff]
    %v7923 = vld [vmem:[#allocation3 + $0x1d0] sm:$0xff]
    %v7924 = vld [vmem:[#allocation3 + $0x1d8] sm:$0xff]
    %v7925 = vld [vmem:[#allocation3 + $0x1e0] sm:$0xff]
    %v7926 = vld [vmem:[#allocation3 + $0x1e8] sm:$0xff]
    %v7927 = vld [vmem:[#allocation3 + $0x1f0] sm:$0xff]
    %v7928 = vld [vmem:[#allocation3 + $0x1f8] sm:$0xff]
    %v7929 = vunpack.c.l.s8.bf16 %v7865
    %v7930 = vunpack.c.l.s8.bf16 %v7866
    %v7931 = vunpack.c.h.s8.bf16 %v7865
    %v7932 = vunpack.c.h.s8.bf16 %v7866
    %v7933 = vunpack.c.l.s8.bf16 %v7867
    %v7934 = vunpack.c.l.s8.bf16 %v7868
    %v7935 = vunpack.c.h.s8.bf16 %v7867
    %v7936 = vunpack.c.h.s8.bf16 %v7868
    %v7937 = vunpack.c.l.s8.bf16 %v7869
    %v7938 = vunpack.c.l.s8.bf16 %v7870
    %v7939 = vunpack.c.h.s8.bf16 %v7869
    %v7940 = vunpack.c.h.s8.bf16 %v7870
    %v7941 = vunpack.c.l.s8.bf16 %v7871
    %v7942 = vunpack.c.l.s8.bf16 %v7872
    %v7943 = vunpack.c.h.s8.bf16 %v7871
    %v7944 = vunpack.c.h.s8.bf16 %v7872
    %v7945 = vunpack.c.l.s8.bf16 %v7873
    %v7946 = vunpack.c.l.s8.bf16 %v7874
    %v7947 = vunpack.c.h.s8.bf16 %v7873
    %v7948 = vunpack.c.h.s8.bf16 %v7874
    %v7949 = vunpack.c.l.s8.bf16 %v7875
    %v7950 = vunpack.c.l.s8.bf16 %v7876
    %v7951 = vunpack.c.h.s8.bf16 %v7875
    %v7952 = vunpack.c.h.s8.bf16 %v7876
    %v7953 = vunpack.c.l.s8.bf16 %v7877
    %v7954 = vunpack.c.l.s8.bf16 %v7878
    %v7955 = vunpack.c.h.s8.bf16 %v7877
    %v7956 = vunpack.c.h.s8.bf16 %v7878
    %v7957 = vunpack.c.l.s8.bf16 %v7879
    %v7958 = vunpack.c.l.s8.bf16 %v7880
    %v7959 = vunpack.c.h.s8.bf16 %v7879
    %v7960 = vunpack.c.h.s8.bf16 %v7880
    %v7961 = vunpack.c.l.s8.bf16 %v7881
    %v7962 = vunpack.c.l.s8.bf16 %v7882
    %v7963 = vunpack.c.h.s8.bf16 %v7881
    %v7964 = vunpack.c.h.s8.bf16 %v7882
    %v7965 = vunpack.c.l.s8.bf16 %v7883
    %v7966 = vunpack.c.l.s8.bf16 %v7884
    %v7967 = vunpack.c.h.s8.bf16 %v7883
    %v7968 = vunpack.c.h.s8.bf16 %v7884
    %v7969 = vunpack.c.l.s8.bf16 %v7885
    %v7970 = vunpack.c.l.s8.bf16 %v7886
    %v7971 = vunpack.c.h.s8.bf16 %v7885
    %v7972 = vunpack.c.h.s8.bf16 %v7886
    %v7973 = vunpack.c.l.s8.bf16 %v7887
    %v7974 = vunpack.c.l.s8.bf16 %v7888
    %v7975 = vunpack.c.h.s8.bf16 %v7887
    %v7976 = vunpack.c.h.s8.bf16 %v7888
    %v7977 = vunpack.c.l.s8.bf16 %v7889
    %v7978 = vunpack.c.l.s8.bf16 %v7890
    %v7979 = vunpack.c.h.s8.bf16 %v7889
    %v7980 = vunpack.c.h.s8.bf16 %v7890
    %v7981 = vunpack.c.l.s8.bf16 %v7891
    %v7982 = vunpack.c.l.s8.bf16 %v7892
    %v7983 = vunpack.c.h.s8.bf16 %v7891
    %v7984 = vunpack.c.h.s8.bf16 %v7892
    %v7985 = vunpack.c.l.s8.bf16 %v7893
    %v7986 = vunpack.c.l.s8.bf16 %v7894
    %v7987 = vunpack.c.h.s8.bf16 %v7893
    %v7988 = vunpack.c.h.s8.bf16 %v7894
    %v7989 = vunpack.c.l.s8.bf16 %v7895
    %v7990 = vunpack.c.l.s8.bf16 %v7896
    %v7991 = vunpack.c.h.s8.bf16 %v7895
    %v7992 = vunpack.c.h.s8.bf16 %v7896
    %v7993 = vunpack.c.l.s8.bf16 %v7897
    %v7994 = vunpack.c.l.s8.bf16 %v7898
    %v7995 = vunpack.c.h.s8.bf16 %v7897
    %v7996 = vunpack.c.h.s8.bf16 %v7898
    %v7997 = vunpack.c.l.s8.bf16 %v7899
    %v7998 = vunpack.c.l.s8.bf16 %v7900
    %v7999 = vunpack.c.h.s8.bf16 %v7899
    %v8000 = vunpack.c.h.s8.bf16 %v7900
    %v8001 = vunpack.c.l.s8.bf16 %v7901
    %v8002 = vunpack.c.l.s8.bf16 %v7902
    %v8003 = vunpack.c.h.s8.bf16 %v7901
    %v8004 = vunpack.c.h.s8.bf16 %v7902
    %v8005 = vunpack.c.l.s8.bf16 %v7903
    %v8006 = vunpack.c.l.s8.bf16 %v7904
    %v8007 = vunpack.c.h.s8.bf16 %v7903
    %v8008 = vunpack.c.h.s8.bf16 %v7904
    %v8009 = vunpack.c.l.s8.bf16 %v7905
    %v8010 = vunpack.c.l.s8.bf16 %v7906
    %v8011 = vunpack.c.h.s8.bf16 %v7905
    %v8012 = vunpack.c.h.s8.bf16 %v7906
    %v8013 = vunpack.c.l.s8.bf16 %v7907
    %v8014 = vunpack.c.l.s8.bf16 %v7908
    %v8015 = vunpack.c.h.s8.bf16 %v7907
    %v8016 = vunpack.c.h.s8.bf16 %v7908
    %v8017 = vunpack.c.l.s8.bf16 %v7909
    %v8018 = vunpack.c.l.s8.bf16 %v7910
    %v8019 = vunpack.c.h.s8.bf16 %v7909
    %v8020 = vunpack.c.h.s8.bf16 %v7910
    %v8021 = vunpack.c.l.s8.bf16 %v7911
    %v8022 = vunpack.c.l.s8.bf16 %v7912
    %v8023 = vunpack.c.h.s8.bf16 %v7911
    %v8024 = vunpack.c.h.s8.bf16 %v7912
    %v8025 = vunpack.c.l.s8.bf16 %v7913
    %v8026 = vunpack.c.l.s8.bf16 %v7914
    %v8027 = vunpack.c.h.s8.bf16 %v7913
    %v8028 = vunpack.c.h.s8.bf16 %v7914
    %v8029 = vunpack.c.l.s8.bf16 %v7915
    %v8030 = vunpack.c.l.s8.bf16 %v7916
    %v8031 = vunpack.c.h.s8.bf16 %v7915
    %v8032 = vunpack.c.h.s8.bf16 %v7916
    %v8033 = vunpack.c.l.s8.bf16 %v7917
    %v8034 = vunpack.c.l.s8.bf16 %v7918
    %v8035 = vunpack.c.h.s8.bf16 %v7917
    %v8036 = vunpack.c.h.s8.bf16 %v7918
    %v8037 = vunpack.c.l.s8.bf16 %v7919
    %v8038 = vunpack.c.l.s8.bf16 %v7920
    %v8039 = vunpack.c.h.s8.bf16 %v7919
    %v8040 = vunpack.c.h.s8.bf16 %v7920
    %v8041 = vunpack.c.l.s8.bf16 %v7921
    %v8042 = vunpack.c.l.s8.bf16 %v7922
    %v8043 = vunpack.c.h.s8.bf16 %v7921
    %v8044 = vunpack.c.h.s8.bf16 %v7922
    %v8045 = vunpack.c.l.s8.bf16 %v7923
    %v8046 = vunpack.c.l.s8.bf16 %v7924
    %v8047 = vunpack.c.h.s8.bf16 %v7923
    %v8048 = vunpack.c.h.s8.bf16 %v7924
    %v8049 = vunpack.c.l.s8.bf16 %v7925
    %v8050 = vunpack.c.l.s8.bf16 %v7926
    %v8051 = vunpack.c.h.s8.bf16 %v7925
    %v8052 = vunpack.c.h.s8.bf16 %v7926
    %v8053 = vunpack.c.l.s8.bf16 %v7927
    %v8054 = vunpack.c.l.s8.bf16 %v7928
    %v8055 = vunpack.c.h.s8.bf16 %v7927
    %v8056 = vunpack.c.h.s8.bf16 %v7928
    %v8057 = vpack.c.bf16 %v7613, %v7605
    %v8058 = vpack.c.bf16 %v7614, %v7606
    %v8059 = vpack.c.bf16 %v7615, %v7607
    %v8060 = vpack.c.bf16 %v7616, %v7608
    %v8061 = vpack.c.bf16 %v7617, %v7609
    %v8062 = vpack.c.bf16 %v7618, %v7610
    %v8063 = vpack.c.bf16 %v7619, %v7611
    %v8064 = vpack.c.bf16 %v7620, %v7612
    %v8065 = vpack.c.bf16 %v7629, %v7621
    %v8066 = vpack.c.bf16 %v7630, %v7622
    %v8067 = vpack.c.bf16 %v7631, %v7623
    %v8068 = vpack.c.bf16 %v7632, %v7624
    %v8069 = vpack.c.bf16 %v7633, %v7625
    %v8070 = vpack.c.bf16 %v7634, %v7626
    %v8071 = vpack.c.bf16 %v7635, %v7627
    %v8072 = vpack.c.bf16 %v7636, %v7628
    %v8073 = vpack.c.bf16 %v7645, %v7637
    %v8074 = vpack.c.bf16 %v7646, %v7638
    %v8075 = vpack.c.bf16 %v7647, %v7639
    %v8076 = vpack.c.bf16 %v7648, %v7640
    %v8077 = vpack.c.bf16 %v7649, %v7641
    %v8078 = vpack.c.bf16 %v7650, %v7642
    %v8079 = vpack.c.bf16 %v7651, %v7643
    %v8080 = vpack.c.bf16 %v7652, %v7644
    %v8081 = vpack.c.bf16 %v7661, %v7653
    %v8082 = vpack.c.bf16 %v7662, %v7654
    %v8083 = vpack.c.bf16 %v7663, %v7655
    %v8084 = vpack.c.bf16 %v7664, %v7656
    %v8085 = vpack.c.bf16 %v7665, %v7657
    %v8086 = vpack.c.bf16 %v7666, %v7658
    %v8087 = vpack.c.bf16 %v7667, %v7659
    %v8088 = vpack.c.bf16 %v7668, %v7660
    %v8089 = vpack.c.bf16 %v7677, %v7669
    %v8090 = vpack.c.bf16 %v7678, %v7670
    %v8091 = vpack.c.bf16 %v7679, %v7671
    %v8092 = vpack.c.bf16 %v7680, %v7672
    %v8093 = vpack.c.bf16 %v7681, %v7673
    %v8094 = vpack.c.bf16 %v7682, %v7674
    %v8095 = vpack.c.bf16 %v7683, %v7675
    %v8096 = vpack.c.bf16 %v7684, %v7676
    %v8097 = vpack.c.bf16 %v7693, %v7685
    %v8098 = vpack.c.bf16 %v7694, %v7686
    %v8099 = vpack.c.bf16 %v7695, %v7687
    %v8100 = vpack.c.bf16 %v7696, %v7688
    %v8101 = vpack.c.bf16 %v7697, %v7689
    %v8102 = vpack.c.bf16 %v7698, %v7690
    %v8103 = vpack.c.bf16 %v7699, %v7691
    %v8104 = vpack.c.bf16 %v7700, %v7692
    %v8105 = vpack.c.bf16 %v7709, %v7701
    %v8106 = vpack.c.bf16 %v7710, %v7702
    %v8107 = vpack.c.bf16 %v7711, %v7703
    %v8108 = vpack.c.bf16 %v7712, %v7704
    %v8109 = vpack.c.bf16 %v7713, %v7705
    %v8110 = vpack.c.bf16 %v7714, %v7706
    %v8111 = vpack.c.bf16 %v7715, %v7707
    %v8112 = vpack.c.bf16 %v7716, %v7708
    %v8113 = vpack.c.bf16 %v7725, %v7717
    %v8114 = vpack.c.bf16 %v7726, %v7718
    %v8115 = vpack.c.bf16 %v7727, %v7719
    %v8116 = vpack.c.bf16 %v7728, %v7720
    %v8117 = vpack.c.bf16 %v7729, %v7721
    %v8118 = vpack.c.bf16 %v7730, %v7722
    %v8119 = vpack.c.bf16 %v7731, %v7723
    %v8120 = vpack.c.bf16 %v7732, %v7724
    %v8121 = vpack.c.bf16 %v7741, %v7733
    %v8122 = vpack.c.bf16 %v7742, %v7734
    %v8123 = vpack.c.bf16 %v7743, %v7735
    %v8124 = vpack.c.bf16 %v7744, %v7736
    %v8125 = vpack.c.bf16 %v7745, %v7737
    %v8126 = vpack.c.bf16 %v7746, %v7738
    %v8127 = vpack.c.bf16 %v7747, %v7739
    %v8128 = vpack.c.bf16 %v7748, %v7740
    %v8129 = vpack.c.bf16 %v7757, %v7749
    %v8130 = vpack.c.bf16 %v7758, %v7750
    %v8131 = vpack.c.bf16 %v7759, %v7751
    %v8132 = vpack.c.bf16 %v7760, %v7752
    %v8133 = vpack.c.bf16 %v7761, %v7753
    %v8134 = vpack.c.bf16 %v7762, %v7754
    %v8135 = vpack.c.bf16 %v7763, %v7755
    %v8136 = vpack.c.bf16 %v7764, %v7756
    %v8137 = vpack.c.bf16 %v7773, %v7765
    %v8138 = vpack.c.bf16 %v7774, %v7766
    %v8139 = vpack.c.bf16 %v7775, %v7767
    %v8140 = vpack.c.bf16 %v7776, %v7768
    %v8141 = vpack.c.bf16 %v7777, %v7769
    %v8142 = vpack.c.bf16 %v7778, %v7770
    %v8143 = vpack.c.bf16 %v7779, %v7771
    %v8144 = vpack.c.bf16 %v7780, %v7772
    %v8145 = vpack.c.bf16 %v7789, %v7781
    %v8146 = vpack.c.bf16 %v7790, %v7782
    %v8147 = vpack.c.bf16 %v7791, %v7783
    %v8148 = vpack.c.bf16 %v7792, %v7784
    %v8149 = vpack.c.bf16 %v7793, %v7785
    %v8150 = vpack.c.bf16 %v7794, %v7786
    %v8151 = vpack.c.bf16 %v7795, %v7787
    %v8152 = vpack.c.bf16 %v7796, %v7788
    %v8153 = vpack.c.bf16 %v7805, %v7797
    %v8154 = vpack.c.bf16 %v7806, %v7798
    %v8155 = vpack.c.bf16 %v7807, %v7799
    %v8156 = vpack.c.bf16 %v7808, %v7800
    %v8157 = vpack.c.bf16 %v7809, %v7801
    %v8158 = vpack.c.bf16 %v7810, %v7802
    %v8159 = vpack.c.bf16 %v7811, %v7803
    %v8160 = vpack.c.bf16 %v7812, %v7804
    %v8161 = vpack.c.bf16 %v7821, %v7813
    %v8162 = vpack.c.bf16 %v7822, %v7814
    %v8163 = vpack.c.bf16 %v7823, %v7815
    %v8164 = vpack.c.bf16 %v7824, %v7816
    %v8165 = vpack.c.bf16 %v7825, %v7817
    %v8166 = vpack.c.bf16 %v7826, %v7818
    %v8167 = vpack.c.bf16 %v7827, %v7819
    %v8168 = vpack.c.bf16 %v7828, %v7820
    %v8169 = vpack.c.bf16 %v7837, %v7829
    %v8170 = vpack.c.bf16 %v7838, %v7830
    %v8171 = vpack.c.bf16 %v7839, %v7831
    %v8172 = vpack.c.bf16 %v7840, %v7832
    %v8173 = vpack.c.bf16 %v7841, %v7833
    %v8174 = vpack.c.bf16 %v7842, %v7834
    %v8175 = vpack.c.bf16 %v7843, %v7835
    %v8176 = vpack.c.bf16 %v7844, %v7836
    %v8177 = vpack.c.bf16 %v7853, %v7845
    %v8178 = vpack.c.bf16 %v7854, %v7846
    %v8179 = vpack.c.bf16 %v7855, %v7847
    %v8180 = vpack.c.bf16 %v7856, %v7848
    %v8181 = vpack.c.bf16 %v7857, %v7849
    %v8182 = vpack.c.bf16 %v7858, %v7850
    %v8183 = vpack.c.bf16 %v7859, %v7851
    %v8184 = vpack.c.bf16 %v7860, %v7852
    %8185 = vmatprep.subr.bf16.mxu0 %v7944
    %8186 = vmatpush1.bf16.msra.mxu0 %v7943
    %8187 = vmatprep.subr.bf16.mxu0 %v7942
    %8188 = vmatpush1.bf16.msra.mxu0 %v7941
    %8189 = vmatprep.subr.bf16.mxu0 %v7940
    %8190 = vmatpush1.bf16.msra.mxu0 %v7939
    %8191 = vmatprep.subr.bf16.mxu0 %v7938
    %8192 = vmatpush1.bf16.msra.mxu0 %v7937
    %8193 = vmatprep.subr.bf16.mxu0 %v7936
    %8194 = vmatpush1.bf16.msra.mxu0 %v7935
    %8195 = vmatprep.subr.bf16.mxu0 %v7934
    %8196 = vmatpush1.bf16.msra.mxu0 %v7933
    %8197 = vmatprep.subr.bf16.mxu0 %v7932
    %8198 = vmatpush1.bf16.msra.mxu0 %v7931
    %8199 = vmatprep.subr.bf16.mxu0 %v7930
    %8200 = vmatpush1.bf16.msra.mxu0 %v7929
    %8201 = vmatprep.subr.bf16.mxu0 %v7960
    %8202 = vmatpush2.bf16.msra.mxu0 %v7959
    %8203 = vmatprep.subr.bf16.mxu0 %v7958
    %8204 = vmatpush2.bf16.msra.mxu0 %v7957
    %8205 = vmatprep.subr.bf16.mxu0 %v7956
    %8206 = vmatpush2.bf16.msra.mxu0 %v7955
    %8207 = vmatprep.subr.bf16.mxu0 %v7954
    %8208 = vmatpush2.bf16.msra.mxu0 %v7953
    %8209 = vmatprep.subr.bf16.mxu0 %v7952
    %8210 = vmatpush2.bf16.msra.mxu0 %v7951
    %8211 = vmatprep.subr.bf16.mxu0 %v7950
    %8212 = vmatpush2.bf16.msra.mxu0 %v7949
    %8213 = vmatprep.subr.bf16.mxu0 %v7948
    %8214 = vmatpush2.bf16.msra.mxu0 %v7947
    %8215 = vmatprep.subr.bf16.mxu0 %v7946
    %8216 = vmatpush2.bf16.msra.mxu0 %v7945
    %8217 = vmatprep.mubr.bf16.mxu0 %v8058
    %8218 = vmatmul.mubr.bf16.gmra.mxu0 %v8057
    %v8219 = vpop.f32.mrf.mxu0
    %v8220 = vadd.f32 0.0, %v8219
    %v8221 = vpop.f32.mrf.mxu0
    %v8222 = vadd.f32 0.0, %v8221
    %v8223 = vpop.f32.mrf.mxu0
    %v8224 = vadd.f32 0.0, %v8223
    %v8225 = vpop.f32.mrf.mxu0
    %v8226 = vadd.f32 0.0, %v8225
    %8227 = vmatprep.mubr.bf16.mxu0 %v8066
    %8228 = vmatmul.mubr.bf16.gmra.mxu0 %v8065
    %v8229 = vpop.f32.mrf.mxu0
    %v8230 = vadd.f32 0.0, %v8229
    %v8231 = vpop.f32.mrf.mxu0
    %v8232 = vadd.f32 0.0, %v8231
    %v8233 = vpop.f32.mrf.mxu0
    %v8234 = vadd.f32 0.0, %v8233
    %v8235 = vpop.f32.mrf.mxu0
    %v8236 = vadd.f32 0.0, %v8235
    %8237 = vmatprep.mubr.bf16.mxu0 %v8074
    %8238 = vmatmul.mubr.bf16.gmra.mxu0 %v8073
    %v8239 = vpop.f32.mrf.mxu0
    %v8240 = vadd.f32 0.0, %v8239
    %v8241 = vpop.f32.mrf.mxu0
    %v8242 = vadd.f32 0.0, %v8241
    %v8243 = vpop.f32.mrf.mxu0
    %v8244 = vadd.f32 0.0, %v8243
    %v8245 = vpop.f32.mrf.mxu0
    %v8246 = vadd.f32 0.0, %v8245
    %8247 = vmatprep.mubr.bf16.mxu0 %v8082
    %8248 = vmatmul.mubr.bf16.gmra.mxu0 %v8081
    %v8249 = vpop.f32.mrf.mxu0
    %v8250 = vadd.f32 0.0, %v8249
    %v8251 = vpop.f32.mrf.mxu0
    %v8252 = vadd.f32 0.0, %v8251
    %v8253 = vpop.f32.mrf.mxu0
    %v8254 = vadd.f32 0.0, %v8253
    %v8255 = vpop.f32.mrf.mxu0
    %v8256 = vadd.f32 0.0, %v8255
    %8257 = vmatprep.mubr.bf16.mxu0 %v8090
    %8258 = vmatmul.mubr.bf16.gmra.mxu0 %v8089
    %v8259 = vpop.f32.mrf.mxu0
    %v8260 = vadd.f32 0.0, %v8259
    %v8261 = vpop.f32.mrf.mxu0
    %v8262 = vadd.f32 0.0, %v8261
    %v8263 = vpop.f32.mrf.mxu0
    %v8264 = vadd.f32 0.0, %v8263
    %v8265 = vpop.f32.mrf.mxu0
    %v8266 = vadd.f32 0.0, %v8265
    %8267 = vmatprep.mubr.bf16.mxu0 %v8098
    %8268 = vmatmul.mubr.bf16.gmra.mxu0 %v8097
    %v8269 = vpop.f32.mrf.mxu0
    %v8270 = vadd.f32 0.0, %v8269
    %v8271 = vpop.f32.mrf.mxu0
    %v8272 = vadd.f32 0.0, %v8271
    %v8273 = vpop.f32.mrf.mxu0
    %v8274 = vadd.f32 0.0, %v8273
    %v8275 = vpop.f32.mrf.mxu0
    %v8276 = vadd.f32 0.0, %v8275
    %8277 = vmatprep.mubr.bf16.mxu0 %v8106
    %8278 = vmatmul.mubr.bf16.gmra.mxu0 %v8105
    %v8279 = vpop.f32.mrf.mxu0
    %v8280 = vadd.f32 0.0, %v8279
    %v8281 = vpop.f32.mrf.mxu0
    %v8282 = vadd.f32 0.0, %v8281
    %v8283 = vpop.f32.mrf.mxu0
    %v8284 = vadd.f32 0.0, %v8283
    %v8285 = vpop.f32.mrf.mxu0
    %v8286 = vadd.f32 0.0, %v8285
    %8287 = vmatprep.mubr.bf16.mxu0 %v8114
    %8288 = vmatmul.mubr.bf16.gmra.mxu0 %v8113
    %v8289 = vpop.f32.mrf.mxu0
    %v8290 = vadd.f32 0.0, %v8289
    %v8291 = vpop.f32.mrf.mxu0
    %v8292 = vadd.f32 0.0, %v8291
    %v8293 = vpop.f32.mrf.mxu0
    %v8294 = vadd.f32 0.0, %v8293
    %v8295 = vpop.f32.mrf.mxu0
    %v8296 = vadd.f32 0.0, %v8295
    %8297 = vmatprep.mubr.bf16.mxu0 %v8122
    %8298 = vmatmul.mubr.bf16.gmra.mxu0 %v8121
    %v8299 = vpop.f32.mrf.mxu0
    %v8300 = vadd.f32 0.0, %v8299
    %v8301 = vpop.f32.mrf.mxu0
    %v8302 = vadd.f32 0.0, %v8301
    %v8303 = vpop.f32.mrf.mxu0
    %v8304 = vadd.f32 0.0, %v8303
    %v8305 = vpop.f32.mrf.mxu0
    %v8306 = vadd.f32 0.0, %v8305
    %8307 = vmatprep.mubr.bf16.mxu0 %v8130
    %8308 = vmatmul.mubr.bf16.gmra.mxu0 %v8129
    %v8309 = vpop.f32.mrf.mxu0
    %v8310 = vadd.f32 0.0, %v8309
    %v8311 = vpop.f32.mrf.mxu0
    %v8312 = vadd.f32 0.0, %v8311
    %v8313 = vpop.f32.mrf.mxu0
    %v8314 = vadd.f32 0.0, %v8313
    %v8315 = vpop.f32.mrf.mxu0
    %v8316 = vadd.f32 0.0, %v8315
    %8317 = vmatprep.mubr.bf16.mxu0 %v8138
    %8318 = vmatmul.mubr.bf16.gmra.mxu0 %v8137
    %v8319 = vpop.f32.mrf.mxu0
    %v8320 = vadd.f32 0.0, %v8319
    %v8321 = vpop.f32.mrf.mxu0
    %v8322 = vadd.f32 0.0, %v8321
    %v8323 = vpop.f32.mrf.mxu0
    %v8324 = vadd.f32 0.0, %v8323
    %v8325 = vpop.f32.mrf.mxu0
    %v8326 = vadd.f32 0.0, %v8325
    %8327 = vmatprep.mubr.bf16.mxu0 %v8146
    %8328 = vmatmul.mubr.bf16.gmra.mxu0 %v8145
    %v8329 = vpop.f32.mrf.mxu0
    %v8330 = vadd.f32 0.0, %v8329
    %v8331 = vpop.f32.mrf.mxu0
    %v8332 = vadd.f32 0.0, %v8331
    %v8333 = vpop.f32.mrf.mxu0
    %v8334 = vadd.f32 0.0, %v8333
    %v8335 = vpop.f32.mrf.mxu0
    %v8336 = vadd.f32 0.0, %v8335
    %8337 = vmatprep.mubr.bf16.mxu0 %v8154
    %8338 = vmatmul.mubr.bf16.gmra.mxu0 %v8153
    %v8339 = vpop.f32.mrf.mxu0
    %v8340 = vadd.f32 0.0, %v8339
    %v8341 = vpop.f32.mrf.mxu0
    %v8342 = vadd.f32 0.0, %v8341
    %v8343 = vpop.f32.mrf.mxu0
    %v8344 = vadd.f32 0.0, %v8343
    %v8345 = vpop.f32.mrf.mxu0
    %v8346 = vadd.f32 0.0, %v8345
    %8347 = vmatprep.mubr.bf16.mxu0 %v8162
    %8348 = vmatmul.mubr.bf16.gmra.mxu0 %v8161
    %v8349 = vpop.f32.mrf.mxu0
    %v8350 = vadd.f32 0.0, %v8349
    %v8351 = vpop.f32.mrf.mxu0
    %v8352 = vadd.f32 0.0, %v8351
    %v8353 = vpop.f32.mrf.mxu0
    %v8354 = vadd.f32 0.0, %v8353
    %v8355 = vpop.f32.mrf.mxu0
    %v8356 = vadd.f32 0.0, %v8355
    %8357 = vmatprep.mubr.bf16.mxu0 %v8170
    %8358 = vmatmul.mubr.bf16.gmra.mxu0 %v8169
    %v8359 = vpop.f32.mrf.mxu0
    %v8360 = vadd.f32 0.0, %v8359
    %v8361 = vpop.f32.mrf.mxu0
    %v8362 = vadd.f32 0.0, %v8361
    %v8363 = vpop.f32.mrf.mxu0
    %v8364 = vadd.f32 0.0, %v8363
    %v8365 = vpop.f32.mrf.mxu0
    %v8366 = vadd.f32 0.0, %v8365
    %8367 = vmatprep.mubr.bf16.mxu0 %v8178
    %8368 = vmatmul.mubr.bf16.gmra.mxu0 %v8177
    %v8369 = vpop.f32.mrf.mxu0
    %v8370 = vadd.f32 0.0, %v8369
    %v8371 = vpop.f32.mrf.mxu0
    %v8372 = vadd.f32 0.0, %v8371
    %v8373 = vpop.f32.mrf.mxu0
    %v8374 = vadd.f32 0.0, %v8373
    %v8375 = vpop.f32.mrf.mxu0
    %v8376 = vadd.f32 0.0, %v8375
    %8377 = vdwg.mxu0
    %8378 = vmatprep.subr.bf16.mxu0 %v7976
    %8379 = vmatpush1.bf16.msra.mxu0 %v7975
    %8380 = vmatprep.subr.bf16.mxu0 %v7974
    %8381 = vmatpush1.bf16.msra.mxu0 %v7973
    %8382 = vmatprep.subr.bf16.mxu0 %v7972
    %8383 = vmatpush1.bf16.msra.mxu0 %v7971
    %8384 = vmatprep.subr.bf16.mxu0 %v7970
    %8385 = vmatpush1.bf16.msra.mxu0 %v7969
    %8386 = vmatprep.subr.bf16.mxu0 %v7968
    %8387 = vmatpush1.bf16.msra.mxu0 %v7967
    %8388 = vmatprep.subr.bf16.mxu0 %v7966
    %8389 = vmatpush1.bf16.msra.mxu0 %v7965
    %8390 = vmatprep.subr.bf16.mxu0 %v7964
    %8391 = vmatpush1.bf16.msra.mxu0 %v7963
    %8392 = vmatprep.subr.bf16.mxu0 %v7962
    %8393 = vmatpush1.bf16.msra.mxu0 %v7961
    %8394 = vmatprep.subr.bf16.mxu0 %v7992
    %8395 = vmatpush2.bf16.msra.mxu0 %v7991
    %8396 = vmatprep.subr.bf16.mxu0 %v7990
    %8397 = vmatpush2.bf16.msra.mxu0 %v7989
    %8398 = vmatprep.subr.bf16.mxu0 %v7988
    %8399 = vmatpush2.bf16.msra.mxu0 %v7987
    %8400 = vmatprep.subr.bf16.mxu0 %v7986
    %8401 = vmatpush2.bf16.msra.mxu0 %v7985
    %8402 = vmatprep.subr.bf16.mxu0 %v7984
    %8403 = vmatpush2.bf16.msra.mxu0 %v7983
    %8404 = vmatprep.subr.bf16.mxu0 %v7982
    %8405 = vmatpush2.bf16.msra.mxu0 %v7981
    %8406 = vmatprep.subr.bf16.mxu0 %v7980
    %8407 = vmatpush2.bf16.msra.mxu0 %v7979
    %8408 = vmatprep.subr.bf16.mxu0 %v7978
    %8409 = vmatpush2.bf16.msra.mxu0 %v7977
    %8410 = vmatprep.mubr.bf16.mxu0 %v8060
    %8411 = vmatmul.mubr.bf16.gmra.mxu0 %v8059
    %v8412 = vpop.f32.mrf.mxu0
    %v8413 = vadd.f32 %v8220, %v8412
    %v8414 = vpop.f32.mrf.mxu0
    %v8415 = vadd.f32 %v8222, %v8414
    %v8416 = vpop.f32.mrf.mxu0
    %v8417 = vadd.f32 %v8224, %v8416
    %v8418 = vpop.f32.mrf.mxu0
    %v8419 = vadd.f32 %v8226, %v8418
    %8420 = vmatprep.mubr.bf16.mxu0 %v8068
    %8421 = vmatmul.mubr.bf16.gmra.mxu0 %v8067
    %v8422 = vpop.f32.mrf.mxu0
    %v8423 = vadd.f32 %v8230, %v8422
    %v8424 = vpop.f32.mrf.mxu0
    %v8425 = vadd.f32 %v8232, %v8424
    %v8426 = vpop.f32.mrf.mxu0
    %v8427 = vadd.f32 %v8234, %v8426
    %v8428 = vpop.f32.mrf.mxu0
    %v8429 = vadd.f32 %v8236, %v8428
    %8430 = vmatprep.mubr.bf16.mxu0 %v8076
    %8431 = vmatmul.mubr.bf16.gmra.mxu0 %v8075
    %v8432 = vpop.f32.mrf.mxu0
    %v8433 = vadd.f32 %v8240, %v8432
    %v8434 = vpop.f32.mrf.mxu0
    %v8435 = vadd.f32 %v8242, %v8434
    %v8436 = vpop.f32.mrf.mxu0
    %v8437 = vadd.f32 %v8244, %v8436
    %v8438 = vpop.f32.mrf.mxu0
    %v8439 = vadd.f32 %v8246, %v8438
    %8440 = vmatprep.mubr.bf16.mxu0 %v8084
    %8441 = vmatmul.mubr.bf16.gmra.mxu0 %v8083
    %v8442 = vpop.f32.mrf.mxu0
    %v8443 = vadd.f32 %v8250, %v8442
    %v8444 = vpop.f32.mrf.mxu0
    %v8445 = vadd.f32 %v8252, %v8444
    %v8446 = vpop.f32.mrf.mxu0
    %v8447 = vadd.f32 %v8254, %v8446
    %v8448 = vpop.f32.mrf.mxu0
    %v8449 = vadd.f32 %v8256, %v8448
    %8450 = vmatprep.mubr.bf16.mxu0 %v8092
    %8451 = vmatmul.mubr.bf16.gmra.mxu0 %v8091
    %v8452 = vpop.f32.mrf.mxu0
    %v8453 = vadd.f32 %v8260, %v8452
    %v8454 = vpop.f32.mrf.mxu0
    %v8455 = vadd.f32 %v8262, %v8454
    %v8456 = vpop.f32.mrf.mxu0
    %v8457 = vadd.f32 %v8264, %v8456
    %v8458 = vpop.f32.mrf.mxu0
    %v8459 = vadd.f32 %v8266, %v8458
    %8460 = vmatprep.mubr.bf16.mxu0 %v8100
    %8461 = vmatmul.mubr.bf16.gmra.mxu0 %v8099
    %v8462 = vpop.f32.mrf.mxu0
    %v8463 = vadd.f32 %v8270, %v8462
    %v8464 = vpop.f32.mrf.mxu0
    %v8465 = vadd.f32 %v8272, %v8464
    %v8466 = vpop.f32.mrf.mxu0
    %v8467 = vadd.f32 %v8274, %v8466
    %v8468 = vpop.f32.mrf.mxu0
    %v8469 = vadd.f32 %v8276, %v8468
    %8470 = vmatprep.mubr.bf16.mxu0 %v8108
    %8471 = vmatmul.mubr.bf16.gmra.mxu0 %v8107
    %v8472 = vpop.f32.mrf.mxu0
    %v8473 = vadd.f32 %v8280, %v8472
    %v8474 = vpop.f32.mrf.mxu0
    %v8475 = vadd.f32 %v8282, %v8474
    %v8476 = vpop.f32.mrf.mxu0
    %v8477 = vadd.f32 %v8284, %v8476
    %v8478 = vpop.f32.mrf.mxu0
    %v8479 = vadd.f32 %v8286, %v8478
    %8480 = vmatprep.mubr.bf16.mxu0 %v8116
    %8481 = vmatmul.mubr.bf16.gmra.mxu0 %v8115
    %v8482 = vpop.f32.mrf.mxu0
    %v8483 = vadd.f32 %v8290, %v8482
    %v8484 = vpop.f32.mrf.mxu0
    %v8485 = vadd.f32 %v8292, %v8484
    %v8486 = vpop.f32.mrf.mxu0
    %v8487 = vadd.f32 %v8294, %v8486
    %v8488 = vpop.f32.mrf.mxu0
    %v8489 = vadd.f32 %v8296, %v8488
    %8490 = vmatprep.mubr.bf16.mxu0 %v8124
    %8491 = vmatmul.mubr.bf16.gmra.mxu0 %v8123
    %v8492 = vpop.f32.mrf.mxu0
    %v8493 = vadd.f32 %v8300, %v8492
    %v8494 = vpop.f32.mrf.mxu0
    %v8495 = vadd.f32 %v8302, %v8494
    %v8496 = vpop.f32.mrf.mxu0
    %v8497 = vadd.f32 %v8304, %v8496
    %v8498 = vpop.f32.mrf.mxu0
    %v8499 = vadd.f32 %v8306, %v8498
    %8500 = vmatprep.mubr.bf16.mxu0 %v8132
    %8501 = vmatmul.mubr.bf16.gmra.mxu0 %v8131
    %v8502 = vpop.f32.mrf.mxu0
    %v8503 = vadd.f32 %v8310, %v8502
    %v8504 = vpop.f32.mrf.mxu0
    %v8505 = vadd.f32 %v8312, %v8504
    %v8506 = vpop.f32.mrf.mxu0
    %v8507 = vadd.f32 %v8314, %v8506
    %v8508 = vpop.f32.mrf.mxu0
    %v8509 = vadd.f32 %v8316, %v8508
    %8510 = vmatprep.mubr.bf16.mxu0 %v8140
    %8511 = vmatmul.mubr.bf16.gmra.mxu0 %v8139
    %v8512 = vpop.f32.mrf.mxu0
    %v8513 = vadd.f32 %v8320, %v8512
    %v8514 = vpop.f32.mrf.mxu0
    %v8515 = vadd.f32 %v8322, %v8514
    %v8516 = vpop.f32.mrf.mxu0
    %v8517 = vadd.f32 %v8324, %v8516
    %v8518 = vpop.f32.mrf.mxu0
    %v8519 = vadd.f32 %v8326, %v8518
    %8520 = vmatprep.mubr.bf16.mxu0 %v8148
    %8521 = vmatmul.mubr.bf16.gmra.mxu0 %v8147
    %v8522 = vpop.f32.mrf.mxu0
    %v8523 = vadd.f32 %v8330, %v8522
    %v8524 = vpop.f32.mrf.mxu0
    %v8525 = vadd.f32 %v8332, %v8524
    %v8526 = vpop.f32.mrf.mxu0
    %v8527 = vadd.f32 %v8334, %v8526
    %v8528 = vpop.f32.mrf.mxu0
    %v8529 = vadd.f32 %v8336, %v8528
    %8530 = vmatprep.mubr.bf16.mxu0 %v8156
    %8531 = vmatmul.mubr.bf16.gmra.mxu0 %v8155
    %v8532 = vpop.f32.mrf.mxu0
    %v8533 = vadd.f32 %v8340, %v8532
    %v8534 = vpop.f32.mrf.mxu0
    %v8535 = vadd.f32 %v8342, %v8534
    %v8536 = vpop.f32.mrf.mxu0
    %v8537 = vadd.f32 %v8344, %v8536
    %v8538 = vpop.f32.mrf.mxu0
    %v8539 = vadd.f32 %v8346, %v8538
    %8540 = vmatprep.mubr.bf16.mxu0 %v8164
    %8541 = vmatmul.mubr.bf16.gmra.mxu0 %v8163
    %v8542 = vpop.f32.mrf.mxu0
    %v8543 = vadd.f32 %v8350, %v8542
    %v8544 = vpop.f32.mrf.mxu0
    %v8545 = vadd.f32 %v8352, %v8544
    %v8546 = vpop.f32.mrf.mxu0
    %v8547 = vadd.f32 %v8354, %v8546
    %v8548 = vpop.f32.mrf.mxu0
    %v8549 = vadd.f32 %v8356, %v8548
    %8550 = vmatprep.mubr.bf16.mxu0 %v8172
    %8551 = vmatmul.mubr.bf16.gmra.mxu0 %v8171
    %v8552 = vpop.f32.mrf.mxu0
    %v8553 = vadd.f32 %v8360, %v8552
    %v8554 = vpop.f32.mrf.mxu0
    %v8555 = vadd.f32 %v8362, %v8554
    %v8556 = vpop.f32.mrf.mxu0
    %v8557 = vadd.f32 %v8364, %v8556
    %v8558 = vpop.f32.mrf.mxu0
    %v8559 = vadd.f32 %v8366, %v8558
    %8560 = vmatprep.mubr.bf16.mxu0 %v8180
    %8561 = vmatmul.mubr.bf16.gmra.mxu0 %v8179
    %v8562 = vpop.f32.mrf.mxu0
    %v8563 = vadd.f32 %v8370, %v8562
    %v8564 = vpop.f32.mrf.mxu0
    %v8565 = vadd.f32 %v8372, %v8564
    %v8566 = vpop.f32.mrf.mxu0
    %v8567 = vadd.f32 %v8374, %v8566
    %v8568 = vpop.f32.mrf.mxu0
    %v8569 = vadd.f32 %v8376, %v8568
    %8570 = vdwg.mxu0
    %8571 = vmatprep.subr.bf16.mxu0 %v8008
    %8572 = vmatpush1.bf16.msra.mxu0 %v8007
    %8573 = vmatprep.subr.bf16.mxu0 %v8006
    %8574 = vmatpush1.bf16.msra.mxu0 %v8005
    %8575 = vmatprep.subr.bf16.mxu0 %v8004
    %8576 = vmatpush1.bf16.msra.mxu0 %v8003
    %8577 = vmatprep.subr.bf16.mxu0 %v8002
    %8578 = vmatpush1.bf16.msra.mxu0 %v8001
    %8579 = vmatprep.subr.bf16.mxu0 %v8000
    %8580 = vmatpush1.bf16.msra.mxu0 %v7999
    %8581 = vmatprep.subr.bf16.mxu0 %v7998
    %8582 = vmatpush1.bf16.msra.mxu0 %v7997
    %8583 = vmatprep.subr.bf16.mxu0 %v7996
    %8584 = vmatpush1.bf16.msra.mxu0 %v7995
    %8585 = vmatprep.subr.bf16.mxu0 %v7994
    %8586 = vmatpush1.bf16.msra.mxu0 %v7993
    %8587 = vmatprep.subr.bf16.mxu0 %v8024
    %8588 = vmatpush2.bf16.msra.mxu0 %v8023
    %8589 = vmatprep.subr.bf16.mxu0 %v8022
    %8590 = vmatpush2.bf16.msra.mxu0 %v8021
    %8591 = vmatprep.subr.bf16.mxu0 %v8020
    %8592 = vmatpush2.bf16.msra.mxu0 %v8019
    %8593 = vmatprep.subr.bf16.mxu0 %v8018
    %8594 = vmatpush2.bf16.msra.mxu0 %v8017
    %8595 = vmatprep.subr.bf16.mxu0 %v8016
    %8596 = vmatpush2.bf16.msra.mxu0 %v8015
    %8597 = vmatprep.subr.bf16.mxu0 %v8014
    %8598 = vmatpush2.bf16.msra.mxu0 %v8013
    %8599 = vmatprep.subr.bf16.mxu0 %v8012
    %8600 = vmatpush2.bf16.msra.mxu0 %v8011
    %8601 = vmatprep.subr.bf16.mxu0 %v8010
    %8602 = vmatpush2.bf16.msra.mxu0 %v8009
    %8603 = vmatprep.mubr.bf16.mxu0 %v8062
    %8604 = vmatmul.mubr.bf16.gmra.mxu0 %v8061
    %v8605 = vpop.f32.mrf.mxu0
    %v8606 = vadd.f32 %v8413, %v8605
    %v8607 = vpop.f32.mrf.mxu0
    %v8608 = vadd.f32 %v8415, %v8607
    %v8609 = vpop.f32.mrf.mxu0
    %v8610 = vadd.f32 %v8417, %v8609
    %v8611 = vpop.f32.mrf.mxu0
    %v8612 = vadd.f32 %v8419, %v8611
    %8613 = vmatprep.mubr.bf16.mxu0 %v8070
    %8614 = vmatmul.mubr.bf16.gmra.mxu0 %v8069
    %v8615 = vpop.f32.mrf.mxu0
    %v8616 = vadd.f32 %v8423, %v8615
    %v8617 = vpop.f32.mrf.mxu0
    %v8618 = vadd.f32 %v8425, %v8617
    %v8619 = vpop.f32.mrf.mxu0
    %v8620 = vadd.f32 %v8427, %v8619
    %v8621 = vpop.f32.mrf.mxu0
    %v8622 = vadd.f32 %v8429, %v8621
    %8623 = vmatprep.mubr.bf16.mxu0 %v8078
    %8624 = vmatmul.mubr.bf16.gmra.mxu0 %v8077
    %v8625 = vpop.f32.mrf.mxu0
    %v8626 = vadd.f32 %v8433, %v8625
    %v8627 = vpop.f32.mrf.mxu0
    %v8628 = vadd.f32 %v8435, %v8627
    %v8629 = vpop.f32.mrf.mxu0
    %v8630 = vadd.f32 %v8437, %v8629
    %v8631 = vpop.f32.mrf.mxu0
    %v8632 = vadd.f32 %v8439, %v8631
    %8633 = vmatprep.mubr.bf16.mxu0 %v8086
    %8634 = vmatmul.mubr.bf16.gmra.mxu0 %v8085
    %v8635 = vpop.f32.mrf.mxu0
    %v8636 = vadd.f32 %v8443, %v8635
    %v8637 = vpop.f32.mrf.mxu0
    %v8638 = vadd.f32 %v8445, %v8637
    %v8639 = vpop.f32.mrf.mxu0
    %v8640 = vadd.f32 %v8447, %v8639
    %v8641 = vpop.f32.mrf.mxu0
    %v8642 = vadd.f32 %v8449, %v8641
    %8643 = vmatprep.mubr.bf16.mxu0 %v8094
    %8644 = vmatmul.mubr.bf16.gmra.mxu0 %v8093
    %v8645 = vpop.f32.mrf.mxu0
    %v8646 = vadd.f32 %v8453, %v8645
    %v8647 = vpop.f32.mrf.mxu0
    %v8648 = vadd.f32 %v8455, %v8647
    %v8649 = vpop.f32.mrf.mxu0
    %v8650 = vadd.f32 %v8457, %v8649
    %v8651 = vpop.f32.mrf.mxu0
    %v8652 = vadd.f32 %v8459, %v8651
    %8653 = vmatprep.mubr.bf16.mxu0 %v8102
    %8654 = vmatmul.mubr.bf16.gmra.mxu0 %v8101
    %v8655 = vpop.f32.mrf.mxu0
    %v8656 = vadd.f32 %v8463, %v8655
    %v8657 = vpop.f32.mrf.mxu0
    %v8658 = vadd.f32 %v8465, %v8657
    %v8659 = vpop.f32.mrf.mxu0
    %v8660 = vadd.f32 %v8467, %v8659
    %v8661 = vpop.f32.mrf.mxu0
    %v8662 = vadd.f32 %v8469, %v8661
    %8663 = vmatprep.mubr.bf16.mxu0 %v8110
    %8664 = vmatmul.mubr.bf16.gmra.mxu0 %v8109
    %v8665 = vpop.f32.mrf.mxu0
    %v8666 = vadd.f32 %v8473, %v8665
    %v8667 = vpop.f32.mrf.mxu0
    %v8668 = vadd.f32 %v8475, %v8667
    %v8669 = vpop.f32.mrf.mxu0
    %v8670 = vadd.f32 %v8477, %v8669
    %v8671 = vpop.f32.mrf.mxu0
    %v8672 = vadd.f32 %v8479, %v8671
    %8673 = vmatprep.mubr.bf16.mxu0 %v8118
    %8674 = vmatmul.mubr.bf16.gmra.mxu0 %v8117
    %v8675 = vpop.f32.mrf.mxu0
    %v8676 = vadd.f32 %v8483, %v8675
    %v8677 = vpop.f32.mrf.mxu0
    %v8678 = vadd.f32 %v8485, %v8677
    %v8679 = vpop.f32.mrf.mxu0
    %v8680 = vadd.f32 %v8487, %v8679
    %v8681 = vpop.f32.mrf.mxu0
    %v8682 = vadd.f32 %v8489, %v8681
    %8683 = vmatprep.mubr.bf16.mxu0 %v8126
    %8684 = vmatmul.mubr.bf16.gmra.mxu0 %v8125
    %v8685 = vpop.f32.mrf.mxu0
    %v8686 = vadd.f32 %v8493, %v8685
    %v8687 = vpop.f32.mrf.mxu0
    %v8688 = vadd.f32 %v8495, %v8687
    %v8689 = vpop.f32.mrf.mxu0
    %v8690 = vadd.f32 %v8497, %v8689
    %v8691 = vpop.f32.mrf.mxu0
    %v8692 = vadd.f32 %v8499, %v8691
    %8693 = vmatprep.mubr.bf16.mxu0 %v8134
    %8694 = vmatmul.mubr.bf16.gmra.mxu0 %v8133
    %v8695 = vpop.f32.mrf.mxu0
    %v8696 = vadd.f32 %v8503, %v8695
    %v8697 = vpop.f32.mrf.mxu0
    %v8698 = vadd.f32 %v8505, %v8697
    %v8699 = vpop.f32.mrf.mxu0
    %v8700 = vadd.f32 %v8507, %v8699
    %v8701 = vpop.f32.mrf.mxu0
    %v8702 = vadd.f32 %v8509, %v8701
    %8703 = vmatprep.mubr.bf16.mxu0 %v8142
    %8704 = vmatmul.mubr.bf16.gmra.mxu0 %v8141
    %v8705 = vpop.f32.mrf.mxu0
    %v8706 = vadd.f32 %v8513, %v8705
    %v8707 = vpop.f32.mrf.mxu0
    %v8708 = vadd.f32 %v8515, %v8707
    %v8709 = vpop.f32.mrf.mxu0
    %v8710 = vadd.f32 %v8517, %v8709
    %v8711 = vpop.f32.mrf.mxu0
    %v8712 = vadd.f32 %v8519, %v8711
    %8713 = vmatprep.mubr.bf16.mxu0 %v8150
    %8714 = vmatmul.mubr.bf16.gmra.mxu0 %v8149
    %v8715 = vpop.f32.mrf.mxu0
    %v8716 = vadd.f32 %v8523, %v8715
    %v8717 = vpop.f32.mrf.mxu0
    %v8718 = vadd.f32 %v8525, %v8717
    %v8719 = vpop.f32.mrf.mxu0
    %v8720 = vadd.f32 %v8527, %v8719
    %v8721 = vpop.f32.mrf.mxu0
    %v8722 = vadd.f32 %v8529, %v8721
    %8723 = vmatprep.mubr.bf16.mxu0 %v8158
    %8724 = vmatmul.mubr.bf16.gmra.mxu0 %v8157
    %v8725 = vpop.f32.mrf.mxu0
    %v8726 = vadd.f32 %v8533, %v8725
    %v8727 = vpop.f32.mrf.mxu0
    %v8728 = vadd.f32 %v8535, %v8727
    %v8729 = vpop.f32.mrf.mxu0
    %v8730 = vadd.f32 %v8537, %v8729
    %v8731 = vpop.f32.mrf.mxu0
    %v8732 = vadd.f32 %v8539, %v8731
    %8733 = vmatprep.mubr.bf16.mxu0 %v8166
    %8734 = vmatmul.mubr.bf16.gmra.mxu0 %v8165
    %v8735 = vpop.f32.mrf.mxu0
    %v8736 = vadd.f32 %v8543, %v8735
    %v8737 = vpop.f32.mrf.mxu0
    %v8738 = vadd.f32 %v8545, %v8737
    %v8739 = vpop.f32.mrf.mxu0
    %v8740 = vadd.f32 %v8547, %v8739
    %v8741 = vpop.f32.mrf.mxu0
    %v8742 = vadd.f32 %v8549, %v8741
    %8743 = vmatprep.mubr.bf16.mxu0 %v8174
    %8744 = vmatmul.mubr.bf16.gmra.mxu0 %v8173
    %v8745 = vpop.f32.mrf.mxu0
    %v8746 = vadd.f32 %v8553, %v8745
    %v8747 = vpop.f32.mrf.mxu0
    %v8748 = vadd.f32 %v8555, %v8747
    %v8749 = vpop.f32.mrf.mxu0
    %v8750 = vadd.f32 %v8557, %v8749
    %v8751 = vpop.f32.mrf.mxu0
    %v8752 = vadd.f32 %v8559, %v8751
    %8753 = vmatprep.mubr.bf16.mxu0 %v8182
    %8754 = vmatmul.mubr.bf16.gmra.mxu0 %v8181
    %v8755 = vpop.f32.mrf.mxu0
    %v8756 = vadd.f32 %v8563, %v8755
    %v8757 = vpop.f32.mrf.mxu0
    %v8758 = vadd.f32 %v8565, %v8757
    %v8759 = vpop.f32.mrf.mxu0
    %v8760 = vadd.f32 %v8567, %v8759
    %v8761 = vpop.f32.mrf.mxu0
    %v8762 = vadd.f32 %v8569, %v8761
    %8763 = vdwg.mxu0
    %8764 = vmatprep.subr.bf16.mxu0 %v8040
    %8765 = vmatpush1.bf16.msra.mxu0 %v8039
    %8766 = vmatprep.subr.bf16.mxu0 %v8038
    %8767 = vmatpush1.bf16.msra.mxu0 %v8037
    %8768 = vmatprep.subr.bf16.mxu0 %v8036
    %8769 = vmatpush1.bf16.msra.mxu0 %v8035
    %8770 = vmatprep.subr.bf16.mxu0 %v8034
    %8771 = vmatpush1.bf16.msra.mxu0 %v8033
    %8772 = vmatprep.subr.bf16.mxu0 %v8032
    %8773 = vmatpush1.bf16.msra.mxu0 %v8031
    %8774 = vmatprep.subr.bf16.mxu0 %v8030
    %8775 = vmatpush1.bf16.msra.mxu0 %v8029
    %8776 = vmatprep.subr.bf16.mxu0 %v8028
    %8777 = vmatpush1.bf16.msra.mxu0 %v8027
    %8778 = vmatprep.subr.bf16.mxu0 %v8026
    %8779 = vmatpush1.bf16.msra.mxu0 %v8025
    %8780 = vmatprep.subr.bf16.mxu0 %v8056
    %8781 = vmatpush2.bf16.msra.mxu0 %v8055
    %8782 = vmatprep.subr.bf16.mxu0 %v8054
    %8783 = vmatpush2.bf16.msra.mxu0 %v8053
    %8784 = vmatprep.subr.bf16.mxu0 %v8052
    %8785 = vmatpush2.bf16.msra.mxu0 %v8051
    %8786 = vmatprep.subr.bf16.mxu0 %v8050
    %8787 = vmatpush2.bf16.msra.mxu0 %v8049
    %8788 = vmatprep.subr.bf16.mxu0 %v8048
    %8789 = vmatpush2.bf16.msra.mxu0 %v8047
    %8790 = vmatprep.subr.bf16.mxu0 %v8046
    %8791 = vmatpush2.bf16.msra.mxu0 %v8045
    %8792 = vmatprep.subr.bf16.mxu0 %v8044
    %8793 = vmatpush2.bf16.msra.mxu0 %v8043
    %8794 = vmatprep.subr.bf16.mxu0 %v8042
    %8795 = vmatpush2.bf16.msra.mxu0 %v8041
    %8796 = vmatprep.mubr.bf16.mxu0 %v8064
    %8797 = vmatmul.mubr.bf16.gmra.mxu0 %v8063
    %v8798 = vpop.f32.mrf.mxu0
    %v8799 = vadd.f32 %v8606, %v8798
    %v8800 = vpop.f32.mrf.mxu0
    %v8801 = vadd.f32 %v8608, %v8800
    %v8802 = vpop.f32.mrf.mxu0
    %v8803 = vadd.f32 %v8610, %v8802
    %v8804 = vpop.f32.mrf.mxu0
    %v8805 = vadd.f32 %v8612, %v8804
    %8806 = vmatprep.mubr.bf16.mxu0 %v8072
    %8807 = vmatmul.mubr.bf16.gmra.mxu0 %v8071
    %v8808 = vpop.f32.mrf.mxu0
    %v8809 = vadd.f32 %v8616, %v8808
    %v8810 = vpop.f32.mrf.mxu0
    %v8811 = vadd.f32 %v8618, %v8810
    %v8812 = vpop.f32.mrf.mxu0
    %v8813 = vadd.f32 %v8620, %v8812
    %v8814 = vpop.f32.mrf.mxu0
    %v8815 = vadd.f32 %v8622, %v8814
    %8816 = vmatprep.mubr.bf16.mxu0 %v8080
    %8817 = vmatmul.mubr.bf16.gmra.mxu0 %v8079
    %v8818 = vpop.f32.mrf.mxu0
    %v8819 = vadd.f32 %v8626, %v8818
    %v8820 = vpop.f32.mrf.mxu0
    %v8821 = vadd.f32 %v8628, %v8820
    %v8822 = vpop.f32.mrf.mxu0
    %v8823 = vadd.f32 %v8630, %v8822
    %v8824 = vpop.f32.mrf.mxu0
    %v8825 = vadd.f32 %v8632, %v8824
    %8826 = vmatprep.mubr.bf16.mxu0 %v8088
    %8827 = vmatmul.mubr.bf16.gmra.mxu0 %v8087
    %v8828 = vpop.f32.mrf.mxu0
    %v8829 = vadd.f32 %v8636, %v8828
    %v8830 = vpop.f32.mrf.mxu0
    %v8831 = vadd.f32 %v8638, %v8830
    %v8832 = vpop.f32.mrf.mxu0
    %v8833 = vadd.f32 %v8640, %v8832
    %v8834 = vpop.f32.mrf.mxu0
    %v8835 = vadd.f32 %v8642, %v8834
    %8836 = vmatprep.mubr.bf16.mxu0 %v8096
    %8837 = vmatmul.mubr.bf16.gmra.mxu0 %v8095
    %v8838 = vpop.f32.mrf.mxu0
    %v8839 = vadd.f32 %v8646, %v8838
    %v8840 = vpop.f32.mrf.mxu0
    %v8841 = vadd.f32 %v8648, %v8840
    %v8842 = vpop.f32.mrf.mxu0
    %v8843 = vadd.f32 %v8650, %v8842
    %v8844 = vpop.f32.mrf.mxu0
    %v8845 = vadd.f32 %v8652, %v8844
    %8846 = vmatprep.mubr.bf16.mxu0 %v8104
    %8847 = vmatmul.mubr.bf16.gmra.mxu0 %v8103
    %v8848 = vpop.f32.mrf.mxu0
    %v8849 = vadd.f32 %v8656, %v8848
    %v8850 = vpop.f32.mrf.mxu0
    %v8851 = vadd.f32 %v8658, %v8850
    %v8852 = vpop.f32.mrf.mxu0
    %v8853 = vadd.f32 %v8660, %v8852
    %v8854 = vpop.f32.mrf.mxu0
    %v8855 = vadd.f32 %v8662, %v8854
    %8856 = vmatprep.mubr.bf16.mxu0 %v8112
    %8857 = vmatmul.mubr.bf16.gmra.mxu0 %v8111
    %v8858 = vpop.f32.mrf.mxu0
    %v8859 = vadd.f32 %v8666, %v8858
    %v8860 = vpop.f32.mrf.mxu0
    %v8861 = vadd.f32 %v8668, %v8860
    %v8862 = vpop.f32.mrf.mxu0
    %v8863 = vadd.f32 %v8670, %v8862
    %v8864 = vpop.f32.mrf.mxu0
    %v8865 = vadd.f32 %v8672, %v8864
    %8866 = vmatprep.mubr.bf16.mxu0 %v8120
    %8867 = vmatmul.mubr.bf16.gmra.mxu0 %v8119
    %v8868 = vpop.f32.mrf.mxu0
    %v8869 = vadd.f32 %v8676, %v8868
    %v8870 = vpop.f32.mrf.mxu0
    %v8871 = vadd.f32 %v8678, %v8870
    %v8872 = vpop.f32.mrf.mxu0
    %v8873 = vadd.f32 %v8680, %v8872
    %v8874 = vpop.f32.mrf.mxu0
    %v8875 = vadd.f32 %v8682, %v8874
    %8876 = vmatprep.mubr.bf16.mxu0 %v8128
    %8877 = vmatmul.mubr.bf16.gmra.mxu0 %v8127
    %v8878 = vpop.f32.mrf.mxu0
    %v8879 = vadd.f32 %v8686, %v8878
    %v8880 = vpop.f32.mrf.mxu0
    %v8881 = vadd.f32 %v8688, %v8880
    %v8882 = vpop.f32.mrf.mxu0
    %v8883 = vadd.f32 %v8690, %v8882
    %v8884 = vpop.f32.mrf.mxu0
    %v8885 = vadd.f32 %v8692, %v8884
    %8886 = vmatprep.mubr.bf16.mxu0 %v8136
    %8887 = vmatmul.mubr.bf16.gmra.mxu0 %v8135
    %v8888 = vpop.f32.mrf.mxu0
    %v8889 = vadd.f32 %v8696, %v8888
    %v8890 = vpop.f32.mrf.mxu0
    %v8891 = vadd.f32 %v8698, %v8890
    %v8892 = vpop.f32.mrf.mxu0
    %v8893 = vadd.f32 %v8700, %v8892
    %v8894 = vpop.f32.mrf.mxu0
    %v8895 = vadd.f32 %v8702, %v8894
    %8896 = vmatprep.mubr.bf16.mxu0 %v8144
    %8897 = vmatmul.mubr.bf16.gmra.mxu0 %v8143
    %v8898 = vpop.f32.mrf.mxu0
    %v8899 = vadd.f32 %v8706, %v8898
    %v8900 = vpop.f32.mrf.mxu0
    %v8901 = vadd.f32 %v8708, %v8900
    %v8902 = vpop.f32.mrf.mxu0
    %v8903 = vadd.f32 %v8710, %v8902
    %v8904 = vpop.f32.mrf.mxu0
    %v8905 = vadd.f32 %v8712, %v8904
    %8906 = vmatprep.mubr.bf16.mxu0 %v8152
    %8907 = vmatmul.mubr.bf16.gmra.mxu0 %v8151
    %v8908 = vpop.f32.mrf.mxu0
    %v8909 = vadd.f32 %v8716, %v8908
    %v8910 = vpop.f32.mrf.mxu0
    %v8911 = vadd.f32 %v8718, %v8910
    %v8912 = vpop.f32.mrf.mxu0
    %v8913 = vadd.f32 %v8720, %v8912
    %v8914 = vpop.f32.mrf.mxu0
    %v8915 = vadd.f32 %v8722, %v8914
    %8916 = vmatprep.mubr.bf16.mxu0 %v8160
    %8917 = vmatmul.mubr.bf16.gmra.mxu0 %v8159
    %v8918 = vpop.f32.mrf.mxu0
    %v8919 = vadd.f32 %v8726, %v8918
    %v8920 = vpop.f32.mrf.mxu0
    %v8921 = vadd.f32 %v8728, %v8920
    %v8922 = vpop.f32.mrf.mxu0
    %v8923 = vadd.f32 %v8730, %v8922
    %v8924 = vpop.f32.mrf.mxu0
    %v8925 = vadd.f32 %v8732, %v8924
    %8926 = vmatprep.mubr.bf16.mxu0 %v8168
    %8927 = vmatmul.mubr.bf16.gmra.mxu0 %v8167
    %v8928 = vpop.f32.mrf.mxu0
    %v8929 = vadd.f32 %v8736, %v8928
    %v8930 = vpop.f32.mrf.mxu0
    %v8931 = vadd.f32 %v8738, %v8930
    %v8932 = vpop.f32.mrf.mxu0
    %v8933 = vadd.f32 %v8740, %v8932
    %v8934 = vpop.f32.mrf.mxu0
    %v8935 = vadd.f32 %v8742, %v8934
    %8936 = vmatprep.mubr.bf16.mxu0 %v8176
    %8937 = vmatmul.mubr.bf16.gmra.mxu0 %v8175
    %v8938 = vpop.f32.mrf.mxu0
    %v8939 = vadd.f32 %v8746, %v8938
    %v8940 = vpop.f32.mrf.mxu0
    %v8941 = vadd.f32 %v8748, %v8940
    %v8942 = vpop.f32.mrf.mxu0
    %v8943 = vadd.f32 %v8750, %v8942
    %v8944 = vpop.f32.mrf.mxu0
    %v8945 = vadd.f32 %v8752, %v8944
    %8946 = vmatprep.mubr.bf16.mxu0 %v8184
    %8947 = vmatmul.mubr.bf16.gmra.mxu0 %v8183
    %v8948 = vpop.f32.mrf.mxu0
    %v8949 = vadd.f32 %v8756, %v8948
    %v8950 = vpop.f32.mrf.mxu0
    %v8951 = vadd.f32 %v8758, %v8950
    %v8952 = vpop.f32.mrf.mxu0
    %v8953 = vadd.f32 %v8760, %v8952
    %v8954 = vpop.f32.mrf.mxu0
    %v8955 = vadd.f32 %v8762, %v8954
    %8956 = vdwg.mxu0
    %v8957 = vld [vmem:[#allocation7 + $0x2c] sm:$0x3]
    %v8959 = vlaneseq
    %v8960 = vshrl.u32 %v8959, 7
    %v8961 = vsub.s32 0, %v8960
    %v8962 = vrot.slane %v8957, %v8961
    %v8963 = vlaneseq
    %v8964 = vshrl.u32 %v8963, 7
    %v8965 = vsub.s32 1, %v8964
    %v8966 = vrot.slane %v8957, %v8965
    %v8969 = vmul.f32 %v8799, %v8962
    %v8970 = vmul.f32 %v8801, %v8966
    %v8971 = vmul.f32 %v8803, %v8962
    %v8972 = vmul.f32 %v8805, %v8966
    %v8973 = vmul.f32 %v8809, %v8962
    %v8974 = vmul.f32 %v8811, %v8966
    %v8975 = vmul.f32 %v8813, %v8962
    %v8976 = vmul.f32 %v8815, %v8966
    %v8977 = vmul.f32 %v8819, %v8962
    %v8978 = vmul.f32 %v8821, %v8966
    %v8979 = vmul.f32 %v8823, %v8962
    %v8980 = vmul.f32 %v8825, %v8966
    %v8981 = vmul.f32 %v8829, %v8962
    %v8982 = vmul.f32 %v8831, %v8966
    %v8983 = vmul.f32 %v8833, %v8962
    %v8984 = vmul.f32 %v8835, %v8966
    %v8985 = vmul.f32 %v8839, %v8962
    %v8986 = vmul.f32 %v8841, %v8966
    %v8987 = vmul.f32 %v8843, %v8962
    %v8988 = vmul.f32 %v8845, %v8966
    %v8989 = vmul.f32 %v8849, %v8962
    %v8990 = vmul.f32 %v8851, %v8966
    %v8991 = vmul.f32 %v8853, %v8962
    %v8992 = vmul.f32 %v8855, %v8966
    %v8993 = vmul.f32 %v8859, %v8962
    %v8994 = vmul.f32 %v8861, %v8966
    %v8995 = vmul.f32 %v8863, %v8962
    %v8996 = vmul.f32 %v8865, %v8966
    %v8997 = vmul.f32 %v8869, %v8962
    %v8998 = vmul.f32 %v8871, %v8966
    %v8999 = vmul.f32 %v8873, %v8962
    %v9000 = vmul.f32 %v8875, %v8966
    %v9001 = vmul.f32 %v8879, %v8962
    %v9002 = vmul.f32 %v8881, %v8966
    %v9003 = vmul.f32 %v8883, %v8962
    %v9004 = vmul.f32 %v8885, %v8966
    %v9005 = vmul.f32 %v8889, %v8962
    %v9006 = vmul.f32 %v8891, %v8966
    %v9007 = vmul.f32 %v8893, %v8962
    %v9008 = vmul.f32 %v8895, %v8966
    %v9009 = vmul.f32 %v8899, %v8962
    %v9010 = vmul.f32 %v8901, %v8966
    %v9011 = vmul.f32 %v8903, %v8962
    %v9012 = vmul.f32 %v8905, %v8966
    %v9013 = vmul.f32 %v8909, %v8962
    %v9014 = vmul.f32 %v8911, %v8966
    %v9015 = vmul.f32 %v8913, %v8962
    %v9016 = vmul.f32 %v8915, %v8966
    %v9017 = vmul.f32 %v8919, %v8962
    %v9018 = vmul.f32 %v8921, %v8966
    %v9019 = vmul.f32 %v8923, %v8962
    %v9020 = vmul.f32 %v8925, %v8966
    %v9021 = vmul.f32 %v8929, %v8962
    %v9022 = vmul.f32 %v8931, %v8966
    %v9023 = vmul.f32 %v8933, %v8962
    %v9024 = vmul.f32 %v8935, %v8966
    %v9025 = vmul.f32 %v8939, %v8962
    %v9026 = vmul.f32 %v8941, %v8966
    %v9027 = vmul.f32 %v8943, %v8962
    %v9028 = vmul.f32 %v8945, %v8966
    %v9029 = vmul.f32 %v8949, %v8962
    %v9030 = vmul.f32 %v8951, %v8966
    %v9031 = vmul.f32 %v8953, %v8962
    %v9032 = vmul.f32 %v8955, %v8966
    %v9033 = vld [vmem:[#allocation7 + $0x2e] sm:$0x3]
    %v9035 = vlaneseq
    %v9036 = vshrl.u32 %v9035, 7
    %v9037 = vsub.s32 0, %v9036
    %v9038 = vrot.slane %v9033, %v9037
    %v9039 = vlaneseq
    %v9040 = vshrl.u32 %v9039, 7
    %v9041 = vsub.s32 1, %v9040
    %v9042 = vrot.slane %v9033, %v9041
    %v9045 = vadd.f32 %v8969, %v9038
    %v9046 = vadd.f32 %v8970, %v9042
    %v9047 = vadd.f32 %v8971, %v9038
    %v9048 = vadd.f32 %v8972, %v9042
    %v9049 = vadd.f32 %v8973, %v9038
    %v9050 = vadd.f32 %v8974, %v9042
    %v9051 = vadd.f32 %v8975, %v9038
    %v9052 = vadd.f32 %v8976, %v9042
    %v9053 = vadd.f32 %v8977, %v9038
    %v9054 = vadd.f32 %v8978, %v9042
    %v9055 = vadd.f32 %v8979, %v9038
    %v9056 = vadd.f32 %v8980, %v9042
    %v9057 = vadd.f32 %v8981, %v9038
    %v9058 = vadd.f32 %v8982, %v9042
    %v9059 = vadd.f32 %v8983, %v9038
    %v9060 = vadd.f32 %v8984, %v9042
    %v9061 = vadd.f32 %v8985, %v9038
    %v9062 = vadd.f32 %v8986, %v9042
    %v9063 = vadd.f32 %v8987, %v9038
    %v9064 = vadd.f32 %v8988, %v9042
    %v9065 = vadd.f32 %v8989, %v9038
    %v9066 = vadd.f32 %v8990, %v9042
    %v9067 = vadd.f32 %v8991, %v9038
    %v9068 = vadd.f32 %v8992, %v9042
    %v9069 = vadd.f32 %v8993, %v9038
    %v9070 = vadd.f32 %v8994, %v9042
    %v9071 = vadd.f32 %v8995, %v9038
    %v9072 = vadd.f32 %v8996, %v9042
    %v9073 = vadd.f32 %v8997, %v9038
    %v9074 = vadd.f32 %v8998, %v9042
    %v9075 = vadd.f32 %v8999, %v9038
    %v9076 = vadd.f32 %v9000, %v9042
    %v9077 = vadd.f32 %v9001, %v9038
    %v9078 = vadd.f32 %v9002, %v9042
    %v9079 = vadd.f32 %v9003, %v9038
    %v9080 = vadd.f32 %v9004, %v9042
    %v9081 = vadd.f32 %v9005, %v9038
    %v9082 = vadd.f32 %v9006, %v9042
    %v9083 = vadd.f32 %v9007, %v9038
    %v9084 = vadd.f32 %v9008, %v9042
    %v9085 = vadd.f32 %v9009, %v9038
    %v9086 = vadd.f32 %v9010, %v9042
    %v9087 = vadd.f32 %v9011, %v9038
    %v9088 = vadd.f32 %v9012, %v9042
    %v9089 = vadd.f32 %v9013, %v9038
    %v9090 = vadd.f32 %v9014, %v9042
    %v9091 = vadd.f32 %v9015, %v9038
    %v9092 = vadd.f32 %v9016, %v9042
    %v9093 = vadd.f32 %v9017, %v9038
    %v9094 = vadd.f32 %v9018, %v9042
    %v9095 = vadd.f32 %v9019, %v9038
    %v9096 = vadd.f32 %v9020, %v9042
    %v9097 = vadd.f32 %v9021, %v9038
    %v9098 = vadd.f32 %v9022, %v9042
    %v9099 = vadd.f32 %v9023, %v9038
    %v9100 = vadd.f32 %v9024, %v9042
    %v9101 = vadd.f32 %v9025, %v9038
    %v9102 = vadd.f32 %v9026, %v9042
    %v9103 = vadd.f32 %v9027, %v9038
    %v9104 = vadd.f32 %v9028, %v9042
    %v9105 = vadd.f32 %v9029, %v9038
    %v9106 = vadd.f32 %v9030, %v9042
    %v9107 = vadd.f32 %v9031, %v9038
    %v9108 = vadd.f32 %v9032, %v9042
    %v9109 = vtanh.pop %v9045
    %v9110 = vtanh.pop %v9046
    %v9111 = vtanh.pop %v9047
    %v9112 = vtanh.pop %v9048
    %v9113 = vtanh.pop %v9049
    %v9114 = vtanh.pop %v9050
    %v9115 = vtanh.pop %v9051
    %v9116 = vtanh.pop %v9052
    %v9117 = vtanh.pop %v9053
    %v9118 = vtanh.pop %v9054
    %v9119 = vtanh.pop %v9055
    %v9120 = vtanh.pop %v9056
    %v9121 = vtanh.pop %v9057
    %v9122 = vtanh.pop %v9058
    %v9123 = vtanh.pop %v9059
    %v9124 = vtanh.pop %v9060
    %v9125 = vtanh.pop %v9061
    %v9126 = vtanh.pop %v9062
    %v9127 = vtanh.pop %v9063
    %v9128 = vtanh.pop %v9064
    %v9129 = vtanh.pop %v9065
    %v9130 = vtanh.pop %v9066
    %v9131 = vtanh.pop %v9067
    %v9132 = vtanh.pop %v9068
    %v9133 = vtanh.pop %v9069
    %v9134 = vtanh.pop %v9070
    %v9135 = vtanh.pop %v9071
    %v9136 = vtanh.pop %v9072
    %v9137 = vtanh.pop %v9073
    %v9138 = vtanh.pop %v9074
    %v9139 = vtanh.pop %v9075
    %v9140 = vtanh.pop %v9076
    %v9141 = vtanh.pop %v9077
    %v9142 = vtanh.pop %v9078
    %v9143 = vtanh.pop %v9079
    %v9144 = vtanh.pop %v9080
    %v9145 = vtanh.pop %v9081
    %v9146 = vtanh.pop %v9082
    %v9147 = vtanh.pop %v9083
    %v9148 = vtanh.pop %v9084
    %v9149 = vtanh.pop %v9085
    %v9150 = vtanh.pop %v9086
    %v9151 = vtanh.pop %v9087
    %v9152 = vtanh.pop %v9088
    %v9153 = vtanh.pop %v9089
    %v9154 = vtanh.pop %v9090
    %v9155 = vtanh.pop %v9091
    %v9156 = vtanh.pop %v9092
    %v9157 = vtanh.pop %v9093
    %v9158 = vtanh.pop %v9094
    %v9159 = vtanh.pop %v9095
    %v9160 = vtanh.pop %v9096
    %v9161 = vtanh.pop %v9097
    %v9162 = vtanh.pop %v9098
    %v9163 = vtanh.pop %v9099
    %v9164 = vtanh.pop %v9100
    %v9165 = vtanh.pop %v9101
    %v9166 = vtanh.pop %v9102
    %v9167 = vtanh.pop %v9103
    %v9168 = vtanh.pop %v9104
    %v9169 = vtanh.pop %v9105
    %v9170 = vtanh.pop %v9106
    %v9171 = vtanh.pop %v9107
    %v9172 = vtanh.pop %v9108
    %9173 = vst [vmem:[%s7] sm:$0xff] %v9109
    %9174 = vst [vmem:[%s7 + $0x8] sm:$0xff] %v9110
    %9175 = vst [vmem:[%s7 + $0x10] sm:$0xff] %v9111
    %9176 = vst [vmem:[%s7 + $0x18] sm:$0xff] %v9112
    %9177 = vst [vmem:[%s7 + $0x20] sm:$0xff] %v9113
    %9178 = vst [vmem:[%s7 + $0x28] sm:$0xff] %v9114
    %9179 = vst [vmem:[%s7 + $0x30] sm:$0xff] %v9115
    %9180 = vst [vmem:[%s7 + $0x38] sm:$0xff] %v9116
    %9181 = vst [vmem:[%s7 + $0x40] sm:$0xff] %v9117
    %9182 = vst [vmem:[%s7 + $0x48] sm:$0xff] %v9118
    %9183 = vst [vmem:[%s7 + $0x50] sm:$0xff] %v9119
    %9184 = vst [vmem:[%s7 + $0x58] sm:$0xff] %v9120
    %9185 = vst [vmem:[%s7 + $0x60] sm:$0xff] %v9121
    %9186 = vst [vmem:[%s7 + $0x68] sm:$0xff] %v9122
    %9187 = vst [vmem:[%s7 + $0x70] sm:$0xff] %v9123
    %9188 = vst [vmem:[%s7 + $0x78] sm:$0xff] %v9124
    %9189 = vst [vmem:[%s7 + $0x80] sm:$0xff] %v9125
    %9190 = vst [vmem:[%s7 + $0x88] sm:$0xff] %v9126
    %9191 = vst [vmem:[%s7 + $0x90] sm:$0xff] %v9127
    %9192 = vst [vmem:[%s7 + $0x98] sm:$0xff] %v9128
    %9193 = vst [vmem:[%s7 + $0xa0] sm:$0xff] %v9129
    %9194 = vst [vmem:[%s7 + $0xa8] sm:$0xff] %v9130
    %9195 = vst [vmem:[%s7 + $0xb0] sm:$0xff] %v9131
    %9196 = vst [vmem:[%s7 + $0xb8] sm:$0xff] %v9132
    %9197 = vst [vmem:[%s7 + $0xc0] sm:$0xff] %v9133
    %9198 = vst [vmem:[%s7 + $0xc8] sm:$0xff] %v9134
    %9199 = vst [vmem:[%s7 + $0xd0] sm:$0xff] %v9135
    %9200 = vst [vmem:[%s7 + $0xd8] sm:$0xff] %v9136
    %9201 = vst [vmem:[%s7 + $0xe0] sm:$0xff] %v9137
    %9202 = vst [vmem:[%s7 + $0xe8] sm:$0xff] %v9138
    %9203 = vst [vmem:[%s7 + $0xf0] sm:$0xff] %v9139
    %9204 = vst [vmem:[%s7 + $0xf8] sm:$0xff] %v9140
    %9205 = vst [vmem:[%s7 + $0x100] sm:$0xff] %v9141
    %9206 = vst [vmem:[%s7 + $0x108] sm:$0xff] %v9142
    %9207 = vst [vmem:[%s7 + $0x110] sm:$0xff] %v9143
    %9208 = vst [vmem:[%s7 + $0x118] sm:$0xff] %v9144
    %9209 = vst [vmem:[%s7 + $0x120] sm:$0xff] %v9145
    %9210 = vst [vmem:[%s7 + $0x128] sm:$0xff] %v9146
    %9211 = vst [vmem:[%s7 + $0x130] sm:$0xff] %v9147
    %9212 = vst [vmem:[%s7 + $0x138] sm:$0xff] %v9148
    %9213 = vst [vmem:[%s7 + $0x140] sm:$0xff] %v9149
    %9214 = vst [vmem:[%s7 + $0x148] sm:$0xff] %v9150
    %9215 = vst [vmem:[%s7 + $0x150] sm:$0xff] %v9151
    %9216 = vst [vmem:[%s7 + $0x158] sm:$0xff] %v9152
    %9217 = vst [vmem:[%s7 + $0x160] sm:$0xff] %v9153
    %9218 = vst [vmem:[%s7 + $0x168] sm:$0xff] %v9154
    %9219 = vst [vmem:[%s7 + $0x170] sm:$0xff] %v9155
    %9220 = vst [vmem:[%s7 + $0x178] sm:$0xff] %v9156
    %9221 = vst [vmem:[%s7 + $0x180] sm:$0xff] %v9157
    %9222 = vst [vmem:[%s7 + $0x188] sm:$0xff] %v9158
    %9223 = vst [vmem:[%s7 + $0x190] sm:$0xff] %v9159
    %9224 = vst [vmem:[%s7 + $0x198] sm:$0xff] %v9160
    %9225 = vst [vmem:[%s7 + $0x1a0] sm:$0xff] %v9161
    %9226 = vst [vmem:[%s7 + $0x1a8] sm:$0xff] %v9162
    %9227 = vst [vmem:[%s7 + $0x1b0] sm:$0xff] %v9163
    %9228 = vst [vmem:[%s7 + $0x1b8] sm:$0xff] %v9164
    %9229 = vst [vmem:[%s7 + $0x1c0] sm:$0xff] %v9165
    %9230 = vst [vmem:[%s7 + $0x1c8] sm:$0xff] %v9166
    %9231 = vst [vmem:[%s7 + $0x1d0] sm:$0xff] %v9167
    %9232 = vst [vmem:[%s7 + $0x1d8] sm:$0xff] %v9168
    %9233 = vst [vmem:[%s7 + $0x1e0] sm:$0xff] %v9169
    %9234 = vst [vmem:[%s7 + $0x1e8] sm:$0xff] %v9170
    %9235 = vst [vmem:[%s7 + $0x1f0] sm:$0xff] %v9171
    %9236 = vst [vmem:[%s7 + $0x1f8] sm:$0xff] %v9172
    // Predicated region
    $region38: #{generator_forward.1} parent=1 // pred_check
      _
    $region39: #{generator_forward.1} parent=1 // pred_check_branch
      %9238 = sbr.rel (0) target = $region41
    $region40: #{generator_forward.1} parent=1 // pred_region
      _
    $region41: #{generator_forward.1} parent=1 // pred_fallthru
      _
    // Predicated region
    $region42: #{generator_forward.1} parent=1 // pred_check
      _
    $region43: #{generator_forward.1} parent=1 // pred_check_branch
      %9240 = sbr.rel (0) target = $region45
    $region44: #{generator_forward.1} parent=1 // pred_region
      _
    $region45: #{generator_forward.1} parent=1 // pred_fallthru
      _
    %9241 = vsyncpa [#allocation6], 1
    %9242 = vsyncpa [#allocation8], 1
  %9243 = vsyncmov [#allocation4]
  %s9244 = vpop.sfrf %9243
  %p9245 = scmp.eq.s32.totalorder %s9244, 0
  %p9246 = pneg %p9245
  %9248 = shalt.err (%p9246)
  %s9249 = scalar_lea.sflag [#allocation4], 1
  %9250 = vsyncmov %s9249
  %s9251 = vpop.sfrf %9250
  %p9252 = scmp.eq.s32.totalorder %s9251, 0
  %p9253 = pneg %p9252
  %9255 = shalt.err (%p9253)

</llo_original>
